<compile_context>
chip_gen: v7x
topology: tpu7x:2x2x1
jax: 0.10.0
libtpu: 0.0.40
codegen_flags: <defaults>
</compile_context>

<pallas_src>
import math
import functools

import jax
import jax.numpy as jnp
import numpy as np
from jax.experimental import pallas as pl
from jax.experimental.pallas import tpu as pltpu


_VMEM_BUDGET = 36 * 1024 * 1024   # target per-kernel working set (fits v7x 64 MiB)
_VMEM_LIMIT = 48 * 1024 * 1024    # scoped VMEM limit requested from the compiler


def _round_up(x, m):
    return (x + m - 1) // m * m


def _pad_dim(x, axis, new_size):
    pad = new_size - x.shape[axis]
    if pad == 0:
        return x
    widths = [(0, 0)] * x.ndim
    widths[axis] = (0, pad)
    return jnp.pad(x, widths)


# ----------------------------- shared math helpers ----------------------------

def _layernorm(x, eps=1e-6):
    # torch.nn.LayerNorm(elementwise_affine=False): biased variance over last dim.
    x = x.astype(jnp.float32)
    mu = jnp.mean(x, axis=-1, keepdims=True)
    var = jnp.mean(jnp.square(x - mu), axis=-1, keepdims=True)
    return (x - mu) * jax.lax.rsqrt(var + eps)


def _gelu_tanh(x):
    # torch.nn.GELU(approximate='tanh')
    c = math.sqrt(2.0 / math.pi)
    return 0.5 * x * (1.0 + jnp.tanh(c * (x + 0.044715 * x * x * x)))


def _rms_norm(x, w, eps=1e-6):
    # torch RMSNorm: f32 statistics, then elementwise weight.
    xf = x.astype(jnp.float32)
    var = jnp.mean(jnp.square(xf), axis=-1, keepdims=True)
    return xf * jax.lax.rsqrt(var + eps) * w


# ------------------------- kernel 1: fused linear family ----------------------
# out = [residual +] [gate *] act( [LN*(1+scale)+shift](x) @ W + b )
# refs: x, [scale, shift], W, b, [gate], [residual], out, [ln-cache scratch]

def _fused_linear_kernel(*refs, fuse_ln, act, has_gate, has_res):
    it = iter(refs)
    x_ref = next(it)
    if fuse_ln:
        scale_ref = next(it)
        shift_ref = next(it)
    w_ref = next(it)
    b_ref = next(it)
    gate_ref = next(it) if has_gate else None
    res_ref = next(it) if has_res else None
    o_ref = next(it)
    xln_ref = next(it) if fuse_ln else None

    if fuse_ln:
        # The x block is invariant over the innermost (output-tile) grid axis:
        # compute LayerNorm + modulation once per s-tile and cache it in VMEM.
        @pl.when(pl.program_id(2) == 0)
        def _():
            xn = _layernorm(x_ref[0])                       # f32 stats
            xn = xn * (1.0 + scale_ref[0]) + shift_ref[0]
            xln_ref[...] = xn.astype(xln_ref.dtype)
        x = xln_ref[...]                                    # bf16 for the MXU
    else:
        x = x_ref[0].astype(w_ref.dtype)

    y = jnp.dot(x, w_ref[...], preferred_element_type=jnp.float32) + b_ref[0]
    if act == "gelu":
        y = _gelu_tanh(y)
    if has_res:
        r = res_ref[0].astype(jnp.float32)
        y = (r + gate_ref[0] * y) if has_gate else (r + y)
    elif has_gate:
        y = gate_ref[0] * y
    o_ref[0] = y.astype(o_ref.dtype)


def fused_linear(x, w, b, *, scale=None, shift=None, gate=None, residual=None,
                 act=None, out_dtype=jnp.bfloat16, block_s=512, block_n=512):
    """Tiled (B, S, K) @ (K, N) with optional fused AdaLN, GELU, (gated) residual."""
    B, S, K = x.shape
    Kw, N = w.shape
    assert Kw == K
    fuse_ln = scale is not None
    has_gate = gate is not None
    has_res = residual is not None

    # Output tile: full width if small / non-dividing, else block_n (>=128-lane dense).
    if N > block_n and N % block_n == 0:
        tn = block_n
    else:
        tn = N

    out_isz = jnp.dtype(out_dtype).itemsize
    res_isz = residual.dtype.itemsize if has_res else 0

    def _est(ts_):
        return (ts_ * K * x.dtype.itemsize * 2            # x block (double buffered)
                + K * tn * 2 * 2                           # bf16 weight tile
                + ts_ * tn * out_isz * 2                   # output tile
                + ts_ * tn * res_isz * 2                   # residual tile
                + (ts_ * K * 2 if fuse_ln else 0)          # LN cache scratch
                + ts_ * max(tn, K) * 4 * 2)                # f32 temporaries

    if S <= block_s:
        ts = S
    else:
        ts = block_s
        while ts >= 256 and _est(ts) > _VMEM_BUDGET:
            ts //= 2
    Sp = _round_up(S, ts)

    xp = _pad_dim(x, 1, Sp)
    inputs = [xp]
    in_specs = [pl.BlockSpec((1, ts, K), lambda b_, s_, n_: (b_, s_, 0))]
    if fuse_ln:
        inputs.append(scale.reshape(B, 1, K).astype(jnp.float32))
        in_specs.append(pl.BlockSpec((1, 1, K), lambda b_, s_, n_: (b_, 0, 0)))
        inputs.append(shift.reshape(B, 1, K).astype(jnp.float32))
        in_specs.append(pl.BlockSpec((1, 1, K), lambda b_, s_, n_: (b_, 0, 0)))
    inputs.append(w.astype(jnp.bfloat16))
    in_specs.append(pl.BlockSpec((K, tn), lambda b_, s_, n_: (0, n_)))
    inputs.append(b.reshape(1, 1, N).astype(jnp.float32))
    in_specs.append(pl.BlockSpec((1, 1, tn), lambda b_, s_, n_: (0, 0, n_)))
    if has_gate:
        inputs.append(gate.reshape(B, 1, N).astype(jnp.float32))
        in_specs.append(pl.BlockSpec((1, 1, tn), lambda b_, s_, n_: (b_, 0, n_)))
    if has_res:
        inputs.append(_pad_dim(residual, 1, Sp))
        in_specs.append(pl.BlockSpec((1, ts, tn), lambda b_, s_, n_: (b_, s_, n_)))

    scratch = [pltpu.VMEM((ts, K), jnp.bfloat16)] if fuse_ln else []

    kernel = functools.partial(_fused_linear_kernel, fuse_ln=fuse_ln, act=act,
                               has_gate=has_gate, has_res=has_res)
    out = pl.pallas_call(
        kernel,
        out_shape=jax.ShapeDtypeStruct((B, Sp, N), out_dtype),
        grid=(B, Sp // ts, N // tn),
        in_specs=in_specs,
        out_specs=pl.BlockSpec((1, ts, tn), lambda b_, s_, n_: (b_, s_, n_)),
        scratch_shapes=scratch,
        compiler_params=pltpu.CompilerParams(
            # innermost (output-tile) axis is 'arbitrary': the LN cache scratch
            # carries state across it.
            dimension_semantics=("parallel", "parallel", "arbitrary"),
            vmem_limit_bytes=_VMEM_LIMIT),
    )(*inputs)
    return out if Sp == S else out[:, :S]


# ----------------------- kernel 2: flash multi-head attention -----------------
# q/k/v: (B, H, S, hd) bf16, softmax scale already folded into q.  Heads are
# batched in one einsum; online softmax over the KV grid axis; padded KV
# columns are masked before the softmax.

def _flash_attn_kernel(q_ref, k_ref, v_ref, o_ref, m_sc, l_sc, acc_sc,
                       *, kv_len, block_kv, mask_kv):
    kv_i = pl.program_id(2)

    @pl.when(kv_i == 0)
    def _():
        m_sc[...] = jnp.full(m_sc.shape, -jnp.inf, dtype=m_sc.dtype)
        l_sc[...] = jnp.zeros(l_sc.shape, dtype=l_sc.dtype)
        acc_sc[...] = jnp.zeros(acc_sc.shape, dtype=acc_sc.dtype)

    q = q_ref[0]                                   # (H, tq, hd)
    k = k_ref[0]                                   # (H, tk, hd)
    v = v_ref[0]

    s = jnp.einsum("hqd,hkd->hqk", q, k,
                   preferred_element_type=jnp.float32)     # (H, tq, tk)
    if mask_kv:
        col = kv_i * block_kv + jax.lax.broadcasted_iota(jnp.int32, s.shape, 2)
        s = jnp.where(col < kv_len, s, -1e30)

    m_prev = m_sc[...]
    m_new = jnp.maximum(m_prev, jnp.max(s, axis=-1, keepdims=True))
    alpha = jnp.exp(m_prev - m_new)
    p = jnp.exp(s - m_new)
    l_sc[...] = alpha * l_sc[...] + jnp.sum(p, axis=-1, keepdims=True)
    pv = jnp.einsum("hqk,hkd->hqd", p.astype(v.dtype), v,
                    preferred_element_type=jnp.float32)    # (H, tq, hd)
    acc_sc[...] = alpha * acc_sc[...] + pv
    m_sc[...] = m_new

    @pl.when(kv_i == pl.num_programs(2) - 1)
    def _():
        inv_l = pl.reciprocal(l_sc[...], approx=True)
        o_ref[0] = (acc_sc[...] * inv_l).astype(o_ref.dtype)


def flash_attention(q, k, v, *, block_q=512, block_kv=256, out_dtype=jnp.bfloat16):
    B, H, Sq, hd = q.shape
    Skv = k.shape[2]

    def _est(tq_, tk_):
        per_q = H * tq_ * hd
        per_k = H * tk_ * hd
        return (4 * per_q * 2                      # q + out blocks, double buffered
                + 4 * per_k * 2 * 2                # k + v blocks, double buffered
                + per_q * 4 + 2 * H * tq_ * 4      # f32 acc + m/l scratch
                + H * tq_ * tk_ * 6)               # f32 scores + bf16 probs

    if Sq <= block_q:
        tq = Sq
    else:
        tq = block_q
        while tq >= 256 and _est(tq, min(Skv, block_kv)) > _VMEM_BUDGET:
            tq //= 2
    if Skv <= block_kv:
        tk = Skv
    else:
        tk = block_kv
        while tk >= 256 and _est(tq, tk) > _VMEM_BUDGET:
            tk //= 2

    Sqp = _round_up(Sq, tq)
    Skvp = _round_up(Skv, tk)
    qp = _pad_dim(q, 2, Sqp)
    kp = _pad_dim(k, 2, Skvp)
    vp = _pad_dim(v, 2, Skvp)
    mask_kv = Skvp != Skv

    kernel = functools.partial(_flash_attn_kernel, kv_len=Skv, block_kv=tk,
                               mask_kv=mask_kv)
    out = pl.pallas_call(
        kernel,
        out_shape=jax.ShapeDtypeStruct((B, H, Sqp, hd), out_dtype),
        grid=(B, Sqp // tq, Skvp // tk),
        in_specs=[
            pl.BlockSpec((1, H, tq, hd), lambda b, qi, ki: (b, 0, qi, 0)),
            pl.BlockSpec((1, H, tk, hd), lambda b, qi, ki: (b, 0, ki, 0)),
            pl.BlockSpec((1, H, tk, hd), lambda b, qi, ki: (b, 0, ki, 0)),
        ],
        out_specs=pl.BlockSpec((1, H, tq, hd), lambda b, qi, ki: (b, 0, qi, 0)),
        scratch_shapes=[
            pltpu.VMEM((H, tq, 1), jnp.float32),
            pltpu.VMEM((H, tq, 1), jnp.float32),
            pltpu.VMEM((H, tq, hd), jnp.float32),
        ],
        compiler_params=pltpu.CompilerParams(
            dimension_semantics=("parallel", "parallel", "arbitrary"),
            vmem_limit_bytes=_VMEM_LIMIT),
    )(qp, kp, vp)
    return out if Sqp == Sq else out[:, :, :Sq]


# --------------------------------- full block ---------------------------------

def joint_transformer_block_with_envmap(x_a, x_b, envmap, temb, params, num_heads):
    B, Sa, D = x_a.shape
    Sb = x_b.shape[1]
    H = num_heads
    hd = D // H
    sm_scale = 1.0 / math.sqrt(hd)
    f32 = jnp.float32
    bf16 = jnp.bfloat16

    def wT(name):
        w, b = params[name]
        return w.T, b                              # (in, out), bias

    # --- AdaLayerNorm modulation: tiny M=1 matmuls, hoisted to plain JAX ----------
    silu_t = jax.nn.silu(temb.astype(f32))
    wa, ba = params["ada_a"]
    emb_a = silu_t @ wa.T.astype(f32) + ba
    wb, bb = params["ada_b"]
    emb_b = silu_t @ wb.T.astype(f32) + bb
    sh_msa_a, sc_msa_a, g_msa_a, sh_mlp_a, sc_mlp_a, g_mlp_a = \
        [emb_a[:, i * D:(i + 1) * D] for i in range(6)]
    sh_msa_b, sc_msa_b, g_msa_b, sh_mlp_b, sc_mlp_b, g_mlp_b = \
        [emb_b[:, i * D:(i + 1) * D] for i in range(6)]

    # --- weights: (in,out); fold 1/sqrt(hd) into the joint-attention q columns ----
    w_qkv_a, b_qkv_a = wT("qkv_a")
    w_qkv_b, b_qkv_b = wT("qkv_b")
    qscale = jnp.concatenate([jnp.full((D,), sm_scale, f32), jnp.ones((2 * D,), f32)])
    w_qkv_a = w_qkv_a * qscale[None, :]
    b_qkv_a = b_qkv_a * qscale
    w_qkv_b = w_qkv_b * qscale[None, :]
    b_qkv_b = b_qkv_b * qscale

    has_env = envmap is not None
    if has_env:
        w_env_q, b_env_q = wT("env_q")
        w_proj_a = jnp.concatenate([w_qkv_a, w_env_q], axis=1)      # (D, 4D)
        b_proj_a = jnp.concatenate([b_qkv_a, b_env_q])
    else:
        w_proj_a, b_proj_a = w_qkv_a, b_qkv_a

    # --- stream a / b: LayerNorm+modulation fused into the QKV projection ---------
    y_a = fused_linear(x_a, w_proj_a, b_proj_a, scale=sc_msa_a, shift=sh_msa_a)
    qkv_b = fused_linear(x_b, w_qkv_b, b_qkv_b, scale=sc_msa_b, shift=sh_msa_b)

    # --- joint attention: one seq concat + one 5-D transpose, heads batched -------
    S = Sa + Sb
    qkv = jnp.concatenate([y_a[..., :3 * D], qkv_b], axis=1)        # (B, S, 3D) bf16
    qkv = qkv.reshape(B, S, 3, H, hd).transpose(2, 0, 3, 1, 4)       # (3, B, H, S, hd)
    attn = flash_attention(qkv[0], qkv[1], qkv[2])                   # (B, H, S, hd)
    attn = attn.transpose(0, 2, 1, 3).reshape(B, S, D)               # (B, S, D)
    attn_a, attn_b = attn[:, :Sa], attn[:, Sa:]

    # --- out projections fused with the gated residual add (bf16 residual chain) --
    w_oa, b_oa = wT("out_a")
    x_a1 = fused_linear(attn_a, w_oa, b_oa, gate=g_msa_a, residual=x_a, out_dtype=bf16)
    w_ob, b_ob = wT("out_b")
    x_b1 = fused_linear(attn_b, w_ob, b_ob, gate=g_msa_b, residual=x_b, out_dtype=bf16)

    def heads(t):   # (B, S, D) -> (B, H, S, hd)
        Bt, St, _ = t.shape
        return t.reshape(Bt, St, H, hd).transpose(0, 2, 1, 3)

    # --- envmap cross-attention (q from modulated norm_a, k/v from envmap) --------
    if has_env:
        q_env_raw = y_a[..., 3 * D:4 * D]
        wk, bk = wT("env_k")
        wv, bv = wT("env_v")
        w_env_kv = jnp.concatenate([wk, wv], axis=1)
        b_env_kv = jnp.concatenate([bk, bv])
        kv_env = fused_linear(envmap, w_env_kv, b_env_kv)            # (B, Se, 2D) bf16
        q_env = _rms_norm(q_env_raw, params["env_norm_q"] * sm_scale).astype(bf16)
        k_env = _rms_norm(kv_env[..., :D], params["env_norm_k"]).astype(bf16)
        v_env = kv_env[..., D:]
        attn_env = flash_attention(heads(q_env), heads(k_env), heads(v_env))
        attn_env = attn_env.transpose(0, 2, 1, 3).reshape(B, Sa, D)

    # --- MLP a (LN+mod+GELU fused into ff1, gated residual fused into ff2) --------
    w_f1a, b_f1a = wT("ff1_a")
    h_a = fused_linear(x_a1, w_f1a, b_f1a, scale=sc_mlp_a, shift=sh_mlp_a, act="gelu")
    w_f2a, b_f2a = wT("ff2_a")
    if has_env:
        x_a2 = fused_linear(h_a, w_f2a, b_f2a, gate=g_mlp_a, residual=x_a1,
                            out_dtype=bf16)
        # final envmap add: plain (no-gate) residual path, f32 final output
        w_eo, b_eo = wT("env_o")
        x_a_out = fused_linear(attn_env, w_eo, b_eo, residual=x_a2, out_dtype=f32)
    else:
        x_a_out = fused_linear(h_a, w_f2a, b_f2a, gate=g_mlp_a, residual=x_a1,
                               out_dtype=f32)

    # --- MLP b ---------------------------------------------------------------------
    w_f1b, b_f1b = wT("ff1_b")
    h_b = fused_linear(x_b1, w_f1b, b_f1b, scale=sc_mlp_b, shift=sh_mlp_b, act="gelu")
    w_f2b, b_f2b = wT("ff2_b")
    x_b_out = fused_linear(h_b, w_f2b, b_f2b, gate=g_mlp_b, residual=x_b1,
                           out_dtype=f32)

    return x_a_out, x_b_out


# --------------------------- pure-JAX reference (check) ------------------------

def _reference(x_a, x_b, env, temb, params, num_heads):
    D = x_a.shape[-1]
    hd = D // num_heads
    Sa = x_a.shape[1]

    def lin(x, name):
        w, b = params[name]
        return x @ w.T + b

    silu_t = jax.nn.silu(temb)
    emb_a = lin(silu_t, "ada_a")[:, None, :]
    sh_msa_a, sc_msa_a, g_msa_a, sh_mlp_a, sc_mlp_a, g_mlp_a = jnp.split(emb_a, 6, -1)
    emb_b = lin(silu_t, "ada_b")[:, None, :]
    sh_msa_b, sc_msa_b, g_msa_b, sh_mlp_b, sc_mlp_b, g_mlp_b = jnp.split(emb_b, 6, -1)

    norm_a = _layernorm(x_a) * (1 + sc_msa_a) + sh_msa_a
    norm_b = _layernorm(x_b) * (1 + sc_msa_b) + sh_msa_b

    def heads(t):
        B, S, _ = t.shape
        return t.reshape(B, S, num_heads, hd).transpose(0, 2, 1, 3)

    def unheads(t):
        B, Hh, S, d = t.shape
        return t.transpose(0, 2, 1, 3).reshape(B, S, Hh * d)

    def mha(q, k, v):
        s = jnp.einsum("bhqd,bhkd->bhqk", q, k) / math.sqrt(hd)
        p = jax.nn.softmax(s, axis=-1)
        return jnp.einsum("bhqk,bhkd->bhqd", p, v)

    # joint attention (standard MHA semantics of the xformers call), only_out_a=False
    qa, ka, va = jnp.split(lin(norm_a, "qkv_a"), 3, -1)
    qb, kb, vb = jnp.split(lin(norm_b, "qkv_b"), 3, -1)
    q = jnp.concatenate([heads(qa), heads(qb)], axis=2)
    k = jnp.concatenate([heads(ka), heads(kb)], axis=2)
    v = jnp.concatenate([heads(va), heads(vb)], axis=2)
    o = unheads(mha(q, k, v))
    attn_a = lin(o[:, :Sa], "out_a")
    attn_b = lin(o[:, Sa:], "out_b")

    # envmap cross attention
    q_e = _rms_norm(lin(norm_a, "env_q"), params["env_norm_q"])
    k_e = _rms_norm(lin(env, "env_k"), params["env_norm_k"])
    v_e = lin(env, "env_v")
    attn_env = lin(unheads(mha(heads(q_e), heads(k_e), heads(v_e))), "env_o")

    x_a = x_a + g_msa_a * attn_a
    h = _layernorm(x_a) * (1 + sc_mlp_a) + sh_mlp_a
    x_a = x_a + g_mlp_a * lin(_gelu_tanh(lin(h, "ff1_a")), "ff2_a")
    x_a = x_a + attn_env

    x_b = x_b + g_msa_b * attn_b
    h = _layernorm(x_b) * (1 + sc_mlp_b) + sh_mlp_b
    x_b = x_b + g_mlp_b * lin(_gelu_tanh(lin(h, "ff1_b")), "ff2_b")
    return x_a, x_b


# ----------------------------------- setup --------------------------------------

def init_params(key, dim):
    shapes = {
        "ada_a": (6 * dim, dim), "ada_b": (6 * dim, dim),
        "qkv_a": (3 * dim, dim), "qkv_b": (3 * dim, dim),
        "out_a": (dim, dim), "out_b": (dim, dim),
        "ff1_a": (4 * dim, dim), "ff2_a": (dim, 4 * dim),
        "ff1_b": (4 * dim, dim), "ff2_b": (dim, 4 * dim),
        "env_q": (dim, dim), "env_k": (dim, dim),
        "env_v": (dim, dim), "env_o": (dim, dim),
    }
    keys = jax.random.split(key, len(shapes) + 2)
    params = {}
    for k_, (name, (of, inf)) in zip(keys[:len(shapes)], shapes.items()):
        k1, k2 = jax.random.split(k_)
        params[name] = (jax.random.normal(k1, (of, inf), jnp.float32) * 0.02,
                        jax.random.normal(k2, (of,), jnp.float32) * 0.02)
    params["env_norm_q"] = 1.0 + 0.1 * jax.random.normal(keys[-2], (dim,), jnp.float32)
    params["env_norm_k"] = 1.0 + 0.1 * jax.random.normal(keys[-1], (dim,), jnp.float32)
    return params


if __name__ == "__main__":
    B, Sa, Sb, Se, D, H = 2, 8, 8, 8, 32, 2

    key = jax.random.PRNGKey(0)
    k1, k2, k3, k4, kp = jax.random.split(key, 5)
    hidden_states_a = jax.random.normal(k1, (B, Sa, D), jnp.float32)
    hidden_states_b = jax.random.normal(k2, (B, Sb, D), jnp.float32)
    hidden_states_envmap = jax.random.normal(k3, (B, Se, D), jnp.float32)
    temb = jax.random.normal(k4, (B, D), jnp.float32)
    params = init_params(kp, D)

    fwd = jax.jit(functools.partial(joint_transformer_block_with_envmap, num_heads=H))
    out_a, out_b = fwd(hidden_states_a, hidden_states_b, hidden_states_envmap, temb,
                       params)
    out_a = jax.block_until_ready(out_a)
    out_b = jax.block_until_ready(out_b)

    ref_a, ref_b = _reference(hidden_states_a, hidden_states_b, hidden_states_envmap,
                              temb, params, num_heads=H)
    # bf16 MXU operands + bf16 residual chain (f32 accumulation / stats)
    # -> loosened tolerance vs the f32 reference.
    np.testing.assert_allclose(np.asarray(out_a), np.asarray(ref_a), rtol=3e-2, atol=3e-2)
    np.testing.assert_allclose(np.asarray(out_b), np.asarray(ref_b), rtol=3e-2, atol=3e-2)

    # --- extra check: padded / multi-tile flash-attention path (KV mask active) ---
    kq1, kq2, kq3 = jax.random.split(jax.random.PRNGKey(1), 3)
    qf = jax.random.normal(kq1, (1, 2, 20, 16), jnp.float32)
    kf = jax.random.normal(kq2, (1, 2, 12, 16), jnp.float32)
    vf = jax.random.normal(kq3, (1, 2, 12, 16), jnp.float32)
    of = flash_attention(qf.astype(jnp.bfloat16), kf.astype(jnp.bfloat16),
                         vf.astype(jnp.bfloat16), block_q=8, block_kv=8)
    of = jax.block_until_ready(of)
    s_ref = jnp.einsum("bhqd,bhkd->bhqk", qf, kf)
    o_ref = jnp.einsum("bhqk,bhkd->bhqd", jax.nn.softmax(s_ref, -1), vf)
    np.testing.assert_allclose(np.asarray(of, dtype=np.float32), np.asarray(o_ref),
                               rtol=2e-2, atol=2e-2)

    # --- extra check: padded / multi-n-tile fused_linear path (LN cache reuse) ----
    kx, kw, kb2, ks1, ks2 = jax.random.split(jax.random.PRNGKey(2), 5)
    xt = jax.random.normal(kx, (1, 20, 32), jnp.float32)
    wt = jax.random.normal(kw, (32, 256), jnp.float32) * 0.05
    bt = jax.random.normal(kb2, (256,), jnp.float32) * 0.05
    sct = jax.random.normal(ks1, (1, 32), jnp.float32) * 0.1
    sht = jax.random.normal(ks2, (1, 32), jnp.float32) * 0.1
    ot = fused_linear(xt, wt, bt, scale=sct, shift=sht, act="gelu",
                      block_s=8, block_n=128, out_dtype=jnp.float32)
    ot = jax.block_until_ready(ot)
    xn = _layernorm(xt) * (1 + sct[:, None, :]) + sht[:, None, :]
    o_ref2 = _gelu_tanh(xn @ wt + bt)
    np.testing.assert_allclose(np.asarray(ot), np.asarray(o_ref2), rtol=2e-2, atol=2e-2)

    print("KERNEL_OK")
</pallas_src>

<mosaic_0001>
module attributes {stable_mosaic.version = 11 : i64} {
  func.func @_fused_linear_kernel(%arg0: i32, %arg1: i32, %arg2: i32, %arg3: memref<1x8x32xf32, #tpu.memory_space<vmem>>, %arg4: memref<1x1x32xf32, #tpu.memory_space<vmem>>, %arg5: memref<1x1x32xf32, #tpu.memory_space<vmem>>, %arg6: memref<32x128xbf16, #tpu.memory_space<vmem>>, %arg7: memref<1x1x128xf32, #tpu.memory_space<vmem>>, %arg8: memref<1x8x128xbf16, #tpu.memory_space<vmem>>, %arg9: memref<8x32xbf16, #tpu.memory_space<vmem>>) attributes {dimension_semantics = [#tpu.dimension_semantics<parallel>, #tpu.dimension_semantics<parallel>, #tpu.dimension_semantics<arbitrary>], iteration_bounds = array<i64: 2, 1, 1>, scalar_prefetch = 0 : i64, scratch_operands = 1 : i64, tpu.core_type = #tpu.core_type<tc>, window_params = [{transform_indices = @transform_0, window_bounds = array<i64: 1, 8, 32>}, {transform_indices = @transform_1, window_bounds = array<i64: 1, 1, 32>}, {transform_indices = @transform_2, window_bounds = array<i64: 1, 1, 32>}, {transform_indices = @transform_3, window_bounds = array<i64: 32, 128>}, {transform_indices = @transform_4, window_bounds = array<i64: 1, 1, 128>}, {transform_indices = @transform_5, window_bounds = array<i64: 1, 8, 128>}]} {
    %c0_i32 = arith.constant 0 : i32
    %0 = arith.cmpi eq, %arg2, %c0_i32 : i32
    %1 = arith.extui %0 : i1 to i32
    %c0_i32_0 = arith.constant 0 : i32
    %2 = arith.cmpi ne, %1, %c0_i32_0 : i32
    scf.if %2 {
      %c0_10 = arith.constant 0 : index
      %c0_11 = arith.constant 0 : index
      %c0_12 = arith.constant 0 : index
      %14 = vector.load %arg3[%c0_10, %c0_11, %c0_12] : memref<1x8x32xf32, #tpu.memory_space<vmem>>, vector<1x8x32xf32>
      %15 = vector.shape_cast %14 : vector<1x8x32xf32> to vector<8x32xf32>
      %cst_13 = arith.constant dense<0.000000e+00> : vector<8xf32>
      %16 = vector.multi_reduction <add>, %15, %cst_13 [1] : vector<8x32xf32> to vector<8xf32>
      %17 = vector.shape_cast %16 : vector<8xf32> to vector<8x1xf32>
      %cst_14 = arith.constant 3.200000e+01 : f32
      %18 = vector.broadcast %cst_14 : f32 to vector<8x1xf32>
      %19 = arith.divf %17, %18 : vector<8x1xf32>
      %20 = vector.broadcast %19 : vector<8x1xf32> to vector<8x32xf32>
      %21 = arith.subf %15, %20 : vector<8x32xf32>
      %22 = arith.mulf %21, %21 : vector<8x32xf32>
      %cst_15 = arith.constant dense<0.000000e+00> : vector<8xf32>
      %23 = vector.multi_reduction <add>, %22, %cst_15 [1] : vector<8x32xf32> to vector<8xf32>
      %24 = vector.shape_cast %23 : vector<8xf32> to vector<8x1xf32>
      %cst_16 = arith.constant 3.200000e+01 : f32
      %25 = vector.broadcast %cst_16 : f32 to vector<8x1xf32>
      %26 = arith.divf %24, %25 : vector<8x1xf32>
      %27 = vector.broadcast %19 : vector<8x1xf32> to vector<8x32xf32>
      %28 = arith.subf %15, %27 : vector<8x32xf32>
      %cst_17 = arith.constant 9.99999997E-7 : f32
      %29 = vector.broadcast %cst_17 : f32 to vector<8x1xf32>
      %30 = arith.addf %26, %29 : vector<8x1xf32>
      %31 = math.rsqrt %30 : vector<8x1xf32>
      %32 = vector.broadcast %31 : vector<8x1xf32> to vector<8x32xf32>
      %33 = arith.mulf %28, %32 : vector<8x32xf32>
      %c0_18 = arith.constant 0 : index
      %c0_19 = arith.constant 0 : index
      %c0_20 = arith.constant 0 : index
      %34 = vector.load %arg4[%c0_18, %c0_19, %c0_20] : memref<1x1x32xf32, #tpu.memory_space<vmem>>, vector<1x1x32xf32>
      %35 = vector.shape_cast %34 : vector<1x1x32xf32> to vector<1x32xf32>
      %cst_21 = arith.constant 1.000000e+00 : f32
      %36 = vector.broadcast %cst_21 : f32 to vector<1x32xf32>
      %37 = arith.addf %36, %35 : vector<1x32xf32>
      %38 = vector.broadcast %37 : vector<1x32xf32> to vector<8x32xf32>
      %39 = arith.mulf %33, %38 : vector<8x32xf32>
      %c0_22 = arith.constant 0 : index
      %c0_23 = arith.constant 0 : index
      %c0_24 = arith.constant 0 : index
      %40 = vector.load %arg5[%c0_22, %c0_23, %c0_24] : memref<1x1x32xf32, #tpu.memory_space<vmem>>, vector<1x1x32xf32>
      %41 = vector.shape_cast %40 : vector<1x1x32xf32> to vector<1x32xf32>
      %42 = vector.broadcast %41 : vector<1x32xf32> to vector<8x32xf32>
      %43 = arith.addf %39, %42 : vector<8x32xf32>
      %44 = arith.truncf %43 : vector<8x32xf32> to vector<8x32xbf16>
      %c0_25 = arith.constant 0 : index
      %c0_26 = arith.constant 0 : index
      %45 = vector.load %arg9[%c0_25, %c0_26] : memref<8x32xbf16, #tpu.memory_space<vmem>>, vector<8x32xbf16>
      tpu.vector_store %arg9[%c0_25, %c0_26], %44 {strides = array<i32>} : memref<8x32xbf16, #tpu.memory_space<vmem>>, vector<8x32xbf16>,
    } else {
    }
    %c0 = arith.constant 0 : index
    %c0_1 = arith.constant 0 : index
    %3 = vector.load %arg9[%c0, %c0_1] : memref<8x32xbf16, #tpu.memory_space<vmem>>, vector<8x32xbf16>
    %c0_2 = arith.constant 0 : index
    %c0_3 = arith.constant 0 : index
    %4 = vector.load %arg6[%c0_2, %c0_3] : memref<32x128xbf16, #tpu.memory_space<vmem>>, vector<32x128xbf16>
    %cst = arith.constant dense<0.000000e+00> : vector<8x128xf32>
    %5 = tpu.matmul %3, %4, %cst {dimension_numbers = #tpu.dot_dimension_numbers<[1], [0], [0], [1], [0, 0, 1, 1], [], []>} : vector<8x32xbf16>, vector<32x128xbf16>, vector<8x128xf32> -> vector<8x128xf32>
    %c0_4 = arith.constant 0 : index
    %c0_5 = arith.constant 0 : index
    %c0_6 = arith.constant 0 : index
    %6 = vector.load %arg7[%c0_4, %c0_5, %c0_6] : memref<1x1x128xf32, #tpu.memory_space<vmem>>, vector<1x1x128xf32>
    %7 = vector.shape_cast %6 : vector<1x1x128xf32> to vector<1x128xf32>
    %8 = vector.broadcast %7 : vector<1x128xf32> to vector<8x128xf32>
    %9 = arith.addf %5, %8 : vector<8x128xf32>
    %10 = arith.truncf %9 : vector<8x128xf32> to vector<8x128xbf16>
    %c0_7 = arith.constant 0 : index
    %c0_8 = arith.constant 0 : index
    %c0_9 = arith.constant 0 : index
    %11 = vector.load %arg8[%c0_7, %c0_8, %c0_9] : memref<1x8x128xbf16, #tpu.memory_space<vmem>>, vector<1x8x128xbf16>
    %12 = vector.shape_cast %11 : vector<1x8x128xbf16> to vector<8x128xbf16>
    %13 = vector.shape_cast %10 : vector<8x128xbf16> to vector<1x8x128xbf16>
    tpu.vector_store %arg8[%c0_7, %c0_8, %c0_9], %13 {strides = array<i32>} : memref<1x8x128xbf16, #tpu.memory_space<vmem>>, vector<1x8x128xbf16>,
    return
  }
  func.func @transform_0(%arg0: i32, %arg1: i32, %arg2: i32) -> (i32, i32, i32) {
    %c0_i32 = arith.constant 0 : i32
    %c0_i32_0 = arith.constant 0 : i32
    return %arg0, %arg1, %c0_i32 : i32, i32, i32
  }
  func.func @transform_1(%arg0: i32, %arg1: i32, %arg2: i32) -> (i32, i32, i32) {
    %c0_i32 = arith.constant 0 : i32
    %c0_i32_0 = arith.constant 0 : i32
    %c0_i32_1 = arith.constant 0 : i32
    return %arg0, %c0_i32, %c0_i32_0 : i32, i32, i32
  }
  func.func @transform_2(%arg0: i32, %arg1: i32, %arg2: i32) -> (i32, i32, i32) {
    %c0_i32 = arith.constant 0 : i32
    %c0_i32_0 = arith.constant 0 : i32
    %c0_i32_1 = arith.constant 0 : i32
    return %arg0, %c0_i32, %c0_i32_0 : i32, i32, i32
  }
  func.func @transform_3(%arg0: i32, %arg1: i32, %arg2: i32) -> (i32, i32) {
    %c0_i32 = arith.constant 0 : i32
    %c0_i32_0 = arith.constant 0 : i32
    return %c0_i32, %arg2 : i32, i32
  }
  func.func @transform_4(%arg0: i32, %arg1: i32, %arg2: i32) -> (i32, i32, i32) {
    %c0_i32 = arith.constant 0 : i32
    %c0_i32_0 = arith.constant 0 : i32
    %c0_i32_1 = arith.constant 0 : i32
    return %c0_i32, %c0_i32_0, %arg2 : i32, i32, i32
  }
  func.func @transform_5(%arg0: i32, %arg1: i32, %arg2: i32) -> (i32, i32, i32) {
    %c0_i32 = arith.constant 0 : i32
    return %arg0, %arg1, %arg2 : i32, i32, i32
  }
}

module attributes {stable_mosaic.version = 11 : i64} {
  func.func @_fused_linear_kernel(%arg0: i32, %arg1: i32, %arg2: i32, %arg3: memref<1x8x32xf32, #tpu.memory_space<vmem>>, %arg4: memref<1x1x32xf32, #tpu.memory_space<vmem>>, %arg5: memref<1x1x32xf32, #tpu.memory_space<vmem>>, %arg6: memref<32x96xbf16, #tpu.memory_space<vmem>>, %arg7: memref<1x1x96xf32, #tpu.memory_space<vmem>>, %arg8: memref<1x8x96xbf16, #tpu.memory_space<vmem>>, %arg9: memref<8x32xbf16, #tpu.memory_space<vmem>>) attributes {dimension_semantics = [#tpu.dimension_semantics<parallel>, #tpu.dimension_semantics<parallel>, #tpu.dimension_semantics<arbitrary>], iteration_bounds = array<i64: 2, 1, 1>, scalar_prefetch = 0 : i64, scratch_operands = 1 : i64, tpu.core_type = #tpu.core_type<tc>, window_params = [{transform_indices = @transform_0, window_bounds = array<i64: 1, 8, 32>}, {transform_indices = @transform_1, window_bounds = array<i64: 1, 1, 32>}, {transform_indices = @transform_2, window_bounds = array<i64: 1, 1, 32>}, {transform_indices = @transform_3, window_bounds = array<i64: 32, 96>}, {transform_indices = @transform_4, window_bounds = array<i64: 1, 1, 96>}, {transform_indices = @transform_5, window_bounds = array<i64: 1, 8, 96>}]} {
    %c0_i32 = arith.constant 0 : i32
    %0 = arith.cmpi eq, %arg2, %c0_i32 : i32
    %1 = arith.extui %0 : i1 to i32
    %c0_i32_0 = arith.constant 0 : i32
    %2 = arith.cmpi ne, %1, %c0_i32_0 : i32
    scf.if %2 {
      %c0_10 = arith.constant 0 : index
      %c0_11 = arith.constant 0 : index
      %c0_12 = arith.constant 0 : index
      %14 = vector.load %arg3[%c0_10, %c0_11, %c0_12] : memref<1x8x32xf32, #tpu.memory_space<vmem>>, vector<1x8x32xf32>
      %15 = vector.shape_cast %14 : vector<1x8x32xf32> to vector<8x32xf32>
      %cst_13 = arith.constant dense<0.000000e+00> : vector<8xf32>
      %16 = vector.multi_reduction <add>, %15, %cst_13 [1] : vector<8x32xf32> to vector<8xf32>
      %17 = vector.shape_cast %16 : vector<8xf32> to vector<8x1xf32>
      %cst_14 = arith.constant 3.200000e+01 : f32
      %18 = vector.broadcast %cst_14 : f32 to vector<8x1xf32>
      %19 = arith.divf %17, %18 : vector<8x1xf32>
      %20 = vector.broadcast %19 : vector<8x1xf32> to vector<8x32xf32>
      %21 = arith.subf %15, %20 : vector<8x32xf32>
      %22 = arith.mulf %21, %21 : vector<8x32xf32>
      %cst_15 = arith.constant dense<0.000000e+00> : vector<8xf32>
      %23 = vector.multi_reduction <add>, %22, %cst_15 [1] : vector<8x32xf32> to vector<8xf32>
      %24 = vector.shape_cast %23 : vector<8xf32> to vector<8x1xf32>
      %cst_16 = arith.constant 3.200000e+01 : f32
      %25 = vector.broadcast %cst_16 : f32 to vector<8x1xf32>
      %26 = arith.divf %24, %25 : vector<8x1xf32>
      %27 = vector.broadcast %19 : vector<8x1xf32> to vector<8x32xf32>
      %28 = arith.subf %15, %27 : vector<8x32xf32>
      %cst_17 = arith.constant 9.99999997E-7 : f32
      %29 = vector.broadcast %cst_17 : f32 to vector<8x1xf32>
      %30 = arith.addf %26, %29 : vector<8x1xf32>
      %31 = math.rsqrt %30 : vector<8x1xf32>
      %32 = vector.broadcast %31 : vector<8x1xf32> to vector<8x32xf32>
      %33 = arith.mulf %28, %32 : vector<8x32xf32>
      %c0_18 = arith.constant 0 : index
      %c0_19 = arith.constant 0 : index
      %c0_20 = arith.constant 0 : index
      %34 = vector.load %arg4[%c0_18, %c0_19, %c0_20] : memref<1x1x32xf32, #tpu.memory_space<vmem>>, vector<1x1x32xf32>
      %35 = vector.shape_cast %34 : vector<1x1x32xf32> to vector<1x32xf32>
      %cst_21 = arith.constant 1.000000e+00 : f32
      %36 = vector.broadcast %cst_21 : f32 to vector<1x32xf32>
      %37 = arith.addf %36, %35 : vector<1x32xf32>
      %38 = vector.broadcast %37 : vector<1x32xf32> to vector<8x32xf32>
      %39 = arith.mulf %33, %38 : vector<8x32xf32>
      %c0_22 = arith.constant 0 : index
      %c0_23 = arith.constant 0 : index
      %c0_24 = arith.constant 0 : index
      %40 = vector.load %arg5[%c0_22, %c0_23, %c0_24] : memref<1x1x32xf32, #tpu.memory_space<vmem>>, vector<1x1x32xf32>
      %41 = vector.shape_cast %40 : vector<1x1x32xf32> to vector<1x32xf32>
      %42 = vector.broadcast %41 : vector<1x32xf32> to vector<8x32xf32>
      %43 = arith.addf %39, %42 : vector<8x32xf32>
      %44 = arith.truncf %43 : vector<8x32xf32> to vector<8x32xbf16>
      %c0_25 = arith.constant 0 : index
      %c0_26 = arith.constant 0 : index
      %45 = vector.load %arg9[%c0_25, %c0_26] : memref<8x32xbf16, #tpu.memory_space<vmem>>, vector<8x32xbf16>
      tpu.vector_store %arg9[%c0_25, %c0_26], %44 {strides = array<i32>} : memref<8x32xbf16, #tpu.memory_space<vmem>>, vector<8x32xbf16>,
    } else {
    }
    %c0 = arith.constant 0 : index
    %c0_1 = arith.constant 0 : index
    %3 = vector.load %arg9[%c0, %c0_1] : memref<8x32xbf16, #tpu.memory_space<vmem>>, vector<8x32xbf16>
    %c0_2 = arith.constant 0 : index
    %c0_3 = arith.constant 0 : index
    %4 = vector.load %arg6[%c0_2, %c0_3] : memref<32x96xbf16, #tpu.memory_space<vmem>>, vector<32x96xbf16>
    %cst = arith.constant dense<0.000000e+00> : vector<8x96xf32>
    %5 = tpu.matmul %3, %4, %cst {dimension_numbers = #tpu.dot_dimension_numbers<[1], [0], [0], [1], [0, 0, 1, 1], [], []>} : vector<8x32xbf16>, vector<32x96xbf16>, vector<8x96xf32> -> vector<8x96xf32>
    %c0_4 = arith.constant 0 : index
    %c0_5 = arith.constant 0 : index
    %c0_6 = arith.constant 0 : index
    %6 = vector.load %arg7[%c0_4, %c0_5, %c0_6] : memref<1x1x96xf32, #tpu.memory_space<vmem>>, vector<1x1x96xf32>
    %7 = vector.shape_cast %6 : vector<1x1x96xf32> to vector<1x96xf32>
    %8 = vector.broadcast %7 : vector<1x96xf32> to vector<8x96xf32>
    %9 = arith.addf %5, %8 : vector<8x96xf32>
    %10 = arith.truncf %9 : vector<8x96xf32> to vector<8x96xbf16>
    %c0_7 = arith.constant 0 : index
    %c0_8 = arith.constant 0 : index
    %c0_9 = arith.constant 0 : index
    %11 = vector.load %arg8[%c0_7, %c0_8, %c0_9] : memref<1x8x96xbf16, #tpu.memory_space<vmem>>, vector<1x8x96xbf16>
    %12 = vector.shape_cast %11 : vector<1x8x96xbf16> to vector<8x96xbf16>
    %13 = vector.shape_cast %10 : vector<8x96xbf16> to vector<1x8x96xbf16>
    tpu.vector_store %arg8[%c0_7, %c0_8, %c0_9], %13 {strides = array<i32>} : memref<1x8x96xbf16, #tpu.memory_space<vmem>>, vector<1x8x96xbf16>,
    return
  }
  func.func @transform_0(%arg0: i32, %arg1: i32, %arg2: i32) -> (i32, i32, i32) {
    %c0_i32 = arith.constant 0 : i32
    %c0_i32_0 = arith.constant 0 : i32
    return %arg0, %arg1, %c0_i32 : i32, i32, i32
  }
  func.func @transform_1(%arg0: i32, %arg1: i32, %arg2: i32) -> (i32, i32, i32) {
    %c0_i32 = arith.constant 0 : i32
    %c0_i32_0 = arith.constant 0 : i32
    %c0_i32_1 = arith.constant 0 : i32
    return %arg0, %c0_i32, %c0_i32_0 : i32, i32, i32
  }
  func.func @transform_2(%arg0: i32, %arg1: i32, %arg2: i32) -> (i32, i32, i32) {
    %c0_i32 = arith.constant 0 : i32
    %c0_i32_0 = arith.constant 0 : i32
    %c0_i32_1 = arith.constant 0 : i32
    return %arg0, %c0_i32, %c0_i32_0 : i32, i32, i32
  }
  func.func @transform_3(%arg0: i32, %arg1: i32, %arg2: i32) -> (i32, i32) {
    %c0_i32 = arith.constant 0 : i32
    %c0_i32_0 = arith.constant 0 : i32
    return %c0_i32, %arg2 : i32, i32
  }
  func.func @transform_4(%arg0: i32, %arg1: i32, %arg2: i32) -> (i32, i32, i32) {
    %c0_i32 = arith.constant 0 : i32
    %c0_i32_0 = arith.constant 0 : i32
    %c0_i32_1 = arith.constant 0 : i32
    return %c0_i32, %c0_i32_0, %arg2 : i32, i32, i32
  }
  func.func @transform_5(%arg0: i32, %arg1: i32, %arg2: i32) -> (i32, i32, i32) {
    %c0_i32 = arith.constant 0 : i32
    return %arg0, %arg1, %arg2 : i32, i32, i32
  }
}

module attributes {stable_mosaic.version = 11 : i64} {
  func.func @_flash_attn_kernel(%arg0: i32, %arg1: i32, %arg2: i32, %arg3: memref<1x2x16x16xbf16, #tpu.memory_space<vmem>>, %arg4: memref<1x2x16x16xbf16, #tpu.memory_space<vmem>>, %arg5: memref<1x2x16x16xbf16, #tpu.memory_space<vmem>>, %arg6: memref<1x2x16x16xbf16, #tpu.memory_space<vmem>>, %arg7: memref<2x16x1xf32, #tpu.memory_space<vmem>>, %arg8: memref<2x16x1xf32, #tpu.memory_space<vmem>>, %arg9: memref<2x16x16xf32, #tpu.memory_space<vmem>>) attributes {dimension_semantics = [#tpu.dimension_semantics<parallel>, #tpu.dimension_semantics<parallel>, #tpu.dimension_semantics<arbitrary>], iteration_bounds = array<i64: 2, 1, 1>, scalar_prefetch = 0 : i64, scratch_operands = 3 : i64, tpu.core_type = #tpu.core_type<tc>, window_params = [{transform_indices = @transform_0, window_bounds = array<i64: 1, 2, 16, 16>}, {transform_indices = @transform_1, window_bounds = array<i64: 1, 2, 16, 16>}, {transform_indices = @transform_2, window_bounds = array<i64: 1, 2, 16, 16>}, {transform_indices = @transform_3, window_bounds = array<i64: 1, 2, 16, 16>}]} {
    %c0_i32 = arith.constant 0 : i32
    %0 = arith.cmpi eq, %arg2, %c0_i32 : i32
    %1 = arith.extui %0 : i1 to i32
    %c0_i32_0 = arith.constant 0 : i32
    %2 = arith.cmpi ne, %1, %c0_i32_0 : i32
    scf.if %2 {
      %cst_35 = arith.constant 0xFF800000 : f32
      %36 = vector.broadcast %cst_35 : f32 to vector<2x16x1xf32>
      %c0_36 = arith.constant 0 : index
      %c0_37 = arith.constant 0 : index
      %c0_38 = arith.constant 0 : index
      %37 = vector.load %arg7[%c0_36, %c0_37, %c0_38] : memref<2x16x1xf32, #tpu.memory_space<vmem>>, vector<2x16x1xf32>
      tpu.vector_store %arg7[%c0_36, %c0_37, %c0_38], %36 {strides = array<i32>} : memref<2x16x1xf32, #tpu.memory_space<vmem>>, vector<2x16x1xf32>,
      %cst_39 = arith.constant 0.000000e+00 : f32
      %38 = vector.broadcast %cst_39 : f32 to vector<2x16x1xf32>
      %c0_40 = arith.constant 0 : index
      %c0_41 = arith.constant 0 : index
      %c0_42 = arith.constant 0 : index
      %39 = vector.load %arg8[%c0_40, %c0_41, %c0_42] : memref<2x16x1xf32, #tpu.memory_space<vmem>>, vector<2x16x1xf32>
      tpu.vector_store %arg8[%c0_40, %c0_41, %c0_42], %38 {strides = array<i32>} : memref<2x16x1xf32, #tpu.memory_space<vmem>>, vector<2x16x1xf32>,
      %cst_43 = arith.constant 0.000000e+00 : f32
      %40 = vector.broadcast %cst_43 : f32 to vector<2x16x16xf32>
      %c0_44 = arith.constant 0 : index
      %c0_45 = arith.constant 0 : index
      %c0_46 = arith.constant 0 : index
      %41 = vector.load %arg9[%c0_44, %c0_45, %c0_46] : memref<2x16x16xf32, #tpu.memory_space<vmem>>, vector<2x16x16xf32>
      tpu.vector_store %arg9[%c0_44, %c0_45, %c0_46], %40 {strides = array<i32>} : memref<2x16x16xf32, #tpu.memory_space<vmem>>, vector<2x16x16xf32>,
    } else {
    }
    %c0 = arith.constant 0 : index
    %c0_1 = arith.constant 0 : index
    %c0_2 = arith.constant 0 : index
    %c0_3 = arith.constant 0 : index
    %3 = vector.load %arg3[%c0, %c0_1, %c0_2, %c0_3] : memref<1x2x16x16xbf16, #tpu.memory_space<vmem>>, vector<1x2x16x16xbf16>
    %4 = vector.shape_cast %3 : vector<1x2x16x16xbf16> to vector<2x16x16xbf16>
    %c0_4 = arith.constant 0 : index
    %c0_5 = arith.constant 0 : index
    %c0_6 = arith.constant 0 : index
    %c0_7 = arith.constant 0 : index
    %5 = vector.load %arg4[%c0_4, %c0_5, %c0_6, %c0_7] : memref<1x2x16x16xbf16, #tpu.memory_space<vmem>>, vector<1x2x16x16xbf16>
    %6 = vector.shape_cast %5 : vector<1x2x16x16xbf16> to vector<2x16x16xbf16>
    %c0_8 = arith.constant 0 : index
    %c0_9 = arith.constant 0 : index
    %c0_10 = arith.constant 0 : index
    %c0_11 = arith.constant 0 : index
    %7 = vector.load %arg5[%c0_8, %c0_9, %c0_10, %c0_11] : memref<1x2x16x16xbf16, #tpu.memory_space<vmem>>, vector<1x2x16x16xbf16>
    %8 = vector.shape_cast %7 : vector<1x2x16x16xbf16> to vector<2x16x16xbf16>
    "tpu.trace_start"() <{level = 10 : i32, message = "hqd,hkd->hqk"}> : () -> ()
    %cst = arith.constant dense<0.000000e+00> : vector<2x16x16xf32>
    %9 = tpu.matmul %4, %6, %cst {dimension_numbers = #tpu.dot_dimension_numbers<[2], [2], [1], [1], [0, 0, 0, 1, 1, 1], [0], [0]>} : vector<2x16x16xbf16>, vector<2x16x16xbf16>, vector<2x16x16xf32> -> vector<2x16x16xf32>
    "tpu.trace_stop"() : () -> ()
    %c0_12 = arith.constant 0 : index
    %c0_13 = arith.constant 0 : index
    %c0_14 = arith.constant 0 : index
    %10 = vector.load %arg7[%c0_12, %c0_13, %c0_14] : memref<2x16x1xf32, #tpu.memory_space<vmem>>, vector<2x16x1xf32>
    %cst_15 = arith.constant dense<0xFF800000> : vector<2x16xf32>
    %11 = vector.multi_reduction <maximumf>, %9, %cst_15 [2] : vector<2x16x16xf32> to vector<2x16xf32>
    %12 = vector.shape_cast %11 : vector<2x16xf32> to vector<2x16x1xf32>
    %13 = arith.maximumf %10, %12 : vector<2x16x1xf32>
    %14 = arith.subf %10, %13 : vector<2x16x1xf32>
    %15 = math.exp %14 : vector<2x16x1xf32>
    %16 = vector.broadcast %13 : vector<2x16x1xf32> to vector<2x16x16xf32>
    %17 = arith.subf %9, %16 : vector<2x16x16xf32>
    %18 = math.exp %17 : vector<2x16x16xf32>
    %c0_16 = arith.constant 0 : index
    %c0_17 = arith.constant 0 : index
    %c0_18 = arith.constant 0 : index
    %19 = vector.load %arg8[%c0_16, %c0_17, %c0_18] : memref<2x16x1xf32, #tpu.memory_space<vmem>>, vector<2x16x1xf32>
    %20 = arith.mulf %15, %19 : vector<2x16x1xf32>
    %cst_19 = arith.constant dense<0.000000e+00> : vector<2x16xf32>
    %21 = vector.multi_reduction <add>, %18, %cst_19 [2] : vector<2x16x16xf32> to vector<2x16xf32>
    %22 = vector.shape_cast %21 : vector<2x16xf32> to vector<2x16x1xf32>
    %23 = arith.addf %20, %22 : vector<2x16x1xf32>
    %c0_20 = arith.constant 0 : index
    %c0_21 = arith.constant 0 : index
    %c0_22 = arith.constant 0 : index
    %24 = vector.load %arg8[%c0_20, %c0_21, %c0_22] : memref<2x16x1xf32, #tpu.memory_space<vmem>>, vector<2x16x1xf32>
    tpu.vector_store %arg8[%c0_20, %c0_21, %c0_22], %23 {strides = array<i32>} : memref<2x16x1xf32, #tpu.memory_space<vmem>>, vector<2x16x1xf32>,
    %25 = arith.truncf %18 : vector<2x16x16xf32> to vector<2x16x16xbf16>
    "tpu.trace_start"() <{level = 10 : i32, message = "hqk,hkd->hqd"}> : () -> ()
    %cst_23 = arith.constant dense<0.000000e+00> : vector<2x16x16xf32>
    %26 = tpu.matmul %25, %8, %cst_23 {dimension_numbers = #tpu.dot_dimension_numbers<[2], [1], [1], [2], [0, 0, 0, 1, 1, 2], [0], [0]>} : vector<2x16x16xbf16>, vector<2x16x16xbf16>, vector<2x16x16xf32> -> vector<2x16x16xf32>
    "tpu.trace_stop"() : () -> ()
    %c0_24 = arith.constant 0 : index
    %c0_25 = arith.constant 0 : index
    %c0_26 = arith.constant 0 : index
    %27 = vector.load %arg9[%c0_24, %c0_25, %c0_26] : memref<2x16x16xf32, #tpu.memory_space<vmem>>, vector<2x16x16xf32>
    %28 = vector.broadcast %15 : vector<2x16x1xf32> to vector<2x16x16xf32>
    %29 = arith.mulf %28, %27 : vector<2x16x16xf32>
    %30 = arith.addf %29, %26 : vector<2x16x16xf32>
    %c0_27 = arith.constant 0 : index
    %c0_28 = arith.constant 0 : index
    %c0_29 = arith.constant 0 : index
    %31 = vector.load %arg9[%c0_27, %c0_28, %c0_29] : memref<2x16x16xf32, #tpu.memory_space<vmem>>, vector<2x16x16xf32>
    tpu.vector_store %arg9[%c0_27, %c0_28, %c0_29], %30 {strides = array<i32>} : memref<2x16x16xf32, #tpu.memory_space<vmem>>, vector<2x16x16xf32>,
    %c0_30 = arith.constant 0 : index
    %c0_31 = arith.constant 0 : index
    %c0_32 = arith.constant 0 : index
    %32 = vector.load %arg7[%c0_30, %c0_31, %c0_32] : memref<2x16x1xf32, #tpu.memory_space<vmem>>, vector<2x16x1xf32>
    tpu.vector_store %arg7[%c0_30, %c0_31, %c0_32], %13 {strides = array<i32>} : memref<2x16x1xf32, #tpu.memory_space<vmem>>, vector<2x16x1xf32>,
    %c0_i32_33 = arith.constant 0 : i32
    %33 = arith.cmpi eq, %arg2, %c0_i32_33 : i32
    %34 = arith.extui %33 : i1 to i32
    %c0_i32_34 = arith.constant 0 : i32
    %35 = arith.cmpi ne, %34, %c0_i32_34 : i32
    scf.if %35 {
      %c0_35 = arith.constant 0 : index
      %c0_36 = arith.constant 0 : index
      %c0_37 = arith.constant 0 : index
      %36 = vector.load %arg8[%c0_35, %c0_36, %c0_37] : memref<2x16x1xf32, #tpu.memory_space<vmem>>, vector<2x16x1xf32>
      %37 = tpu.reciprocal %36 {approx = true} : vector<2x16x1xf32> -> vector<2x16x1xf32>
      %c0_38 = arith.constant 0 : index
      %c0_39 = arith.constant 0 : index
      %c0_40 = arith.constant 0 : index
      %38 = vector.load %arg9[%c0_38, %c0_39, %c0_40] : memref<2x16x16xf32, #tpu.memory_space<vmem>>, vector<2x16x16xf32>
      %39 = vector.broadcast %37 : vector<2x16x1xf32> to vector<2x16x16xf32>
      %40 = arith.mulf %38, %39 : vector<2x16x16xf32>
      %41 = arith.truncf %40 : vector<2x16x16xf32> to vector<2x16x16xbf16>
      %c0_41 = arith.constant 0 : index
      %c0_42 = arith.constant 0 : index
      %c0_43 = arith.constant 0 : index
      %c0_44 = arith.constant 0 : index
      %42 = vector.load %arg6[%c0_41, %c0_42, %c0_43, %c0_44] : memref<1x2x16x16xbf16, #tpu.memory_space<vmem>>, vector<1x2x16x16xbf16>
      %43 = vector.shape_cast %42 : vector<1x2x16x16xbf16> to vector<2x16x16xbf16>
      %44 = vector.shape_cast %41 : vector<2x16x16xbf16> to vector<1x2x16x16xbf16>
      tpu.vector_store %arg6[%c0_41, %c0_42, %c0_43, %c0_44], %44 {strides = array<i32>} : memref<1x2x16x16xbf16, #tpu.memory_space<vmem>>, vector<1x2x16x16xbf16>,
    } else {
    }
    return
  }
  func.func @transform_0(%arg0: i32, %arg1: i32, %arg2: i32) -> (i32, i32, i32, i32) {
    %c0_i32 = arith.constant 0 : i32
    %c0_i32_0 = arith.constant 0 : i32
    %c0_i32_1 = arith.constant 0 : i32
    return %arg0, %c0_i32, %arg1, %c0_i32_0 : i32, i32, i32, i32
  }
  func.func @transform_1(%arg0: i32, %arg1: i32, %arg2: i32) -> (i32, i32, i32, i32) {
    %c0_i32 = arith.constant 0 : i32
    %c0_i32_0 = arith.constant 0 : i32
    %c0_i32_1 = arith.constant 0 : i32
    return %arg0, %c0_i32, %arg2, %c0_i32_0 : i32, i32, i32, i32
  }
  func.func @transform_2(%arg0: i32, %arg1: i32, %arg2: i32) -> (i32, i32, i32, i32) {
    %c0_i32 = arith.constant 0 : i32
    %c0_i32_0 = arith.constant 0 : i32
    %c0_i32_1 = arith.constant 0 : i32
    return %arg0, %c0_i32, %arg2, %c0_i32_0 : i32, i32, i32, i32
  }
  func.func @transform_3(%arg0: i32, %arg1: i32, %arg2: i32) -> (i32, i32, i32, i32) {
    %c0_i32 = arith.constant 0 : i32
    %c0_i32_0 = arith.constant 0 : i32
    %c0_i32_1 = arith.constant 0 : i32
    return %arg0, %c0_i32, %arg1, %c0_i32_0 : i32, i32, i32, i32
  }
}

module attributes {stable_mosaic.version = 11 : i64} {
  func.func @_fused_linear_kernel(%arg0: i32, %arg1: i32, %arg2: i32, %arg3: memref<1x8x32xbf16, #tpu.memory_space<vmem>>, %arg4: memref<32x32xbf16, #tpu.memory_space<vmem>>, %arg5: memref<1x1x32xf32, #tpu.memory_space<vmem>>, %arg6: memref<1x1x32xf32, #tpu.memory_space<vmem>>, %arg7: memref<1x8x32xf32, #tpu.memory_space<vmem>>, %arg8: memref<1x8x32xbf16, #tpu.memory_space<vmem>>) attributes {dimension_semantics = [#tpu.dimension_semantics<parallel>, #tpu.dimension_semantics<parallel>, #tpu.dimension_semantics<arbitrary>], iteration_bounds = array<i64: 2, 1, 1>, scalar_prefetch = 0 : i64, scratch_operands = 0 : i64, tpu.core_type = #tpu.core_type<tc>, window_params = [{transform_indices = @transform_0, window_bounds = array<i64: 1, 8, 32>}, {transform_indices = @transform_1, window_bounds = array<i64: 32, 32>}, {transform_indices = @transform_2, window_bounds = array<i64: 1, 1, 32>}, {transform_indices = @transform_3, window_bounds = array<i64: 1, 1, 32>}, {transform_indices = @transform_4, window_bounds = array<i64: 1, 8, 32>}, {transform_indices = @transform_5, window_bounds = array<i64: 1, 8, 32>}]} {
    %c0 = arith.constant 0 : index
    %c0_0 = arith.constant 0 : index
    %c0_1 = arith.constant 0 : index
    %0 = vector.load %arg3[%c0, %c0_0, %c0_1] : memref<1x8x32xbf16, #tpu.memory_space<vmem>>, vector<1x8x32xbf16>
    %1 = vector.shape_cast %0 : vector<1x8x32xbf16> to vector<8x32xbf16>
    %c0_2 = arith.constant 0 : index
    %c0_3 = arith.constant 0 : index
    %2 = vector.load %arg4[%c0_2, %c0_3] : memref<32x32xbf16, #tpu.memory_space<vmem>>, vector<32x32xbf16>
    %cst = arith.constant dense<0.000000e+00> : vector<8x32xf32>
    %3 = tpu.matmul %1, %2, %cst {dimension_numbers = #tpu.dot_dimension_numbers<[1], [0], [0], [1], [0, 0, 1, 1], [], []>} : vector<8x32xbf16>, vector<32x32xbf16>, vector<8x32xf32> -> vector<8x32xf32>
    %c0_4 = arith.constant 0 : index
    %c0_5 = arith.constant 0 : index
    %c0_6 = arith.constant 0 : index
    %4 = vector.load %arg5[%c0_4, %c0_5, %c0_6] : memref<1x1x32xf32, #tpu.memory_space<vmem>>, vector<1x1x32xf32>
    %5 = vector.shape_cast %4 : vector<1x1x32xf32> to vector<1x32xf32>
    %6 = vector.broadcast %5 : vector<1x32xf32> to vector<8x32xf32>
    %7 = arith.addf %3, %6 : vector<8x32xf32>
    %c0_7 = arith.constant 0 : index
    %c0_8 = arith.constant 0 : index
    %c0_9 = arith.constant 0 : index
    %8 = vector.load %arg7[%c0_7, %c0_8, %c0_9] : memref<1x8x32xf32, #tpu.memory_space<vmem>>, vector<1x8x32xf32>
    %9 = vector.shape_cast %8 : vector<1x8x32xf32> to vector<8x32xf32>
    %c0_10 = arith.constant 0 : index
    %c0_11 = arith.constant 0 : index
    %c0_12 = arith.constant 0 : index
    %10 = vector.load %arg6[%c0_10, %c0_11, %c0_12] : memref<1x1x32xf32, #tpu.memory_space<vmem>>, vector<1x1x32xf32>
    %11 = vector.shape_cast %10 : vector<1x1x32xf32> to vector<1x32xf32>
    %12 = vector.broadcast %11 : vector<1x32xf32> to vector<8x32xf32>
    %13 = arith.mulf %12, %7 : vector<8x32xf32>
    %14 = arith.addf %9, %13 : vector<8x32xf32>
    %15 = arith.truncf %14 : vector<8x32xf32> to vector<8x32xbf16>
    %c0_13 = arith.constant 0 : index
    %c0_14 = arith.constant 0 : index
    %c0_15 = arith.constant 0 : index
    %16 = vector.load %arg8[%c0_13, %c0_14, %c0_15] : memref<1x8x32xbf16, #tpu.memory_space<vmem>>, vector<1x8x32xbf16>
    %17 = vector.shape_cast %16 : vector<1x8x32xbf16> to vector<8x32xbf16>
    %18 = vector.shape_cast %15 : vector<8x32xbf16> to vector<1x8x32xbf16>
    tpu.vector_store %arg8[%c0_13, %c0_14, %c0_15], %18 {strides = array<i32>} : memref<1x8x32xbf16, #tpu.memory_space<vmem>>, vector<1x8x32xbf16>,
    return
  }
  func.func @transform_0(%arg0: i32, %arg1: i32, %arg2: i32) -> (i32, i32, i32) {
    %c0_i32 = arith.constant 0 : i32
    %c0_i32_0 = arith.constant 0 : i32
    return %arg0, %arg1, %c0_i32 : i32, i32, i32
  }
  func.func @transform_1(%arg0: i32, %arg1: i32, %arg2: i32) -> (i32, i32) {
    %c0_i32 = arith.constant 0 : i32
    %c0_i32_0 = arith.constant 0 : i32
    return %c0_i32, %arg2 : i32, i32
  }
  func.func @transform_2(%arg0: i32, %arg1: i32, %arg2: i32) -> (i32, i32, i32) {
    %c0_i32 = arith.constant 0 : i32
    %c0_i32_0 = arith.constant 0 : i32
    %c0_i32_1 = arith.constant 0 : i32
    return %c0_i32, %c0_i32_0, %arg2 : i32, i32, i32
  }
  func.func @transform_3(%arg0: i32, %arg1: i32, %arg2: i32) -> (i32, i32, i32) {
    %c0_i32 = arith.constant 0 : i32
    %c0_i32_0 = arith.constant 0 : i32
    return %arg0, %c0_i32, %arg2 : i32, i32, i32
  }
  func.func @transform_4(%arg0: i32, %arg1: i32, %arg2: i32) -> (i32, i32, i32) {
    %c0_i32 = arith.constant 0 : i32
    return %arg0, %arg1, %arg2 : i32, i32, i32
  }
  func.func @transform_5(%arg0: i32, %arg1: i32, %arg2: i32) -> (i32, i32, i32) {
    %c0_i32 = arith.constant 0 : i32
    return %arg0, %arg1, %arg2 : i32, i32, i32
  }
}

module attributes {stable_mosaic.version = 11 : i64} {
  func.func @_fused_linear_kernel(%arg0: i32, %arg1: i32, %arg2: i32, %arg3: memref<1x8x32xbf16, #tpu.memory_space<vmem>>, %arg4: memref<1x1x32xf32, #tpu.memory_space<vmem>>, %arg5: memref<1x1x32xf32, #tpu.memory_space<vmem>>, %arg6: memref<32x128xbf16, #tpu.memory_space<vmem>>, %arg7: memref<1x1x128xf32, #tpu.memory_space<vmem>>, %arg8: memref<1x8x128xbf16, #tpu.memory_space<vmem>>, %arg9: memref<8x32xbf16, #tpu.memory_space<vmem>>) attributes {dimension_semantics = [#tpu.dimension_semantics<parallel>, #tpu.dimension_semantics<parallel>, #tpu.dimension_semantics<arbitrary>], iteration_bounds = array<i64: 2, 1, 1>, scalar_prefetch = 0 : i64, scratch_operands = 1 : i64, tpu.core_type = #tpu.core_type<tc>, window_params = [{transform_indices = @transform_0, window_bounds = array<i64: 1, 8, 32>}, {transform_indices = @transform_1, window_bounds = array<i64: 1, 1, 32>}, {transform_indices = @transform_2, window_bounds = array<i64: 1, 1, 32>}, {transform_indices = @transform_3, window_bounds = array<i64: 32, 128>}, {transform_indices = @transform_4, window_bounds = array<i64: 1, 1, 128>}, {transform_indices = @transform_5, window_bounds = array<i64: 1, 8, 128>}]} {
    %c0_i32 = arith.constant 0 : i32
    %0 = arith.cmpi eq, %arg2, %c0_i32 : i32
    %1 = arith.extui %0 : i1 to i32
    %c0_i32_0 = arith.constant 0 : i32
    %2 = arith.cmpi ne, %1, %c0_i32_0 : i32
    scf.if %2 {
      %c0_14 = arith.constant 0 : index
      %c0_15 = arith.constant 0 : index
      %c0_16 = arith.constant 0 : index
      %27 = vector.load %arg3[%c0_14, %c0_15, %c0_16] : memref<1x8x32xbf16, #tpu.memory_space<vmem>>, vector<1x8x32xbf16>
      %28 = vector.shape_cast %27 : vector<1x8x32xbf16> to vector<8x32xbf16>
      %29 = arith.extf %28 : vector<8x32xbf16> to vector<8x32xf32>
      %cst_17 = arith.constant dense<0.000000e+00> : vector<8xf32>
      %30 = vector.multi_reduction <add>, %29, %cst_17 [1] : vector<8x32xf32> to vector<8xf32>
      %31 = vector.shape_cast %30 : vector<8xf32> to vector<8x1xf32>
      %cst_18 = arith.constant 3.200000e+01 : f32
      %32 = vector.broadcast %cst_18 : f32 to vector<8x1xf32>
      %33 = arith.divf %31, %32 : vector<8x1xf32>
      %34 = vector.broadcast %33 : vector<8x1xf32> to vector<8x32xf32>
      %35 = arith.subf %29, %34 : vector<8x32xf32>
      %36 = arith.mulf %35, %35 : vector<8x32xf32>
      %cst_19 = arith.constant dense<0.000000e+00> : vector<8xf32>
      %37 = vector.multi_reduction <add>, %36, %cst_19 [1] : vector<8x32xf32> to vector<8xf32>
      %38 = vector.shape_cast %37 : vector<8xf32> to vector<8x1xf32>
      %cst_20 = arith.constant 3.200000e+01 : f32
      %39 = vector.broadcast %cst_20 : f32 to vector<8x1xf32>
      %40 = arith.divf %38, %39 : vector<8x1xf32>
      %41 = vector.broadcast %33 : vector<8x1xf32> to vector<8x32xf32>
      %42 = arith.subf %29, %41 : vector<8x32xf32>
      %cst_21 = arith.constant 9.99999997E-7 : f32
      %43 = vector.broadcast %cst_21 : f32 to vector<8x1xf32>
      %44 = arith.addf %40, %43 : vector<8x1xf32>
      %45 = math.rsqrt %44 : vector<8x1xf32>
      %46 = vector.broadcast %45 : vector<8x1xf32> to vector<8x32xf32>
      %47 = arith.mulf %42, %46 : vector<8x32xf32>
      %c0_22 = arith.constant 0 : index
      %c0_23 = arith.constant 0 : index
      %c0_24 = arith.constant 0 : index
      %48 = vector.load %arg4[%c0_22, %c0_23, %c0_24] : memref<1x1x32xf32, #tpu.memory_space<vmem>>, vector<1x1x32xf32>
      %49 = vector.shape_cast %48 : vector<1x1x32xf32> to vector<1x32xf32>
      %cst_25 = arith.constant 1.000000e+00 : f32
      %50 = vector.broadcast %cst_25 : f32 to vector<1x32xf32>
      %51 = arith.addf %50, %49 : vector<1x32xf32>
      %52 = vector.broadcast %51 : vector<1x32xf32> to vector<8x32xf32>
      %53 = arith.mulf %47, %52 : vector<8x32xf32>
      %c0_26 = arith.constant 0 : index
      %c0_27 = arith.constant 0 : index
      %c0_28 = arith.constant 0 : index
      %54 = vector.load %arg5[%c0_26, %c0_27, %c0_28] : memref<1x1x32xf32, #tpu.memory_space<vmem>>, vector<1x1x32xf32>
      %55 = vector.shape_cast %54 : vector<1x1x32xf32> to vector<1x32xf32>
      %56 = vector.broadcast %55 : vector<1x32xf32> to vector<8x32xf32>
      %57 = arith.addf %53, %56 : vector<8x32xf32>
      %58 = arith.truncf %57 : vector<8x32xf32> to vector<8x32xbf16>
      %c0_29 = arith.constant 0 : index
      %c0_30 = arith.constant 0 : index
      %59 = vector.load %arg9[%c0_29, %c0_30] : memref<8x32xbf16, #tpu.memory_space<vmem>>, vector<8x32xbf16>
      tpu.vector_store %arg9[%c0_29, %c0_30], %58 {strides = array<i32>} : memref<8x32xbf16, #tpu.memory_space<vmem>>, vector<8x32xbf16>,
    } else {
    }
    %c0 = arith.constant 0 : index
    %c0_1 = arith.constant 0 : index
    %3 = vector.load %arg9[%c0, %c0_1] : memref<8x32xbf16, #tpu.memory_space<vmem>>, vector<8x32xbf16>
    %c0_2 = arith.constant 0 : index
    %c0_3 = arith.constant 0 : index
    %4 = vector.load %arg6[%c0_2, %c0_3] : memref<32x128xbf16, #tpu.memory_space<vmem>>, vector<32x128xbf16>
    %cst = arith.constant dense<0.000000e+00> : vector<8x128xf32>
    %5 = tpu.matmul %3, %4, %cst {dimension_numbers = #tpu.dot_dimension_numbers<[1], [0], [0], [1], [0, 0, 1, 1], [], []>} : vector<8x32xbf16>, vector<32x128xbf16>, vector<8x128xf32> -> vector<8x128xf32>
    %c0_4 = arith.constant 0 : index
    %c0_5 = arith.constant 0 : index
    %c0_6 = arith.constant 0 : index
    %6 = vector.load %arg7[%c0_4, %c0_5, %c0_6] : memref<1x1x128xf32, #tpu.memory_space<vmem>>, vector<1x1x128xf32>
    %7 = vector.shape_cast %6 : vector<1x1x128xf32> to vector<1x128xf32>
    %8 = vector.broadcast %7 : vector<1x128xf32> to vector<8x128xf32>
    %9 = arith.addf %5, %8 : vector<8x128xf32>
    %cst_7 = arith.constant 5.000000e-01 : f32
    %10 = vector.broadcast %cst_7 : f32 to vector<8x128xf32>
    %11 = arith.mulf %10, %9 : vector<8x128xf32>
    %cst_8 = arith.constant 4.471500e-02 : f32
    %12 = vector.broadcast %cst_8 : f32 to vector<8x128xf32>
    %13 = arith.mulf %12, %9 : vector<8x128xf32>
    %14 = arith.mulf %13, %9 : vector<8x128xf32>
    %15 = arith.mulf %14, %9 : vector<8x128xf32>
    %16 = arith.addf %9, %15 : vector<8x128xf32>
    %cst_9 = arith.constant 0.797884583 : f32
    %17 = vector.broadcast %cst_9 : f32 to vector<8x128xf32>
    %18 = arith.mulf %17, %16 : vector<8x128xf32>
    %19 = math.tanh %18 : vector<8x128xf32>
    %cst_10 = arith.constant 1.000000e+00 : f32
    %20 = vector.broadcast %cst_10 : f32 to vector<8x128xf32>
    %21 = arith.addf %20, %19 : vector<8x128xf32>
    %22 = arith.mulf %11, %21 : vector<8x128xf32>
    %23 = arith.truncf %22 : vector<8x128xf32> to vector<8x128xbf16>
    %c0_11 = arith.constant 0 : index
    %c0_12 = arith.constant 0 : index
    %c0_13 = arith.constant 0 : index
    %24 = vector.load %arg8[%c0_11, %c0_12, %c0_13] : memref<1x8x128xbf16, #tpu.memory_space<vmem>>, vector<1x8x128xbf16>
    %25 = vector.shape_cast %24 : vector<1x8x128xbf16> to vector<8x128xbf16>
    %26 = vector.shape_cast %23 : vector<8x128xbf16> to vector<1x8x128xbf16>
    tpu.vector_store %arg8[%c0_11, %c0_12, %c0_13], %26 {strides = array<i32>} : memref<1x8x128xbf16, #tpu.memory_space<vmem>>, vector<1x8x128xbf16>,
    return
  }
  func.func @transform_0(%arg0: i32, %arg1: i32, %arg2: i32) -> (i32, i32, i32) {
    %c0_i32 = arith.constant 0 : i32
    %c0_i32_0 = arith.constant 0 : i32
    return %arg0, %arg1, %c0_i32 : i32, i32, i32
  }
  func.func @transform_1(%arg0: i32, %arg1: i32, %arg2: i32) -> (i32, i32, i32) {
    %c0_i32 = arith.constant 0 : i32
    %c0_i32_0 = arith.constant 0 : i32
    %c0_i32_1 = arith.constant 0 : i32
    return %arg0, %c0_i32, %c0_i32_0 : i32, i32, i32
  }
  func.func @transform_2(%arg0: i32, %arg1: i32, %arg2: i32) -> (i32, i32, i32) {
    %c0_i32 = arith.constant 0 : i32
    %c0_i32_0 = arith.constant 0 : i32
    %c0_i32_1 = arith.constant 0 : i32
    return %arg0, %c0_i32, %c0_i32_0 : i32, i32, i32
  }
  func.func @transform_3(%arg0: i32, %arg1: i32, %arg2: i32) -> (i32, i32) {
    %c0_i32 = arith.constant 0 : i32
    %c0_i32_0 = arith.constant 0 : i32
    return %c0_i32, %arg2 : i32, i32
  }
  func.func @transform_4(%arg0: i32, %arg1: i32, %arg2: i32) -> (i32, i32, i32) {
    %c0_i32 = arith.constant 0 : i32
    %c0_i32_0 = arith.constant 0 : i32
    %c0_i32_1 = arith.constant 0 : i32
    return %c0_i32, %c0_i32_0, %arg2 : i32, i32, i32
  }
  func.func @transform_5(%arg0: i32, %arg1: i32, %arg2: i32) -> (i32, i32, i32) {
    %c0_i32 = arith.constant 0 : i32
    return %arg0, %arg1, %arg2 : i32, i32, i32
  }
}

module attributes {stable_mosaic.version = 11 : i64} {
  func.func @_fused_linear_kernel(%arg0: i32, %arg1: i32, %arg2: i32, %arg3: memref<1x8x128xbf16, #tpu.memory_space<vmem>>, %arg4: memref<128x32xbf16, #tpu.memory_space<vmem>>, %arg5: memref<1x1x32xf32, #tpu.memory_space<vmem>>, %arg6: memref<1x1x32xf32, #tpu.memory_space<vmem>>, %arg7: memref<1x8x32xbf16, #tpu.memory_space<vmem>>, %arg8: memref<1x8x32xf32, #tpu.memory_space<vmem>>) attributes {dimension_semantics = [#tpu.dimension_semantics<parallel>, #tpu.dimension_semantics<parallel>, #tpu.dimension_semantics<arbitrary>], iteration_bounds = array<i64: 2, 1, 1>, scalar_prefetch = 0 : i64, scratch_operands = 0 : i64, tpu.core_type = #tpu.core_type<tc>, window_params = [{transform_indices = @transform_0, window_bounds = array<i64: 1, 8, 128>}, {transform_indices = @transform_1, window_bounds = array<i64: 128, 32>}, {transform_indices = @transform_2, window_bounds = array<i64: 1, 1, 32>}, {transform_indices = @transform_3, window_bounds = array<i64: 1, 1, 32>}, {transform_indices = @transform_4, window_bounds = array<i64: 1, 8, 32>}, {transform_indices = @transform_5, window_bounds = array<i64: 1, 8, 32>}]} {
    %c0 = arith.constant 0 : index
    %c0_0 = arith.constant 0 : index
    %c0_1 = arith.constant 0 : index
    %0 = vector.load %arg3[%c0, %c0_0, %c0_1] : memref<1x8x128xbf16, #tpu.memory_space<vmem>>, vector<1x8x128xbf16>
    %1 = vector.shape_cast %0 : vector<1x8x128xbf16> to vector<8x128xbf16>
    %c0_2 = arith.constant 0 : index
    %c0_3 = arith.constant 0 : index
    %2 = vector.load %arg4[%c0_2, %c0_3] : memref<128x32xbf16, #tpu.memory_space<vmem>>, vector<128x32xbf16>
    %cst = arith.constant dense<0.000000e+00> : vector<8x32xf32>
    %3 = tpu.matmul %1, %2, %cst {dimension_numbers = #tpu.dot_dimension_numbers<[1], [0], [0], [1], [0, 0, 1, 1], [], []>} : vector<8x128xbf16>, vector<128x32xbf16>, vector<8x32xf32> -> vector<8x32xf32>
    %c0_4 = arith.constant 0 : index
    %c0_5 = arith.constant 0 : index
    %c0_6 = arith.constant 0 : index
    %4 = vector.load %arg5[%c0_4, %c0_5, %c0_6] : memref<1x1x32xf32, #tpu.memory_space<vmem>>, vector<1x1x32xf32>
    %5 = vector.shape_cast %4 : vector<1x1x32xf32> to vector<1x32xf32>
    %6 = vector.broadcast %5 : vector<1x32xf32> to vector<8x32xf32>
    %7 = arith.addf %3, %6 : vector<8x32xf32>
    %c0_7 = arith.constant 0 : index
    %c0_8 = arith.constant 0 : index
    %c0_9 = arith.constant 0 : index
    %8 = vector.load %arg7[%c0_7, %c0_8, %c0_9] : memref<1x8x32xbf16, #tpu.memory_space<vmem>>, vector<1x8x32xbf16>
    %9 = vector.shape_cast %8 : vector<1x8x32xbf16> to vector<8x32xbf16>
    %10 = arith.extf %9 : vector<8x32xbf16> to vector<8x32xf32>
    %c0_10 = arith.constant 0 : index
    %c0_11 = arith.constant 0 : index
    %c0_12 = arith.constant 0 : index
    %11 = vector.load %arg6[%c0_10, %c0_11, %c0_12] : memref<1x1x32xf32, #tpu.memory_space<vmem>>, vector<1x1x32xf32>
    %12 = vector.shape_cast %11 : vector<1x1x32xf32> to vector<1x32xf32>
    %13 = vector.broadcast %12 : vector<1x32xf32> to vector<8x32xf32>
    %14 = arith.mulf %13, %7 : vector<8x32xf32>
    %15 = arith.addf %10, %14 : vector<8x32xf32>
    %c0_13 = arith.constant 0 : index
    %c0_14 = arith.constant 0 : index
    %c0_15 = arith.constant 0 : index
    %16 = vector.load %arg8[%c0_13, %c0_14, %c0_15] : memref<1x8x32xf32, #tpu.memory_space<vmem>>, vector<1x8x32xf32>
    %17 = vector.shape_cast %16 : vector<1x8x32xf32> to vector<8x32xf32>
    %18 = vector.shape_cast %15 : vector<8x32xf32> to vector<1x8x32xf32>
    tpu.vector_store %arg8[%c0_13, %c0_14, %c0_15], %18 {strides = array<i32>} : memref<1x8x32xf32, #tpu.memory_space<vmem>>, vector<1x8x32xf32>,
    return
  }
  func.func @transform_0(%arg0: i32, %arg1: i32, %arg2: i32) -> (i32, i32, i32) {
    %c0_i32 = arith.constant 0 : i32
    %c0_i32_0 = arith.constant 0 : i32
    return %arg0, %arg1, %c0_i32 : i32, i32, i32
  }
  func.func @transform_1(%arg0: i32, %arg1: i32, %arg2: i32) -> (i32, i32) {
    %c0_i32 = arith.constant 0 : i32
    %c0_i32_0 = arith.constant 0 : i32
    return %c0_i32, %arg2 : i32, i32
  }
  func.func @transform_2(%arg0: i32, %arg1: i32, %arg2: i32) -> (i32, i32, i32) {
    %c0_i32 = arith.constant 0 : i32
    %c0_i32_0 = arith.constant 0 : i32
    %c0_i32_1 = arith.constant 0 : i32
    return %c0_i32, %c0_i32_0, %arg2 : i32, i32, i32
  }
  func.func @transform_3(%arg0: i32, %arg1: i32, %arg2: i32) -> (i32, i32, i32) {
    %c0_i32 = arith.constant 0 : i32
    %c0_i32_0 = arith.constant 0 : i32
    return %arg0, %c0_i32, %arg2 : i32, i32, i32
  }
  func.func @transform_4(%arg0: i32, %arg1: i32, %arg2: i32) -> (i32, i32, i32) {
    %c0_i32 = arith.constant 0 : i32
    return %arg0, %arg1, %arg2 : i32, i32, i32
  }
  func.func @transform_5(%arg0: i32, %arg1: i32, %arg2: i32) -> (i32, i32, i32) {
    %c0_i32 = arith.constant 0 : i32
    return %arg0, %arg1, %arg2 : i32, i32, i32
  }
}

module attributes {stable_mosaic.version = 11 : i64} {
  func.func @_fused_linear_kernel(%arg0: i32, %arg1: i32, %arg2: i32, %arg3: memref<1x8x128xbf16, #tpu.memory_space<vmem>>, %arg4: memref<128x32xbf16, #tpu.memory_space<vmem>>, %arg5: memref<1x1x32xf32, #tpu.memory_space<vmem>>, %arg6: memref<1x1x32xf32, #tpu.memory_space<vmem>>, %arg7: memref<1x8x32xbf16, #tpu.memory_space<vmem>>, %arg8: memref<1x8x32xbf16, #tpu.memory_space<vmem>>) attributes {dimension_semantics = [#tpu.dimension_semantics<parallel>, #tpu.dimension_semantics<parallel>, #tpu.dimension_semantics<arbitrary>], iteration_bounds = array<i64: 2, 1, 1>, scalar_prefetch = 0 : i64, scratch_operands = 0 : i64, tpu.core_type = #tpu.core_type<tc>, window_params = [{transform_indices = @transform_0, window_bounds = array<i64: 1, 8, 128>}, {transform_indices = @transform_1, window_bounds = array<i64: 128, 32>}, {transform_indices = @transform_2, window_bounds = array<i64: 1, 1, 32>}, {transform_indices = @transform_3, window_bounds = array<i64: 1, 1, 32>}, {transform_indices = @transform_4, window_bounds = array<i64: 1, 8, 32>}, {transform_indices = @transform_5, window_bounds = array<i64: 1, 8, 32>}]} {
    %c0 = arith.constant 0 : index
    %c0_0 = arith.constant 0 : index
    %c0_1 = arith.constant 0 : index
    %0 = vector.load %arg3[%c0, %c0_0, %c0_1] : memref<1x8x128xbf16, #tpu.memory_space<vmem>>, vector<1x8x128xbf16>
    %1 = vector.shape_cast %0 : vector<1x8x128xbf16> to vector<8x128xbf16>
    %c0_2 = arith.constant 0 : index
    %c0_3 = arith.constant 0 : index
    %2 = vector.load %arg4[%c0_2, %c0_3] : memref<128x32xbf16, #tpu.memory_space<vmem>>, vector<128x32xbf16>
    %cst = arith.constant dense<0.000000e+00> : vector<8x32xf32>
    %3 = tpu.matmul %1, %2, %cst {dimension_numbers = #tpu.dot_dimension_numbers<[1], [0], [0], [1], [0, 0, 1, 1], [], []>} : vector<8x128xbf16>, vector<128x32xbf16>, vector<8x32xf32> -> vector<8x32xf32>
    %c0_4 = arith.constant 0 : index
    %c0_5 = arith.constant 0 : index
    %c0_6 = arith.constant 0 : index
    %4 = vector.load %arg5[%c0_4, %c0_5, %c0_6] : memref<1x1x32xf32, #tpu.memory_space<vmem>>, vector<1x1x32xf32>
    %5 = vector.shape_cast %4 : vector<1x1x32xf32> to vector<1x32xf32>
    %6 = vector.broadcast %5 : vector<1x32xf32> to vector<8x32xf32>
    %7 = arith.addf %3, %6 : vector<8x32xf32>
    %c0_7 = arith.constant 0 : index
    %c0_8 = arith.constant 0 : index
    %c0_9 = arith.constant 0 : index
    %8 = vector.load %arg7[%c0_7, %c0_8, %c0_9] : memref<1x8x32xbf16, #tpu.memory_space<vmem>>, vector<1x8x32xbf16>
    %9 = vector.shape_cast %8 : vector<1x8x32xbf16> to vector<8x32xbf16>
    %10 = arith.extf %9 : vector<8x32xbf16> to vector<8x32xf32>
    %c0_10 = arith.constant 0 : index
    %c0_11 = arith.constant 0 : index
    %c0_12 = arith.constant 0 : index
    %11 = vector.load %arg6[%c0_10, %c0_11, %c0_12] : memref<1x1x32xf32, #tpu.memory_space<vmem>>, vector<1x1x32xf32>
    %12 = vector.shape_cast %11 : vector<1x1x32xf32> to vector<1x32xf32>
    %13 = vector.broadcast %12 : vector<1x32xf32> to vector<8x32xf32>
    %14 = arith.mulf %13, %7 : vector<8x32xf32>
    %15 = arith.addf %10, %14 : vector<8x32xf32>
    %16 = arith.truncf %15 : vector<8x32xf32> to vector<8x32xbf16>
    %c0_13 = arith.constant 0 : index
    %c0_14 = arith.constant 0 : index
    %c0_15 = arith.constant 0 : index
    %17 = vector.load %arg8[%c0_13, %c0_14, %c0_15] : memref<1x8x32xbf16, #tpu.memory_space<vmem>>, vector<1x8x32xbf16>
    %18 = vector.shape_cast %17 : vector<1x8x32xbf16> to vector<8x32xbf16>
    %19 = vector.shape_cast %16 : vector<8x32xbf16> to vector<1x8x32xbf16>
    tpu.vector_store %arg8[%c0_13, %c0_14, %c0_15], %19 {strides = array<i32>} : memref<1x8x32xbf16, #tpu.memory_space<vmem>>, vector<1x8x32xbf16>,
    return
  }
  func.func @transform_0(%arg0: i32, %arg1: i32, %arg2: i32) -> (i32, i32, i32) {
    %c0_i32 = arith.constant 0 : i32
    %c0_i32_0 = arith.constant 0 : i32
    return %arg0, %arg1, %c0_i32 : i32, i32, i32
  }
  func.func @transform_1(%arg0: i32, %arg1: i32, %arg2: i32) -> (i32, i32) {
    %c0_i32 = arith.constant 0 : i32
    %c0_i32_0 = arith.constant 0 : i32
    return %c0_i32, %arg2 : i32, i32
  }
  func.func @transform_2(%arg0: i32, %arg1: i32, %arg2: i32) -> (i32, i32, i32) {
    %c0_i32 = arith.constant 0 : i32
    %c0_i32_0 = arith.constant 0 : i32
    %c0_i32_1 = arith.constant 0 : i32
    return %c0_i32, %c0_i32_0, %arg2 : i32, i32, i32
  }
  func.func @transform_3(%arg0: i32, %arg1: i32, %arg2: i32) -> (i32, i32, i32) {
    %c0_i32 = arith.constant 0 : i32
    %c0_i32_0 = arith.constant 0 : i32
    return %arg0, %c0_i32, %arg2 : i32, i32, i32
  }
  func.func @transform_4(%arg0: i32, %arg1: i32, %arg2: i32) -> (i32, i32, i32) {
    %c0_i32 = arith.constant 0 : i32
    return %arg0, %arg1, %arg2 : i32, i32, i32
  }
  func.func @transform_5(%arg0: i32, %arg1: i32, %arg2: i32) -> (i32, i32, i32) {
    %c0_i32 = arith.constant 0 : i32
    return %arg0, %arg1, %arg2 : i32, i32, i32
  }
}

module attributes {stable_mosaic.version = 11 : i64} {
  func.func @_flash_attn_kernel(%arg0: i32, %arg1: i32, %arg2: i32, %arg3: memref<1x2x8x16xbf16, #tpu.memory_space<vmem>>, %arg4: memref<1x2x8x16xbf16, #tpu.memory_space<vmem>>, %arg5: memref<1x2x8x16xbf16, #tpu.memory_space<vmem>>, %arg6: memref<1x2x8x16xbf16, #tpu.memory_space<vmem>>, %arg7: memref<2x8x1xf32, #tpu.memory_space<vmem>>, %arg8: memref<2x8x1xf32, #tpu.memory_space<vmem>>, %arg9: memref<2x8x16xf32, #tpu.memory_space<vmem>>) attributes {dimension_semantics = [#tpu.dimension_semantics<parallel>, #tpu.dimension_semantics<parallel>, #tpu.dimension_semantics<arbitrary>], iteration_bounds = array<i64: 2, 1, 1>, scalar_prefetch = 0 : i64, scratch_operands = 3 : i64, tpu.core_type = #tpu.core_type<tc>, window_params = [{transform_indices = @transform_0, window_bounds = array<i64: 1, 2, 8, 16>}, {transform_indices = @transform_1, window_bounds = array<i64: 1, 2, 8, 16>}, {transform_indices = @transform_2, window_bounds = array<i64: 1, 2, 8, 16>}, {transform_indices = @transform_3, window_bounds = array<i64: 1, 2, 8, 16>}]} {
    %c0_i32 = arith.constant 0 : i32
    %0 = arith.cmpi eq, %arg2, %c0_i32 : i32
    %1 = arith.extui %0 : i1 to i32
    %c0_i32_0 = arith.constant 0 : i32
    %2 = arith.cmpi ne, %1, %c0_i32_0 : i32
    scf.if %2 {
      %cst_35 = arith.constant 0xFF800000 : f32
      %36 = vector.broadcast %cst_35 : f32 to vector<2x8x1xf32>
      %c0_36 = arith.constant 0 : index
      %c0_37 = arith.constant 0 : index
      %c0_38 = arith.constant 0 : index
      %37 = vector.load %arg7[%c0_36, %c0_37, %c0_38] : memref<2x8x1xf32, #tpu.memory_space<vmem>>, vector<2x8x1xf32>
      tpu.vector_store %arg7[%c0_36, %c0_37, %c0_38], %36 {strides = array<i32>} : memref<2x8x1xf32, #tpu.memory_space<vmem>>, vector<2x8x1xf32>,
      %cst_39 = arith.constant 0.000000e+00 : f32
      %38 = vector.broadcast %cst_39 : f32 to vector<2x8x1xf32>
      %c0_40 = arith.constant 0 : index
      %c0_41 = arith.constant 0 : index
      %c0_42 = arith.constant 0 : index
      %39 = vector.load %arg8[%c0_40, %c0_41, %c0_42] : memref<2x8x1xf32, #tpu.memory_space<vmem>>, vector<2x8x1xf32>
      tpu.vector_store %arg8[%c0_40, %c0_41, %c0_42], %38 {strides = array<i32>} : memref<2x8x1xf32, #tpu.memory_space<vmem>>, vector<2x8x1xf32>,
      %cst_43 = arith.constant 0.000000e+00 : f32
      %40 = vector.broadcast %cst_43 : f32 to vector<2x8x16xf32>
      %c0_44 = arith.constant 0 : index
      %c0_45 = arith.constant 0 : index
      %c0_46 = arith.constant 0 : index
      %41 = vector.load %arg9[%c0_44, %c0_45, %c0_46] : memref<2x8x16xf32, #tpu.memory_space<vmem>>, vector<2x8x16xf32>
      tpu.vector_store %arg9[%c0_44, %c0_45, %c0_46], %40 {strides = array<i32>} : memref<2x8x16xf32, #tpu.memory_space<vmem>>, vector<2x8x16xf32>,
    } else {
    }
    %c0 = arith.constant 0 : index
    %c0_1 = arith.constant 0 : index
    %c0_2 = arith.constant 0 : index
    %c0_3 = arith.constant 0 : index
    %3 = vector.load %arg3[%c0, %c0_1, %c0_2, %c0_3] : memref<1x2x8x16xbf16, #tpu.memory_space<vmem>>, vector<1x2x8x16xbf16>
    %4 = vector.shape_cast %3 : vector<1x2x8x16xbf16> to vector<2x8x16xbf16>
    %c0_4 = arith.constant 0 : index
    %c0_5 = arith.constant 0 : index
    %c0_6 = arith.constant 0 : index
    %c0_7 = arith.constant 0 : index
    %5 = vector.load %arg4[%c0_4, %c0_5, %c0_6, %c0_7] : memref<1x2x8x16xbf16, #tpu.memory_space<vmem>>, vector<1x2x8x16xbf16>
    %6 = vector.shape_cast %5 : vector<1x2x8x16xbf16> to vector<2x8x16xbf16>
    %c0_8 = arith.constant 0 : index
    %c0_9 = arith.constant 0 : index
    %c0_10 = arith.constant 0 : index
    %c0_11 = arith.constant 0 : index
    %7 = vector.load %arg5[%c0_8, %c0_9, %c0_10, %c0_11] : memref<1x2x8x16xbf16, #tpu.memory_space<vmem>>, vector<1x2x8x16xbf16>
    %8 = vector.shape_cast %7 : vector<1x2x8x16xbf16> to vector<2x8x16xbf16>
    "tpu.trace_start"() <{level = 10 : i32, message = "hqd,hkd->hqk"}> : () -> ()
    %cst = arith.constant dense<0.000000e+00> : vector<2x8x8xf32>
    %9 = tpu.matmul %4, %6, %cst {dimension_numbers = #tpu.dot_dimension_numbers<[2], [2], [1], [1], [0, 0, 0, 1, 1, 1], [0], [0]>} : vector<2x8x16xbf16>, vector<2x8x16xbf16>, vector<2x8x8xf32> -> vector<2x8x8xf32>
    "tpu.trace_stop"() : () -> ()
    %c0_12 = arith.constant 0 : index
    %c0_13 = arith.constant 0 : index
    %c0_14 = arith.constant 0 : index
    %10 = vector.load %arg7[%c0_12, %c0_13, %c0_14] : memref<2x8x1xf32, #tpu.memory_space<vmem>>, vector<2x8x1xf32>
    %cst_15 = arith.constant dense<0xFF800000> : vector<2x8xf32>
    %11 = vector.multi_reduction <maximumf>, %9, %cst_15 [2] : vector<2x8x8xf32> to vector<2x8xf32>
    %12 = vector.shape_cast %11 : vector<2x8xf32> to vector<2x8x1xf32>
    %13 = arith.maximumf %10, %12 : vector<2x8x1xf32>
    %14 = arith.subf %10, %13 : vector<2x8x1xf32>
    %15 = math.exp %14 : vector<2x8x1xf32>
    %16 = vector.broadcast %13 : vector<2x8x1xf32> to vector<2x8x8xf32>
    %17 = arith.subf %9, %16 : vector<2x8x8xf32>
    %18 = math.exp %17 : vector<2x8x8xf32>
    %c0_16 = arith.constant 0 : index
    %c0_17 = arith.constant 0 : index
    %c0_18 = arith.constant 0 : index
    %19 = vector.load %arg8[%c0_16, %c0_17, %c0_18] : memref<2x8x1xf32, #tpu.memory_space<vmem>>, vector<2x8x1xf32>
    %20 = arith.mulf %15, %19 : vector<2x8x1xf32>
    %cst_19 = arith.constant dense<0.000000e+00> : vector<2x8xf32>
    %21 = vector.multi_reduction <add>, %18, %cst_19 [2] : vector<2x8x8xf32> to vector<2x8xf32>
    %22 = vector.shape_cast %21 : vector<2x8xf32> to vector<2x8x1xf32>
    %23 = arith.addf %20, %22 : vector<2x8x1xf32>
    %c0_20 = arith.constant 0 : index
    %c0_21 = arith.constant 0 : index
    %c0_22 = arith.constant 0 : index
    %24 = vector.load %arg8[%c0_20, %c0_21, %c0_22] : memref<2x8x1xf32, #tpu.memory_space<vmem>>, vector<2x8x1xf32>
    tpu.vector_store %arg8[%c0_20, %c0_21, %c0_22], %23 {strides = array<i32>} : memref<2x8x1xf32, #tpu.memory_space<vmem>>, vector<2x8x1xf32>,
    %25 = arith.truncf %18 : vector<2x8x8xf32> to vector<2x8x8xbf16>
    "tpu.trace_start"() <{level = 10 : i32, message = "hqk,hkd->hqd"}> : () -> ()
    %cst_23 = arith.constant dense<0.000000e+00> : vector<2x8x16xf32>
    %26 = tpu.matmul %25, %8, %cst_23 {dimension_numbers = #tpu.dot_dimension_numbers<[2], [1], [1], [2], [0, 0, 0, 1, 1, 2], [0], [0]>} : vector<2x8x8xbf16>, vector<2x8x16xbf16>, vector<2x8x16xf32> -> vector<2x8x16xf32>
    "tpu.trace_stop"() : () -> ()
    %c0_24 = arith.constant 0 : index
    %c0_25 = arith.constant 0 : index
    %c0_26 = arith.constant 0 : index
    %27 = vector.load %arg9[%c0_24, %c0_25, %c0_26] : memref<2x8x16xf32, #tpu.memory_space<vmem>>, vector<2x8x16xf32>
    %28 = vector.broadcast %15 : vector<2x8x1xf32> to vector<2x8x16xf32>
    %29 = arith.mulf %28, %27 : vector<2x8x16xf32>
    %30 = arith.addf %29, %26 : vector<2x8x16xf32>
    %c0_27 = arith.constant 0 : index
    %c0_28 = arith.constant 0 : index
    %c0_29 = arith.constant 0 : index
    %31 = vector.load %arg9[%c0_27, %c0_28, %c0_29] : memref<2x8x16xf32, #tpu.memory_space<vmem>>, vector<2x8x16xf32>
    tpu.vector_store %arg9[%c0_27, %c0_28, %c0_29], %30 {strides = array<i32>} : memref<2x8x16xf32, #tpu.memory_space<vmem>>, vector<2x8x16xf32>,
    %c0_30 = arith.constant 0 : index
    %c0_31 = arith.constant 0 : index
    %c0_32 = arith.constant 0 : index
    %32 = vector.load %arg7[%c0_30, %c0_31, %c0_32] : memref<2x8x1xf32, #tpu.memory_space<vmem>>, vector<2x8x1xf32>
    tpu.vector_store %arg7[%c0_30, %c0_31, %c0_32], %13 {strides = array<i32>} : memref<2x8x1xf32, #tpu.memory_space<vmem>>, vector<2x8x1xf32>,
    %c0_i32_33 = arith.constant 0 : i32
    %33 = arith.cmpi eq, %arg2, %c0_i32_33 : i32
    %34 = arith.extui %33 : i1 to i32
    %c0_i32_34 = arith.constant 0 : i32
    %35 = arith.cmpi ne, %34, %c0_i32_34 : i32
    scf.if %35 {
      %c0_35 = arith.constant 0 : index
      %c0_36 = arith.constant 0 : index
      %c0_37 = arith.constant 0 : index
      %36 = vector.load %arg8[%c0_35, %c0_36, %c0_37] : memref<2x8x1xf32, #tpu.memory_space<vmem>>, vector<2x8x1xf32>
      %37 = tpu.reciprocal %36 {approx = true} : vector<2x8x1xf32> -> vector<2x8x1xf32>
      %c0_38 = arith.constant 0 : index
      %c0_39 = arith.constant 0 : index
      %c0_40 = arith.constant 0 : index
      %38 = vector.load %arg9[%c0_38, %c0_39, %c0_40] : memref<2x8x16xf32, #tpu.memory_space<vmem>>, vector<2x8x16xf32>
      %39 = vector.broadcast %37 : vector<2x8x1xf32> to vector<2x8x16xf32>
      %40 = arith.mulf %38, %39 : vector<2x8x16xf32>
      %41 = arith.truncf %40 : vector<2x8x16xf32> to vector<2x8x16xbf16>
      %c0_41 = arith.constant 0 : index
      %c0_42 = arith.constant 0 : index
      %c0_43 = arith.constant 0 : index
      %c0_44 = arith.constant 0 : index
      %42 = vector.load %arg6[%c0_41, %c0_42, %c0_43, %c0_44] : memref<1x2x8x16xbf16, #tpu.memory_space<vmem>>, vector<1x2x8x16xbf16>
      %43 = vector.shape_cast %42 : vector<1x2x8x16xbf16> to vector<2x8x16xbf16>
      %44 = vector.shape_cast %41 : vector<2x8x16xbf16> to vector<1x2x8x16xbf16>
      tpu.vector_store %arg6[%c0_41, %c0_42, %c0_43, %c0_44], %44 {strides = array<i32>} : memref<1x2x8x16xbf16, #tpu.memory_space<vmem>>, vector<1x2x8x16xbf16>,
    } else {
    }
    return
  }
  func.func @transform_0(%arg0: i32, %arg1: i32, %arg2: i32) -> (i32, i32, i32, i32) {
    %c0_i32 = arith.constant 0 : i32
    %c0_i32_0 = arith.constant 0 : i32
    %c0_i32_1 = arith.constant 0 : i32
    return %arg0, %c0_i32, %arg1, %c0_i32_0 : i32, i32, i32, i32
  }
  func.func @transform_1(%arg0: i32, %arg1: i32, %arg2: i32) -> (i32, i32, i32, i32) {
    %c0_i32 = arith.constant 0 : i32
    %c0_i32_0 = arith.constant 0 : i32
    %c0_i32_1 = arith.constant 0 : i32
    return %arg0, %c0_i32, %arg2, %c0_i32_0 : i32, i32, i32, i32
  }
  func.func @transform_2(%arg0: i32, %arg1: i32, %arg2: i32) -> (i32, i32, i32, i32) {
    %c0_i32 = arith.constant 0 : i32
    %c0_i32_0 = arith.constant 0 : i32
    %c0_i32_1 = arith.constant 0 : i32
    return %arg0, %c0_i32, %arg2, %c0_i32_0 : i32, i32, i32, i32
  }
  func.func @transform_3(%arg0: i32, %arg1: i32, %arg2: i32) -> (i32, i32, i32, i32) {
    %c0_i32 = arith.constant 0 : i32
    %c0_i32_0 = arith.constant 0 : i32
    %c0_i32_1 = arith.constant 0 : i32
    return %arg0, %c0_i32, %arg1, %c0_i32_0 : i32, i32, i32, i32
  }
}

module attributes {stable_mosaic.version = 11 : i64} {
  func.func @_fused_linear_kernel(%arg0: i32, %arg1: i32, %arg2: i32, %arg3: memref<1x8x32xbf16, #tpu.memory_space<vmem>>, %arg4: memref<32x32xbf16, #tpu.memory_space<vmem>>, %arg5: memref<1x1x32xf32, #tpu.memory_space<vmem>>, %arg6: memref<1x8x32xbf16, #tpu.memory_space<vmem>>, %arg7: memref<1x8x32xf32, #tpu.memory_space<vmem>>) attributes {dimension_semantics = [#tpu.dimension_semantics<parallel>, #tpu.dimension_semantics<parallel>, #tpu.dimension_semantics<arbitrary>], iteration_bounds = array<i64: 2, 1, 1>, scalar_prefetch = 0 : i64, scratch_operands = 0 : i64, tpu.core_type = #tpu.core_type<tc>, window_params = [{transform_indices = @transform_0, window_bounds = array<i64: 1, 8, 32>}, {transform_indices = @transform_1, window_bounds = array<i64: 32, 32>}, {transform_indices = @transform_2, window_bounds = array<i64: 1, 1, 32>}, {transform_indices = @transform_3, window_bounds = array<i64: 1, 8, 32>}, {transform_indices = @transform_4, window_bounds = array<i64: 1, 8, 32>}]} {
    %c0 = arith.constant 0 : index
    %c0_0 = arith.constant 0 : index
    %c0_1 = arith.constant 0 : index
    %0 = vector.load %arg3[%c0, %c0_0, %c0_1] : memref<1x8x32xbf16, #tpu.memory_space<vmem>>, vector<1x8x32xbf16>
    %1 = vector.shape_cast %0 : vector<1x8x32xbf16> to vector<8x32xbf16>
    %c0_2 = arith.constant 0 : index
    %c0_3 = arith.constant 0 : index
    %2 = vector.load %arg4[%c0_2, %c0_3] : memref<32x32xbf16, #tpu.memory_space<vmem>>, vector<32x32xbf16>
    %cst = arith.constant dense<0.000000e+00> : vector<8x32xf32>
    %3 = tpu.matmul %1, %2, %cst {dimension_numbers = #tpu.dot_dimension_numbers<[1], [0], [0], [1], [0, 0, 1, 1], [], []>} : vector<8x32xbf16>, vector<32x32xbf16>, vector<8x32xf32> -> vector<8x32xf32>
    %c0_4 = arith.constant 0 : index
    %c0_5 = arith.constant 0 : index
    %c0_6 = arith.constant 0 : index
    %4 = vector.load %arg5[%c0_4, %c0_5, %c0_6] : memref<1x1x32xf32, #tpu.memory_space<vmem>>, vector<1x1x32xf32>
    %5 = vector.shape_cast %4 : vector<1x1x32xf32> to vector<1x32xf32>
    %6 = vector.broadcast %5 : vector<1x32xf32> to vector<8x32xf32>
    %7 = arith.addf %3, %6 : vector<8x32xf32>
    %c0_7 = arith.constant 0 : index
    %c0_8 = arith.constant 0 : index
    %c0_9 = arith.constant 0 : index
    %8 = vector.load %arg6[%c0_7, %c0_8, %c0_9] : memref<1x8x32xbf16, #tpu.memory_space<vmem>>, vector<1x8x32xbf16>
    %9 = vector.shape_cast %8 : vector<1x8x32xbf16> to vector<8x32xbf16>
    %10 = arith.extf %9 : vector<8x32xbf16> to vector<8x32xf32>
    %11 = arith.addf %10, %7 : vector<8x32xf32>
    %c0_10 = arith.constant 0 : index
    %c0_11 = arith.constant 0 : index
    %c0_12 = arith.constant 0 : index
    %12 = vector.load %arg7[%c0_10, %c0_11, %c0_12] : memref<1x8x32xf32, #tpu.memory_space<vmem>>, vector<1x8x32xf32>
    %13 = vector.shape_cast %12 : vector<1x8x32xf32> to vector<8x32xf32>
    %14 = vector.shape_cast %11 : vector<8x32xf32> to vector<1x8x32xf32>
    tpu.vector_store %arg7[%c0_10, %c0_11, %c0_12], %14 {strides = array<i32>} : memref<1x8x32xf32, #tpu.memory_space<vmem>>, vector<1x8x32xf32>,
    return
  }
  func.func @transform_0(%arg0: i32, %arg1: i32, %arg2: i32) -> (i32, i32, i32) {
    %c0_i32 = arith.constant 0 : i32
    %c0_i32_0 = arith.constant 0 : i32
    return %arg0, %arg1, %c0_i32 : i32, i32, i32
  }
  func.func @transform_1(%arg0: i32, %arg1: i32, %arg2: i32) -> (i32, i32) {
    %c0_i32 = arith.constant 0 : i32
    %c0_i32_0 = arith.constant 0 : i32
    return %c0_i32, %arg2 : i32, i32
  }
  func.func @transform_2(%arg0: i32, %arg1: i32, %arg2: i32) -> (i32, i32, i32) {
    %c0_i32 = arith.constant 0 : i32
    %c0_i32_0 = arith.constant 0 : i32
    %c0_i32_1 = arith.constant 0 : i32
    return %c0_i32, %c0_i32_0, %arg2 : i32, i32, i32
  }
  func.func @transform_3(%arg0: i32, %arg1: i32, %arg2: i32) -> (i32, i32, i32) {
    %c0_i32 = arith.constant 0 : i32
    return %arg0, %arg1, %arg2 : i32, i32, i32
  }
  func.func @transform_4(%arg0: i32, %arg1: i32, %arg2: i32) -> (i32, i32, i32) {
    %c0_i32 = arith.constant 0 : i32
    return %arg0, %arg1, %arg2 : i32, i32, i32
  }
}

module attributes {stable_mosaic.version = 11 : i64} {
  func.func @_fused_linear_kernel(%arg0: i32, %arg1: i32, %arg2: i32, %arg3: memref<1x8x32xf32, #tpu.memory_space<vmem>>, %arg4: memref<32x64xbf16, #tpu.memory_space<vmem>>, %arg5: memref<1x1x64xf32, #tpu.memory_space<vmem>>, %arg6: memref<1x8x64xbf16, #tpu.memory_space<vmem>>) attributes {dimension_semantics = [#tpu.dimension_semantics<parallel>, #tpu.dimension_semantics<parallel>, #tpu.dimension_semantics<arbitrary>], iteration_bounds = array<i64: 2, 1, 1>, scalar_prefetch = 0 : i64, scratch_operands = 0 : i64, tpu.core_type = #tpu.core_type<tc>, window_params = [{transform_indices = @transform_0, window_bounds = array<i64: 1, 8, 32>}, {transform_indices = @transform_1, window_bounds = array<i64: 32, 64>}, {transform_indices = @transform_2, window_bounds = array<i64: 1, 1, 64>}, {transform_indices = @transform_3, window_bounds = array<i64: 1, 8, 64>}]} {
    %c0 = arith.constant 0 : index
    %c0_0 = arith.constant 0 : index
    %c0_1 = arith.constant 0 : index
    %0 = vector.load %arg3[%c0, %c0_0, %c0_1] : memref<1x8x32xf32, #tpu.memory_space<vmem>>, vector<1x8x32xf32>
    %1 = vector.shape_cast %0 : vector<1x8x32xf32> to vector<8x32xf32>
    %2 = arith.truncf %1 : vector<8x32xf32> to vector<8x32xbf16>
    %c0_2 = arith.constant 0 : index
    %c0_3 = arith.constant 0 : index
    %3 = vector.load %arg4[%c0_2, %c0_3] : memref<32x64xbf16, #tpu.memory_space<vmem>>, vector<32x64xbf16>
    %cst = arith.constant dense<0.000000e+00> : vector<8x64xf32>
    %4 = tpu.matmul %2, %3, %cst {dimension_numbers = #tpu.dot_dimension_numbers<[1], [0], [0], [1], [0, 0, 1, 1], [], []>} : vector<8x32xbf16>, vector<32x64xbf16>, vector<8x64xf32> -> vector<8x64xf32>
    %c0_4 = arith.constant 0 : index
    %c0_5 = arith.constant 0 : index
    %c0_6 = arith.constant 0 : index
    %5 = vector.load %arg5[%c0_4, %c0_5, %c0_6] : memref<1x1x64xf32, #tpu.memory_space<vmem>>, vector<1x1x64xf32>
    %6 = vector.shape_cast %5 : vector<1x1x64xf32> to vector<1x64xf32>
    %7 = vector.broadcast %6 : vector<1x64xf32> to vector<8x64xf32>
    %8 = arith.addf %4, %7 : vector<8x64xf32>
    %9 = arith.truncf %8 : vector<8x64xf32> to vector<8x64xbf16>
    %c0_7 = arith.constant 0 : index
    %c0_8 = arith.constant 0 : index
    %c0_9 = arith.constant 0 : index
    %10 = vector.load %arg6[%c0_7, %c0_8, %c0_9] : memref<1x8x64xbf16, #tpu.memory_space<vmem>>, vector<1x8x64xbf16>
    %11 = vector.shape_cast %10 : vector<1x8x64xbf16> to vector<8x64xbf16>
    %12 = vector.shape_cast %9 : vector<8x64xbf16> to vector<1x8x64xbf16>
    tpu.vector_store %arg6[%c0_7, %c0_8, %c0_9], %12 {strides = array<i32>} : memref<1x8x64xbf16, #tpu.memory_space<vmem>>, vector<1x8x64xbf16>,
    return
  }
  func.func @transform_0(%arg0: i32, %arg1: i32, %arg2: i32) -> (i32, i32, i32) {
    %c0_i32 = arith.constant 0 : i32
    %c0_i32_0 = arith.constant 0 : i32
    return %arg0, %arg1, %c0_i32 : i32, i32, i32
  }
  func.func @transform_1(%arg0: i32, %arg1: i32, %arg2: i32) -> (i32, i32) {
    %c0_i32 = arith.constant 0 : i32
    %c0_i32_0 = arith.constant 0 : i32
    return %c0_i32, %arg2 : i32, i32
  }
  func.func @transform_2(%arg0: i32, %arg1: i32, %arg2: i32) -> (i32, i32, i32) {
    %c0_i32 = arith.constant 0 : i32
    %c0_i32_0 = arith.constant 0 : i32
    %c0_i32_1 = arith.constant 0 : i32
    return %c0_i32, %c0_i32_0, %arg2 : i32, i32, i32
  }
  func.func @transform_3(%arg0: i32, %arg1: i32, %arg2: i32) -> (i32, i32, i32) {
    %c0_i32 = arith.constant 0 : i32
    return %arg0, %arg1, %arg2 : i32, i32, i32
  }
}

</mosaic_0001>

<llo_original>
// kernel: joint_transformer_block_with_envmap.12
$region0: #{joint_transformer_block_with_envmap.12}
  #allocation0 [shape = 'u32[]', space=smem, size = 0x4, offset = 0x4, fixed_abs, tag = 'smem constant byte address 0x4 - core index']
  #allocation1 [shape = 'u32[144,128]{1,0:T(1,128)}', space=vmem, size = 0x12000, scoped, tag = 'internal scratch']
  #allocation2 [shape = 'bf16[8,32]{1,0:T(8,128)(2,1)}', space=vmem, size = 0x800, scoped, tag = 'scratch operand']
  %s0 = inlined_call_operand.vmem [shape: f32[2,8,32], index: 0, kind: input, shape index: {}]
  %s1 = inlined_call_operand.vmem [shape: f32[2,1,32], index: 1, kind: input, shape index: {}]
  %s2 = inlined_call_operand.vmem [shape: f32[2,1,32], index: 2, kind: input, shape index: {}]
  %s3 = inlined_call_operand.vmem [shape: bf16[32,128], index: 3, kind: input, shape index: {}]
  %s4 = inlined_call_operand.vmem [shape: f32[1,1,128], index: 4, kind: input, shape index: {}]
  %s5 = inlined_call_operand.vmem [shape: bf16[2,8,128], index: 5, kind: output, shape index: {}]
  %s6 = sld [smem:[#allocation0]]
  $region57: #{joint_transformer_block_with_envmap.12} parent=0
    _
  %s8 = ssub.s32 1, %s6
  %s9 = scalar_select 0, %s8, %s6
  loop: start=0, step=1, limit=4
  $region2: #{joint_transformer_block_with_envmap.12} parent=0 // loop_pre_header
    _
  $region3: #{joint_transformer_block_with_envmap.12} parent=0 // loop_header
    %s11 = sphi 0, %s15
    %p12 = scmp.ge.s32.totalorder %s11, 4
    %s18 = sphi 0, %s37
    %s19 = sphi 0, %s33
    %s20 = sphi 0, %s29
    %s21 = sphi 0, %s18
    %s22 = sphi 0, %s19
    %s23 = sphi 0, %s20
    %s24 = sphi 0, %s21
    %s25 = sphi 0, %s22
    %s26 = sphi 0, %s23
    %s42 = sphi 0, %s44
    %s45 = sphi 0, %s42
    %s46 = sphi 0, %s45
    %s62 = sphi 0, %s46
    %s68 = sphi 0, %s70
    %s71 = sphi 0, %s68
    %s72 = sphi 0, %s71
    %s88 = sphi 0, %s72
    %s94 = sphi 0, %s96
    %s97 = sphi 0, %s94
    %s98 = sphi 0, %s97
    %s114 = sphi 0, %s98
    %s120 = sphi 0, %s122
    %s123 = sphi 0, %s120
    %s124 = sphi 0, %s123
    %s140 = sphi 0, %s124
    %s146 = sphi 0, %s148
    %s149 = sphi 0, %s146
    %s150 = sphi 0, %s149
    %s166 = sphi 0, %s150
    %s176 = sphi 0, %s178
    %s179 = sphi 0, %s176
    %s180 = sphi 0, %s179
    %s196 = sphi 0, %s180
  $region4: #{joint_transformer_block_with_envmap.12} parent=0 // loop_header_branch
    %14 = sbr.rel (%p12) target = $region8
  $region5: #{joint_transformer_block_with_envmap.12} parent=0 // loop_body
    %s16 = ssub.s32 %s11, 1
    %s17 = ssub.s32 %s11, 2
    %s27 = sadd.s32 1, %s20
    %p28 = scmp.ge.s32.totalorder %s27, 1
    %s29 = scalar_select %p28, 0, %s27
    %s30 = sadd.s32 1, %s19
    %s31 = scalar_select %p28, %s30, %s19
    %p32 = scmp.ge.s32.totalorder %s31, 1
    %s33 = scalar_select %p32, 0, %s31
    %s34 = sadd.s32 1, %s18
    %s35 = scalar_select %p32, %s34, %s18
    %p36 = scmp.ge.s32.totalorder %s35, 2
    %s37 = scalar_select %p36, 0, %s35
    %s38 = ssub.s32 %s18, %s37
    %s39 = ssub.s32 %s19, %s33
    %s40 = sor.u32 %s38, %s39
    %p41 = scmp.eq.s32.totalorder %s40, 0
    %s43 = sadd.s32 %s42, 1
    %s44 = scalar_select %p41, %s42, %s43
    %p47 = pneg %p41
    %p48 = scmp.eq.s32.totalorder %s11, 1
    %p49 = por %p47, %p48
    %p50 = scmp.ne.s32.totalorder %s42, %s45
    %p51 = scmp.eq.s32.totalorder %s11, 0
    %p52 = por %p50, %p51
    %p53 = scmp.ne.s32.totalorder %s42, %s45
    %p54 = scmp.eq.s32.totalorder %s16, 1
    %p55 = por %p53, %p54
    %p56 = scmp.ne.s32.totalorder %s45, %s46
    %p57 = scmp.eq.s32.totalorder %s16, 0
    %p58 = por %p56, %p57
    %p59 = scmp.ne.s32.totalorder %s45, %s46
    %p60 = scmp.eq.s32.totalorder %s17, 1
    %p61 = por %p59, %p60
    %p63 = scmp.ne.s32.totalorder %s46, %s62
    %p64 = scmp.eq.s32.totalorder %s17, 0
    %p65 = por %p63, %p64
    %s66 = ssub.s32 %s18, %s37
    %p67 = scmp.eq.s32.totalorder %s66, 0
    %s69 = sadd.s32 %s68, 1
    %s70 = scalar_select %p67, %s68, %s69
    %p73 = pneg %p67
    %p74 = scmp.eq.s32.totalorder %s11, 1
    %p75 = por %p73, %p74
    %p76 = scmp.ne.s32.totalorder %s68, %s71
    %p77 = scmp.eq.s32.totalorder %s11, 0
    %p78 = por %p76, %p77
    %p79 = scmp.ne.s32.totalorder %s68, %s71
    %p80 = scmp.eq.s32.totalorder %s16, 1
    %p81 = por %p79, %p80
    %p82 = scmp.ne.s32.totalorder %s71, %s72
    %p83 = scmp.eq.s32.totalorder %s16, 0
    %p84 = por %p82, %p83
    %p85 = scmp.ne.s32.totalorder %s71, %s72
    %p86 = scmp.eq.s32.totalorder %s17, 1
    %p87 = por %p85, %p86
    %p89 = scmp.ne.s32.totalorder %s72, %s88
    %p90 = scmp.eq.s32.totalorder %s17, 0
    %p91 = por %p89, %p90
    %s92 = ssub.s32 %s18, %s37
    %p93 = scmp.eq.s32.totalorder %s92, 0
    %s95 = sadd.s32 %s94, 1
    %s96 = scalar_select %p93, %s94, %s95
    %p99 = pneg %p93
    %p100 = scmp.eq.s32.totalorder %s11, 1
    %p101 = por %p99, %p100
    %p102 = scmp.ne.s32.totalorder %s94, %s97
    %p103 = scmp.eq.s32.totalorder %s11, 0
    %p104 = por %p102, %p103
    %p105 = scmp.ne.s32.totalorder %s94, %s97
    %p106 = scmp.eq.s32.totalorder %s16, 1
    %p107 = por %p105, %p106
    %p108 = scmp.ne.s32.totalorder %s97, %s98
    %p109 = scmp.eq.s32.totalorder %s16, 0
    %p110 = por %p108, %p109
    %p111 = scmp.ne.s32.totalorder %s97, %s98
    %p112 = scmp.eq.s32.totalorder %s17, 1
    %p113 = por %p111, %p112
    %p115 = scmp.ne.s32.totalorder %s98, %s114
    %p116 = scmp.eq.s32.totalorder %s17, 0
    %p117 = por %p115, %p116
    %s118 = ssub.s32 %s20, %s29
    %p119 = scmp.eq.s32.totalorder %s118, 0
    %s121 = sadd.s32 %s120, 1
    %s122 = scalar_select %p119, %s120, %s121
    %p125 = pneg %p119
    %p126 = scmp.eq.s32.totalorder %s11, 1
    %p127 = por %p125, %p126
    %p128 = scmp.ne.s32.totalorder %s120, %s123
    %p129 = scmp.eq.s32.totalorder %s11, 0
    %p130 = por %p128, %p129
    %p131 = scmp.ne.s32.totalorder %s120, %s123
    %p132 = scmp.eq.s32.totalorder %s16, 1
    %p133 = por %p131, %p132
    %p134 = scmp.ne.s32.totalorder %s123, %s124
    %p135 = scmp.eq.s32.totalorder %s16, 0
    %p136 = por %p134, %p135
    %p137 = scmp.ne.s32.totalorder %s123, %s124
    %p138 = scmp.eq.s32.totalorder %s17, 1
    %p139 = por %p137, %p138
    %p141 = scmp.ne.s32.totalorder %s124, %s140
    %p142 = scmp.eq.s32.totalorder %s17, 0
    %p143 = por %p141, %p142
    %s144 = ssub.s32 %s20, %s29
    %p145 = scmp.eq.s32.totalorder %s144, 0
    %s147 = sadd.s32 %s146, 1
    %s148 = scalar_select %p145, %s146, %s147
    %p151 = pneg %p145
    %p152 = scmp.eq.s32.totalorder %s11, 1
    %p153 = por %p151, %p152
    %p154 = scmp.ne.s32.totalorder %s146, %s149
    %p155 = scmp.eq.s32.totalorder %s11, 0
    %p156 = por %p154, %p155
    %p157 = scmp.ne.s32.totalorder %s146, %s149
    %p158 = scmp.eq.s32.totalorder %s16, 1
    %p159 = por %p157, %p158
    %p160 = scmp.ne.s32.totalorder %s149, %s150
    %p161 = scmp.eq.s32.totalorder %s16, 0
    %p162 = por %p160, %p161
    %p163 = scmp.ne.s32.totalorder %s149, %s150
    %p164 = scmp.eq.s32.totalorder %s17, 1
    %p165 = por %p163, %p164
    %p167 = scmp.ne.s32.totalorder %s150, %s166
    %p168 = scmp.eq.s32.totalorder %s17, 0
    %p169 = por %p167, %p168
    %s170 = ssub.s32 %s18, %s37
    %s171 = ssub.s32 %s19, %s33
    %s172 = sor.u32 %s170, %s171
    %s173 = ssub.s32 %s20, %s29
    %s174 = sor.u32 %s172, %s173
    %p175 = scmp.eq.s32.totalorder %s174, 0
    %s177 = sadd.s32 %s176, 1
    %s178 = scalar_select %p175, %s176, %s177
    %p181 = pneg %p175
    %p182 = scmp.eq.s32.totalorder %s11, 1
    %p183 = por %p181, %p182
    %p184 = scmp.ne.s32.totalorder %s176, %s179
    %p185 = scmp.eq.s32.totalorder %s11, 0
    %p186 = por %p184, %p185
    %p187 = scmp.ne.s32.totalorder %s176, %s179
    %p188 = scmp.eq.s32.totalorder %s16, 1
    %p189 = por %p187, %p188
    %p190 = scmp.ne.s32.totalorder %s179, %s180
    %p191 = scmp.eq.s32.totalorder %s16, 0
    %p192 = por %p190, %p191
    %p193 = scmp.ne.s32.totalorder %s179, %s180
    %p194 = scmp.eq.s32.totalorder %s17, 1
    %p195 = por %p193, %p194
    %p197 = scmp.ne.s32.totalorder %s180, %s196
    %p198 = scmp.eq.s32.totalorder %s17, 0
    %p199 = por %p197, %p198
    %p200 = scmp.le.s32.totalorder 1, %s11
    %p201 = scmp.lt.s32.totalorder %s11, 3
    %p202 = pnand %p200, %p201
    %p203 = pneg %p202
    // Predicated region
    $region9: #{joint_transformer_block_with_envmap.12} parent=5 // pred_check
      _
    $region10: #{joint_transformer_block_with_envmap.12} parent=5 // pred_check_branch
      %205 = sbr.rel (%p202) target = $region12
    $region11: #{joint_transformer_block_with_envmap.12} parent=5 // pred_region
      %s206 = ssub.s32 %s11, 1
      // Predicated region
      $region13: #{joint_transformer_block_with_envmap.12} parent=11 // pred_check
        %p207 = pneg %p136
      $region14: #{joint_transformer_block_with_envmap.12} parent=11 // pred_check_branch
        %209 = sbr.rel (%p207) target = $region16
      $region15: #{joint_transformer_block_with_envmap.12} parent=11 // pred_region
        %p210 = scmp.lt.s32.totalorder %s23, 0
        %s211 = scalar_select %p210, %s23, 0
        %s212 = smul.addr %s211, 4
        %s213 = scalar_lea.vmem %s3, %s212
      $region16: #{joint_transformer_block_with_envmap.12} parent=11 // pred_fallthru
        _
      // Predicated region
      $region17: #{joint_transformer_block_with_envmap.12} parent=11 // pred_check
        %p214 = pneg %p162
      $region18: #{joint_transformer_block_with_envmap.12} parent=11 // pred_check_branch
        %216 = sbr.rel (%p214) target = $region20
      $region19: #{joint_transformer_block_with_envmap.12} parent=11 // pred_region
        %p217 = scmp.lt.s32.totalorder %s23, 0
        %s218 = scalar_select %p217, %s23, 0
        %s219 = scalar_lea.vmem %s4, %s218
      $region20: #{joint_transformer_block_with_envmap.12} parent=11 // pred_fallthru
        _
    $region12: #{joint_transformer_block_with_envmap.12} parent=5 // pred_fallthru
      _
    %p220 = scmp.lt.s32.totalorder %s11, 2
    // Predicated region
    $region21: #{joint_transformer_block_with_envmap.12} parent=5 // pred_check
      %p221 = pneg %p220
    $region22: #{joint_transformer_block_with_envmap.12} parent=5 // pred_check_branch
      %223 = sbr.rel (%p221) target = $region24
    $region23: #{joint_transformer_block_with_envmap.12} parent=5 // pred_region
      // Predicated region
      $region25: #{joint_transformer_block_with_envmap.12} parent=23 // pred_check
        %p224 = pneg %p52
      $region26: #{joint_transformer_block_with_envmap.12} parent=23 // pred_check_branch
        %226 = sbr.rel (%p224) target = $region28
      $region27: #{joint_transformer_block_with_envmap.12} parent=23 // pred_region
        %p227 = scmp.lt.s32.totalorder %s18, 1
        %s228 = scalar_select %p227, %s18, 1
        %p229 = scmp.lt.s32.totalorder %s19, 0
        %s230 = scalar_select %p229, %s19, 0
        %s231 = sadd.s32 %s230, %s228
        %s232 = smul.addr %s231, 8
        %s233 = scalar_lea.vmem %s0, %s232
      $region28: #{joint_transformer_block_with_envmap.12} parent=23 // pred_fallthru
        _
      // Predicated region
      $region29: #{joint_transformer_block_with_envmap.12} parent=23 // pred_check
        %p234 = pneg %p78
      $region30: #{joint_transformer_block_with_envmap.12} parent=23 // pred_check_branch
        %236 = sbr.rel (%p234) target = $region32
      $region31: #{joint_transformer_block_with_envmap.12} parent=23 // pred_region
        %p237 = scmp.lt.s32.totalorder %s18, 1
        %s238 = scalar_select %p237, %s18, 1
        %s239 = scalar_lea.vmem %s1, %s238
      $region32: #{joint_transformer_block_with_envmap.12} parent=23 // pred_fallthru
        _
      // Predicated region
      $region33: #{joint_transformer_block_with_envmap.12} parent=23 // pred_check
        %p240 = pneg %p104
      $region34: #{joint_transformer_block_with_envmap.12} parent=23 // pred_check_branch
        %242 = sbr.rel (%p240) target = $region36
      $region35: #{joint_transformer_block_with_envmap.12} parent=23 // pred_region
        %p243 = scmp.lt.s32.totalorder %s18, 1
        %s244 = scalar_select %p243, %s18, 1
        %s245 = scalar_lea.vmem %s2, %s244
      $region36: #{joint_transformer_block_with_envmap.12} parent=23 // pred_fallthru
        _
    $region24: #{joint_transformer_block_with_envmap.12} parent=5 // pred_fallthru
      _
    %p246 = scmp.le.s32.totalorder 1, %s11
    %p247 = scmp.lt.s32.totalorder %s11, 3
    %p248 = pnand %p246, %p247
    %p249 = pneg %p248
    // Predicated region
    $region37: #{joint_transformer_block_with_envmap.12} parent=5 // pred_check
      _
    $region38: #{joint_transformer_block_with_envmap.12} parent=5 // pred_check_branch
      %251 = sbr.rel (%p248) target = $region40
    $region39: #{joint_transformer_block_with_envmap.12} parent=5 // pred_region
      %s252 = ssub.s32 %s11, 1
      %p253 = scmp.lt.s32.totalorder %s21, 1
      %s254 = scalar_select %p253, %s21, 1
      %p255 = scmp.lt.s32.totalorder %s22, 0
      %s256 = scalar_select %p255, %s22, 0
      %s257 = sadd.s32 %s256, %s254
      %s258 = smul.addr %s257, 8
      %s259 = scalar_lea.vmem %s0, %s258
      %p260 = pneg %p58
      %p261 = pneg %p55
      %p262 = scmp.lt.s32.totalorder %s21, 1
      %s263 = scalar_select %p262, %s21, 1
      %s264 = scalar_lea.vmem %s1, %s263
      %p265 = pneg %p84
      %p266 = pneg %p81
      %p267 = scmp.lt.s32.totalorder %s21, 1
      %s268 = scalar_select %p267, %s21, 1
      %s269 = scalar_lea.vmem %s2, %s268
      %p270 = pneg %p110
      %p271 = pneg %p107
      %p272 = scmp.lt.s32.totalorder %s23, 0
      %s273 = scalar_select %p272, %s23, 0
      %s274 = smul.addr %s273, 4
      %s275 = scalar_lea.vmem %s3, %s274
      %p276 = pneg %p136
      %p277 = pneg %p133
      %p278 = scmp.lt.s32.totalorder %s23, 0
      %s279 = scalar_select %p278, %s23, 0
      %s280 = scalar_lea.vmem %s4, %s279
      %p281 = pneg %p162
      %p282 = pneg %p159
      %p283 = pneg %p192
      %p284 = pneg %p189
      %p285 = scmp.lt.s32.totalorder %s21, 1
      %s286 = scalar_select %p285, %s21, 1
      %p287 = scmp.lt.s32.totalorder %s22, 0
      %s288 = scalar_select %p287, %s22, 0
      %p289 = scmp.lt.s32.totalorder %s23, 0
      %s290 = scalar_select %p289, %s23, 0
      %s291 = sadd.s32 %s290, %s288
      %s292 = sadd.s32 %s291, %s286
      %s293 = smul.addr %s292, 4
      %s294 = scalar_lea.vmem %s5, %s293
      %p295 = scmp.lt.s32.totalorder %s21, 1
      %s296 = scalar_select %p295, %s21, 1
      %p297 = scmp.lt.s32.totalorder %s22, 0
      %s298 = scalar_select %p297, %s22, 0
      %s299 = sadd.s32 %s298, %s296
      %s300 = smul.addr %s299, 8
      %s301 = scalar_lea.vmem %s0, %s300
      %p302 = scmp.lt.s32.totalorder %s21, 1
      %s303 = scalar_select %p302, %s21, 1
      %s304 = scalar_lea.vmem %s1, %s303
      %p305 = scmp.lt.s32.totalorder %s21, 1
      %s306 = scalar_select %p305, %s21, 1
      %s307 = scalar_lea.vmem %s2, %s306
      %p308 = scmp.lt.s32.totalorder %s23, 0
      %s309 = scalar_select %p308, %s23, 0
      %s310 = smul.addr %s309, 4
      %s311 = scalar_lea.vmem %s3, %s310
      %p312 = scmp.lt.s32.totalorder %s23, 0
      %s313 = scalar_select %p312, %s23, 0
      %s314 = scalar_lea.vmem %s4, %s313
      %p315 = scmp.lt.s32.totalorder %s21, 1
      %s316 = scalar_select %p315, %s21, 1
      %p317 = scmp.lt.s32.totalorder %s22, 0
      %s318 = scalar_select %p317, %s22, 0
      %p319 = scmp.lt.s32.totalorder %s23, 0
      %s320 = scalar_select %p319, %s23, 0
      %s321 = sadd.s32 %s320, %s318
      %s322 = sadd.s32 %s321, %s316
      %s323 = smul.addr %s322, 4
      %s324 = scalar_lea.vmem %s5, %s323
      %p326 = scmp.eq.s32.totalorder %s23, 0
      // Predicated region
      $region41: #{joint_transformer_block_with_envmap.12} parent=39 // pred_check
        %p327 = pneg %p326
      $region42: #{joint_transformer_block_with_envmap.12} parent=39 // pred_check_branch
        %329 = sbr.rel (%p327) target = $region44
      $region43: #{joint_transformer_block_with_envmap.12} parent=39 // pred_region
        %v330 = vld [vmem:[%s301] sm:$0xff]
        %vm331 = vcmask 261120
        %v332 = vsel %vm331, %v330, 0.0
        %333 = vadd.xlane.f32.xlu0 %v332
        %v334 = vpop.xlane.xlu0 %333
        %v335 = vrcp.pop 32.0
        %v336 = vmul.f32 %v334, %v335
        %v337 = vsub.f32 %v330, %v336
        %v338 = vmul.f32 %v337, %v337
        %v339 = vsel %vm331, %v338, 0.0
        %340 = vadd.xlane.f32.xlu0 %v339
        %v341 = vpop.xlane.xlu0 %340
        %v342 = vmul.f32 %v341, %v335
        %v343 = vadd.f32 %v342, 1e-06
        %v344 = vrsqrt.pop %v343
        %v345 = vmul.f32 %v337, %v344
        %v346 = vld [vmem:[%s304] sm:$0x1]
        %v347 = vadd.f32 %v346, 1.0
        %v349 = vlaneseq
        %v350 = vshrl.u32 %v349, 7
        %v351 = vsub.s32 0, %v350
        %v352 = vrot.slane %v347, %v351
        %v354 = vmul.f32 %v345, %v352
        %v355 = vld [vmem:[%s307] sm:$0x1]
        %v357 = vlaneseq
        %v358 = vshrl.u32 %v357, 7
        %v359 = vsub.s32 0, %v358
        %v360 = vrot.slane %v355, %v359
        %v362 = vadd.f32 %v354, %v360
        %v363 = vpack.c.bf16 %v362, %v362
        %vm364 = vcmask 257024
        %365 = vst.msk [vmem:[#allocation2] sm:$0xf] %vm364, %v363
      $region44: #{joint_transformer_block_with_envmap.12} parent=39 // pred_fallthru
        _
      %v366 = vld [vmem:[#allocation2] sm:$0xf]
      %v367 = vld [vmem:[%s311] sm:$0xf]
      %v368 = vld [vmem:[%s311 + $0x4] sm:$0xf]
      %v369 = vld [vmem:[%s311 + $0x8] sm:$0xf]
      %v370 = vld [vmem:[%s311 + $0xc] sm:$0xf]
      %v371 = vld [vmem:[%s314] sm:$0x1]
      %v373 = vlaneseq
      %v374 = vshrl.u32 %v373, 7
      %v375 = vsub.s32 0, %v374
      %v376 = vrot.slane %v371, %v375
      %v382 = vunpack.c.l.b16 %v367
      %v383 = vunpack.c.l.b16 %v368
      %v384 = vunpack.c.l.b16 %v369
      %v385 = vunpack.c.l.b16 %v370
      %v386 = vpack.c.b16 %v383, %v382
      %v387 = vpack.c.b16 %v385, %v384
      %vm390 = vcmask 261120
      %v392 = vsel %vm390, %v366, 0
      %394 = vmatprep.subr.bf16.mxu0 0
      %395 = vmatpush1.bf16.msra.mxu0 %v386
      %396 = vmatprep.subr.bf16.mxu0 0
      %397 = vmatpush1.bf16.msra.mxu0 %v387
      %398 = vmatprep.subr.bf16.mxu0 0
      %399 = vmatpush1.bf16.msra.mxu0 0
      %400 = vmatprep.subr.bf16.mxu0 0
      %401 = vmatpush1.bf16.msra.mxu0 0
      %402 = vmatprep.subr.bf16.mxu0 0
      %403 = vmatpush1.bf16.msra.mxu0 0
      %404 = vmatprep.subr.bf16.mxu0 0
      %405 = vmatpush1.bf16.msra.mxu0 0
      %406 = vmatprep.subr.bf16.mxu0 0
      %407 = vmatpush1.bf16.msra.mxu0 0
      %408 = vmatprep.subr.bf16.mxu0 0
      %409 = vmatpush1.bf16.msra.mxu0 0
      %410 = vmatprep.subr.bf16.mxu0 0
      %411 = vmatpush1.bf16.msra.mxu0 0
      %412 = vmatprep.subr.bf16.mxu0 0
      %413 = vmatpush1.bf16.msra.mxu0 0
      %414 = vmatprep.subr.bf16.mxu0 0
      %415 = vmatpush1.bf16.msra.mxu0 0
      %416 = vmatprep.subr.bf16.mxu0 0
      %417 = vmatpush1.bf16.msra.mxu0 0
      %418 = vmatprep.subr.bf16.mxu0 0
      %419 = vmatpush1.bf16.msra.mxu0 0
      %420 = vmatprep.subr.bf16.mxu0 0
      %421 = vmatpush1.bf16.msra.mxu0 0
      %422 = vmatprep.subr.bf16.mxu0 0
      %423 = vmatpush1.bf16.msra.mxu0 0
      %424 = vmatprep.subr.bf16.mxu0 0
      %425 = vmatpush1.bf16.msra.mxu0 0
      %426 = vmatprep.mubr.bf16.mxu0 0
      %427 = vmatmul.mubr.bf16.gmra.mrb[0].mxu0 %v392
      %v428 = vpop.f32.mrb[0].mxu0
      %v429 = vadd.f32 %v376, %v428
      %v430 = vpop.f32.mrb[0].mxu0
      %v431 = vpop.f32.mrb[0].mxu0
      %v432 = vpop.f32.mrb[0].mxu0
      %433 = vdwg.mxu0
      %v434 = vpack.c.bf16 %v429, %v429
      %435 = vst [vmem:[%s324] sm:$0xf] %v434
      %p436 = scmp.lt.s32.totalorder %s21, 1
      %s437 = scalar_select %p436, %s21, 1
      %p438 = scmp.lt.s32.totalorder %s22, 0
      %s439 = scalar_select %p438, %s22, 0
      %p440 = scmp.lt.s32.totalorder %s23, 0
      %s441 = scalar_select %p440, %s23, 0
      %s442 = sadd.s32 %s441, %s439
      %s443 = sadd.s32 %s442, %s437
      %s444 = smul.addr %s443, 4
      %s445 = scalar_lea.vmem %s5, %s444
      // Predicated region
      $region45: #{joint_transformer_block_with_envmap.12} parent=39 // pred_check
        %p446 = pneg %p189
      $region46: #{joint_transformer_block_with_envmap.12} parent=39 // pred_check_branch
        %448 = sbr.rel (%p446) target = $region48
      $region47: #{joint_transformer_block_with_envmap.12} parent=39 // pred_region
        _
      $region48: #{joint_transformer_block_with_envmap.12} parent=39 // pred_fallthru
        _
    $region40: #{joint_transformer_block_with_envmap.12} parent=5 // pred_fallthru
      _
    %p449 = scmp.le.s32.totalorder 2, %s11
    // Predicated region
    $region49: #{joint_transformer_block_with_envmap.12} parent=5 // pred_check
      %p450 = pneg %p449
    $region50: #{joint_transformer_block_with_envmap.12} parent=5 // pred_check_branch
      %452 = sbr.rel (%p450) target = $region52
    $region51: #{joint_transformer_block_with_envmap.12} parent=5 // pred_region
      %s453 = ssub.s32 %s11, 2
      // Predicated region
      $region53: #{joint_transformer_block_with_envmap.12} parent=51 // pred_check
        %p454 = pneg %p195
      $region54: #{joint_transformer_block_with_envmap.12} parent=51 // pred_check_branch
        %456 = sbr.rel (%p454) target = $region56
      $region55: #{joint_transformer_block_with_envmap.12} parent=51 // pred_region
        %p457 = scmp.lt.s32.totalorder %s24, 1
        %s458 = scalar_select %p457, %s24, 1
        %p459 = scmp.lt.s32.totalorder %s25, 0
        %s460 = scalar_select %p459, %s25, 0
        %p461 = scmp.lt.s32.totalorder %s26, 0
        %s462 = scalar_select %p461, %s26, 0
        %s463 = sadd.s32 %s462, %s460
        %s464 = sadd.s32 %s463, %s458
        %s465 = smul.addr %s464, 4
        %s466 = scalar_lea.vmem %s5, %s465
      $region56: #{joint_transformer_block_with_envmap.12} parent=51 // pred_fallthru
        _
    $region52: #{joint_transformer_block_with_envmap.12} parent=5 // pred_fallthru
      _
  $region6: #{joint_transformer_block_with_envmap.12} parent=0 // loop_footer
    %s15 = sadd.s32 1, %s11
  $region7: #{joint_transformer_block_with_envmap.12} parent=0 // loop_footer_branch
    %10 = sbr.rel target = $region3
  $region8: #{joint_transformer_block_with_envmap.12} parent=0 // loop_exit
    _

// kernel: joint_transformer_block_with_envmap.13
$region0: #{joint_transformer_block_with_envmap.13}
  #allocation0 [shape = 'u32[]', space=smem, size = 0x4, offset = 0x4, fixed_abs, tag = 'smem constant byte address 0x4 - core index']
  #allocation1 [shape = 'u32[144,128]{1,0:T(1,128)}', space=vmem, size = 0x12000, scoped, tag = 'internal scratch']
  #allocation2 [shape = 'bf16[8,32]{1,0:T(8,128)(2,1)}', space=vmem, size = 0x800, scoped, tag = 'scratch operand']
  %s0 = inlined_call_operand.vmem [shape: f32[2,8,32], index: 0, kind: input, shape index: {}]
  %s1 = inlined_call_operand.vmem [shape: f32[2,1,32], index: 1, kind: input, shape index: {}]
  %s2 = inlined_call_operand.vmem [shape: f32[2,1,32], index: 2, kind: input, shape index: {}]
  %s3 = inlined_call_operand.vmem [shape: bf16[32,96], index: 3, kind: input, shape index: {}]
  %s4 = inlined_call_operand.vmem [shape: f32[1,1,96], index: 4, kind: input, shape index: {}]
  %s5 = inlined_call_operand.vmem [shape: bf16[2,8,96], index: 5, kind: output, shape index: {}]
  %s6 = sld [smem:[#allocation0]]
  $region57: #{joint_transformer_block_with_envmap.13} parent=0
    _
  %s8 = ssub.s32 1, %s6
  %s9 = scalar_select 0, %s8, %s6
  loop: start=0, step=1, limit=4
  $region2: #{joint_transformer_block_with_envmap.13} parent=0 // loop_pre_header
    _
  $region3: #{joint_transformer_block_with_envmap.13} parent=0 // loop_header
    %s11 = sphi 0, %s15
    %p12 = scmp.ge.s32.totalorder %s11, 4
    %s18 = sphi 0, %s37
    %s19 = sphi 0, %s33
    %s20 = sphi 0, %s29
    %s21 = sphi 0, %s18
    %s22 = sphi 0, %s19
    %s23 = sphi 0, %s20
    %s24 = sphi 0, %s21
    %s25 = sphi 0, %s22
    %s26 = sphi 0, %s23
    %s42 = sphi 0, %s44
    %s45 = sphi 0, %s42
    %s46 = sphi 0, %s45
    %s62 = sphi 0, %s46
    %s68 = sphi 0, %s70
    %s71 = sphi 0, %s68
    %s72 = sphi 0, %s71
    %s88 = sphi 0, %s72
    %s94 = sphi 0, %s96
    %s97 = sphi 0, %s94
    %s98 = sphi 0, %s97
    %s114 = sphi 0, %s98
    %s120 = sphi 0, %s122
    %s123 = sphi 0, %s120
    %s124 = sphi 0, %s123
    %s140 = sphi 0, %s124
    %s146 = sphi 0, %s148
    %s149 = sphi 0, %s146
    %s150 = sphi 0, %s149
    %s166 = sphi 0, %s150
    %s176 = sphi 0, %s178
    %s179 = sphi 0, %s176
    %s180 = sphi 0, %s179
    %s196 = sphi 0, %s180
  $region4: #{joint_transformer_block_with_envmap.13} parent=0 // loop_header_branch
    %14 = sbr.rel (%p12) target = $region8
  $region5: #{joint_transformer_block_with_envmap.13} parent=0 // loop_body
    %s16 = ssub.s32 %s11, 1
    %s17 = ssub.s32 %s11, 2
    %s27 = sadd.s32 1, %s20
    %p28 = scmp.ge.s32.totalorder %s27, 1
    %s29 = scalar_select %p28, 0, %s27
    %s30 = sadd.s32 1, %s19
    %s31 = scalar_select %p28, %s30, %s19
    %p32 = scmp.ge.s32.totalorder %s31, 1
    %s33 = scalar_select %p32, 0, %s31
    %s34 = sadd.s32 1, %s18
    %s35 = scalar_select %p32, %s34, %s18
    %p36 = scmp.ge.s32.totalorder %s35, 2
    %s37 = scalar_select %p36, 0, %s35
    %s38 = ssub.s32 %s18, %s37
    %s39 = ssub.s32 %s19, %s33
    %s40 = sor.u32 %s38, %s39
    %p41 = scmp.eq.s32.totalorder %s40, 0
    %s43 = sadd.s32 %s42, 1
    %s44 = scalar_select %p41, %s42, %s43
    %p47 = pneg %p41
    %p48 = scmp.eq.s32.totalorder %s11, 1
    %p49 = por %p47, %p48
    %p50 = scmp.ne.s32.totalorder %s42, %s45
    %p51 = scmp.eq.s32.totalorder %s11, 0
    %p52 = por %p50, %p51
    %p53 = scmp.ne.s32.totalorder %s42, %s45
    %p54 = scmp.eq.s32.totalorder %s16, 1
    %p55 = por %p53, %p54
    %p56 = scmp.ne.s32.totalorder %s45, %s46
    %p57 = scmp.eq.s32.totalorder %s16, 0
    %p58 = por %p56, %p57
    %p59 = scmp.ne.s32.totalorder %s45, %s46
    %p60 = scmp.eq.s32.totalorder %s17, 1
    %p61 = por %p59, %p60
    %p63 = scmp.ne.s32.totalorder %s46, %s62
    %p64 = scmp.eq.s32.totalorder %s17, 0
    %p65 = por %p63, %p64
    %s66 = ssub.s32 %s18, %s37
    %p67 = scmp.eq.s32.totalorder %s66, 0
    %s69 = sadd.s32 %s68, 1
    %s70 = scalar_select %p67, %s68, %s69
    %p73 = pneg %p67
    %p74 = scmp.eq.s32.totalorder %s11, 1
    %p75 = por %p73, %p74
    %p76 = scmp.ne.s32.totalorder %s68, %s71
    %p77 = scmp.eq.s32.totalorder %s11, 0
    %p78 = por %p76, %p77
    %p79 = scmp.ne.s32.totalorder %s68, %s71
    %p80 = scmp.eq.s32.totalorder %s16, 1
    %p81 = por %p79, %p80
    %p82 = scmp.ne.s32.totalorder %s71, %s72
    %p83 = scmp.eq.s32.totalorder %s16, 0
    %p84 = por %p82, %p83
    %p85 = scmp.ne.s32.totalorder %s71, %s72
    %p86 = scmp.eq.s32.totalorder %s17, 1
    %p87 = por %p85, %p86
    %p89 = scmp.ne.s32.totalorder %s72, %s88
    %p90 = scmp.eq.s32.totalorder %s17, 0
    %p91 = por %p89, %p90
    %s92 = ssub.s32 %s18, %s37
    %p93 = scmp.eq.s32.totalorder %s92, 0
    %s95 = sadd.s32 %s94, 1
    %s96 = scalar_select %p93, %s94, %s95
    %p99 = pneg %p93
    %p100 = scmp.eq.s32.totalorder %s11, 1
    %p101 = por %p99, %p100
    %p102 = scmp.ne.s32.totalorder %s94, %s97
    %p103 = scmp.eq.s32.totalorder %s11, 0
    %p104 = por %p102, %p103
    %p105 = scmp.ne.s32.totalorder %s94, %s97
    %p106 = scmp.eq.s32.totalorder %s16, 1
    %p107 = por %p105, %p106
    %p108 = scmp.ne.s32.totalorder %s97, %s98
    %p109 = scmp.eq.s32.totalorder %s16, 0
    %p110 = por %p108, %p109
    %p111 = scmp.ne.s32.totalorder %s97, %s98
    %p112 = scmp.eq.s32.totalorder %s17, 1
    %p113 = por %p111, %p112
    %p115 = scmp.ne.s32.totalorder %s98, %s114
    %p116 = scmp.eq.s32.totalorder %s17, 0
    %p117 = por %p115, %p116
    %s118 = ssub.s32 %s20, %s29
    %p119 = scmp.eq.s32.totalorder %s118, 0
    %s121 = sadd.s32 %s120, 1
    %s122 = scalar_select %p119, %s120, %s121
    %p125 = pneg %p119
    %p126 = scmp.eq.s32.totalorder %s11, 1
    %p127 = por %p125, %p126
    %p128 = scmp.ne.s32.totalorder %s120, %s123
    %p129 = scmp.eq.s32.totalorder %s11, 0
    %p130 = por %p128, %p129
    %p131 = scmp.ne.s32.totalorder %s120, %s123
    %p132 = scmp.eq.s32.totalorder %s16, 1
    %p133 = por %p131, %p132
    %p134 = scmp.ne.s32.totalorder %s123, %s124
    %p135 = scmp.eq.s32.totalorder %s16, 0
    %p136 = por %p134, %p135
    %p137 = scmp.ne.s32.totalorder %s123, %s124
    %p138 = scmp.eq.s32.totalorder %s17, 1
    %p139 = por %p137, %p138
    %p141 = scmp.ne.s32.totalorder %s124, %s140
    %p142 = scmp.eq.s32.totalorder %s17, 0
    %p143 = por %p141, %p142
    %s144 = ssub.s32 %s20, %s29
    %p145 = scmp.eq.s32.totalorder %s144, 0
    %s147 = sadd.s32 %s146, 1
    %s148 = scalar_select %p145, %s146, %s147
    %p151 = pneg %p145
    %p152 = scmp.eq.s32.totalorder %s11, 1
    %p153 = por %p151, %p152
    %p154 = scmp.ne.s32.totalorder %s146, %s149
    %p155 = scmp.eq.s32.totalorder %s11, 0
    %p156 = por %p154, %p155
    %p157 = scmp.ne.s32.totalorder %s146, %s149
    %p158 = scmp.eq.s32.totalorder %s16, 1
    %p159 = por %p157, %p158
    %p160 = scmp.ne.s32.totalorder %s149, %s150
    %p161 = scmp.eq.s32.totalorder %s16, 0
    %p162 = por %p160, %p161
    %p163 = scmp.ne.s32.totalorder %s149, %s150
    %p164 = scmp.eq.s32.totalorder %s17, 1
    %p165 = por %p163, %p164
    %p167 = scmp.ne.s32.totalorder %s150, %s166
    %p168 = scmp.eq.s32.totalorder %s17, 0
    %p169 = por %p167, %p168
    %s170 = ssub.s32 %s18, %s37
    %s171 = ssub.s32 %s19, %s33
    %s172 = sor.u32 %s170, %s171
    %s173 = ssub.s32 %s20, %s29
    %s174 = sor.u32 %s172, %s173
    %p175 = scmp.eq.s32.totalorder %s174, 0
    %s177 = sadd.s32 %s176, 1
    %s178 = scalar_select %p175, %s176, %s177
    %p181 = pneg %p175
    %p182 = scmp.eq.s32.totalorder %s11, 1
    %p183 = por %p181, %p182
    %p184 = scmp.ne.s32.totalorder %s176, %s179
    %p185 = scmp.eq.s32.totalorder %s11, 0
    %p186 = por %p184, %p185
    %p187 = scmp.ne.s32.totalorder %s176, %s179
    %p188 = scmp.eq.s32.totalorder %s16, 1
    %p189 = por %p187, %p188
    %p190 = scmp.ne.s32.totalorder %s179, %s180
    %p191 = scmp.eq.s32.totalorder %s16, 0
    %p192 = por %p190, %p191
    %p193 = scmp.ne.s32.totalorder %s179, %s180
    %p194 = scmp.eq.s32.totalorder %s17, 1
    %p195 = por %p193, %p194
    %p197 = scmp.ne.s32.totalorder %s180, %s196
    %p198 = scmp.eq.s32.totalorder %s17, 0
    %p199 = por %p197, %p198
    %p200 = scmp.le.s32.totalorder 1, %s11
    %p201 = scmp.lt.s32.totalorder %s11, 3
    %p202 = pnand %p200, %p201
    %p203 = pneg %p202
    // Predicated region
    $region9: #{joint_transformer_block_with_envmap.13} parent=5 // pred_check
      _
    $region10: #{joint_transformer_block_with_envmap.13} parent=5 // pred_check_branch
      %205 = sbr.rel (%p202) target = $region12
    $region11: #{joint_transformer_block_with_envmap.13} parent=5 // pred_region
      %s206 = ssub.s32 %s11, 1
      // Predicated region
      $region13: #{joint_transformer_block_with_envmap.13} parent=11 // pred_check
        %p207 = pneg %p136
      $region14: #{joint_transformer_block_with_envmap.13} parent=11 // pred_check_branch
        %209 = sbr.rel (%p207) target = $region16
      $region15: #{joint_transformer_block_with_envmap.13} parent=11 // pred_region
        %p210 = scmp.lt.s32.totalorder %s23, 0
        %s211 = scalar_select %p210, %s23, 0
        %s212 = smul.addr %s211, 4
        %s213 = scalar_lea.vmem %s3, %s212
      $region16: #{joint_transformer_block_with_envmap.13} parent=11 // pred_fallthru
        _
      // Predicated region
      $region17: #{joint_transformer_block_with_envmap.13} parent=11 // pred_check
        %p214 = pneg %p162
      $region18: #{joint_transformer_block_with_envmap.13} parent=11 // pred_check_branch
        %216 = sbr.rel (%p214) target = $region20
      $region19: #{joint_transformer_block_with_envmap.13} parent=11 // pred_region
        %p217 = scmp.lt.s32.totalorder %s23, 0
        %s218 = scalar_select %p217, %s23, 0
        %s219 = scalar_lea.vmem %s4, %s218
      $region20: #{joint_transformer_block_with_envmap.13} parent=11 // pred_fallthru
        _
    $region12: #{joint_transformer_block_with_envmap.13} parent=5 // pred_fallthru
      _
    %p220 = scmp.lt.s32.totalorder %s11, 2
    // Predicated region
    $region21: #{joint_transformer_block_with_envmap.13} parent=5 // pred_check
      %p221 = pneg %p220
    $region22: #{joint_transformer_block_with_envmap.13} parent=5 // pred_check_branch
      %223 = sbr.rel (%p221) target = $region24
    $region23: #{joint_transformer_block_with_envmap.13} parent=5 // pred_region
      // Predicated region
      $region25: #{joint_transformer_block_with_envmap.13} parent=23 // pred_check
        %p224 = pneg %p52
      $region26: #{joint_transformer_block_with_envmap.13} parent=23 // pred_check_branch
        %226 = sbr.rel (%p224) target = $region28
      $region27: #{joint_transformer_block_with_envmap.13} parent=23 // pred_region
        %p227 = scmp.lt.s32.totalorder %s18, 1
        %s228 = scalar_select %p227, %s18, 1
        %p229 = scmp.lt.s32.totalorder %s19, 0
        %s230 = scalar_select %p229, %s19, 0
        %s231 = sadd.s32 %s230, %s228
        %s232 = smul.addr %s231, 8
        %s233 = scalar_lea.vmem %s0, %s232
      $region28: #{joint_transformer_block_with_envmap.13} parent=23 // pred_fallthru
        _
      // Predicated region
      $region29: #{joint_transformer_block_with_envmap.13} parent=23 // pred_check
        %p234 = pneg %p78
      $region30: #{joint_transformer_block_with_envmap.13} parent=23 // pred_check_branch
        %236 = sbr.rel (%p234) target = $region32
      $region31: #{joint_transformer_block_with_envmap.13} parent=23 // pred_region
        %p237 = scmp.lt.s32.totalorder %s18, 1
        %s238 = scalar_select %p237, %s18, 1
        %s239 = scalar_lea.vmem %s1, %s238
      $region32: #{joint_transformer_block_with_envmap.13} parent=23 // pred_fallthru
        _
      // Predicated region
      $region33: #{joint_transformer_block_with_envmap.13} parent=23 // pred_check
        %p240 = pneg %p104
      $region34: #{joint_transformer_block_with_envmap.13} parent=23 // pred_check_branch
        %242 = sbr.rel (%p240) target = $region36
      $region35: #{joint_transformer_block_with_envmap.13} parent=23 // pred_region
        %p243 = scmp.lt.s32.totalorder %s18, 1
        %s244 = scalar_select %p243, %s18, 1
        %s245 = scalar_lea.vmem %s2, %s244
      $region36: #{joint_transformer_block_with_envmap.13} parent=23 // pred_fallthru
        _
    $region24: #{joint_transformer_block_with_envmap.13} parent=5 // pred_fallthru
      _
    %p246 = scmp.le.s32.totalorder 1, %s11
    %p247 = scmp.lt.s32.totalorder %s11, 3
    %p248 = pnand %p246, %p247
    %p249 = pneg %p248
    // Predicated region
    $region37: #{joint_transformer_block_with_envmap.13} parent=5 // pred_check
      _
    $region38: #{joint_transformer_block_with_envmap.13} parent=5 // pred_check_branch
      %251 = sbr.rel (%p248) target = $region40
    $region39: #{joint_transformer_block_with_envmap.13} parent=5 // pred_region
      %s252 = ssub.s32 %s11, 1
      %p253 = scmp.lt.s32.totalorder %s21, 1
      %s254 = scalar_select %p253, %s21, 1
      %p255 = scmp.lt.s32.totalorder %s22, 0
      %s256 = scalar_select %p255, %s22, 0
      %s257 = sadd.s32 %s256, %s254
      %s258 = smul.addr %s257, 8
      %s259 = scalar_lea.vmem %s0, %s258
      %p260 = pneg %p58
      %p261 = pneg %p55
      %p262 = scmp.lt.s32.totalorder %s21, 1
      %s263 = scalar_select %p262, %s21, 1
      %s264 = scalar_lea.vmem %s1, %s263
      %p265 = pneg %p84
      %p266 = pneg %p81
      %p267 = scmp.lt.s32.totalorder %s21, 1
      %s268 = scalar_select %p267, %s21, 1
      %s269 = scalar_lea.vmem %s2, %s268
      %p270 = pneg %p110
      %p271 = pneg %p107
      %p272 = scmp.lt.s32.totalorder %s23, 0
      %s273 = scalar_select %p272, %s23, 0
      %s274 = smul.addr %s273, 4
      %s275 = scalar_lea.vmem %s3, %s274
      %p276 = pneg %p136
      %p277 = pneg %p133
      %p278 = scmp.lt.s32.totalorder %s23, 0
      %s279 = scalar_select %p278, %s23, 0
      %s280 = scalar_lea.vmem %s4, %s279
      %p281 = pneg %p162
      %p282 = pneg %p159
      %p283 = pneg %p192
      %p284 = pneg %p189
      %p285 = scmp.lt.s32.totalorder %s21, 1
      %s286 = scalar_select %p285, %s21, 1
      %p287 = scmp.lt.s32.totalorder %s22, 0
      %s288 = scalar_select %p287, %s22, 0
      %p289 = scmp.lt.s32.totalorder %s23, 0
      %s290 = scalar_select %p289, %s23, 0
      %s291 = sadd.s32 %s290, %s288
      %s292 = sadd.s32 %s291, %s286
      %s293 = smul.addr %s292, 4
      %s294 = scalar_lea.vmem %s5, %s293
      %p295 = scmp.lt.s32.totalorder %s21, 1
      %s296 = scalar_select %p295, %s21, 1
      %p297 = scmp.lt.s32.totalorder %s22, 0
      %s298 = scalar_select %p297, %s22, 0
      %s299 = sadd.s32 %s298, %s296
      %s300 = smul.addr %s299, 8
      %s301 = scalar_lea.vmem %s0, %s300
      %p302 = scmp.lt.s32.totalorder %s21, 1
      %s303 = scalar_select %p302, %s21, 1
      %s304 = scalar_lea.vmem %s1, %s303
      %p305 = scmp.lt.s32.totalorder %s21, 1
      %s306 = scalar_select %p305, %s21, 1
      %s307 = scalar_lea.vmem %s2, %s306
      %p308 = scmp.lt.s32.totalorder %s23, 0
      %s309 = scalar_select %p308, %s23, 0
      %s310 = smul.addr %s309, 4
      %s311 = scalar_lea.vmem %s3, %s310
      %p312 = scmp.lt.s32.totalorder %s23, 0
      %s313 = scalar_select %p312, %s23, 0
      %s314 = scalar_lea.vmem %s4, %s313
      %p315 = scmp.lt.s32.totalorder %s21, 1
      %s316 = scalar_select %p315, %s21, 1
      %p317 = scmp.lt.s32.totalorder %s22, 0
      %s318 = scalar_select %p317, %s22, 0
      %p319 = scmp.lt.s32.totalorder %s23, 0
      %s320 = scalar_select %p319, %s23, 0
      %s321 = sadd.s32 %s320, %s318
      %s322 = sadd.s32 %s321, %s316
      %s323 = smul.addr %s322, 4
      %s324 = scalar_lea.vmem %s5, %s323
      %p326 = scmp.eq.s32.totalorder %s23, 0
      // Predicated region
      $region41: #{joint_transformer_block_with_envmap.13} parent=39 // pred_check
        %p327 = pneg %p326
      $region42: #{joint_transformer_block_with_envmap.13} parent=39 // pred_check_branch
        %329 = sbr.rel (%p327) target = $region44
      $region43: #{joint_transformer_block_with_envmap.13} parent=39 // pred_region
        %v330 = vld [vmem:[%s301] sm:$0xff]
        %vm331 = vcmask 261120
        %v332 = vsel %vm331, %v330, 0.0
        %333 = vadd.xlane.f32.xlu0 %v332
        %v334 = vpop.xlane.xlu0 %333
        %v335 = vrcp.pop 32.0
        %v336 = vmul.f32 %v334, %v335
        %v337 = vsub.f32 %v330, %v336
        %v338 = vmul.f32 %v337, %v337
        %v339 = vsel %vm331, %v338, 0.0
        %340 = vadd.xlane.f32.xlu0 %v339
        %v341 = vpop.xlane.xlu0 %340
        %v342 = vmul.f32 %v341, %v335
        %v343 = vadd.f32 %v342, 1e-06
        %v344 = vrsqrt.pop %v343
        %v345 = vmul.f32 %v337, %v344
        %v346 = vld [vmem:[%s304] sm:$0x1]
        %v347 = vadd.f32 %v346, 1.0
        %v349 = vlaneseq
        %v350 = vshrl.u32 %v349, 7
        %v351 = vsub.s32 0, %v350
        %v352 = vrot.slane %v347, %v351
        %v354 = vmul.f32 %v345, %v352
        %v355 = vld [vmem:[%s307] sm:$0x1]
        %v357 = vlaneseq
        %v358 = vshrl.u32 %v357, 7
        %v359 = vsub.s32 0, %v358
        %v360 = vrot.slane %v355, %v359
        %v362 = vadd.f32 %v354, %v360
        %v363 = vpack.c.bf16 %v362, %v362
        %vm364 = vcmask 257024
        %365 = vst.msk [vmem:[#allocation2] sm:$0xf] %vm364, %v363
      $region44: #{joint_transformer_block_with_envmap.13} parent=39 // pred_fallthru
        _
      %v366 = vld [vmem:[#allocation2] sm:$0xf]
      %v367 = vld [vmem:[%s311] sm:$0xf]
      %v368 = vld [vmem:[%s311 + $0x4] sm:$0xf]
      %v369 = vld [vmem:[%s311 + $0x8] sm:$0xf]
      %v370 = vld [vmem:[%s311 + $0xc] sm:$0xf]
      %v371 = vld [vmem:[%s314] sm:$0x1]
      %v373 = vlaneseq
      %v374 = vshrl.u32 %v373, 7
      %v375 = vsub.s32 0, %v374
      %v376 = vrot.slane %v371, %v375
      %v382 = vunpack.c.l.b16 %v367
      %v383 = vunpack.c.l.b16 %v368
      %v384 = vunpack.c.l.b16 %v369
      %v385 = vunpack.c.l.b16 %v370
      %v386 = vpack.c.b16 %v383, %v382
      %v387 = vpack.c.b16 %v385, %v384
      %vm390 = vcmask 261120
      %v392 = vsel %vm390, %v366, 0
      %394 = vmatprep.subr.bf16.mxu0 0
      %395 = vmatpush1.bf16.msra.mxu0 %v386
      %396 = vmatprep.subr.bf16.mxu0 0
      %397 = vmatpush1.bf16.msra.mxu0 %v387
      %398 = vmatprep.subr.bf16.mxu0 0
      %399 = vmatpush1.bf16.msra.mxu0 0
      %400 = vmatprep.subr.bf16.mxu0 0
      %401 = vmatpush1.bf16.msra.mxu0 0
      %402 = vmatprep.subr.bf16.mxu0 0
      %403 = vmatpush1.bf16.msra.mxu0 0
      %404 = vmatprep.subr.bf16.mxu0 0
      %405 = vmatpush1.bf16.msra.mxu0 0
      %406 = vmatprep.subr.bf16.mxu0 0
      %407 = vmatpush1.bf16.msra.mxu0 0
      %408 = vmatprep.subr.bf16.mxu0 0
      %409 = vmatpush1.bf16.msra.mxu0 0
      %410 = vmatprep.subr.bf16.mxu0 0
      %411 = vmatpush1.bf16.msra.mxu0 0
      %412 = vmatprep.subr.bf16.mxu0 0
      %413 = vmatpush1.bf16.msra.mxu0 0
      %414 = vmatprep.subr.bf16.mxu0 0
      %415 = vmatpush1.bf16.msra.mxu0 0
      %416 = vmatprep.subr.bf16.mxu0 0
      %417 = vmatpush1.bf16.msra.mxu0 0
      %418 = vmatprep.subr.bf16.mxu0 0
      %419 = vmatpush1.bf16.msra.mxu0 0
      %420 = vmatprep.subr.bf16.mxu0 0
      %421 = vmatpush1.bf16.msra.mxu0 0
      %422 = vmatprep.subr.bf16.mxu0 0
      %423 = vmatpush1.bf16.msra.mxu0 0
      %424 = vmatprep.subr.bf16.mxu0 0
      %425 = vmatpush1.bf16.msra.mxu0 0
      %426 = vmatprep.mubr.bf16.mxu0 0
      %427 = vmatmul.mubr.bf16.gmra.mrb[0].mxu0 %v392
      %v428 = vpop.f32.mrb[0].mxu0
      %v429 = vadd.f32 %v376, %v428
      %v430 = vpop.f32.mrb[0].mxu0
      %v431 = vpop.f32.mrb[0].mxu0
      %v432 = vpop.f32.mrb[0].mxu0
      %433 = vdwg.mxu0
      %v434 = vpack.c.bf16 %v429, %v429
      %vm435 = vcmask 781312
      %436 = vst.msk [vmem:[%s324] sm:$0xf] %vm435, %v434
      %p437 = scmp.lt.s32.totalorder %s21, 1
      %s438 = scalar_select %p437, %s21, 1
      %p439 = scmp.lt.s32.totalorder %s22, 0
      %s440 = scalar_select %p439, %s22, 0
      %p441 = scmp.lt.s32.totalorder %s23, 0
      %s442 = scalar_select %p441, %s23, 0
      %s443 = sadd.s32 %s442, %s440
      %s444 = sadd.s32 %s443, %s438
      %s445 = smul.addr %s444, 4
      %s446 = scalar_lea.vmem %s5, %s445
      // Predicated region
      $region45: #{joint_transformer_block_with_envmap.13} parent=39 // pred_check
        %p447 = pneg %p189
      $region46: #{joint_transformer_block_with_envmap.13} parent=39 // pred_check_branch
        %449 = sbr.rel (%p447) target = $region48
      $region47: #{joint_transformer_block_with_envmap.13} parent=39 // pred_region
        _
      $region48: #{joint_transformer_block_with_envmap.13} parent=39 // pred_fallthru
        _
    $region40: #{joint_transformer_block_with_envmap.13} parent=5 // pred_fallthru
      _
    %p450 = scmp.le.s32.totalorder 2, %s11
    // Predicated region
    $region49: #{joint_transformer_block_with_envmap.13} parent=5 // pred_check
      %p451 = pneg %p450
    $region50: #{joint_transformer_block_with_envmap.13} parent=5 // pred_check_branch
      %453 = sbr.rel (%p451) target = $region52
    $region51: #{joint_transformer_block_with_envmap.13} parent=5 // pred_region
      %s454 = ssub.s32 %s11, 2
      // Predicated region
      $region53: #{joint_transformer_block_with_envmap.13} parent=51 // pred_check
        %p455 = pneg %p195
      $region54: #{joint_transformer_block_with_envmap.13} parent=51 // pred_check_branch
        %457 = sbr.rel (%p455) target = $region56
      $region55: #{joint_transformer_block_with_envmap.13} parent=51 // pred_region
        %p458 = scmp.lt.s32.totalorder %s24, 1
        %s459 = scalar_select %p458, %s24, 1
        %p460 = scmp.lt.s32.totalorder %s25, 0
        %s461 = scalar_select %p460, %s25, 0
        %p462 = scmp.lt.s32.totalorder %s26, 0
        %s463 = scalar_select %p462, %s26, 0
        %s464 = sadd.s32 %s463, %s461
        %s465 = sadd.s32 %s464, %s459
        %s466 = smul.addr %s465, 4
        %s467 = scalar_lea.vmem %s5, %s466
      $region56: #{joint_transformer_block_with_envmap.13} parent=51 // pred_fallthru
        _
    $region52: #{joint_transformer_block_with_envmap.13} parent=5 // pred_fallthru
      _
  $region6: #{joint_transformer_block_with_envmap.13} parent=0 // loop_footer
    %s15 = sadd.s32 1, %s11
  $region7: #{joint_transformer_block_with_envmap.13} parent=0 // loop_footer_branch
    %10 = sbr.rel target = $region3
  $region8: #{joint_transformer_block_with_envmap.13} parent=0 // loop_exit
    _

// kernel: joint_transformer_block_with_envmap.14
$region0: #{joint_transformer_block_with_envmap.14}
  #allocation0 [shape = 'u32[]', space=smem, size = 0x4, offset = 0x4, fixed_abs, tag = 'smem constant byte address 0x4 - core index']
  #allocation1 [shape = 'u32[144,128]{1,0:T(1,128)}', space=vmem, size = 0x12000, scoped, tag = 'internal scratch']
  #allocation2 [shape = 'f32[2,16,1]{2,1,0:T(8,128)}', space=vmem, size = 0x4000, scoped, tag = 'scratch operand']
  #allocation3 [shape = 'f32[2,16,1]{2,1,0:T(8,128)}', space=vmem, size = 0x4000, scoped, tag = 'scratch operand']
  #allocation4 [shape = 'f32[2,16,16]{2,1,0:T(8,128)}', space=vmem, size = 0x4000, scoped, tag = 'scratch operand']
  %s0 = inlined_call_operand.vmem [shape: bf16[2,2,16,16], index: 0, kind: input, shape index: {}]
  %s1 = inlined_call_operand.vmem [shape: bf16[2,2,16,16], index: 1, kind: input, shape index: {}]
  %s2 = inlined_call_operand.vmem [shape: bf16[2,2,16,16], index: 2, kind: input, shape index: {}]
  %s3 = inlined_call_operand.vmem [shape: bf16[2,2,16,16], index: 3, kind: output, shape index: {}]
  %s4 = sld [smem:[#allocation0]]
  $region53: #{joint_transformer_block_with_envmap.14} parent=0
    _
  %s6 = ssub.s32 1, %s4
  %s7 = scalar_select 0, %s6, %s4
  loop: start=0, step=1, limit=4
  $region2: #{joint_transformer_block_with_envmap.14} parent=0 // loop_pre_header
    _
  $region3: #{joint_transformer_block_with_envmap.14} parent=0 // loop_header
    %s9 = sphi 0, %s13
    %p10 = scmp.ge.s32.totalorder %s9, 4
    %s16 = sphi 0, %s35
    %s17 = sphi 0, %s31
    %s18 = sphi 0, %s27
    %s19 = sphi 0, %s16
    %s20 = sphi 0, %s17
    %s21 = sphi 0, %s18
    %s22 = sphi 0, %s19
    %s23 = sphi 0, %s20
    %s24 = sphi 0, %s21
    %s40 = sphi 0, %s42
    %s43 = sphi 0, %s40
    %s44 = sphi 0, %s43
    %s60 = sphi 0, %s44
    %s68 = sphi 0, %s70
    %s71 = sphi 0, %s68
    %s72 = sphi 0, %s71
    %s88 = sphi 0, %s72
    %s96 = sphi 0, %s98
    %s99 = sphi 0, %s96
    %s100 = sphi 0, %s99
    %s116 = sphi 0, %s100
    %s124 = sphi 0, %s126
    %s127 = sphi 0, %s124
    %s128 = sphi 0, %s127
    %s144 = sphi 0, %s128
  $region4: #{joint_transformer_block_with_envmap.14} parent=0 // loop_header_branch
    %12 = sbr.rel (%p10) target = $region8
  $region5: #{joint_transformer_block_with_envmap.14} parent=0 // loop_body
    %s14 = ssub.s32 %s9, 1
    %s15 = ssub.s32 %s9, 2
    %s25 = sadd.s32 1, %s18
    %p26 = scmp.ge.s32.totalorder %s25, 1
    %s27 = scalar_select %p26, 0, %s25
    %s28 = sadd.s32 1, %s17
    %s29 = scalar_select %p26, %s28, %s17
    %p30 = scmp.ge.s32.totalorder %s29, 1
    %s31 = scalar_select %p30, 0, %s29
    %s32 = sadd.s32 1, %s16
    %s33 = scalar_select %p30, %s32, %s16
    %p34 = scmp.ge.s32.totalorder %s33, 2
    %s35 = scalar_select %p34, 0, %s33
    %s36 = ssub.s32 %s16, %s35
    %s37 = ssub.s32 %s17, %s31
    %s38 = sor.u32 %s36, %s37
    %p39 = scmp.eq.s32.totalorder %s38, 0
    %s41 = sadd.s32 %s40, 1
    %s42 = scalar_select %p39, %s40, %s41
    %p45 = pneg %p39
    %p46 = scmp.eq.s32.totalorder %s9, 1
    %p47 = por %p45, %p46
    %p48 = scmp.ne.s32.totalorder %s40, %s43
    %p49 = scmp.eq.s32.totalorder %s9, 0
    %p50 = por %p48, %p49
    %p51 = scmp.ne.s32.totalorder %s40, %s43
    %p52 = scmp.eq.s32.totalorder %s14, 1
    %p53 = por %p51, %p52
    %p54 = scmp.ne.s32.totalorder %s43, %s44
    %p55 = scmp.eq.s32.totalorder %s14, 0
    %p56 = por %p54, %p55
    %p57 = scmp.ne.s32.totalorder %s43, %s44
    %p58 = scmp.eq.s32.totalorder %s15, 1
    %p59 = por %p57, %p58
    %p61 = scmp.ne.s32.totalorder %s44, %s60
    %p62 = scmp.eq.s32.totalorder %s15, 0
    %p63 = por %p61, %p62
    %s64 = ssub.s32 %s16, %s35
    %s65 = ssub.s32 %s18, %s27
    %s66 = sor.u32 %s64, %s65
    %p67 = scmp.eq.s32.totalorder %s66, 0
    %s69 = sadd.s32 %s68, 1
    %s70 = scalar_select %p67, %s68, %s69
    %p73 = pneg %p67
    %p74 = scmp.eq.s32.totalorder %s9, 1
    %p75 = por %p73, %p74
    %p76 = scmp.ne.s32.totalorder %s68, %s71
    %p77 = scmp.eq.s32.totalorder %s9, 0
    %p78 = por %p76, %p77
    %p79 = scmp.ne.s32.totalorder %s68, %s71
    %p80 = scmp.eq.s32.totalorder %s14, 1
    %p81 = por %p79, %p80
    %p82 = scmp.ne.s32.totalorder %s71, %s72
    %p83 = scmp.eq.s32.totalorder %s14, 0
    %p84 = por %p82, %p83
    %p85 = scmp.ne.s32.totalorder %s71, %s72
    %p86 = scmp.eq.s32.totalorder %s15, 1
    %p87 = por %p85, %p86
    %p89 = scmp.ne.s32.totalorder %s72, %s88
    %p90 = scmp.eq.s32.totalorder %s15, 0
    %p91 = por %p89, %p90
    %s92 = ssub.s32 %s16, %s35
    %s93 = ssub.s32 %s18, %s27
    %s94 = sor.u32 %s92, %s93
    %p95 = scmp.eq.s32.totalorder %s94, 0
    %s97 = sadd.s32 %s96, 1
    %s98 = scalar_select %p95, %s96, %s97
    %p101 = pneg %p95
    %p102 = scmp.eq.s32.totalorder %s9, 1
    %p103 = por %p101, %p102
    %p104 = scmp.ne.s32.totalorder %s96, %s99
    %p105 = scmp.eq.s32.totalorder %s9, 0
    %p106 = por %p104, %p105
    %p107 = scmp.ne.s32.totalorder %s96, %s99
    %p108 = scmp.eq.s32.totalorder %s14, 1
    %p109 = por %p107, %p108
    %p110 = scmp.ne.s32.totalorder %s99, %s100
    %p111 = scmp.eq.s32.totalorder %s14, 0
    %p112 = por %p110, %p111
    %p113 = scmp.ne.s32.totalorder %s99, %s100
    %p114 = scmp.eq.s32.totalorder %s15, 1
    %p115 = por %p113, %p114
    %p117 = scmp.ne.s32.totalorder %s100, %s116
    %p118 = scmp.eq.s32.totalorder %s15, 0
    %p119 = por %p117, %p118
    %s120 = ssub.s32 %s16, %s35
    %s121 = ssub.s32 %s17, %s31
    %s122 = sor.u32 %s120, %s121
    %p123 = scmp.eq.s32.totalorder %s122, 0
    %s125 = sadd.s32 %s124, 1
    %s126 = scalar_select %p123, %s124, %s125
    %p129 = pneg %p123
    %p130 = scmp.eq.s32.totalorder %s9, 1
    %p131 = por %p129, %p130
    %p132 = scmp.ne.s32.totalorder %s124, %s127
    %p133 = scmp.eq.s32.totalorder %s9, 0
    %p134 = por %p132, %p133
    %p135 = scmp.ne.s32.totalorder %s124, %s127
    %p136 = scmp.eq.s32.totalorder %s14, 1
    %p137 = por %p135, %p136
    %p138 = scmp.ne.s32.totalorder %s127, %s128
    %p139 = scmp.eq.s32.totalorder %s14, 0
    %p140 = por %p138, %p139
    %p141 = scmp.ne.s32.totalorder %s127, %s128
    %p142 = scmp.eq.s32.totalorder %s15, 1
    %p143 = por %p141, %p142
    %p145 = scmp.ne.s32.totalorder %s128, %s144
    %p146 = scmp.eq.s32.totalorder %s15, 0
    %p147 = por %p145, %p146
    %p148 = scmp.le.s32.totalorder 1, %s9
    %p149 = scmp.lt.s32.totalorder %s9, 3
    %p150 = pnand %p148, %p149
    %p151 = pneg %p150
    // Predicated region
    $region9: #{joint_transformer_block_with_envmap.14} parent=5 // pred_check
      _
    $region10: #{joint_transformer_block_with_envmap.14} parent=5 // pred_check_branch
      %153 = sbr.rel (%p150) target = $region12
    $region11: #{joint_transformer_block_with_envmap.14} parent=5 // pred_region
      %s154 = ssub.s32 %s9, 1
    $region12: #{joint_transformer_block_with_envmap.14} parent=5 // pred_fallthru
      _
    %p155 = scmp.lt.s32.totalorder %s9, 2
    // Predicated region
    $region13: #{joint_transformer_block_with_envmap.14} parent=5 // pred_check
      %p156 = pneg %p155
    $region14: #{joint_transformer_block_with_envmap.14} parent=5 // pred_check_branch
      %158 = sbr.rel (%p156) target = $region16
    $region15: #{joint_transformer_block_with_envmap.14} parent=5 // pred_region
      // Predicated region
      $region17: #{joint_transformer_block_with_envmap.14} parent=15 // pred_check
        %p159 = pneg %p50
      $region18: #{joint_transformer_block_with_envmap.14} parent=15 // pred_check_branch
        %161 = sbr.rel (%p159) target = $region20
      $region19: #{joint_transformer_block_with_envmap.14} parent=15 // pred_region
        %s162 = smul.u32 2, %s17
        %p163 = scmp.lt.s32.totalorder %s16, 1
        %s164 = scalar_select %p163, %s16, 1
        %p165 = scmp.lt.s32.totalorder %s162, 1
        %s166 = scalar_select %p165, %s162, 1
        %s167 = smul.addr %s164, 4
        %s168 = sadd.s32 %s166, %s167
        %s169 = smul.addr %s168, 4
        %s170 = scalar_lea.vmem %s0, %s169
        %s171 = smul.u32 2, %s17
      $region20: #{joint_transformer_block_with_envmap.14} parent=15 // pred_fallthru
        _
      // Predicated region
      $region21: #{joint_transformer_block_with_envmap.14} parent=15 // pred_check
        %p172 = pneg %p78
      $region22: #{joint_transformer_block_with_envmap.14} parent=15 // pred_check_branch
        %174 = sbr.rel (%p172) target = $region24
      $region23: #{joint_transformer_block_with_envmap.14} parent=15 // pred_region
        %s175 = smul.u32 2, %s18
        %p176 = scmp.lt.s32.totalorder %s16, 1
        %s177 = scalar_select %p176, %s16, 1
        %p178 = scmp.lt.s32.totalorder %s175, 1
        %s179 = scalar_select %p178, %s175, 1
        %s180 = smul.addr %s177, 4
        %s181 = sadd.s32 %s179, %s180
        %s182 = smul.addr %s181, 4
        %s183 = scalar_lea.vmem %s1, %s182
        %s184 = smul.u32 2, %s18
      $region24: #{joint_transformer_block_with_envmap.14} parent=15 // pred_fallthru
        _
      // Predicated region
      $region25: #{joint_transformer_block_with_envmap.14} parent=15 // pred_check
        %p185 = pneg %p106
      $region26: #{joint_transformer_block_with_envmap.14} parent=15 // pred_check_branch
        %187 = sbr.rel (%p185) target = $region28
      $region27: #{joint_transformer_block_with_envmap.14} parent=15 // pred_region
        %s188 = smul.u32 2, %s18
        %p189 = scmp.lt.s32.totalorder %s16, 1
        %s190 = scalar_select %p189, %s16, 1
        %p191 = scmp.lt.s32.totalorder %s188, 1
        %s192 = scalar_select %p191, %s188, 1
        %s193 = smul.addr %s190, 4
        %s194 = sadd.s32 %s192, %s193
        %s195 = smul.addr %s194, 4
        %s196 = scalar_lea.vmem %s2, %s195
        %s197 = smul.u32 2, %s18
      $region28: #{joint_transformer_block_with_envmap.14} parent=15 // pred_fallthru
        _
    $region16: #{joint_transformer_block_with_envmap.14} parent=5 // pred_fallthru
      _
    %p198 = scmp.le.s32.totalorder 1, %s9
    %p199 = scmp.lt.s32.totalorder %s9, 3
    %p200 = pnand %p198, %p199
    %p201 = pneg %p200
    // Predicated region
    $region29: #{joint_transformer_block_with_envmap.14} parent=5 // pred_check
      _
    $region30: #{joint_transformer_block_with_envmap.14} parent=5 // pred_check_branch
      %203 = sbr.rel (%p200) target = $region32
    $region31: #{joint_transformer_block_with_envmap.14} parent=5 // pred_region
      %s204 = ssub.s32 %s9, 1
      %s205 = smul.u32 2, %s20
      %p206 = scmp.lt.s32.totalorder %s19, 1
      %s207 = scalar_select %p206, %s19, 1
      %p208 = scmp.lt.s32.totalorder %s205, 1
      %s209 = scalar_select %p208, %s205, 1
      %s210 = smul.addr %s207, 4
      %s211 = sadd.s32 %s209, %s210
      %s212 = smul.addr %s211, 4
      %s213 = scalar_lea.vmem %s0, %s212
      %p214 = pneg %p56
      %p215 = pneg %p53
      %s216 = smul.u32 2, %s21
      %p217 = scmp.lt.s32.totalorder %s19, 1
      %s218 = scalar_select %p217, %s19, 1
      %p219 = scmp.lt.s32.totalorder %s216, 1
      %s220 = scalar_select %p219, %s216, 1
      %s221 = smul.addr %s218, 4
      %s222 = sadd.s32 %s220, %s221
      %s223 = smul.addr %s222, 4
      %s224 = scalar_lea.vmem %s1, %s223
      %p225 = pneg %p84
      %p226 = pneg %p81
      %s227 = smul.u32 2, %s21
      %p228 = scmp.lt.s32.totalorder %s19, 1
      %s229 = scalar_select %p228, %s19, 1
      %p230 = scmp.lt.s32.totalorder %s227, 1
      %s231 = scalar_select %p230, %s227, 1
      %s232 = smul.addr %s229, 4
      %s233 = sadd.s32 %s231, %s232
      %s234 = smul.addr %s233, 4
      %s235 = scalar_lea.vmem %s2, %s234
      %p236 = pneg %p112
      %p237 = pneg %p109
      %p238 = pneg %p140
      %p239 = pneg %p137
      %s240 = smul.u32 2, %s20
      %p241 = scmp.lt.s32.totalorder %s19, 1
      %s242 = scalar_select %p241, %s19, 1
      %p243 = scmp.lt.s32.totalorder %s240, 1
      %s244 = scalar_select %p243, %s240, 1
      %s245 = smul.addr %s242, 4
      %s246 = sadd.s32 %s244, %s245
      %s247 = smul.addr %s246, 4
      %s248 = scalar_lea.vmem %s3, %s247
      %s249 = smul.u32 2, %s20
      %p250 = scmp.lt.s32.totalorder %s19, 1
      %s251 = scalar_select %p250, %s19, 1
      %p252 = scmp.lt.s32.totalorder %s249, 1
      %s253 = scalar_select %p252, %s249, 1
      %s254 = smul.addr %s251, 4
      %s255 = sadd.s32 %s253, %s254
      %s256 = smul.addr %s255, 4
      %s257 = scalar_lea.vmem %s0, %s256
      %s258 = smul.u32 2, %s20
      %s259 = smul.u32 2, %s21
      %p260 = scmp.lt.s32.totalorder %s19, 1
      %s261 = scalar_select %p260, %s19, 1
      %p262 = scmp.lt.s32.totalorder %s259, 1
      %s263 = scalar_select %p262, %s259, 1
      %s264 = smul.addr %s261, 4
      %s265 = sadd.s32 %s263, %s264
      %s266 = smul.addr %s265, 4
      %s267 = scalar_lea.vmem %s1, %s266
      %s268 = smul.u32 2, %s21
      %s269 = smul.u32 2, %s21
      %p270 = scmp.lt.s32.totalorder %s19, 1
      %s271 = scalar_select %p270, %s19, 1
      %p272 = scmp.lt.s32.totalorder %s269, 1
      %s273 = scalar_select %p272, %s269, 1
      %s274 = smul.addr %s271, 4
      %s275 = sadd.s32 %s273, %s274
      %s276 = smul.addr %s275, 4
      %s277 = scalar_lea.vmem %s2, %s276
      %s278 = smul.u32 2, %s21
      %s279 = smul.u32 2, %s20
      %p280 = scmp.lt.s32.totalorder %s19, 1
      %s281 = scalar_select %p280, %s19, 1
      %p282 = scmp.lt.s32.totalorder %s279, 1
      %s283 = scalar_select %p282, %s279, 1
      %s284 = smul.addr %s281, 4
      %s285 = sadd.s32 %s283, %s284
      %s286 = smul.addr %s285, 4
      %s287 = scalar_lea.vmem %s3, %s286
      %s288 = smul.u32 2, %s20
      %p290 = scmp.eq.s32.totalorder %s21, 0
      // Predicated region
      $region33: #{joint_transformer_block_with_envmap.14} parent=31 // pred_check
        %p291 = pneg %p290
      $region34: #{joint_transformer_block_with_envmap.14} parent=31 // pred_check_branch
        %293 = sbr.rel (%p291) target = $region36
      $region35: #{joint_transformer_block_with_envmap.14} parent=31 // pred_region
        %vm294 = vcmask 7168
        %295 = vst.msk [vmem:[#allocation2] sm:$0xff] %vm294, -inf
        %296 = vst.msk [vmem:[#allocation2 + $0x8] sm:$0xff] %vm294, -inf
        %297 = vst.msk [vmem:[#allocation2 + $0x10] sm:$0xff] %vm294, -inf
        %298 = vst.msk [vmem:[#allocation2 + $0x18] sm:$0xff] %vm294, -inf
        %299 = vst.msk [vmem:[#allocation3] sm:$0xff] %vm294, 0.0
        %300 = vst.msk [vmem:[#allocation3 + $0x8] sm:$0xff] %vm294, 0.0
        %301 = vst.msk [vmem:[#allocation3 + $0x10] sm:$0xff] %vm294, 0.0
        %302 = vst.msk [vmem:[#allocation3 + $0x18] sm:$0xff] %vm294, 0.0
        %vm303 = vcmask 130048
        %304 = vst.msk [vmem:[#allocation4] sm:$0xff] %vm303, 0.0
        %305 = vst.msk [vmem:[#allocation4 + $0x8] sm:$0xff] %vm303, 0.0
        %306 = vst.msk [vmem:[#allocation4 + $0x10] sm:$0xff] %vm303, 0.0
        %307 = vst.msk [vmem:[#allocation4 + $0x18] sm:$0xff] %vm303, 0.0
      $region36: #{joint_transformer_block_with_envmap.14} parent=31 // pred_fallthru
        _
      %v308 = vld [vmem:[%s257] sm:$0xf]
      %v309 = vld [vmem:[%s257 + $0x4] sm:$0xf]
      %v310 = vld [vmem:[%s257 + $0x8] sm:$0xf]
      %v311 = vld [vmem:[%s257 + $0xc] sm:$0xf]
      %v312 = vld [vmem:[%s267] sm:$0xf]
      %v313 = vld [vmem:[%s267 + $0x4] sm:$0xf]
      %v314 = vld [vmem:[%s267 + $0x8] sm:$0xf]
      %v315 = vld [vmem:[%s267 + $0xc] sm:$0xf]
      %v316 = vld [vmem:[%s277] sm:$0xf]
      %v317 = vld [vmem:[%s277 + $0x4] sm:$0xf]
      %v318 = vld [vmem:[%s277 + $0x8] sm:$0xf]
      %v319 = vld [vmem:[%s277 + $0xc] sm:$0xf]
      %v322 = vunpack.c.l.b16 %v308
      %v323 = vunpack.c.l.b16 %v309
      %v324 = vpack.c.b16 %v323, %v322
      %v327 = vunpack.c.l.b16 %v312
      %v328 = vunpack.c.l.b16 %v313
      %v329 = vpack.c.b16 %v328, %v327
      %vm330 = vcmask 130048
      %v332 = vsel %vm330, %v324, 0
      %v335 = vsel %vm330, %v329, 0
      %337 = vmatprep.subr.bf16.mxu0 0
      %338 = vmatpush1.bf16.xpose.msra.mxu0 %v335
      %339 = vmatprep.subr.bf16.mxu0 0
      %340 = vmatpush1.bf16.xpose.msra.mxu0 0
      %341 = vmatprep.subr.bf16.mxu0 0
      %342 = vmatpush1.bf16.xpose.msra.mxu0 0
      %343 = vmatprep.subr.bf16.mxu0 0
      %344 = vmatpush1.bf16.xpose.msra.mxu0 0
      %345 = vmatprep.subr.bf16.mxu0 0
      %346 = vmatpush1.bf16.xpose.msra.mxu0 0
      %347 = vmatprep.subr.bf16.mxu0 0
      %348 = vmatpush1.bf16.xpose.msra.mxu0 0
      %349 = vmatprep.subr.bf16.mxu0 0
      %350 = vmatpush1.bf16.xpose.msra.mxu0 0
      %351 = vmatprep.subr.bf16.mxu0 0
      %352 = vmatpush1.bf16.xpose.msra.mxu0 0
      %353 = vmatprep.subr.bf16.mxu0 0
      %354 = vmatpush1.bf16.xpose.msra.mxu0 0
      %355 = vmatprep.subr.bf16.mxu0 0
      %356 = vmatpush1.bf16.xpose.msra.mxu0 0
      %357 = vmatprep.subr.bf16.mxu0 0
      %358 = vmatpush1.bf16.xpose.msra.mxu0 0
      %359 = vmatprep.subr.bf16.mxu0 0
      %360 = vmatpush1.bf16.xpose.msra.mxu0 0
      %361 = vmatprep.subr.bf16.mxu0 0
      %362 = vmatpush1.bf16.xpose.msra.mxu0 0
      %363 = vmatprep.subr.bf16.mxu0 0
      %364 = vmatpush1.bf16.xpose.msra.mxu0 0
      %365 = vmatprep.subr.bf16.mxu0 0
      %366 = vmatpush1.bf16.xpose.msra.mxu0 0
      %367 = vmatprep.subr.bf16.mxu0 0
      %368 = vmatpush1.bf16.xpose.msra.mxu0 0
      %369 = vmatprep.mubr.bf16.mxu0 0
      %370 = vmatmul.mubr.bf16.gmra.mrb[0].mxu0 %v332
      %v371 = vpop.f32.mrb[0].mxu0
      %v372 = vadd.f32 0.0, %v371
      %v373 = vpop.f32.mrb[0].mxu0
      %v374 = vpop.f32.mrb[0].mxu0
      %v375 = vadd.f32 0.0, %v374
      %v376 = vpop.f32.mrb[0].mxu0
      %377 = vdwg.mxu0
      %v380 = vunpack.c.l.b16 %v310
      %v381 = vunpack.c.l.b16 %v311
      %v382 = vpack.c.b16 %v381, %v380
      %v385 = vunpack.c.l.b16 %v314
      %v386 = vunpack.c.l.b16 %v315
      %v387 = vpack.c.b16 %v386, %v385
      %v389 = vsel %vm330, %v382, 0
      %v392 = vsel %vm330, %v387, 0
      %394 = vmatprep.subr.bf16.mxu0 0
      %395 = vmatpush1.bf16.xpose.msra.mxu0 %v392
      %396 = vmatprep.subr.bf16.mxu0 0
      %397 = vmatpush1.bf16.xpose.msra.mxu0 0
      %398 = vmatprep.subr.bf16.mxu0 0
      %399 = vmatpush1.bf16.xpose.msra.mxu0 0
      %400 = vmatprep.subr.bf16.mxu0 0
      %401 = vmatpush1.bf16.xpose.msra.mxu0 0
      %402 = vmatprep.subr.bf16.mxu0 0
      %403 = vmatpush1.bf16.xpose.msra.mxu0 0
      %404 = vmatprep.subr.bf16.mxu0 0
      %405 = vmatpush1.bf16.xpose.msra.mxu0 0
      %406 = vmatprep.subr.bf16.mxu0 0
      %407 = vmatpush1.bf16.xpose.msra.mxu0 0
      %408 = vmatprep.subr.bf16.mxu0 0
      %409 = vmatpush1.bf16.xpose.msra.mxu0 0
      %410 = vmatprep.subr.bf16.mxu0 0
      %411 = vmatpush1.bf16.xpose.msra.mxu0 0
      %412 = vmatprep.subr.bf16.mxu0 0
      %413 = vmatpush1.bf16.xpose.msra.mxu0 0
      %414 = vmatprep.subr.bf16.mxu0 0
      %415 = vmatpush1.bf16.xpose.msra.mxu0 0
      %416 = vmatprep.subr.bf16.mxu0 0
      %417 = vmatpush1.bf16.xpose.msra.mxu0 0
      %418 = vmatprep.subr.bf16.mxu0 0
      %419 = vmatpush1.bf16.xpose.msra.mxu0 0
      %420 = vmatprep.subr.bf16.mxu0 0
      %421 = vmatpush1.bf16.xpose.msra.mxu0 0
      %422 = vmatprep.subr.bf16.mxu0 0
      %423 = vmatpush1.bf16.xpose.msra.mxu0 0
      %424 = vmatprep.subr.bf16.mxu0 0
      %425 = vmatpush1.bf16.xpose.msra.mxu0 0
      %426 = vmatprep.mubr.bf16.mxu0 0
      %427 = vmatmul.mubr.bf16.gmra.mrb[0].mxu0 %v389
      %v428 = vpop.f32.mrb[0].mxu0
      %v429 = vadd.f32 0.0, %v428
      %v430 = vpop.f32.mrb[0].mxu0
      %v431 = vpop.f32.mrb[0].mxu0
      %v432 = vadd.f32 0.0, %v431
      %v433 = vpop.f32.mrb[0].mxu0
      %434 = vdwg.mxu0
      %v435 = vld [vmem:[#allocation2] sm:$0xff]
      %v436 = vld [vmem:[#allocation2 + $0x8] sm:$0xff]
      %v437 = vld [vmem:[#allocation2 + $0x10] sm:$0xff]
      %v438 = vld [vmem:[#allocation2 + $0x18] sm:$0xff]
      %v439 = vsel %vm330, %v372, -inf
      %440 = vmax.xlane.f32.xlu0 %v439
      %v441 = vpop.xlane.xlu0 %440
      %v442 = vsel %vm330, %v375, -inf
      %443 = vmax.xlane.f32.xlu0 %v442
      %v444 = vpop.xlane.xlu0 %443
      %v445 = vsel %vm330, %v429, -inf
      %446 = vmax.xlane.f32.xlu0 %v445
      %v447 = vpop.xlane.xlu0 %446
      %v448 = vsel %vm330, %v432, -inf
      %449 = vmax.xlane.f32.xlu0 %v448
      %v450 = vpop.xlane.xlu0 %449
      %v451 = vmax.f32 %v435, %v441
      %v452 = vmax.f32 %v436, %v444
      %v453 = vmax.f32 %v437, %v447
      %v454 = vmax.f32 %v438, %v450
      %v455 = vsub.f32 %v435, %v451
      %v456 = vsub.f32 %v436, %v452
      %v457 = vsub.f32 %v437, %v453
      %v458 = vsub.f32 %v438, %v454
      %v459 = vmul.f32 %v455, 1.442695
      %v460 = vpow.pop %v459
      %v461 = vmul.f32 %v456, 1.442695
      %v462 = vpow.pop %v461
      %v463 = vmul.f32 %v457, 1.442695
      %v464 = vpow.pop %v463
      %v465 = vmul.f32 %v458, 1.442695
      %v466 = vpow.pop %v465
      %468 = vset.pattern.permute.xlu0 0
      %469 = vperm.xlu0 %468, %v451
      %v470 = vpop.permute.xlu0 %469
      %473 = vset.pattern.permute.xlu0 0
      %474 = vperm.xlu0 %473, %v452
      %v475 = vpop.permute.xlu0 %474
      %478 = vset.pattern.permute.xlu0 0
      %479 = vperm.xlu0 %478, %v453
      %v480 = vpop.permute.xlu0 %479
      %483 = vset.pattern.permute.xlu0 0
      %484 = vperm.xlu0 %483, %v454
      %v485 = vpop.permute.xlu0 %484
      %v487 = vsub.f32 %v372, %v470
      %v488 = vsub.f32 %v375, %v475
      %v489 = vsub.f32 %v429, %v480
      %v490 = vsub.f32 %v432, %v485
      %v491 = vmul.f32 %v487, 1.442695
      %v492 = vpow.pop %v491
      %v493 = vmul.f32 %v488, 1.442695
      %v494 = vpow.pop %v493
      %v495 = vmul.f32 %v489, 1.442695
      %v496 = vpow.pop %v495
      %v497 = vmul.f32 %v490, 1.442695
      %v498 = vpow.pop %v497
      %v499 = vld [vmem:[#allocation3] sm:$0xff]
      %v500 = vld [vmem:[#allocation3 + $0x8] sm:$0xff]
      %v501 = vld [vmem:[#allocation3 + $0x10] sm:$0xff]
      %v502 = vld [vmem:[#allocation3 + $0x18] sm:$0xff]
      %v503 = vmul.f32 %v460, %v499
      %v504 = vmul.f32 %v462, %v500
      %v505 = vmul.f32 %v464, %v501
      %v506 = vmul.f32 %v466, %v502
      %v507 = vsel %vm330, %v492, 0.0
      %508 = vadd.xlane.f32.xlu0 %v507
      %v509 = vpop.xlane.xlu0 %508
      %v510 = vsel %vm330, %v494, 0.0
      %511 = vadd.xlane.f32.xlu0 %v510
      %v512 = vpop.xlane.xlu0 %511
      %v513 = vsel %vm330, %v496, 0.0
      %514 = vadd.xlane.f32.xlu0 %v513
      %v515 = vpop.xlane.xlu0 %514
      %v516 = vsel %vm330, %v498, 0.0
      %517 = vadd.xlane.f32.xlu0 %v516
      %v518 = vpop.xlane.xlu0 %517
      %v519 = vadd.f32 %v503, %v509
      %v520 = vadd.f32 %v504, %v512
      %v521 = vadd.f32 %v505, %v515
      %v522 = vadd.f32 %v506, %v518
      %vm523 = vcmask 7168
      %524 = vst.msk [vmem:[#allocation3] sm:$0xff] %vm523, %v519
      %525 = vst.msk [vmem:[#allocation3 + $0x8] sm:$0xff] %vm523, %v520
      %526 = vst.msk [vmem:[#allocation3 + $0x10] sm:$0xff] %vm523, %v521
      %527 = vst.msk [vmem:[#allocation3 + $0x18] sm:$0xff] %vm523, %v522
      %v528 = vpack.c.bf16 %v494, %v492
      %v529 = vpack.c.bf16 %v498, %v496
      %v532 = vunpack.c.l.b16 %v316
      %v533 = vunpack.c.l.b16 %v317
      %v534 = vpack.c.b16 %v533, %v532
      %v537 = vsel %vm330, %v528, 0
      %539 = vmatprep.subr.bf16.mxu0 0
      %540 = vmatpush1.bf16.msra.mxu0 %v534
      %541 = vmatprep.subr.bf16.mxu0 0
      %542 = vmatpush1.bf16.msra.mxu0 0
      %543 = vmatprep.subr.bf16.mxu0 0
      %544 = vmatpush1.bf16.msra.mxu0 0
      %545 = vmatprep.subr.bf16.mxu0 0
      %546 = vmatpush1.bf16.msra.mxu0 0
      %547 = vmatprep.subr.bf16.mxu0 0
      %548 = vmatpush1.bf16.msra.mxu0 0
      %549 = vmatprep.subr.bf16.mxu0 0
      %550 = vmatpush1.bf16.msra.mxu0 0
      %551 = vmatprep.subr.bf16.mxu0 0
      %552 = vmatpush1.bf16.msra.mxu0 0
      %553 = vmatprep.subr.bf16.mxu0 0
      %554 = vmatpush1.bf16.msra.mxu0 0
      %555 = vmatprep.subr.bf16.mxu0 0
      %556 = vmatpush1.bf16.msra.mxu0 0
      %557 = vmatprep.subr.bf16.mxu0 0
      %558 = vmatpush1.bf16.msra.mxu0 0
      %559 = vmatprep.subr.bf16.mxu0 0
      %560 = vmatpush1.bf16.msra.mxu0 0
      %561 = vmatprep.subr.bf16.mxu0 0
      %562 = vmatpush1.bf16.msra.mxu0 0
      %563 = vmatprep.subr.bf16.mxu0 0
      %564 = vmatpush1.bf16.msra.mxu0 0
      %565 = vmatprep.subr.bf16.mxu0 0
      %566 = vmatpush1.bf16.msra.mxu0 0
      %567 = vmatprep.subr.bf16.mxu0 0
      %568 = vmatpush1.bf16.msra.mxu0 0
      %569 = vmatprep.subr.bf16.mxu0 0
      %570 = vmatpush1.bf16.msra.mxu0 0
      %571 = vmatprep.mubr.bf16.mxu0 0
      %572 = vmatmul.mubr.bf16.gmra.mrb[0].mxu0 %v537
      %v573 = vpop.f32.mrb[0].mxu0
      %v574 = vadd.f32 0.0, %v573
      %v575 = vpop.f32.mrb[0].mxu0
      %v576 = vpop.f32.mrb[0].mxu0
      %v577 = vadd.f32 0.0, %v576
      %v578 = vpop.f32.mrb[0].mxu0
      %579 = vdwg.mxu0
      %v582 = vunpack.c.l.b16 %v318
      %v583 = vunpack.c.l.b16 %v319
      %v584 = vpack.c.b16 %v583, %v582
      %v587 = vsel %vm330, %v529, 0
      %589 = vmatprep.subr.bf16.mxu0 0
      %590 = vmatpush1.bf16.msra.mxu0 %v584
      %591 = vmatprep.subr.bf16.mxu0 0
      %592 = vmatpush1.bf16.msra.mxu0 0
      %593 = vmatprep.subr.bf16.mxu0 0
      %594 = vmatpush1.bf16.msra.mxu0 0
      %595 = vmatprep.subr.bf16.mxu0 0
      %596 = vmatpush1.bf16.msra.mxu0 0
      %597 = vmatprep.subr.bf16.mxu0 0
      %598 = vmatpush1.bf16.msra.mxu0 0
      %599 = vmatprep.subr.bf16.mxu0 0
      %600 = vmatpush1.bf16.msra.mxu0 0
      %601 = vmatprep.subr.bf16.mxu0 0
      %602 = vmatpush1.bf16.msra.mxu0 0
      %603 = vmatprep.subr.bf16.mxu0 0
      %604 = vmatpush1.bf16.msra.mxu0 0
      %605 = vmatprep.subr.bf16.mxu0 0
      %606 = vmatpush1.bf16.msra.mxu0 0
      %607 = vmatprep.subr.bf16.mxu0 0
      %608 = vmatpush1.bf16.msra.mxu0 0
      %609 = vmatprep.subr.bf16.mxu0 0
      %610 = vmatpush1.bf16.msra.mxu0 0
      %611 = vmatprep.subr.bf16.mxu0 0
      %612 = vmatpush1.bf16.msra.mxu0 0
      %613 = vmatprep.subr.bf16.mxu0 0
      %614 = vmatpush1.bf16.msra.mxu0 0
      %615 = vmatprep.subr.bf16.mxu0 0
      %616 = vmatpush1.bf16.msra.mxu0 0
      %617 = vmatprep.subr.bf16.mxu0 0
      %618 = vmatpush1.bf16.msra.mxu0 0
      %619 = vmatprep.subr.bf16.mxu0 0
      %620 = vmatpush1.bf16.msra.mxu0 0
      %621 = vmatprep.mubr.bf16.mxu0 0
      %622 = vmatmul.mubr.bf16.gmra.mrb[0].mxu0 %v587
      %v623 = vpop.f32.mrb[0].mxu0
      %v624 = vadd.f32 0.0, %v623
      %v625 = vpop.f32.mrb[0].mxu0
      %v626 = vpop.f32.mrb[0].mxu0
      %v627 = vadd.f32 0.0, %v626
      %v628 = vpop.f32.mrb[0].mxu0
      %629 = vdwg.mxu0
      %v630 = vld [vmem:[#allocation4] sm:$0xff]
      %v631 = vld [vmem:[#allocation4 + $0x8] sm:$0xff]
      %v632 = vld [vmem:[#allocation4 + $0x10] sm:$0xff]
      %v633 = vld [vmem:[#allocation4 + $0x18] sm:$0xff]
      %635 = vset.pattern.permute.xlu0 0
      %636 = vperm.xlu0 %635, %v460
      %v637 = vpop.permute.xlu0 %636
      %640 = vset.pattern.permute.xlu0 0
      %641 = vperm.xlu0 %640, %v462
      %v642 = vpop.permute.xlu0 %641
      %645 = vset.pattern.permute.xlu0 0
      %646 = vperm.xlu0 %645, %v464
      %v647 = vpop.permute.xlu0 %646
      %650 = vset.pattern.permute.xlu0 0
      %651 = vperm.xlu0 %650, %v466
      %v652 = vpop.permute.xlu0 %651
      %v654 = vmul.f32 %v637, %v630
      %v655 = vmul.f32 %v642, %v631
      %v656 = vmul.f32 %v647, %v632
      %v657 = vmul.f32 %v652, %v633
      %v658 = vadd.f32 %v654, %v574
      %v659 = vadd.f32 %v655, %v577
      %v660 = vadd.f32 %v656, %v624
      %v661 = vadd.f32 %v657, %v627
      %662 = vst.msk [vmem:[#allocation4] sm:$0xff] %vm330, %v658
      %663 = vst.msk [vmem:[#allocation4 + $0x8] sm:$0xff] %vm330, %v659
      %664 = vst.msk [vmem:[#allocation4 + $0x10] sm:$0xff] %vm330, %v660
      %665 = vst.msk [vmem:[#allocation4 + $0x18] sm:$0xff] %vm330, %v661
      %666 = vst.msk [vmem:[#allocation2] sm:$0xff] %vm523, %v451
      %667 = vst.msk [vmem:[#allocation2 + $0x8] sm:$0xff] %vm523, %v452
      %668 = vst.msk [vmem:[#allocation2 + $0x10] sm:$0xff] %vm523, %v453
      %669 = vst.msk [vmem:[#allocation2 + $0x18] sm:$0xff] %vm523, %v454
      // Predicated region
      $region37: #{joint_transformer_block_with_envmap.14} parent=31 // pred_check
        %p670 = pneg %p290
      $region38: #{joint_transformer_block_with_envmap.14} parent=31 // pred_check_branch
        %672 = sbr.rel (%p670) target = $region40
      $region39: #{joint_transformer_block_with_envmap.14} parent=31 // pred_region
        %v673 = vld [vmem:[#allocation3] sm:$0xff]
        %v674 = vld [vmem:[#allocation3 + $0x8] sm:$0xff]
        %v675 = vld [vmem:[#allocation3 + $0x10] sm:$0xff]
        %v676 = vld [vmem:[#allocation3 + $0x18] sm:$0xff]
        %v677 = vrcp.pop %v673
        %v678 = vrcp.pop %v674
        %v679 = vrcp.pop %v675
        %v680 = vrcp.pop %v676
        %v681 = vld [vmem:[#allocation4] sm:$0xff]
        %v682 = vld [vmem:[#allocation4 + $0x8] sm:$0xff]
        %v683 = vld [vmem:[#allocation4 + $0x10] sm:$0xff]
        %v684 = vld [vmem:[#allocation4 + $0x18] sm:$0xff]
        %686 = vset.pattern.permute.xlu0 0
        %687 = vperm.xlu0 %686, %v677
        %v688 = vpop.permute.xlu0 %687
        %691 = vset.pattern.permute.xlu0 0
        %692 = vperm.xlu0 %691, %v678
        %v693 = vpop.permute.xlu0 %692
        %696 = vset.pattern.permute.xlu0 0
        %697 = vperm.xlu0 %696, %v679
        %v698 = vpop.permute.xlu0 %697
        %701 = vset.pattern.permute.xlu0 0
        %702 = vperm.xlu0 %701, %v680
        %v703 = vpop.permute.xlu0 %702
        %v705 = vmul.f32 %v681, %v688
        %v706 = vmul.f32 %v682, %v693
        %v707 = vmul.f32 %v683, %v698
        %v708 = vmul.f32 %v684, %v703
        %v709 = vpack.c.bf16 %v706, %v705
        %v710 = vpack.c.bf16 %v708, %v707
        %v713 = vunpack.c.l.b16 %v709
        %v714 = vunpack.c.h.b16 %v709
        %v715 = vunpack.c.l.b16 %v710
        %v716 = vunpack.c.h.b16 %v710
        %v717 = vpack.c.b16 %v713, %v713
        %v718 = vpack.c.b16 %v714, %v714
        %v719 = vpack.c.b16 %v715, %v715
        %v720 = vpack.c.b16 %v716, %v716
        %vm725 = vcmask 125952
        %726 = vst.msk [vmem:[%s287] sm:$0xf] %vm725, %v717
        %727 = vst.msk [vmem:[%s287 + $0x4] sm:$0xf] %vm725, %v718
        %728 = vst.msk [vmem:[%s287 + $0x8] sm:$0xf] %vm725, %v719
        %729 = vst.msk [vmem:[%s287 + $0xc] sm:$0xf] %vm725, %v720
      $region40: #{joint_transformer_block_with_envmap.14} parent=31 // pred_fallthru
        _
      %s730 = smul.u32 2, %s20
      %p731 = scmp.lt.s32.totalorder %s19, 1
      %s732 = scalar_select %p731, %s19, 1
      %p733 = scmp.lt.s32.totalorder %s730, 1
      %s734 = scalar_select %p733, %s730, 1
      %s735 = smul.addr %s732, 4
      %s736 = sadd.s32 %s734, %s735
      %s737 = smul.addr %s736, 4
      %s738 = scalar_lea.vmem %s3, %s737
      // Predicated region
      $region41: #{joint_transformer_block_with_envmap.14} parent=31 // pred_check
        %p739 = pneg %p137
      $region42: #{joint_transformer_block_with_envmap.14} parent=31 // pred_check_branch
        %741 = sbr.rel (%p739) target = $region44
      $region43: #{joint_transformer_block_with_envmap.14} parent=31 // pred_region
        %s742 = smul.u32 2, %s20
      $region44: #{joint_transformer_block_with_envmap.14} parent=31 // pred_fallthru
        _
    $region32: #{joint_transformer_block_with_envmap.14} parent=5 // pred_fallthru
      _
    %p743 = scmp.le.s32.totalorder 2, %s9
    // Predicated region
    $region45: #{joint_transformer_block_with_envmap.14} parent=5 // pred_check
      %p744 = pneg %p743
    $region46: #{joint_transformer_block_with_envmap.14} parent=5 // pred_check_branch
      %746 = sbr.rel (%p744) target = $region48
    $region47: #{joint_transformer_block_with_envmap.14} parent=5 // pred_region
      %s747 = ssub.s32 %s9, 2
      // Predicated region
      $region49: #{joint_transformer_block_with_envmap.14} parent=47 // pred_check
        %p748 = pneg %p143
      $region50: #{joint_transformer_block_with_envmap.14} parent=47 // pred_check_branch
        %750 = sbr.rel (%p748) target = $region52
      $region51: #{joint_transformer_block_with_envmap.14} parent=47 // pred_region
        %s751 = smul.u32 2, %s23
        %p752 = scmp.lt.s32.totalorder %s22, 1
        %s753 = scalar_select %p752, %s22, 1
        %p754 = scmp.lt.s32.totalorder %s751, 1
        %s755 = scalar_select %p754, %s751, 1
        %s756 = smul.addr %s753, 4
        %s757 = sadd.s32 %s755, %s756
        %s758 = smul.addr %s757, 4
        %s759 = scalar_lea.vmem %s3, %s758
      $region52: #{joint_transformer_block_with_envmap.14} parent=47 // pred_fallthru
        _
    $region48: #{joint_transformer_block_with_envmap.14} parent=5 // pred_fallthru
      _
  $region6: #{joint_transformer_block_with_envmap.14} parent=0 // loop_footer
    %s13 = sadd.s32 1, %s9
  $region7: #{joint_transformer_block_with_envmap.14} parent=0 // loop_footer_branch
    %8 = sbr.rel target = $region3
  $region8: #{joint_transformer_block_with_envmap.14} parent=0 // loop_exit
    _

// kernel: joint_transformer_block_with_envmap.16
$region0: #{joint_transformer_block_with_envmap.16}
  #allocation0 [shape = 'u32[]', space=smem, size = 0x4, offset = 0x4, fixed_abs, tag = 'smem constant byte address 0x4 - core index']
  #allocation1 [shape = 'u32[144,128]{1,0:T(1,128)}', space=vmem, size = 0x12000, scoped, tag = 'internal scratch']
  %s0 = inlined_call_operand.vmem [shape: bf16[2,8,32], index: 0, kind: input, shape index: {}]
  %s1 = inlined_call_operand.vmem [shape: bf16[32,32], index: 1, kind: input, shape index: {}]
  %s2 = inlined_call_operand.vmem [shape: f32[1,1,32], index: 2, kind: input, shape index: {}]
  %s3 = inlined_call_operand.vmem [shape: f32[2,1,32], index: 3, kind: input, shape index: {}]
  %s4 = inlined_call_operand.vmem [shape: f32[2,8,32], index: 4, kind: input, shape index: {}]
  %s5 = inlined_call_operand.vmem [shape: bf16[2,8,32], index: 5, kind: output, shape index: {}]
  %s6 = sld [smem:[#allocation0]]
  $region53: #{joint_transformer_block_with_envmap.16} parent=0
    _
  %s8 = ssub.s32 1, %s6
  %s9 = scalar_select 0, %s8, %s6
  loop: start=0, step=1, limit=4
  $region2: #{joint_transformer_block_with_envmap.16} parent=0 // loop_pre_header
    _
  $region3: #{joint_transformer_block_with_envmap.16} parent=0 // loop_header
    %s11 = sphi 0, %s15
    %p12 = scmp.ge.s32.totalorder %s11, 4
    %s18 = sphi 0, %s37
    %s19 = sphi 0, %s33
    %s20 = sphi 0, %s29
    %s21 = sphi 0, %s18
    %s22 = sphi 0, %s19
    %s23 = sphi 0, %s20
    %s24 = sphi 0, %s21
    %s25 = sphi 0, %s22
    %s26 = sphi 0, %s23
    %s42 = sphi 0, %s44
    %s45 = sphi 0, %s42
    %s46 = sphi 0, %s45
    %s62 = sphi 0, %s46
    %s68 = sphi 0, %s70
    %s71 = sphi 0, %s68
    %s72 = sphi 0, %s71
    %s88 = sphi 0, %s72
    %s94 = sphi 0, %s96
    %s97 = sphi 0, %s94
    %s98 = sphi 0, %s97
    %s114 = sphi 0, %s98
    %s122 = sphi 0, %s124
    %s125 = sphi 0, %s122
    %s126 = sphi 0, %s125
    %s142 = sphi 0, %s126
    %s152 = sphi 0, %s154
    %s155 = sphi 0, %s152
    %s156 = sphi 0, %s155
    %s172 = sphi 0, %s156
    %s182 = sphi 0, %s184
    %s185 = sphi 0, %s182
    %s186 = sphi 0, %s185
    %s202 = sphi 0, %s186
  $region4: #{joint_transformer_block_with_envmap.16} parent=0 // loop_header_branch
    %14 = sbr.rel (%p12) target = $region8
  $region5: #{joint_transformer_block_with_envmap.16} parent=0 // loop_body
    %s16 = ssub.s32 %s11, 1
    %s17 = ssub.s32 %s11, 2
    %s27 = sadd.s32 1, %s20
    %p28 = scmp.ge.s32.totalorder %s27, 1
    %s29 = scalar_select %p28, 0, %s27
    %s30 = sadd.s32 1, %s19
    %s31 = scalar_select %p28, %s30, %s19
    %p32 = scmp.ge.s32.totalorder %s31, 1
    %s33 = scalar_select %p32, 0, %s31
    %s34 = sadd.s32 1, %s18
    %s35 = scalar_select %p32, %s34, %s18
    %p36 = scmp.ge.s32.totalorder %s35, 2
    %s37 = scalar_select %p36, 0, %s35
    %s38 = ssub.s32 %s18, %s37
    %s39 = ssub.s32 %s19, %s33
    %s40 = sor.u32 %s38, %s39
    %p41 = scmp.eq.s32.totalorder %s40, 0
    %s43 = sadd.s32 %s42, 1
    %s44 = scalar_select %p41, %s42, %s43
    %p47 = pneg %p41
    %p48 = scmp.eq.s32.totalorder %s11, 1
    %p49 = por %p47, %p48
    %p50 = scmp.ne.s32.totalorder %s42, %s45
    %p51 = scmp.eq.s32.totalorder %s11, 0
    %p52 = por %p50, %p51
    %p53 = scmp.ne.s32.totalorder %s42, %s45
    %p54 = scmp.eq.s32.totalorder %s16, 1
    %p55 = por %p53, %p54
    %p56 = scmp.ne.s32.totalorder %s45, %s46
    %p57 = scmp.eq.s32.totalorder %s16, 0
    %p58 = por %p56, %p57
    %p59 = scmp.ne.s32.totalorder %s45, %s46
    %p60 = scmp.eq.s32.totalorder %s17, 1
    %p61 = por %p59, %p60
    %p63 = scmp.ne.s32.totalorder %s46, %s62
    %p64 = scmp.eq.s32.totalorder %s17, 0
    %p65 = por %p63, %p64
    %s66 = ssub.s32 %s20, %s29
    %p67 = scmp.eq.s32.totalorder %s66, 0
    %s69 = sadd.s32 %s68, 1
    %s70 = scalar_select %p67, %s68, %s69
    %p73 = pneg %p67
    %p74 = scmp.eq.s32.totalorder %s11, 1
    %p75 = por %p73, %p74
    %p76 = scmp.ne.s32.totalorder %s68, %s71
    %p77 = scmp.eq.s32.totalorder %s11, 0
    %p78 = por %p76, %p77
    %p79 = scmp.ne.s32.totalorder %s68, %s71
    %p80 = scmp.eq.s32.totalorder %s16, 1
    %p81 = por %p79, %p80
    %p82 = scmp.ne.s32.totalorder %s71, %s72
    %p83 = scmp.eq.s32.totalorder %s16, 0
    %p84 = por %p82, %p83
    %p85 = scmp.ne.s32.totalorder %s71, %s72
    %p86 = scmp.eq.s32.totalorder %s17, 1
    %p87 = por %p85, %p86
    %p89 = scmp.ne.s32.totalorder %s72, %s88
    %p90 = scmp.eq.s32.totalorder %s17, 0
    %p91 = por %p89, %p90
    %s92 = ssub.s32 %s20, %s29
    %p93 = scmp.eq.s32.totalorder %s92, 0
    %s95 = sadd.s32 %s94, 1
    %s96 = scalar_select %p93, %s94, %s95
    %p99 = pneg %p93
    %p100 = scmp.eq.s32.totalorder %s11, 1
    %p101 = por %p99, %p100
    %p102 = scmp.ne.s32.totalorder %s94, %s97
    %p103 = scmp.eq.s32.totalorder %s11, 0
    %p104 = por %p102, %p103
    %p105 = scmp.ne.s32.totalorder %s94, %s97
    %p106 = scmp.eq.s32.totalorder %s16, 1
    %p107 = por %p105, %p106
    %p108 = scmp.ne.s32.totalorder %s97, %s98
    %p109 = scmp.eq.s32.totalorder %s16, 0
    %p110 = por %p108, %p109
    %p111 = scmp.ne.s32.totalorder %s97, %s98
    %p112 = scmp.eq.s32.totalorder %s17, 1
    %p113 = por %p111, %p112
    %p115 = scmp.ne.s32.totalorder %s98, %s114
    %p116 = scmp.eq.s32.totalorder %s17, 0
    %p117 = por %p115, %p116
    %s118 = ssub.s32 %s18, %s37
    %s119 = ssub.s32 %s20, %s29
    %s120 = sor.u32 %s118, %s119
    %p121 = scmp.eq.s32.totalorder %s120, 0
    %s123 = sadd.s32 %s122, 1
    %s124 = scalar_select %p121, %s122, %s123
    %p127 = pneg %p121
    %p128 = scmp.eq.s32.totalorder %s11, 1
    %p129 = por %p127, %p128
    %p130 = scmp.ne.s32.totalorder %s122, %s125
    %p131 = scmp.eq.s32.totalorder %s11, 0
    %p132 = por %p130, %p131
    %p133 = scmp.ne.s32.totalorder %s122, %s125
    %p134 = scmp.eq.s32.totalorder %s16, 1
    %p135 = por %p133, %p134
    %p136 = scmp.ne.s32.totalorder %s125, %s126
    %p137 = scmp.eq.s32.totalorder %s16, 0
    %p138 = por %p136, %p137
    %p139 = scmp.ne.s32.totalorder %s125, %s126
    %p140 = scmp.eq.s32.totalorder %s17, 1
    %p141 = por %p139, %p140
    %p143 = scmp.ne.s32.totalorder %s126, %s142
    %p144 = scmp.eq.s32.totalorder %s17, 0
    %p145 = por %p143, %p144
    %s146 = ssub.s32 %s18, %s37
    %s147 = ssub.s32 %s19, %s33
    %s148 = sor.u32 %s146, %s147
    %s149 = ssub.s32 %s20, %s29
    %s150 = sor.u32 %s148, %s149
    %p151 = scmp.eq.s32.totalorder %s150, 0
    %s153 = sadd.s32 %s152, 1
    %s154 = scalar_select %p151, %s152, %s153
    %p157 = pneg %p151
    %p158 = scmp.eq.s32.totalorder %s11, 1
    %p159 = por %p157, %p158
    %p160 = scmp.ne.s32.totalorder %s152, %s155
    %p161 = scmp.eq.s32.totalorder %s11, 0
    %p162 = por %p160, %p161
    %p163 = scmp.ne.s32.totalorder %s152, %s155
    %p164 = scmp.eq.s32.totalorder %s16, 1
    %p165 = por %p163, %p164
    %p166 = scmp.ne.s32.totalorder %s155, %s156
    %p167 = scmp.eq.s32.totalorder %s16, 0
    %p168 = por %p166, %p167
    %p169 = scmp.ne.s32.totalorder %s155, %s156
    %p170 = scmp.eq.s32.totalorder %s17, 1
    %p171 = por %p169, %p170
    %p173 = scmp.ne.s32.totalorder %s156, %s172
    %p174 = scmp.eq.s32.totalorder %s17, 0
    %p175 = por %p173, %p174
    %s176 = ssub.s32 %s18, %s37
    %s177 = ssub.s32 %s19, %s33
    %s178 = sor.u32 %s176, %s177
    %s179 = ssub.s32 %s20, %s29
    %s180 = sor.u32 %s178, %s179
    %p181 = scmp.eq.s32.totalorder %s180, 0
    %s183 = sadd.s32 %s182, 1
    %s184 = scalar_select %p181, %s182, %s183
    %p187 = pneg %p181
    %p188 = scmp.eq.s32.totalorder %s11, 1
    %p189 = por %p187, %p188
    %p190 = scmp.ne.s32.totalorder %s182, %s185
    %p191 = scmp.eq.s32.totalorder %s11, 0
    %p192 = por %p190, %p191
    %p193 = scmp.ne.s32.totalorder %s182, %s185
    %p194 = scmp.eq.s32.totalorder %s16, 1
    %p195 = por %p193, %p194
    %p196 = scmp.ne.s32.totalorder %s185, %s186
    %p197 = scmp.eq.s32.totalorder %s16, 0
    %p198 = por %p196, %p197
    %p199 = scmp.ne.s32.totalorder %s185, %s186
    %p200 = scmp.eq.s32.totalorder %s17, 1
    %p201 = por %p199, %p200
    %p203 = scmp.ne.s32.totalorder %s186, %s202
    %p204 = scmp.eq.s32.totalorder %s17, 0
    %p205 = por %p203, %p204
    %p206 = scmp.le.s32.totalorder 1, %s11
    %p207 = scmp.lt.s32.totalorder %s11, 3
    %p208 = pnand %p206, %p207
    %p209 = pneg %p208
    // Predicated region
    $region9: #{joint_transformer_block_with_envmap.16} parent=5 // pred_check
      _
    $region10: #{joint_transformer_block_with_envmap.16} parent=5 // pred_check_branch
      %211 = sbr.rel (%p208) target = $region12
    $region11: #{joint_transformer_block_with_envmap.16} parent=5 // pred_region
      %s212 = ssub.s32 %s11, 1
      // Predicated region
      $region13: #{joint_transformer_block_with_envmap.16} parent=11 // pred_check
        %p213 = pneg %p84
      $region14: #{joint_transformer_block_with_envmap.16} parent=11 // pred_check_branch
        %215 = sbr.rel (%p213) target = $region16
      $region15: #{joint_transformer_block_with_envmap.16} parent=11 // pred_region
        %p216 = scmp.lt.s32.totalorder %s23, 0
        %s217 = scalar_select %p216, %s23, 0
        %s218 = smul.addr %s217, 4
        %s219 = scalar_lea.vmem %s1, %s218
      $region16: #{joint_transformer_block_with_envmap.16} parent=11 // pred_fallthru
        _
      // Predicated region
      $region17: #{joint_transformer_block_with_envmap.16} parent=11 // pred_check
        %p220 = pneg %p110
      $region18: #{joint_transformer_block_with_envmap.16} parent=11 // pred_check_branch
        %222 = sbr.rel (%p220) target = $region20
      $region19: #{joint_transformer_block_with_envmap.16} parent=11 // pred_region
        %p223 = scmp.lt.s32.totalorder %s23, 0
        %s224 = scalar_select %p223, %s23, 0
        %s225 = scalar_lea.vmem %s2, %s224
      $region20: #{joint_transformer_block_with_envmap.16} parent=11 // pred_fallthru
        _
    $region12: #{joint_transformer_block_with_envmap.16} parent=5 // pred_fallthru
      _
    %p226 = scmp.lt.s32.totalorder %s11, 2
    // Predicated region
    $region21: #{joint_transformer_block_with_envmap.16} parent=5 // pred_check
      %p227 = pneg %p226
    $region22: #{joint_transformer_block_with_envmap.16} parent=5 // pred_check_branch
      %229 = sbr.rel (%p227) target = $region24
    $region23: #{joint_transformer_block_with_envmap.16} parent=5 // pred_region
      // Predicated region
      $region25: #{joint_transformer_block_with_envmap.16} parent=23 // pred_check
        %p230 = pneg %p52
      $region26: #{joint_transformer_block_with_envmap.16} parent=23 // pred_check_branch
        %232 = sbr.rel (%p230) target = $region28
      $region27: #{joint_transformer_block_with_envmap.16} parent=23 // pred_region
        %p233 = scmp.lt.s32.totalorder %s18, 1
        %s234 = scalar_select %p233, %s18, 1
        %p235 = scmp.lt.s32.totalorder %s19, 0
        %s236 = scalar_select %p235, %s19, 0
        %s237 = sadd.s32 %s236, %s234
        %s238 = smul.addr %s237, 4
        %s239 = scalar_lea.vmem %s0, %s238
      $region28: #{joint_transformer_block_with_envmap.16} parent=23 // pred_fallthru
        _
      // Predicated region
      $region29: #{joint_transformer_block_with_envmap.16} parent=23 // pred_check
        %p240 = pneg %p132
      $region30: #{joint_transformer_block_with_envmap.16} parent=23 // pred_check_branch
        %242 = sbr.rel (%p240) target = $region32
      $region31: #{joint_transformer_block_with_envmap.16} parent=23 // pred_region
        %p243 = scmp.lt.s32.totalorder %s18, 1
        %s244 = scalar_select %p243, %s18, 1
        %p245 = scmp.lt.s32.totalorder %s20, 0
        %s246 = scalar_select %p245, %s20, 0
        %s247 = sadd.s32 %s246, %s244
        %s248 = scalar_lea.vmem %s3, %s247
      $region32: #{joint_transformer_block_with_envmap.16} parent=23 // pred_fallthru
        _
      // Predicated region
      $region33: #{joint_transformer_block_with_envmap.16} parent=23 // pred_check
        %p249 = pneg %p162
      $region34: #{joint_transformer_block_with_envmap.16} parent=23 // pred_check_branch
        %251 = sbr.rel (%p249) target = $region36
      $region35: #{joint_transformer_block_with_envmap.16} parent=23 // pred_region
        %p252 = scmp.lt.s32.totalorder %s18, 1
        %s253 = scalar_select %p252, %s18, 1
        %p254 = scmp.lt.s32.totalorder %s19, 0
        %s255 = scalar_select %p254, %s19, 0
        %p256 = scmp.lt.s32.totalorder %s20, 0
        %s257 = scalar_select %p256, %s20, 0
        %s258 = sadd.s32 %s257, %s255
        %s259 = sadd.s32 %s258, %s253
        %s260 = smul.addr %s259, 8
        %s261 = scalar_lea.vmem %s4, %s260
      $region36: #{joint_transformer_block_with_envmap.16} parent=23 // pred_fallthru
        _
    $region24: #{joint_transformer_block_with_envmap.16} parent=5 // pred_fallthru
      _
    %p262 = scmp.le.s32.totalorder 1, %s11
    %p263 = scmp.lt.s32.totalorder %s11, 3
    %p264 = pnand %p262, %p263
    %p265 = pneg %p264
    // Predicated region
    $region37: #{joint_transformer_block_with_envmap.16} parent=5 // pred_check
      _
    $region38: #{joint_transformer_block_with_envmap.16} parent=5 // pred_check_branch
      %267 = sbr.rel (%p264) target = $region40
    $region39: #{joint_transformer_block_with_envmap.16} parent=5 // pred_region
      %s268 = ssub.s32 %s11, 1
      %p269 = scmp.lt.s32.totalorder %s21, 1
      %s270 = scalar_select %p269, %s21, 1
      %p271 = scmp.lt.s32.totalorder %s22, 0
      %s272 = scalar_select %p271, %s22, 0
      %s273 = sadd.s32 %s272, %s270
      %s274 = smul.addr %s273, 4
      %s275 = scalar_lea.vmem %s0, %s274
      %p276 = pneg %p58
      %p277 = pneg %p55
      %p278 = scmp.lt.s32.totalorder %s23, 0
      %s279 = scalar_select %p278, %s23, 0
      %s280 = smul.addr %s279, 4
      %s281 = scalar_lea.vmem %s1, %s280
      %p282 = pneg %p84
      %p283 = pneg %p81
      %p284 = scmp.lt.s32.totalorder %s23, 0
      %s285 = scalar_select %p284, %s23, 0
      %s286 = scalar_lea.vmem %s2, %s285
      %p287 = pneg %p110
      %p288 = pneg %p107
      %p289 = scmp.lt.s32.totalorder %s21, 1
      %s290 = scalar_select %p289, %s21, 1
      %p291 = scmp.lt.s32.totalorder %s23, 0
      %s292 = scalar_select %p291, %s23, 0
      %s293 = sadd.s32 %s292, %s290
      %s294 = scalar_lea.vmem %s3, %s293
      %p295 = pneg %p138
      %p296 = pneg %p135
      %p297 = scmp.lt.s32.totalorder %s21, 1
      %s298 = scalar_select %p297, %s21, 1
      %p299 = scmp.lt.s32.totalorder %s22, 0
      %s300 = scalar_select %p299, %s22, 0
      %p301 = scmp.lt.s32.totalorder %s23, 0
      %s302 = scalar_select %p301, %s23, 0
      %s303 = sadd.s32 %s302, %s300
      %s304 = sadd.s32 %s303, %s298
      %s305 = smul.addr %s304, 8
      %s306 = scalar_lea.vmem %s4, %s305
      %p307 = pneg %p168
      %p308 = pneg %p165
      %p309 = pneg %p198
      %p310 = pneg %p195
      %p311 = scmp.lt.s32.totalorder %s21, 1
      %s312 = scalar_select %p311, %s21, 1
      %p313 = scmp.lt.s32.totalorder %s22, 0
      %s314 = scalar_select %p313, %s22, 0
      %p315 = scmp.lt.s32.totalorder %s23, 0
      %s316 = scalar_select %p315, %s23, 0
      %s317 = sadd.s32 %s316, %s314
      %s318 = sadd.s32 %s317, %s312
      %s319 = smul.addr %s318, 4
      %s320 = scalar_lea.vmem %s5, %s319
      %p321 = scmp.lt.s32.totalorder %s21, 1
      %s322 = scalar_select %p321, %s21, 1
      %p323 = scmp.lt.s32.totalorder %s22, 0
      %s324 = scalar_select %p323, %s22, 0
      %s325 = sadd.s32 %s324, %s322
      %s326 = smul.addr %s325, 4
      %s327 = scalar_lea.vmem %s0, %s326
      %p328 = scmp.lt.s32.totalorder %s23, 0
      %s329 = scalar_select %p328, %s23, 0
      %s330 = smul.addr %s329, 4
      %s331 = scalar_lea.vmem %s1, %s330
      %p332 = scmp.lt.s32.totalorder %s23, 0
      %s333 = scalar_select %p332, %s23, 0
      %s334 = scalar_lea.vmem %s2, %s333
      %p335 = scmp.lt.s32.totalorder %s21, 1
      %s336 = scalar_select %p335, %s21, 1
      %p337 = scmp.lt.s32.totalorder %s23, 0
      %s338 = scalar_select %p337, %s23, 0
      %s339 = sadd.s32 %s338, %s336
      %s340 = scalar_lea.vmem %s3, %s339
      %p341 = scmp.lt.s32.totalorder %s21, 1
      %s342 = scalar_select %p341, %s21, 1
      %p343 = scmp.lt.s32.totalorder %s22, 0
      %s344 = scalar_select %p343, %s22, 0
      %p345 = scmp.lt.s32.totalorder %s23, 0
      %s346 = scalar_select %p345, %s23, 0
      %s347 = sadd.s32 %s346, %s344
      %s348 = sadd.s32 %s347, %s342
      %s349 = smul.addr %s348, 8
      %s350 = scalar_lea.vmem %s4, %s349
      %p351 = scmp.lt.s32.totalorder %s21, 1
      %s352 = scalar_select %p351, %s21, 1
      %p353 = scmp.lt.s32.totalorder %s22, 0
      %s354 = scalar_select %p353, %s22, 0
      %p355 = scmp.lt.s32.totalorder %s23, 0
      %s356 = scalar_select %p355, %s23, 0
      %s357 = sadd.s32 %s356, %s354
      %s358 = sadd.s32 %s357, %s352
      %s359 = smul.addr %s358, 4
      %s360 = scalar_lea.vmem %s5, %s359
      %v362 = vld [vmem:[%s327] sm:$0xf]
      %v363 = vld [vmem:[%s331] sm:$0xf]
      %v364 = vld [vmem:[%s331 + $0x4] sm:$0xf]
      %v365 = vld [vmem:[%s331 + $0x8] sm:$0xf]
      %v366 = vld [vmem:[%s331 + $0xc] sm:$0xf]
      %v367 = vld [vmem:[%s334] sm:$0x1]
      %v369 = vlaneseq
      %v370 = vshrl.u32 %v369, 7
      %v371 = vsub.s32 0, %v370
      %v372 = vrot.slane %v367, %v371
      %v378 = vunpack.c.l.b16 %v363
      %v379 = vunpack.c.l.b16 %v364
      %v380 = vunpack.c.l.b16 %v365
      %v381 = vunpack.c.l.b16 %v366
      %v382 = vpack.c.b16 %v379, %v378
      %v383 = vpack.c.b16 %v381, %v380
      %vm386 = vcmask 261120
      %v388 = vsel %vm386, %v362, 0
      %390 = vmatprep.subr.bf16.mxu0 0
      %391 = vmatpush1.bf16.msra.mxu0 %v382
      %392 = vmatprep.subr.bf16.mxu0 0
      %393 = vmatpush1.bf16.msra.mxu0 %v383
      %394 = vmatprep.subr.bf16.mxu0 0
      %395 = vmatpush1.bf16.msra.mxu0 0
      %396 = vmatprep.subr.bf16.mxu0 0
      %397 = vmatpush1.bf16.msra.mxu0 0
      %398 = vmatprep.subr.bf16.mxu0 0
      %399 = vmatpush1.bf16.msra.mxu0 0
      %400 = vmatprep.subr.bf16.mxu0 0
      %401 = vmatpush1.bf16.msra.mxu0 0
      %402 = vmatprep.subr.bf16.mxu0 0
      %403 = vmatpush1.bf16.msra.mxu0 0
      %404 = vmatprep.subr.bf16.mxu0 0
      %405 = vmatpush1.bf16.msra.mxu0 0
      %406 = vmatprep.subr.bf16.mxu0 0
      %407 = vmatpush1.bf16.msra.mxu0 0
      %408 = vmatprep.subr.bf16.mxu0 0
      %409 = vmatpush1.bf16.msra.mxu0 0
      %410 = vmatprep.subr.bf16.mxu0 0
      %411 = vmatpush1.bf16.msra.mxu0 0
      %412 = vmatprep.subr.bf16.mxu0 0
      %413 = vmatpush1.bf16.msra.mxu0 0
      %414 = vmatprep.subr.bf16.mxu0 0
      %415 = vmatpush1.bf16.msra.mxu0 0
      %416 = vmatprep.subr.bf16.mxu0 0
      %417 = vmatpush1.bf16.msra.mxu0 0
      %418 = vmatprep.subr.bf16.mxu0 0
      %419 = vmatpush1.bf16.msra.mxu0 0
      %420 = vmatprep.subr.bf16.mxu0 0
      %421 = vmatpush1.bf16.msra.mxu0 0
      %422 = vmatprep.mubr.bf16.mxu0 0
      %423 = vmatmul.mubr.bf16.gmra.mrb[0].mxu0 %v388
      %v424 = vpop.f32.mrb[0].mxu0
      %v425 = vadd.f32 %v372, %v424
      %v426 = vpop.f32.mrb[0].mxu0
      %v427 = vpop.f32.mrb[0].mxu0
      %v428 = vpop.f32.mrb[0].mxu0
      %429 = vdwg.mxu0
      %v430 = vld [vmem:[%s350] sm:$0xff]
      %v431 = vld [vmem:[%s340] sm:$0x1]
      %v433 = vlaneseq
      %v434 = vshrl.u32 %v433, 7
      %v435 = vsub.s32 0, %v434
      %v436 = vrot.slane %v431, %v435
      %v438 = vmul.f32 %v436, %v425
      %v439 = vadd.f32 %v430, %v438
      %v440 = vpack.c.bf16 %v439, %v439
      %vm441 = vcmask 257024
      %442 = vst.msk [vmem:[%s360] sm:$0xf] %vm441, %v440
      %p443 = scmp.lt.s32.totalorder %s21, 1
      %s444 = scalar_select %p443, %s21, 1
      %p445 = scmp.lt.s32.totalorder %s22, 0
      %s446 = scalar_select %p445, %s22, 0
      %p447 = scmp.lt.s32.totalorder %s23, 0
      %s448 = scalar_select %p447, %s23, 0
      %s449 = sadd.s32 %s448, %s446
      %s450 = sadd.s32 %s449, %s444
      %s451 = smul.addr %s450, 4
      %s452 = scalar_lea.vmem %s5, %s451
      // Predicated region
      $region41: #{joint_transformer_block_with_envmap.16} parent=39 // pred_check
        %p453 = pneg %p195
      $region42: #{joint_transformer_block_with_envmap.16} parent=39 // pred_check_branch
        %455 = sbr.rel (%p453) target = $region44
      $region43: #{joint_transformer_block_with_envmap.16} parent=39 // pred_region
        _
      $region44: #{joint_transformer_block_with_envmap.16} parent=39 // pred_fallthru
        _
    $region40: #{joint_transformer_block_with_envmap.16} parent=5 // pred_fallthru
      _
    %p456 = scmp.le.s32.totalorder 2, %s11
    // Predicated region
    $region45: #{joint_transformer_block_with_envmap.16} parent=5 // pred_check
      %p457 = pneg %p456
    $region46: #{joint_transformer_block_with_envmap.16} parent=5 // pred_check_branch
      %459 = sbr.rel (%p457) target = $region48
    $region47: #{joint_transformer_block_with_envmap.16} parent=5 // pred_region
      %s460 = ssub.s32 %s11, 2
      // Predicated region
      $region49: #{joint_transformer_block_with_envmap.16} parent=47 // pred_check
        %p461 = pneg %p201
      $region50: #{joint_transformer_block_with_envmap.16} parent=47 // pred_check_branch
        %463 = sbr.rel (%p461) target = $region52
      $region51: #{joint_transformer_block_with_envmap.16} parent=47 // pred_region
        %p464 = scmp.lt.s32.totalorder %s24, 1
        %s465 = scalar_select %p464, %s24, 1
        %p466 = scmp.lt.s32.totalorder %s25, 0
        %s467 = scalar_select %p466, %s25, 0
        %p468 = scmp.lt.s32.totalorder %s26, 0
        %s469 = scalar_select %p468, %s26, 0
        %s470 = sadd.s32 %s469, %s467
        %s471 = sadd.s32 %s470, %s465
        %s472 = smul.addr %s471, 4
        %s473 = scalar_lea.vmem %s5, %s472
      $region52: #{joint_transformer_block_with_envmap.16} parent=47 // pred_fallthru
        _
    $region48: #{joint_transformer_block_with_envmap.16} parent=5 // pred_fallthru
      _
  $region6: #{joint_transformer_block_with_envmap.16} parent=0 // loop_footer
    %s15 = sadd.s32 1, %s11
  $region7: #{joint_transformer_block_with_envmap.16} parent=0 // loop_footer_branch
    %10 = sbr.rel target = $region3
  $region8: #{joint_transformer_block_with_envmap.16} parent=0 // loop_exit
    _

// kernel: joint_transformer_block_with_envmap.22
$region0: #{joint_transformer_block_with_envmap.22}
  #allocation0 [shape = 'u32[]', space=smem, size = 0x4, offset = 0x4, fixed_abs, tag = 'smem constant byte address 0x4 - core index']
  #allocation1 [shape = 'u32[144,128]{1,0:T(1,128)}', space=vmem, size = 0x12000, scoped, tag = 'internal scratch']
  #allocation2 [shape = 'bf16[8,32]{1,0:T(8,128)(2,1)}', space=vmem, size = 0x800, scoped, tag = 'scratch operand']
  %s0 = inlined_call_operand.vmem [shape: bf16[2,8,32], index: 0, kind: input, shape index: {}]
  %s1 = inlined_call_operand.vmem [shape: f32[2,1,32], index: 1, kind: input, shape index: {}]
  %s2 = inlined_call_operand.vmem [shape: f32[2,1,32], index: 2, kind: input, shape index: {}]
  %s3 = inlined_call_operand.vmem [shape: bf16[32,128], index: 3, kind: input, shape index: {}]
  %s4 = inlined_call_operand.vmem [shape: f32[1,1,128], index: 4, kind: input, shape index: {}]
  %s5 = inlined_call_operand.vmem [shape: bf16[2,8,128], index: 5, kind: output, shape index: {}]
  %s6 = sld [smem:[#allocation0]]
  $region57: #{joint_transformer_block_with_envmap.22} parent=0
    _
  %s8 = ssub.s32 1, %s6
  %s9 = scalar_select 0, %s8, %s6
  loop: start=0, step=1, limit=4
  $region2: #{joint_transformer_block_with_envmap.22} parent=0 // loop_pre_header
    _
  $region3: #{joint_transformer_block_with_envmap.22} parent=0 // loop_header
    %s11 = sphi 0, %s15
    %p12 = scmp.ge.s32.totalorder %s11, 4
    %s18 = sphi 0, %s37
    %s19 = sphi 0, %s33
    %s20 = sphi 0, %s29
    %s21 = sphi 0, %s18
    %s22 = sphi 0, %s19
    %s23 = sphi 0, %s20
    %s24 = sphi 0, %s21
    %s25 = sphi 0, %s22
    %s26 = sphi 0, %s23
    %s42 = sphi 0, %s44
    %s45 = sphi 0, %s42
    %s46 = sphi 0, %s45
    %s62 = sphi 0, %s46
    %s68 = sphi 0, %s70
    %s71 = sphi 0, %s68
    %s72 = sphi 0, %s71
    %s88 = sphi 0, %s72
    %s94 = sphi 0, %s96
    %s97 = sphi 0, %s94
    %s98 = sphi 0, %s97
    %s114 = sphi 0, %s98
    %s120 = sphi 0, %s122
    %s123 = sphi 0, %s120
    %s124 = sphi 0, %s123
    %s140 = sphi 0, %s124
    %s146 = sphi 0, %s148
    %s149 = sphi 0, %s146
    %s150 = sphi 0, %s149
    %s166 = sphi 0, %s150
    %s176 = sphi 0, %s178
    %s179 = sphi 0, %s176
    %s180 = sphi 0, %s179
    %s196 = sphi 0, %s180
  $region4: #{joint_transformer_block_with_envmap.22} parent=0 // loop_header_branch
    %14 = sbr.rel (%p12) target = $region8
  $region5: #{joint_transformer_block_with_envmap.22} parent=0 // loop_body
    %s16 = ssub.s32 %s11, 1
    %s17 = ssub.s32 %s11, 2
    %s27 = sadd.s32 1, %s20
    %p28 = scmp.ge.s32.totalorder %s27, 1
    %s29 = scalar_select %p28, 0, %s27
    %s30 = sadd.s32 1, %s19
    %s31 = scalar_select %p28, %s30, %s19
    %p32 = scmp.ge.s32.totalorder %s31, 1
    %s33 = scalar_select %p32, 0, %s31
    %s34 = sadd.s32 1, %s18
    %s35 = scalar_select %p32, %s34, %s18
    %p36 = scmp.ge.s32.totalorder %s35, 2
    %s37 = scalar_select %p36, 0, %s35
    %s38 = ssub.s32 %s18, %s37
    %s39 = ssub.s32 %s19, %s33
    %s40 = sor.u32 %s38, %s39
    %p41 = scmp.eq.s32.totalorder %s40, 0
    %s43 = sadd.s32 %s42, 1
    %s44 = scalar_select %p41, %s42, %s43
    %p47 = pneg %p41
    %p48 = scmp.eq.s32.totalorder %s11, 1
    %p49 = por %p47, %p48
    %p50 = scmp.ne.s32.totalorder %s42, %s45
    %p51 = scmp.eq.s32.totalorder %s11, 0
    %p52 = por %p50, %p51
    %p53 = scmp.ne.s32.totalorder %s42, %s45
    %p54 = scmp.eq.s32.totalorder %s16, 1
    %p55 = por %p53, %p54
    %p56 = scmp.ne.s32.totalorder %s45, %s46
    %p57 = scmp.eq.s32.totalorder %s16, 0
    %p58 = por %p56, %p57
    %p59 = scmp.ne.s32.totalorder %s45, %s46
    %p60 = scmp.eq.s32.totalorder %s17, 1
    %p61 = por %p59, %p60
    %p63 = scmp.ne.s32.totalorder %s46, %s62
    %p64 = scmp.eq.s32.totalorder %s17, 0
    %p65 = por %p63, %p64
    %s66 = ssub.s32 %s18, %s37
    %p67 = scmp.eq.s32.totalorder %s66, 0
    %s69 = sadd.s32 %s68, 1
    %s70 = scalar_select %p67, %s68, %s69
    %p73 = pneg %p67
    %p74 = scmp.eq.s32.totalorder %s11, 1
    %p75 = por %p73, %p74
    %p76 = scmp.ne.s32.totalorder %s68, %s71
    %p77 = scmp.eq.s32.totalorder %s11, 0
    %p78 = por %p76, %p77
    %p79 = scmp.ne.s32.totalorder %s68, %s71
    %p80 = scmp.eq.s32.totalorder %s16, 1
    %p81 = por %p79, %p80
    %p82 = scmp.ne.s32.totalorder %s71, %s72
    %p83 = scmp.eq.s32.totalorder %s16, 0
    %p84 = por %p82, %p83
    %p85 = scmp.ne.s32.totalorder %s71, %s72
    %p86 = scmp.eq.s32.totalorder %s17, 1
    %p87 = por %p85, %p86
    %p89 = scmp.ne.s32.totalorder %s72, %s88
    %p90 = scmp.eq.s32.totalorder %s17, 0
    %p91 = por %p89, %p90
    %s92 = ssub.s32 %s18, %s37
    %p93 = scmp.eq.s32.totalorder %s92, 0
    %s95 = sadd.s32 %s94, 1
    %s96 = scalar_select %p93, %s94, %s95
    %p99 = pneg %p93
    %p100 = scmp.eq.s32.totalorder %s11, 1
    %p101 = por %p99, %p100
    %p102 = scmp.ne.s32.totalorder %s94, %s97
    %p103 = scmp.eq.s32.totalorder %s11, 0
    %p104 = por %p102, %p103
    %p105 = scmp.ne.s32.totalorder %s94, %s97
    %p106 = scmp.eq.s32.totalorder %s16, 1
    %p107 = por %p105, %p106
    %p108 = scmp.ne.s32.totalorder %s97, %s98
    %p109 = scmp.eq.s32.totalorder %s16, 0
    %p110 = por %p108, %p109
    %p111 = scmp.ne.s32.totalorder %s97, %s98
    %p112 = scmp.eq.s32.totalorder %s17, 1
    %p113 = por %p111, %p112
    %p115 = scmp.ne.s32.totalorder %s98, %s114
    %p116 = scmp.eq.s32.totalorder %s17, 0
    %p117 = por %p115, %p116
    %s118 = ssub.s32 %s20, %s29
    %p119 = scmp.eq.s32.totalorder %s118, 0
    %s121 = sadd.s32 %s120, 1
    %s122 = scalar_select %p119, %s120, %s121
    %p125 = pneg %p119
    %p126 = scmp.eq.s32.totalorder %s11, 1
    %p127 = por %p125, %p126
    %p128 = scmp.ne.s32.totalorder %s120, %s123
    %p129 = scmp.eq.s32.totalorder %s11, 0
    %p130 = por %p128, %p129
    %p131 = scmp.ne.s32.totalorder %s120, %s123
    %p132 = scmp.eq.s32.totalorder %s16, 1
    %p133 = por %p131, %p132
    %p134 = scmp.ne.s32.totalorder %s123, %s124
    %p135 = scmp.eq.s32.totalorder %s16, 0
    %p136 = por %p134, %p135
    %p137 = scmp.ne.s32.totalorder %s123, %s124
    %p138 = scmp.eq.s32.totalorder %s17, 1
    %p139 = por %p137, %p138
    %p141 = scmp.ne.s32.totalorder %s124, %s140
    %p142 = scmp.eq.s32.totalorder %s17, 0
    %p143 = por %p141, %p142
    %s144 = ssub.s32 %s20, %s29
    %p145 = scmp.eq.s32.totalorder %s144, 0
    %s147 = sadd.s32 %s146, 1
    %s148 = scalar_select %p145, %s146, %s147
    %p151 = pneg %p145
    %p152 = scmp.eq.s32.totalorder %s11, 1
    %p153 = por %p151, %p152
    %p154 = scmp.ne.s32.totalorder %s146, %s149
    %p155 = scmp.eq.s32.totalorder %s11, 0
    %p156 = por %p154, %p155
    %p157 = scmp.ne.s32.totalorder %s146, %s149
    %p158 = scmp.eq.s32.totalorder %s16, 1
    %p159 = por %p157, %p158
    %p160 = scmp.ne.s32.totalorder %s149, %s150
    %p161 = scmp.eq.s32.totalorder %s16, 0
    %p162 = por %p160, %p161
    %p163 = scmp.ne.s32.totalorder %s149, %s150
    %p164 = scmp.eq.s32.totalorder %s17, 1
    %p165 = por %p163, %p164
    %p167 = scmp.ne.s32.totalorder %s150, %s166
    %p168 = scmp.eq.s32.totalorder %s17, 0
    %p169 = por %p167, %p168
    %s170 = ssub.s32 %s18, %s37
    %s171 = ssub.s32 %s19, %s33
    %s172 = sor.u32 %s170, %s171
    %s173 = ssub.s32 %s20, %s29
    %s174 = sor.u32 %s172, %s173
    %p175 = scmp.eq.s32.totalorder %s174, 0
    %s177 = sadd.s32 %s176, 1
    %s178 = scalar_select %p175, %s176, %s177
    %p181 = pneg %p175
    %p182 = scmp.eq.s32.totalorder %s11, 1
    %p183 = por %p181, %p182
    %p184 = scmp.ne.s32.totalorder %s176, %s179
    %p185 = scmp.eq.s32.totalorder %s11, 0
    %p186 = por %p184, %p185
    %p187 = scmp.ne.s32.totalorder %s176, %s179
    %p188 = scmp.eq.s32.totalorder %s16, 1
    %p189 = por %p187, %p188
    %p190 = scmp.ne.s32.totalorder %s179, %s180
    %p191 = scmp.eq.s32.totalorder %s16, 0
    %p192 = por %p190, %p191
    %p193 = scmp.ne.s32.totalorder %s179, %s180
    %p194 = scmp.eq.s32.totalorder %s17, 1
    %p195 = por %p193, %p194
    %p197 = scmp.ne.s32.totalorder %s180, %s196
    %p198 = scmp.eq.s32.totalorder %s17, 0
    %p199 = por %p197, %p198
    %p200 = scmp.le.s32.totalorder 1, %s11
    %p201 = scmp.lt.s32.totalorder %s11, 3
    %p202 = pnand %p200, %p201
    %p203 = pneg %p202
    // Predicated region
    $region9: #{joint_transformer_block_with_envmap.22} parent=5 // pred_check
      _
    $region10: #{joint_transformer_block_with_envmap.22} parent=5 // pred_check_branch
      %205 = sbr.rel (%p202) target = $region12
    $region11: #{joint_transformer_block_with_envmap.22} parent=5 // pred_region
      %s206 = ssub.s32 %s11, 1
      // Predicated region
      $region13: #{joint_transformer_block_with_envmap.22} parent=11 // pred_check
        %p207 = pneg %p136
      $region14: #{joint_transformer_block_with_envmap.22} parent=11 // pred_check_branch
        %209 = sbr.rel (%p207) target = $region16
      $region15: #{joint_transformer_block_with_envmap.22} parent=11 // pred_region
        %p210 = scmp.lt.s32.totalorder %s23, 0
        %s211 = scalar_select %p210, %s23, 0
        %s212 = smul.addr %s211, 4
        %s213 = scalar_lea.vmem %s3, %s212
      $region16: #{joint_transformer_block_with_envmap.22} parent=11 // pred_fallthru
        _
      // Predicated region
      $region17: #{joint_transformer_block_with_envmap.22} parent=11 // pred_check
        %p214 = pneg %p162
      $region18: #{joint_transformer_block_with_envmap.22} parent=11 // pred_check_branch
        %216 = sbr.rel (%p214) target = $region20
      $region19: #{joint_transformer_block_with_envmap.22} parent=11 // pred_region
        %p217 = scmp.lt.s32.totalorder %s23, 0
        %s218 = scalar_select %p217, %s23, 0
        %s219 = scalar_lea.vmem %s4, %s218
      $region20: #{joint_transformer_block_with_envmap.22} parent=11 // pred_fallthru
        _
    $region12: #{joint_transformer_block_with_envmap.22} parent=5 // pred_fallthru
      _
    %p220 = scmp.lt.s32.totalorder %s11, 2
    // Predicated region
    $region21: #{joint_transformer_block_with_envmap.22} parent=5 // pred_check
      %p221 = pneg %p220
    $region22: #{joint_transformer_block_with_envmap.22} parent=5 // pred_check_branch
      %223 = sbr.rel (%p221) target = $region24
    $region23: #{joint_transformer_block_with_envmap.22} parent=5 // pred_region
      // Predicated region
      $region25: #{joint_transformer_block_with_envmap.22} parent=23 // pred_check
        %p224 = pneg %p52
      $region26: #{joint_transformer_block_with_envmap.22} parent=23 // pred_check_branch
        %226 = sbr.rel (%p224) target = $region28
      $region27: #{joint_transformer_block_with_envmap.22} parent=23 // pred_region
        %p227 = scmp.lt.s32.totalorder %s18, 1
        %s228 = scalar_select %p227, %s18, 1
        %p229 = scmp.lt.s32.totalorder %s19, 0
        %s230 = scalar_select %p229, %s19, 0
        %s231 = sadd.s32 %s230, %s228
        %s232 = smul.addr %s231, 4
        %s233 = scalar_lea.vmem %s0, %s232
      $region28: #{joint_transformer_block_with_envmap.22} parent=23 // pred_fallthru
        _
      // Predicated region
      $region29: #{joint_transformer_block_with_envmap.22} parent=23 // pred_check
        %p234 = pneg %p78
      $region30: #{joint_transformer_block_with_envmap.22} parent=23 // pred_check_branch
        %236 = sbr.rel (%p234) target = $region32
      $region31: #{joint_transformer_block_with_envmap.22} parent=23 // pred_region
        %p237 = scmp.lt.s32.totalorder %s18, 1
        %s238 = scalar_select %p237, %s18, 1
        %s239 = scalar_lea.vmem %s1, %s238
      $region32: #{joint_transformer_block_with_envmap.22} parent=23 // pred_fallthru
        _
      // Predicated region
      $region33: #{joint_transformer_block_with_envmap.22} parent=23 // pred_check
        %p240 = pneg %p104
      $region34: #{joint_transformer_block_with_envmap.22} parent=23 // pred_check_branch
        %242 = sbr.rel (%p240) target = $region36
      $region35: #{joint_transformer_block_with_envmap.22} parent=23 // pred_region
        %p243 = scmp.lt.s32.totalorder %s18, 1
        %s244 = scalar_select %p243, %s18, 1
        %s245 = scalar_lea.vmem %s2, %s244
      $region36: #{joint_transformer_block_with_envmap.22} parent=23 // pred_fallthru
        _
    $region24: #{joint_transformer_block_with_envmap.22} parent=5 // pred_fallthru
      _
    %p246 = scmp.le.s32.totalorder 1, %s11
    %p247 = scmp.lt.s32.totalorder %s11, 3
    %p248 = pnand %p246, %p247
    %p249 = pneg %p248
    // Predicated region
    $region37: #{joint_transformer_block_with_envmap.22} parent=5 // pred_check
      _
    $region38: #{joint_transformer_block_with_envmap.22} parent=5 // pred_check_branch
      %251 = sbr.rel (%p248) target = $region40
    $region39: #{joint_transformer_block_with_envmap.22} parent=5 // pred_region
      %s252 = ssub.s32 %s11, 1
      %p253 = scmp.lt.s32.totalorder %s21, 1
      %s254 = scalar_select %p253, %s21, 1
      %p255 = scmp.lt.s32.totalorder %s22, 0
      %s256 = scalar_select %p255, %s22, 0
      %s257 = sadd.s32 %s256, %s254
      %s258 = smul.addr %s257, 4
      %s259 = scalar_lea.vmem %s0, %s258
      %p260 = pneg %p58
      %p261 = pneg %p55
      %p262 = scmp.lt.s32.totalorder %s21, 1
      %s263 = scalar_select %p262, %s21, 1
      %s264 = scalar_lea.vmem %s1, %s263
      %p265 = pneg %p84
      %p266 = pneg %p81
      %p267 = scmp.lt.s32.totalorder %s21, 1
      %s268 = scalar_select %p267, %s21, 1
      %s269 = scalar_lea.vmem %s2, %s268
      %p270 = pneg %p110
      %p271 = pneg %p107
      %p272 = scmp.lt.s32.totalorder %s23, 0
      %s273 = scalar_select %p272, %s23, 0
      %s274 = smul.addr %s273, 4
      %s275 = scalar_lea.vmem %s3, %s274
      %p276 = pneg %p136
      %p277 = pneg %p133
      %p278 = scmp.lt.s32.totalorder %s23, 0
      %s279 = scalar_select %p278, %s23, 0
      %s280 = scalar_lea.vmem %s4, %s279
      %p281 = pneg %p162
      %p282 = pneg %p159
      %p283 = pneg %p192
      %p284 = pneg %p189
      %p285 = scmp.lt.s32.totalorder %s21, 1
      %s286 = scalar_select %p285, %s21, 1
      %p287 = scmp.lt.s32.totalorder %s22, 0
      %s288 = scalar_select %p287, %s22, 0
      %p289 = scmp.lt.s32.totalorder %s23, 0
      %s290 = scalar_select %p289, %s23, 0
      %s291 = sadd.s32 %s290, %s288
      %s292 = sadd.s32 %s291, %s286
      %s293 = smul.addr %s292, 4
      %s294 = scalar_lea.vmem %s5, %s293
      %p295 = scmp.lt.s32.totalorder %s21, 1
      %s296 = scalar_select %p295, %s21, 1
      %p297 = scmp.lt.s32.totalorder %s22, 0
      %s298 = scalar_select %p297, %s22, 0
      %s299 = sadd.s32 %s298, %s296
      %s300 = smul.addr %s299, 4
      %s301 = scalar_lea.vmem %s0, %s300
      %p302 = scmp.lt.s32.totalorder %s21, 1
      %s303 = scalar_select %p302, %s21, 1
      %s304 = scalar_lea.vmem %s1, %s303
      %p305 = scmp.lt.s32.totalorder %s21, 1
      %s306 = scalar_select %p305, %s21, 1
      %s307 = scalar_lea.vmem %s2, %s306
      %p308 = scmp.lt.s32.totalorder %s23, 0
      %s309 = scalar_select %p308, %s23, 0
      %s310 = smul.addr %s309, 4
      %s311 = scalar_lea.vmem %s3, %s310
      %p312 = scmp.lt.s32.totalorder %s23, 0
      %s313 = scalar_select %p312, %s23, 0
      %s314 = scalar_lea.vmem %s4, %s313
      %p315 = scmp.lt.s32.totalorder %s21, 1
      %s316 = scalar_select %p315, %s21, 1
      %p317 = scmp.lt.s32.totalorder %s22, 0
      %s318 = scalar_select %p317, %s22, 0
      %p319 = scmp.lt.s32.totalorder %s23, 0
      %s320 = scalar_select %p319, %s23, 0
      %s321 = sadd.s32 %s320, %s318
      %s322 = sadd.s32 %s321, %s316
      %s323 = smul.addr %s322, 4
      %s324 = scalar_lea.vmem %s5, %s323
      %p326 = scmp.eq.s32.totalorder %s23, 0
      // Predicated region
      $region41: #{joint_transformer_block_with_envmap.22} parent=39 // pred_check
        %p327 = pneg %p326
      $region42: #{joint_transformer_block_with_envmap.22} parent=39 // pred_check_branch
        %329 = sbr.rel (%p327) target = $region44
      $region43: #{joint_transformer_block_with_envmap.22} parent=39 // pred_region
        %v330 = vld [vmem:[%s301] sm:$0xf]
        %v331 = vunpack.c.l.bf16 %v330
        %vm332 = vcmask 261120
        %v333 = vsel %vm332, %v331, 0.0
        %334 = vadd.xlane.f32.xlu0 %v333
        %v335 = vpop.xlane.xlu0 %334
        %v336 = vrcp.pop 32.0
        %v337 = vmul.f32 %v335, %v336
        %v338 = vsub.f32 %v331, %v337
        %v339 = vmul.f32 %v338, %v338
        %v340 = vsel %vm332, %v339, 0.0
        %341 = vadd.xlane.f32.xlu0 %v340
        %v342 = vpop.xlane.xlu0 %341
        %v343 = vmul.f32 %v342, %v336
        %v344 = vadd.f32 %v343, 1e-06
        %v345 = vrsqrt.pop %v344
        %v346 = vmul.f32 %v338, %v345
        %v347 = vld [vmem:[%s304] sm:$0x1]
        %v348 = vadd.f32 %v347, 1.0
        %v350 = vlaneseq
        %v351 = vshrl.u32 %v350, 7
        %v352 = vsub.s32 0, %v351
        %v353 = vrot.slane %v348, %v352
        %v355 = vmul.f32 %v346, %v353
        %v356 = vld [vmem:[%s307] sm:$0x1]
        %v358 = vlaneseq
        %v359 = vshrl.u32 %v358, 7
        %v360 = vsub.s32 0, %v359
        %v361 = vrot.slane %v356, %v360
        %v363 = vadd.f32 %v355, %v361
        %v364 = vpack.c.bf16 %v363, %v363
        %vm365 = vcmask 257024
        %366 = vst.msk [vmem:[#allocation2] sm:$0xf] %vm365, %v364
      $region44: #{joint_transformer_block_with_envmap.22} parent=39 // pred_fallthru
        _
      %v367 = vld [vmem:[#allocation2] sm:$0xf]
      %v368 = vld [vmem:[%s311] sm:$0xf]
      %v369 = vld [vmem:[%s311 + $0x4] sm:$0xf]
      %v370 = vld [vmem:[%s311 + $0x8] sm:$0xf]
      %v371 = vld [vmem:[%s311 + $0xc] sm:$0xf]
      %v372 = vld [vmem:[%s314] sm:$0x1]
      %v374 = vlaneseq
      %v375 = vshrl.u32 %v374, 7
      %v376 = vsub.s32 0, %v375
      %v377 = vrot.slane %v372, %v376
      %v383 = vunpack.c.l.b16 %v368
      %v384 = vunpack.c.l.b16 %v369
      %v385 = vunpack.c.l.b16 %v370
      %v386 = vunpack.c.l.b16 %v371
      %v387 = vpack.c.b16 %v384, %v383
      %v388 = vpack.c.b16 %v386, %v385
      %vm391 = vcmask 261120
      %v393 = vsel %vm391, %v367, 0
      %395 = vmatprep.subr.bf16.mxu0 0
      %396 = vmatpush1.bf16.msra.mxu0 %v387
      %397 = vmatprep.subr.bf16.mxu0 0
      %398 = vmatpush1.bf16.msra.mxu0 %v388
      %399 = vmatprep.subr.bf16.mxu0 0
      %400 = vmatpush1.bf16.msra.mxu0 0
      %401 = vmatprep.subr.bf16.mxu0 0
      %402 = vmatpush1.bf16.msra.mxu0 0
      %403 = vmatprep.subr.bf16.mxu0 0
      %404 = vmatpush1.bf16.msra.mxu0 0
      %405 = vmatprep.subr.bf16.mxu0 0
      %406 = vmatpush1.bf16.msra.mxu0 0
      %407 = vmatprep.subr.bf16.mxu0 0
      %408 = vmatpush1.bf16.msra.mxu0 0
      %409 = vmatprep.subr.bf16.mxu0 0
      %410 = vmatpush1.bf16.msra.mxu0 0
      %411 = vmatprep.subr.bf16.mxu0 0
      %412 = vmatpush1.bf16.msra.mxu0 0
      %413 = vmatprep.subr.bf16.mxu0 0
      %414 = vmatpush1.bf16.msra.mxu0 0
      %415 = vmatprep.subr.bf16.mxu0 0
      %416 = vmatpush1.bf16.msra.mxu0 0
      %417 = vmatprep.subr.bf16.mxu0 0
      %418 = vmatpush1.bf16.msra.mxu0 0
      %419 = vmatprep.subr.bf16.mxu0 0
      %420 = vmatpush1.bf16.msra.mxu0 0
      %421 = vmatprep.subr.bf16.mxu0 0
      %422 = vmatpush1.bf16.msra.mxu0 0
      %423 = vmatprep.subr.bf16.mxu0 0
      %424 = vmatpush1.bf16.msra.mxu0 0
      %425 = vmatprep.subr.bf16.mxu0 0
      %426 = vmatpush1.bf16.msra.mxu0 0
      %427 = vmatprep.mubr.bf16.mxu0 0
      %428 = vmatmul.mubr.bf16.gmra.mrb[0].mxu0 %v393
      %v429 = vpop.f32.mrb[0].mxu0
      %v430 = vadd.f32 %v377, %v429
      %v431 = vpop.f32.mrb[0].mxu0
      %v432 = vpop.f32.mrb[0].mxu0
      %v433 = vpop.f32.mrb[0].mxu0
      %434 = vdwg.mxu0
      %v435 = vmul.f32 %v430, 0.5
      %v436 = vmul.f32 %v430, 0.044715
      %v437 = vmul.f32 %v436, %v430
      %v438 = vmul.f32 %v437, %v430
      %v439 = vadd.f32 %v430, %v438
      %v440 = vmul.f32 %v439, 0.7978846
      %v441 = vtanh.pop %v440
      %v442 = vadd.f32 %v441, 1.0
      %v443 = vmul.f32 %v435, %v442
      %v444 = vpack.c.bf16 %v443, %v443
      %445 = vst [vmem:[%s324] sm:$0xf] %v444
      %p446 = scmp.lt.s32.totalorder %s21, 1
      %s447 = scalar_select %p446, %s21, 1
      %p448 = scmp.lt.s32.totalorder %s22, 0
      %s449 = scalar_select %p448, %s22, 0
      %p450 = scmp.lt.s32.totalorder %s23, 0
      %s451 = scalar_select %p450, %s23, 0
      %s452 = sadd.s32 %s451, %s449
      %s453 = sadd.s32 %s452, %s447
      %s454 = smul.addr %s453, 4
      %s455 = scalar_lea.vmem %s5, %s454
      // Predicated region
      $region45: #{joint_transformer_block_with_envmap.22} parent=39 // pred_check
        %p456 = pneg %p189
      $region46: #{joint_transformer_block_with_envmap.22} parent=39 // pred_check_branch
        %458 = sbr.rel (%p456) target = $region48
      $region47: #{joint_transformer_block_with_envmap.22} parent=39 // pred_region
        _
      $region48: #{joint_transformer_block_with_envmap.22} parent=39 // pred_fallthru
        _
    $region40: #{joint_transformer_block_with_envmap.22} parent=5 // pred_fallthru
      _
    %p459 = scmp.le.s32.totalorder 2, %s11
    // Predicated region
    $region49: #{joint_transformer_block_with_envmap.22} parent=5 // pred_check
      %p460 = pneg %p459
    $region50: #{joint_transformer_block_with_envmap.22} parent=5 // pred_check_branch
      %462 = sbr.rel (%p460) target = $region52
    $region51: #{joint_transformer_block_with_envmap.22} parent=5 // pred_region
      %s463 = ssub.s32 %s11, 2
      // Predicated region
      $region53: #{joint_transformer_block_with_envmap.22} parent=51 // pred_check
        %p464 = pneg %p195
      $region54: #{joint_transformer_block_with_envmap.22} parent=51 // pred_check_branch
        %466 = sbr.rel (%p464) target = $region56
      $region55: #{joint_transformer_block_with_envmap.22} parent=51 // pred_region
        %p467 = scmp.lt.s32.totalorder %s24, 1
        %s468 = scalar_select %p467, %s24, 1
        %p469 = scmp.lt.s32.totalorder %s25, 0
        %s470 = scalar_select %p469, %s25, 0
        %p471 = scmp.lt.s32.totalorder %s26, 0
        %s472 = scalar_select %p471, %s26, 0
        %s473 = sadd.s32 %s472, %s470
        %s474 = sadd.s32 %s473, %s468
        %s475 = smul.addr %s474, 4
        %s476 = scalar_lea.vmem %s5, %s475
      $region56: #{joint_transformer_block_with_envmap.22} parent=51 // pred_fallthru
        _
    $region52: #{joint_transformer_block_with_envmap.22} parent=5 // pred_fallthru
      _
  $region6: #{joint_transformer_block_with_envmap.22} parent=0 // loop_footer
    %s15 = sadd.s32 1, %s11
  $region7: #{joint_transformer_block_with_envmap.22} parent=0 // loop_footer_branch
    %10 = sbr.rel target = $region3
  $region8: #{joint_transformer_block_with_envmap.22} parent=0 // loop_exit
    _

// kernel: joint_transformer_block_with_envmap.23
$region0: #{joint_transformer_block_with_envmap.23}
  #allocation0 [shape = 'u32[]', space=smem, size = 0x4, offset = 0x4, fixed_abs, tag = 'smem constant byte address 0x4 - core index']
  #allocation1 [shape = 'u32[144,128]{1,0:T(1,128)}', space=vmem, size = 0x12000, scoped, tag = 'internal scratch']
  %s0 = inlined_call_operand.vmem [shape: bf16[2,8,128], index: 0, kind: input, shape index: {}]
  %s1 = inlined_call_operand.vmem [shape: bf16[128,32], index: 1, kind: input, shape index: {}]
  %s2 = inlined_call_operand.vmem [shape: f32[1,1,32], index: 2, kind: input, shape index: {}]
  %s3 = inlined_call_operand.vmem [shape: f32[2,1,32], index: 3, kind: input, shape index: {}]
  %s4 = inlined_call_operand.vmem [shape: bf16[2,8,32], index: 4, kind: input, shape index: {}]
  %s5 = inlined_call_operand.hbm [shape: f32[2,8,32], index: 5, kind: output, shape index: {}]
  %s6 = sld [smem:[#allocation0]]
  $region53: #{joint_transformer_block_with_envmap.23} parent=0
    _
  %s8 = ssub.s32 1, %s6
  %s9 = scalar_select 0, %s8, %s6
  $region1: #{joint_transformer_block_with_envmap.23} parent=0
    #allocation2 [shape = 'u8[8192]{0}', space=vmem, size = 0x2000, scoped, tag = 'output window, operand 0']
    #allocation3 [shape = 's32[2]{0}', space=sflag, size = 0x8, scoped, tag = 'scoped memory for joint_transformer_block_with_envmap.23']
    %10 = vsyncpa [#allocation3], 0
    %s11 = scalar_lea.sflag [#allocation3], 1
    %12 = vsyncpa %s11, 0
    loop: start=0, step=1, limit=4
    $region2: #{joint_transformer_block_with_envmap.23} parent=1 // loop_pre_header
      _
    $region3: #{joint_transformer_block_with_envmap.23} parent=1 // loop_header
      %s14 = sphi 0, %s18
      %p15 = scmp.ge.s32.totalorder %s14, 4
      %s21 = sphi 0, %s40
      %s22 = sphi 0, %s36
      %s23 = sphi 0, %s32
      %s24 = sphi 0, %s21
      %s25 = sphi 0, %s22
      %s26 = sphi 0, %s23
      %s27 = sphi 0, %s24
      %s28 = sphi 0, %s25
      %s29 = sphi 0, %s26
      %s45 = sphi 0, %s47
      %s48 = sphi 0, %s45
      %s49 = sphi 0, %s48
      %s65 = sphi 0, %s49
      %s71 = sphi 0, %s73
      %s74 = sphi 0, %s71
      %s75 = sphi 0, %s74
      %s91 = sphi 0, %s75
      %s97 = sphi 0, %s99
      %s100 = sphi 0, %s97
      %s101 = sphi 0, %s100
      %s117 = sphi 0, %s101
      %s125 = sphi 0, %s127
      %s128 = sphi 0, %s125
      %s129 = sphi 0, %s128
      %s145 = sphi 0, %s129
      %s155 = sphi 0, %s157
      %s158 = sphi 0, %s155
      %s159 = sphi 0, %s158
      %s175 = sphi 0, %s159
      %s185 = sphi 0, %s187
      %s188 = sphi 0, %s185
      %s189 = sphi 0, %s188
      %s205 = sphi 0, %s189
    $region4: #{joint_transformer_block_with_envmap.23} parent=1 // loop_header_branch
      %17 = sbr.rel (%p15) target = $region8
    $region5: #{joint_transformer_block_with_envmap.23} parent=1 // loop_body
      %s19 = ssub.s32 %s14, 1
      %s20 = ssub.s32 %s14, 2
      %s30 = sadd.s32 1, %s23
      %p31 = scmp.ge.s32.totalorder %s30, 1
      %s32 = scalar_select %p31, 0, %s30
      %s33 = sadd.s32 1, %s22
      %s34 = scalar_select %p31, %s33, %s22
      %p35 = scmp.ge.s32.totalorder %s34, 1
      %s36 = scalar_select %p35, 0, %s34
      %s37 = sadd.s32 1, %s21
      %s38 = scalar_select %p35, %s37, %s21
      %p39 = scmp.ge.s32.totalorder %s38, 2
      %s40 = scalar_select %p39, 0, %s38
      %s41 = ssub.s32 %s21, %s40
      %s42 = ssub.s32 %s22, %s36
      %s43 = sor.u32 %s41, %s42
      %p44 = scmp.eq.s32.totalorder %s43, 0
      %s46 = sadd.s32 %s45, 1
      %s47 = scalar_select %p44, %s45, %s46
      %p50 = pneg %p44
      %p51 = scmp.eq.s32.totalorder %s14, 1
      %p52 = por %p50, %p51
      %p53 = scmp.ne.s32.totalorder %s45, %s48
      %p54 = scmp.eq.s32.totalorder %s14, 0
      %p55 = por %p53, %p54
      %p56 = scmp.ne.s32.totalorder %s45, %s48
      %p57 = scmp.eq.s32.totalorder %s19, 1
      %p58 = por %p56, %p57
      %p59 = scmp.ne.s32.totalorder %s48, %s49
      %p60 = scmp.eq.s32.totalorder %s19, 0
      %p61 = por %p59, %p60
      %p62 = scmp.ne.s32.totalorder %s48, %s49
      %p63 = scmp.eq.s32.totalorder %s20, 1
      %p64 = por %p62, %p63
      %p66 = scmp.ne.s32.totalorder %s49, %s65
      %p67 = scmp.eq.s32.totalorder %s20, 0
      %p68 = por %p66, %p67
      %s69 = ssub.s32 %s23, %s32
      %p70 = scmp.eq.s32.totalorder %s69, 0
      %s72 = sadd.s32 %s71, 1
      %s73 = scalar_select %p70, %s71, %s72
      %p76 = pneg %p70
      %p77 = scmp.eq.s32.totalorder %s14, 1
      %p78 = por %p76, %p77
      %p79 = scmp.ne.s32.totalorder %s71, %s74
      %p80 = scmp.eq.s32.totalorder %s14, 0
      %p81 = por %p79, %p80
      %p82 = scmp.ne.s32.totalorder %s71, %s74
      %p83 = scmp.eq.s32.totalorder %s19, 1
      %p84 = por %p82, %p83
      %p85 = scmp.ne.s32.totalorder %s74, %s75
      %p86 = scmp.eq.s32.totalorder %s19, 0
      %p87 = por %p85, %p86
      %p88 = scmp.ne.s32.totalorder %s74, %s75
      %p89 = scmp.eq.s32.totalorder %s20, 1
      %p90 = por %p88, %p89
      %p92 = scmp.ne.s32.totalorder %s75, %s91
      %p93 = scmp.eq.s32.totalorder %s20, 0
      %p94 = por %p92, %p93
      %s95 = ssub.s32 %s23, %s32
      %p96 = scmp.eq.s32.totalorder %s95, 0
      %s98 = sadd.s32 %s97, 1
      %s99 = scalar_select %p96, %s97, %s98
      %p102 = pneg %p96
      %p103 = scmp.eq.s32.totalorder %s14, 1
      %p104 = por %p102, %p103
      %p105 = scmp.ne.s32.totalorder %s97, %s100
      %p106 = scmp.eq.s32.totalorder %s14, 0
      %p107 = por %p105, %p106
      %p108 = scmp.ne.s32.totalorder %s97, %s100
      %p109 = scmp.eq.s32.totalorder %s19, 1
      %p110 = por %p108, %p109
      %p111 = scmp.ne.s32.totalorder %s100, %s101
      %p112 = scmp.eq.s32.totalorder %s19, 0
      %p113 = por %p111, %p112
      %p114 = scmp.ne.s32.totalorder %s100, %s101
      %p115 = scmp.eq.s32.totalorder %s20, 1
      %p116 = por %p114, %p115
      %p118 = scmp.ne.s32.totalorder %s101, %s117
      %p119 = scmp.eq.s32.totalorder %s20, 0
      %p120 = por %p118, %p119
      %s121 = ssub.s32 %s21, %s40
      %s122 = ssub.s32 %s23, %s32
      %s123 = sor.u32 %s121, %s122
      %p124 = scmp.eq.s32.totalorder %s123, 0
      %s126 = sadd.s32 %s125, 1
      %s127 = scalar_select %p124, %s125, %s126
      %p130 = pneg %p124
      %p131 = scmp.eq.s32.totalorder %s14, 1
      %p132 = por %p130, %p131
      %p133 = scmp.ne.s32.totalorder %s125, %s128
      %p134 = scmp.eq.s32.totalorder %s14, 0
      %p135 = por %p133, %p134
      %p136 = scmp.ne.s32.totalorder %s125, %s128
      %p137 = scmp.eq.s32.totalorder %s19, 1
      %p138 = por %p136, %p137
      %p139 = scmp.ne.s32.totalorder %s128, %s129
      %p140 = scmp.eq.s32.totalorder %s19, 0
      %p141 = por %p139, %p140
      %p142 = scmp.ne.s32.totalorder %s128, %s129
      %p143 = scmp.eq.s32.totalorder %s20, 1
      %p144 = por %p142, %p143
      %p146 = scmp.ne.s32.totalorder %s129, %s145
      %p147 = scmp.eq.s32.totalorder %s20, 0
      %p148 = por %p146, %p147
      %s149 = ssub.s32 %s21, %s40
      %s150 = ssub.s32 %s22, %s36
      %s151 = sor.u32 %s149, %s150
      %s152 = ssub.s32 %s23, %s32
      %s153 = sor.u32 %s151, %s152
      %p154 = scmp.eq.s32.totalorder %s153, 0
      %s156 = sadd.s32 %s155, 1
      %s157 = scalar_select %p154, %s155, %s156
      %p160 = pneg %p154
      %p161 = scmp.eq.s32.totalorder %s14, 1
      %p162 = por %p160, %p161
      %p163 = scmp.ne.s32.totalorder %s155, %s158
      %p164 = scmp.eq.s32.totalorder %s14, 0
      %p165 = por %p163, %p164
      %p166 = scmp.ne.s32.totalorder %s155, %s158
      %p167 = scmp.eq.s32.totalorder %s19, 1
      %p168 = por %p166, %p167
      %p169 = scmp.ne.s32.totalorder %s158, %s159
      %p170 = scmp.eq.s32.totalorder %s19, 0
      %p171 = por %p169, %p170
      %p172 = scmp.ne.s32.totalorder %s158, %s159
      %p173 = scmp.eq.s32.totalorder %s20, 1
      %p174 = por %p172, %p173
      %p176 = scmp.ne.s32.totalorder %s159, %s175
      %p177 = scmp.eq.s32.totalorder %s20, 0
      %p178 = por %p176, %p177
      %s179 = ssub.s32 %s21, %s40
      %s180 = ssub.s32 %s22, %s36
      %s181 = sor.u32 %s179, %s180
      %s182 = ssub.s32 %s23, %s32
      %s183 = sor.u32 %s181, %s182
      %p184 = scmp.eq.s32.totalorder %s183, 0
      %s186 = sadd.s32 %s185, 1
      %s187 = scalar_select %p184, %s185, %s186
      %p190 = pneg %p184
      %p191 = scmp.eq.s32.totalorder %s14, 1
      %p192 = por %p190, %p191
      %p193 = scmp.ne.s32.totalorder %s185, %s188
      %p194 = scmp.eq.s32.totalorder %s14, 0
      %p195 = por %p193, %p194
      %p196 = scmp.ne.s32.totalorder %s185, %s188
      %p197 = scmp.eq.s32.totalorder %s19, 1
      %p198 = por %p196, %p197
      %p199 = scmp.ne.s32.totalorder %s188, %s189
      %p200 = scmp.eq.s32.totalorder %s19, 0
      %p201 = por %p199, %p200
      %p202 = scmp.ne.s32.totalorder %s188, %s189
      %p203 = scmp.eq.s32.totalorder %s20, 1
      %p204 = por %p202, %p203
      %p206 = scmp.ne.s32.totalorder %s189, %s205
      %p207 = scmp.eq.s32.totalorder %s20, 0
      %p208 = por %p206, %p207
      %p209 = scmp.le.s32.totalorder 1, %s14
      %p210 = scmp.lt.s32.totalorder %s14, 3
      %p211 = pnand %p209, %p210
      %p212 = pneg %p211
      // Predicated region
      $region9: #{joint_transformer_block_with_envmap.23} parent=5 // pred_check
        _
      $region10: #{joint_transformer_block_with_envmap.23} parent=5 // pred_check_branch
        %214 = sbr.rel (%p211) target = $region12
      $region11: #{joint_transformer_block_with_envmap.23} parent=5 // pred_region
        %s215 = ssub.s32 %s14, 1
        // Predicated region
        $region13: #{joint_transformer_block_with_envmap.23} parent=11 // pred_check
          %p216 = pneg %p87
        $region14: #{joint_transformer_block_with_envmap.23} parent=11 // pred_check_branch
          %218 = sbr.rel (%p216) target = $region16
        $region15: #{joint_transformer_block_with_envmap.23} parent=11 // pred_region
          %p219 = scmp.lt.s32.totalorder %s26, 0
          %s220 = scalar_select %p219, %s26, 0
          %s221 = smul.addr %s220, 4
          %s222 = scalar_lea.vmem %s1, %s221
        $region16: #{joint_transformer_block_with_envmap.23} parent=11 // pred_fallthru
          _
        // Predicated region
        $region17: #{joint_transformer_block_with_envmap.23} parent=11 // pred_check
          %p223 = pneg %p113
        $region18: #{joint_transformer_block_with_envmap.23} parent=11 // pred_check_branch
          %225 = sbr.rel (%p223) target = $region20
        $region19: #{joint_transformer_block_with_envmap.23} parent=11 // pred_region
          %p226 = scmp.lt.s32.totalorder %s26, 0
          %s227 = scalar_select %p226, %s26, 0
          %s228 = scalar_lea.vmem %s2, %s227
        $region20: #{joint_transformer_block_with_envmap.23} parent=11 // pred_fallthru
          _
      $region12: #{joint_transformer_block_with_envmap.23} parent=5 // pred_fallthru
        _
      %p229 = scmp.lt.s32.totalorder %s14, 2
      // Predicated region
      $region21: #{joint_transformer_block_with_envmap.23} parent=5 // pred_check
        %p230 = pneg %p229
      $region22: #{joint_transformer_block_with_envmap.23} parent=5 // pred_check_branch
        %232 = sbr.rel (%p230) target = $region24
      $region23: #{joint_transformer_block_with_envmap.23} parent=5 // pred_region
        // Predicated region
        $region25: #{joint_transformer_block_with_envmap.23} parent=23 // pred_check
          %p233 = pneg %p55
        $region26: #{joint_transformer_block_with_envmap.23} parent=23 // pred_check_branch
          %235 = sbr.rel (%p233) target = $region28
        $region27: #{joint_transformer_block_with_envmap.23} parent=23 // pred_region
          %p236 = scmp.lt.s32.totalorder %s21, 1
          %s237 = scalar_select %p236, %s21, 1
          %p238 = scmp.lt.s32.totalorder %s22, 0
          %s239 = scalar_select %p238, %s22, 0
          %s240 = sadd.s32 %s239, %s237
          %s241 = smul.addr %s240, 4
          %s242 = scalar_lea.vmem %s0, %s241
        $region28: #{joint_transformer_block_with_envmap.23} parent=23 // pred_fallthru
          _
        // Predicated region
        $region29: #{joint_transformer_block_with_envmap.23} parent=23 // pred_check
          %p243 = pneg %p135
        $region30: #{joint_transformer_block_with_envmap.23} parent=23 // pred_check_branch
          %245 = sbr.rel (%p243) target = $region32
        $region31: #{joint_transformer_block_with_envmap.23} parent=23 // pred_region
          %p246 = scmp.lt.s32.totalorder %s21, 1
          %s247 = scalar_select %p246, %s21, 1
          %p248 = scmp.lt.s32.totalorder %s23, 0
          %s249 = scalar_select %p248, %s23, 0
          %s250 = sadd.s32 %s249, %s247
          %s251 = scalar_lea.vmem %s3, %s250
        $region32: #{joint_transformer_block_with_envmap.23} parent=23 // pred_fallthru
          _
        // Predicated region
        $region33: #{joint_transformer_block_with_envmap.23} parent=23 // pred_check
          %p252 = pneg %p165
        $region34: #{joint_transformer_block_with_envmap.23} parent=23 // pred_check_branch
          %254 = sbr.rel (%p252) target = $region36
        $region35: #{joint_transformer_block_with_envmap.23} parent=23 // pred_region
          %p255 = scmp.lt.s32.totalorder %s21, 1
          %s256 = scalar_select %p255, %s21, 1
          %p257 = scmp.lt.s32.totalorder %s22, 0
          %s258 = scalar_select %p257, %s22, 0
          %p259 = scmp.lt.s32.totalorder %s23, 0
          %s260 = scalar_select %p259, %s23, 0
          %s261 = sadd.s32 %s260, %s258
          %s262 = sadd.s32 %s261, %s256
          %s263 = smul.addr %s262, 4
          %s264 = scalar_lea.vmem %s4, %s263
        $region36: #{joint_transformer_block_with_envmap.23} parent=23 // pred_fallthru
          _
      $region24: #{joint_transformer_block_with_envmap.23} parent=5 // pred_fallthru
        _
      %p265 = scmp.le.s32.totalorder 1, %s14
      %p266 = scmp.lt.s32.totalorder %s14, 3
      %p267 = pnand %p265, %p266
      %p268 = pneg %p267
      // Predicated region
      $region37: #{joint_transformer_block_with_envmap.23} parent=5 // pred_check
        _
      $region38: #{joint_transformer_block_with_envmap.23} parent=5 // pred_check_branch
        %270 = sbr.rel (%p267) target = $region40
      $region39: #{joint_transformer_block_with_envmap.23} parent=5 // pred_region
        %s271 = ssub.s32 %s14, 1
        %p272 = scmp.lt.s32.totalorder %s24, 1
        %s273 = scalar_select %p272, %s24, 1
        %p274 = scmp.lt.s32.totalorder %s25, 0
        %s275 = scalar_select %p274, %s25, 0
        %s276 = sadd.s32 %s275, %s273
        %s277 = smul.addr %s276, 4
        %s278 = scalar_lea.vmem %s0, %s277
        %p279 = pneg %p61
        %p280 = pneg %p58
        %p281 = scmp.lt.s32.totalorder %s26, 0
        %s282 = scalar_select %p281, %s26, 0
        %s283 = smul.addr %s282, 4
        %s284 = scalar_lea.vmem %s1, %s283
        %p285 = pneg %p87
        %p286 = pneg %p84
        %p287 = scmp.lt.s32.totalorder %s26, 0
        %s288 = scalar_select %p287, %s26, 0
        %s289 = scalar_lea.vmem %s2, %s288
        %p290 = pneg %p113
        %p291 = pneg %p110
        %p292 = scmp.lt.s32.totalorder %s24, 1
        %s293 = scalar_select %p292, %s24, 1
        %p294 = scmp.lt.s32.totalorder %s26, 0
        %s295 = scalar_select %p294, %s26, 0
        %s296 = sadd.s32 %s295, %s293
        %s297 = scalar_lea.vmem %s3, %s296
        %p298 = pneg %p141
        %p299 = pneg %p138
        %p300 = scmp.lt.s32.totalorder %s24, 1
        %s301 = scalar_select %p300, %s24, 1
        %p302 = scmp.lt.s32.totalorder %s25, 0
        %s303 = scalar_select %p302, %s25, 0
        %p304 = scmp.lt.s32.totalorder %s26, 0
        %s305 = scalar_select %p304, %s26, 0
        %s306 = sadd.s32 %s305, %s303
        %s307 = sadd.s32 %s306, %s301
        %s308 = smul.addr %s307, 4
        %s309 = scalar_lea.vmem %s4, %s308
        %p310 = pneg %p171
        %p311 = pneg %p168
        %p312 = pneg %p201
        %p313 = pneg %p198
        %s314 = sand.u32 %s188, 1
        %s315 = scalar_lea.sflag [#allocation3], %s314
        %s316 = sand.u32 %s188, 1
        %s317 = smul.addr %s316, 8
        %s318 = scalar_lea.vmem [#allocation2], %s317
        %p319 = scmp.lt.s32.totalorder %s24, 1
        %s320 = scalar_select %p319, %s24, 1
        %p321 = scmp.lt.s32.totalorder %s25, 0
        %s322 = scalar_select %p321, %s25, 0
        %s323 = sadd.s32 %s322, %s320
        %s324 = smul.addr %s323, 4
        %s325 = scalar_lea.vmem %s0, %s324
        %p326 = scmp.lt.s32.totalorder %s26, 0
        %s327 = scalar_select %p326, %s26, 0
        %s328 = smul.addr %s327, 4
        %s329 = scalar_lea.vmem %s1, %s328
        %p330 = scmp.lt.s32.totalorder %s26, 0
        %s331 = scalar_select %p330, %s26, 0
        %s332 = scalar_lea.vmem %s2, %s331
        %p333 = scmp.lt.s32.totalorder %s24, 1
        %s334 = scalar_select %p333, %s24, 1
        %p335 = scmp.lt.s32.totalorder %s26, 0
        %s336 = scalar_select %p335, %s26, 0
        %s337 = sadd.s32 %s336, %s334
        %s338 = scalar_lea.vmem %s3, %s337
        %p339 = scmp.lt.s32.totalorder %s24, 1
        %s340 = scalar_select %p339, %s24, 1
        %p341 = scmp.lt.s32.totalorder %s25, 0
        %s342 = scalar_select %p341, %s25, 0
        %p343 = scmp.lt.s32.totalorder %s26, 0
        %s344 = scalar_select %p343, %s26, 0
        %s345 = sadd.s32 %s344, %s342
        %s346 = sadd.s32 %s345, %s340
        %s347 = smul.addr %s346, 4
        %s348 = scalar_lea.vmem %s4, %s347
        %v350 = vld [vmem:[%s325] sm:$0xf]
        %v351 = vld [vmem:[%s329] sm:$0xf]
        %v352 = vld [vmem:[%s329 + $0x4] sm:$0xf]
        %v353 = vld [vmem:[%s329 + $0x8] sm:$0xf]
        %v354 = vld [vmem:[%s329 + $0xc] sm:$0xf]
        %v355 = vld [vmem:[%s329 + $0x10] sm:$0xf]
        %v356 = vld [vmem:[%s329 + $0x14] sm:$0xf]
        %v357 = vld [vmem:[%s329 + $0x18] sm:$0xf]
        %v358 = vld [vmem:[%s329 + $0x1c] sm:$0xf]
        %v359 = vld [vmem:[%s329 + $0x20] sm:$0xf]
        %v360 = vld [vmem:[%s329 + $0x24] sm:$0xf]
        %v361 = vld [vmem:[%s329 + $0x28] sm:$0xf]
        %v362 = vld [vmem:[%s329 + $0x2c] sm:$0xf]
        %v363 = vld [vmem:[%s329 + $0x30] sm:$0xf]
        %v364 = vld [vmem:[%s329 + $0x34] sm:$0xf]
        %v365 = vld [vmem:[%s329 + $0x38] sm:$0xf]
        %v366 = vld [vmem:[%s329 + $0x3c] sm:$0xf]
        %v367 = vld [vmem:[%s332] sm:$0x1]
        %v369 = vlaneseq
        %v370 = vshrl.u32 %v369, 7
        %v371 = vsub.s32 0, %v370
        %v372 = vrot.slane %v367, %v371
        %v390 = vunpack.c.l.b16 %v351
        %v391 = vunpack.c.l.b16 %v352
        %v392 = vunpack.c.l.b16 %v353
        %v393 = vunpack.c.l.b16 %v354
        %v394 = vunpack.c.l.b16 %v355
        %v395 = vunpack.c.l.b16 %v356
        %v396 = vunpack.c.l.b16 %v357
        %v397 = vunpack.c.l.b16 %v358
        %v398 = vunpack.c.l.b16 %v359
        %v399 = vunpack.c.l.b16 %v360
        %v400 = vunpack.c.l.b16 %v361
        %v401 = vunpack.c.l.b16 %v362
        %v402 = vunpack.c.l.b16 %v363
        %v403 = vunpack.c.l.b16 %v364
        %v404 = vunpack.c.l.b16 %v365
        %v405 = vunpack.c.l.b16 %v366
        %v406 = vpack.c.b16 %v391, %v390
        %v407 = vpack.c.b16 %v393, %v392
        %v408 = vpack.c.b16 %v395, %v394
        %v409 = vpack.c.b16 %v397, %v396
        %v410 = vpack.c.b16 %v399, %v398
        %v411 = vpack.c.b16 %v401, %v400
        %v412 = vpack.c.b16 %v403, %v402
        %v413 = vpack.c.b16 %v405, %v404
        %422 = vmatprep.subr.bf16.mxu0 0
        %423 = vmatpush1.bf16.msra.mxu0 %v406
        %424 = vmatprep.subr.bf16.mxu0 0
        %425 = vmatpush1.bf16.msra.mxu0 %v407
        %426 = vmatprep.subr.bf16.mxu0 0
        %427 = vmatpush1.bf16.msra.mxu0 %v408
        %428 = vmatprep.subr.bf16.mxu0 0
        %429 = vmatpush1.bf16.msra.mxu0 %v409
        %430 = vmatprep.subr.bf16.mxu0 0
        %431 = vmatpush1.bf16.msra.mxu0 %v410
        %432 = vmatprep.subr.bf16.mxu0 0
        %433 = vmatpush1.bf16.msra.mxu0 %v411
        %434 = vmatprep.subr.bf16.mxu0 0
        %435 = vmatpush1.bf16.msra.mxu0 %v412
        %436 = vmatprep.subr.bf16.mxu0 0
        %437 = vmatpush1.bf16.msra.mxu0 %v413
        %438 = vmatprep.subr.bf16.mxu0 0
        %439 = vmatpush1.bf16.msra.mxu0 0
        %440 = vmatprep.subr.bf16.mxu0 0
        %441 = vmatpush1.bf16.msra.mxu0 0
        %442 = vmatprep.subr.bf16.mxu0 0
        %443 = vmatpush1.bf16.msra.mxu0 0
        %444 = vmatprep.subr.bf16.mxu0 0
        %445 = vmatpush1.bf16.msra.mxu0 0
        %446 = vmatprep.subr.bf16.mxu0 0
        %447 = vmatpush1.bf16.msra.mxu0 0
        %448 = vmatprep.subr.bf16.mxu0 0
        %449 = vmatpush1.bf16.msra.mxu0 0
        %450 = vmatprep.subr.bf16.mxu0 0
        %451 = vmatpush1.bf16.msra.mxu0 0
        %452 = vmatprep.subr.bf16.mxu0 0
        %453 = vmatpush1.bf16.msra.mxu0 0
        %454 = vmatprep.mubr.bf16.mxu0 0
        %455 = vmatmul.mubr.bf16.gmra.mrb[0].mxu0 %v350
        %v456 = vpop.f32.mrb[0].mxu0
        %v457 = vadd.f32 %v372, %v456
        %v458 = vpop.f32.mrb[0].mxu0
        %v459 = vpop.f32.mrb[0].mxu0
        %v460 = vpop.f32.mrb[0].mxu0
        %461 = vdwg.mxu0
        %v462 = vld [vmem:[%s348] sm:$0xf]
        %v463 = vunpack.c.l.bf16 %v462
        %v464 = vld [vmem:[%s338] sm:$0x1]
        %v466 = vlaneseq
        %v467 = vshrl.u32 %v466, 7
        %v468 = vsub.s32 0, %v467
        %v469 = vrot.slane %v464, %v468
        %v471 = vmul.f32 %v469, %v457
        %v472 = vadd.f32 %v463, %v471
        %vm473 = vcmask 261120
        %474 = vst.msk [vmem:[%s318] sm:$0xff] %vm473, %v472
        %s475 = sand.u32 %s188, 1
        %s476 = scalar_lea.sflag [#allocation3], %s475
        %s477 = sand.u32 %s188, 1
        %s478 = smul.addr %s477, 8
        %s479 = scalar_lea.vmem [#allocation2], %s478
        // Predicated region
        $region41: #{joint_transformer_block_with_envmap.23} parent=39 // pred_check
          %p480 = pneg %p198
        $region42: #{joint_transformer_block_with_envmap.23} parent=39 // pred_check_branch
          %482 = sbr.rel (%p480) target = $region44
        $region43: #{joint_transformer_block_with_envmap.23} parent=39 // pred_region
          %s484 = ssub.s32 128, 128
          %485 = vsyncadd %s476, %s484
          %s486 = sadd.s32 %s26, %s25
          %s487 = sadd.s32 %s486, %s24
          %s488 = smul.addr %s487, 128
          %s489 = scalar_lea.hbm %s5, %s488
          %s491 = sshll.u32 %s479, 4
          %s492 = int_to_ptr.vmem [resolvable:$true] %s491
          %494 = dma.vmem_to_hbm [thread:$0]  %s492, 128, %s489, %s476
        $region44: #{joint_transformer_block_with_envmap.23} parent=39 // pred_fallthru
          _
      $region40: #{joint_transformer_block_with_envmap.23} parent=5 // pred_fallthru
        _
      %p495 = scmp.le.s32.totalorder 2, %s14
      // Predicated region
      $region45: #{joint_transformer_block_with_envmap.23} parent=5 // pred_check
        %p496 = pneg %p495
      $region46: #{joint_transformer_block_with_envmap.23} parent=5 // pred_check_branch
        %498 = sbr.rel (%p496) target = $region48
      $region47: #{joint_transformer_block_with_envmap.23} parent=5 // pred_region
        %s499 = ssub.s32 %s14, 2
        // Predicated region
        $region49: #{joint_transformer_block_with_envmap.23} parent=47 // pred_check
          %p500 = pneg %p204
        $region50: #{joint_transformer_block_with_envmap.23} parent=47 // pred_check_branch
          %502 = sbr.rel (%p500) target = $region52
        $region51: #{joint_transformer_block_with_envmap.23} parent=47 // pred_region
          %s503 = sand.u32 %s189, 1
          %s504 = scalar_lea.sflag [#allocation3], %s503
          %s505 = sand.u32 %s189, 1
          %s506 = smul.addr %s505, 8
          %s507 = scalar_lea.vmem [#allocation2], %s506
          %508 = dma.done %s504, 128
        $region52: #{joint_transformer_block_with_envmap.23} parent=47 // pred_fallthru
          _
      $region48: #{joint_transformer_block_with_envmap.23} parent=5 // pred_fallthru
        _
    $region6: #{joint_transformer_block_with_envmap.23} parent=1 // loop_footer
      %s18 = sadd.s32 1, %s14
    $region7: #{joint_transformer_block_with_envmap.23} parent=1 // loop_footer_branch
      %13 = sbr.rel target = $region3
    $region8: #{joint_transformer_block_with_envmap.23} parent=1 // loop_exit
      _
    %509 = vsyncpa [#allocation3], 1
    %s510 = scalar_lea.sflag [#allocation3], 1
    %511 = vsyncpa %s510, 1

// kernel: joint_transformer_block_with_envmap.20
$region0: #{joint_transformer_block_with_envmap.20}
  #allocation0 [shape = 'u32[]', space=smem, size = 0x4, offset = 0x4, fixed_abs, tag = 'smem constant byte address 0x4 - core index']
  #allocation1 [shape = 'u32[144,128]{1,0:T(1,128)}', space=vmem, size = 0x12000, scoped, tag = 'internal scratch']
  %s0 = inlined_call_operand.vmem [shape: bf16[2,8,128], index: 0, kind: input, shape index: {}]
  %s1 = inlined_call_operand.vmem [shape: bf16[128,32], index: 1, kind: input, shape index: {}]
  %s2 = inlined_call_operand.vmem [shape: f32[1,1,32], index: 2, kind: input, shape index: {}]
  %s3 = inlined_call_operand.vmem [shape: f32[2,1,32], index: 3, kind: input, shape index: {}]
  %s4 = inlined_call_operand.vmem [shape: bf16[2,8,32], index: 4, kind: input, shape index: {}]
  %s5 = inlined_call_operand.vmem [shape: bf16[2,8,32], index: 5, kind: output, shape index: {}]
  %s6 = sld [smem:[#allocation0]]
  $region53: #{joint_transformer_block_with_envmap.20} parent=0
    _
  %s8 = ssub.s32 1, %s6
  %s9 = scalar_select 0, %s8, %s6
  loop: start=0, step=1, limit=4
  $region2: #{joint_transformer_block_with_envmap.20} parent=0 // loop_pre_header
    _
  $region3: #{joint_transformer_block_with_envmap.20} parent=0 // loop_header
    %s11 = sphi 0, %s15
    %p12 = scmp.ge.s32.totalorder %s11, 4
    %s18 = sphi 0, %s37
    %s19 = sphi 0, %s33
    %s20 = sphi 0, %s29
    %s21 = sphi 0, %s18
    %s22 = sphi 0, %s19
    %s23 = sphi 0, %s20
    %s24 = sphi 0, %s21
    %s25 = sphi 0, %s22
    %s26 = sphi 0, %s23
    %s42 = sphi 0, %s44
    %s45 = sphi 0, %s42
    %s46 = sphi 0, %s45
    %s62 = sphi 0, %s46
    %s68 = sphi 0, %s70
    %s71 = sphi 0, %s68
    %s72 = sphi 0, %s71
    %s88 = sphi 0, %s72
    %s94 = sphi 0, %s96
    %s97 = sphi 0, %s94
    %s98 = sphi 0, %s97
    %s114 = sphi 0, %s98
    %s122 = sphi 0, %s124
    %s125 = sphi 0, %s122
    %s126 = sphi 0, %s125
    %s142 = sphi 0, %s126
    %s152 = sphi 0, %s154
    %s155 = sphi 0, %s152
    %s156 = sphi 0, %s155
    %s172 = sphi 0, %s156
    %s182 = sphi 0, %s184
    %s185 = sphi 0, %s182
    %s186 = sphi 0, %s185
    %s202 = sphi 0, %s186
  $region4: #{joint_transformer_block_with_envmap.20} parent=0 // loop_header_branch
    %14 = sbr.rel (%p12) target = $region8
  $region5: #{joint_transformer_block_with_envmap.20} parent=0 // loop_body
    %s16 = ssub.s32 %s11, 1
    %s17 = ssub.s32 %s11, 2
    %s27 = sadd.s32 1, %s20
    %p28 = scmp.ge.s32.totalorder %s27, 1
    %s29 = scalar_select %p28, 0, %s27
    %s30 = sadd.s32 1, %s19
    %s31 = scalar_select %p28, %s30, %s19
    %p32 = scmp.ge.s32.totalorder %s31, 1
    %s33 = scalar_select %p32, 0, %s31
    %s34 = sadd.s32 1, %s18
    %s35 = scalar_select %p32, %s34, %s18
    %p36 = scmp.ge.s32.totalorder %s35, 2
    %s37 = scalar_select %p36, 0, %s35
    %s38 = ssub.s32 %s18, %s37
    %s39 = ssub.s32 %s19, %s33
    %s40 = sor.u32 %s38, %s39
    %p41 = scmp.eq.s32.totalorder %s40, 0
    %s43 = sadd.s32 %s42, 1
    %s44 = scalar_select %p41, %s42, %s43
    %p47 = pneg %p41
    %p48 = scmp.eq.s32.totalorder %s11, 1
    %p49 = por %p47, %p48
    %p50 = scmp.ne.s32.totalorder %s42, %s45
    %p51 = scmp.eq.s32.totalorder %s11, 0
    %p52 = por %p50, %p51
    %p53 = scmp.ne.s32.totalorder %s42, %s45
    %p54 = scmp.eq.s32.totalorder %s16, 1
    %p55 = por %p53, %p54
    %p56 = scmp.ne.s32.totalorder %s45, %s46
    %p57 = scmp.eq.s32.totalorder %s16, 0
    %p58 = por %p56, %p57
    %p59 = scmp.ne.s32.totalorder %s45, %s46
    %p60 = scmp.eq.s32.totalorder %s17, 1
    %p61 = por %p59, %p60
    %p63 = scmp.ne.s32.totalorder %s46, %s62
    %p64 = scmp.eq.s32.totalorder %s17, 0
    %p65 = por %p63, %p64
    %s66 = ssub.s32 %s20, %s29
    %p67 = scmp.eq.s32.totalorder %s66, 0
    %s69 = sadd.s32 %s68, 1
    %s70 = scalar_select %p67, %s68, %s69
    %p73 = pneg %p67
    %p74 = scmp.eq.s32.totalorder %s11, 1
    %p75 = por %p73, %p74
    %p76 = scmp.ne.s32.totalorder %s68, %s71
    %p77 = scmp.eq.s32.totalorder %s11, 0
    %p78 = por %p76, %p77
    %p79 = scmp.ne.s32.totalorder %s68, %s71
    %p80 = scmp.eq.s32.totalorder %s16, 1
    %p81 = por %p79, %p80
    %p82 = scmp.ne.s32.totalorder %s71, %s72
    %p83 = scmp.eq.s32.totalorder %s16, 0
    %p84 = por %p82, %p83
    %p85 = scmp.ne.s32.totalorder %s71, %s72
    %p86 = scmp.eq.s32.totalorder %s17, 1
    %p87 = por %p85, %p86
    %p89 = scmp.ne.s32.totalorder %s72, %s88
    %p90 = scmp.eq.s32.totalorder %s17, 0
    %p91 = por %p89, %p90
    %s92 = ssub.s32 %s20, %s29
    %p93 = scmp.eq.s32.totalorder %s92, 0
    %s95 = sadd.s32 %s94, 1
    %s96 = scalar_select %p93, %s94, %s95
    %p99 = pneg %p93
    %p100 = scmp.eq.s32.totalorder %s11, 1
    %p101 = por %p99, %p100
    %p102 = scmp.ne.s32.totalorder %s94, %s97
    %p103 = scmp.eq.s32.totalorder %s11, 0
    %p104 = por %p102, %p103
    %p105 = scmp.ne.s32.totalorder %s94, %s97
    %p106 = scmp.eq.s32.totalorder %s16, 1
    %p107 = por %p105, %p106
    %p108 = scmp.ne.s32.totalorder %s97, %s98
    %p109 = scmp.eq.s32.totalorder %s16, 0
    %p110 = por %p108, %p109
    %p111 = scmp.ne.s32.totalorder %s97, %s98
    %p112 = scmp.eq.s32.totalorder %s17, 1
    %p113 = por %p111, %p112
    %p115 = scmp.ne.s32.totalorder %s98, %s114
    %p116 = scmp.eq.s32.totalorder %s17, 0
    %p117 = por %p115, %p116
    %s118 = ssub.s32 %s18, %s37
    %s119 = ssub.s32 %s20, %s29
    %s120 = sor.u32 %s118, %s119
    %p121 = scmp.eq.s32.totalorder %s120, 0
    %s123 = sadd.s32 %s122, 1
    %s124 = scalar_select %p121, %s122, %s123
    %p127 = pneg %p121
    %p128 = scmp.eq.s32.totalorder %s11, 1
    %p129 = por %p127, %p128
    %p130 = scmp.ne.s32.totalorder %s122, %s125
    %p131 = scmp.eq.s32.totalorder %s11, 0
    %p132 = por %p130, %p131
    %p133 = scmp.ne.s32.totalorder %s122, %s125
    %p134 = scmp.eq.s32.totalorder %s16, 1
    %p135 = por %p133, %p134
    %p136 = scmp.ne.s32.totalorder %s125, %s126
    %p137 = scmp.eq.s32.totalorder %s16, 0
    %p138 = por %p136, %p137
    %p139 = scmp.ne.s32.totalorder %s125, %s126
    %p140 = scmp.eq.s32.totalorder %s17, 1
    %p141 = por %p139, %p140
    %p143 = scmp.ne.s32.totalorder %s126, %s142
    %p144 = scmp.eq.s32.totalorder %s17, 0
    %p145 = por %p143, %p144
    %s146 = ssub.s32 %s18, %s37
    %s147 = ssub.s32 %s19, %s33
    %s148 = sor.u32 %s146, %s147
    %s149 = ssub.s32 %s20, %s29
    %s150 = sor.u32 %s148, %s149
    %p151 = scmp.eq.s32.totalorder %s150, 0
    %s153 = sadd.s32 %s152, 1
    %s154 = scalar_select %p151, %s152, %s153
    %p157 = pneg %p151
    %p158 = scmp.eq.s32.totalorder %s11, 1
    %p159 = por %p157, %p158
    %p160 = scmp.ne.s32.totalorder %s152, %s155
    %p161 = scmp.eq.s32.totalorder %s11, 0
    %p162 = por %p160, %p161
    %p163 = scmp.ne.s32.totalorder %s152, %s155
    %p164 = scmp.eq.s32.totalorder %s16, 1
    %p165 = por %p163, %p164
    %p166 = scmp.ne.s32.totalorder %s155, %s156
    %p167 = scmp.eq.s32.totalorder %s16, 0
    %p168 = por %p166, %p167
    %p169 = scmp.ne.s32.totalorder %s155, %s156
    %p170 = scmp.eq.s32.totalorder %s17, 1
    %p171 = por %p169, %p170
    %p173 = scmp.ne.s32.totalorder %s156, %s172
    %p174 = scmp.eq.s32.totalorder %s17, 0
    %p175 = por %p173, %p174
    %s176 = ssub.s32 %s18, %s37
    %s177 = ssub.s32 %s19, %s33
    %s178 = sor.u32 %s176, %s177
    %s179 = ssub.s32 %s20, %s29
    %s180 = sor.u32 %s178, %s179
    %p181 = scmp.eq.s32.totalorder %s180, 0
    %s183 = sadd.s32 %s182, 1
    %s184 = scalar_select %p181, %s182, %s183
    %p187 = pneg %p181
    %p188 = scmp.eq.s32.totalorder %s11, 1
    %p189 = por %p187, %p188
    %p190 = scmp.ne.s32.totalorder %s182, %s185
    %p191 = scmp.eq.s32.totalorder %s11, 0
    %p192 = por %p190, %p191
    %p193 = scmp.ne.s32.totalorder %s182, %s185
    %p194 = scmp.eq.s32.totalorder %s16, 1
    %p195 = por %p193, %p194
    %p196 = scmp.ne.s32.totalorder %s185, %s186
    %p197 = scmp.eq.s32.totalorder %s16, 0
    %p198 = por %p196, %p197
    %p199 = scmp.ne.s32.totalorder %s185, %s186
    %p200 = scmp.eq.s32.totalorder %s17, 1
    %p201 = por %p199, %p200
    %p203 = scmp.ne.s32.totalorder %s186, %s202
    %p204 = scmp.eq.s32.totalorder %s17, 0
    %p205 = por %p203, %p204
    %p206 = scmp.le.s32.totalorder 1, %s11
    %p207 = scmp.lt.s32.totalorder %s11, 3
    %p208 = pnand %p206, %p207
    %p209 = pneg %p208
    // Predicated region
    $region9: #{joint_transformer_block_with_envmap.20} parent=5 // pred_check
      _
    $region10: #{joint_transformer_block_with_envmap.20} parent=5 // pred_check_branch
      %211 = sbr.rel (%p208) target = $region12
    $region11: #{joint_transformer_block_with_envmap.20} parent=5 // pred_region
      %s212 = ssub.s32 %s11, 1
      // Predicated region
      $region13: #{joint_transformer_block_with_envmap.20} parent=11 // pred_check
        %p213 = pneg %p84
      $region14: #{joint_transformer_block_with_envmap.20} parent=11 // pred_check_branch
        %215 = sbr.rel (%p213) target = $region16
      $region15: #{joint_transformer_block_with_envmap.20} parent=11 // pred_region
        %p216 = scmp.lt.s32.totalorder %s23, 0
        %s217 = scalar_select %p216, %s23, 0
        %s218 = smul.addr %s217, 4
        %s219 = scalar_lea.vmem %s1, %s218
      $region16: #{joint_transformer_block_with_envmap.20} parent=11 // pred_fallthru
        _
      // Predicated region
      $region17: #{joint_transformer_block_with_envmap.20} parent=11 // pred_check
        %p220 = pneg %p110
      $region18: #{joint_transformer_block_with_envmap.20} parent=11 // pred_check_branch
        %222 = sbr.rel (%p220) target = $region20
      $region19: #{joint_transformer_block_with_envmap.20} parent=11 // pred_region
        %p223 = scmp.lt.s32.totalorder %s23, 0
        %s224 = scalar_select %p223, %s23, 0
        %s225 = scalar_lea.vmem %s2, %s224
      $region20: #{joint_transformer_block_with_envmap.20} parent=11 // pred_fallthru
        _
    $region12: #{joint_transformer_block_with_envmap.20} parent=5 // pred_fallthru
      _
    %p226 = scmp.lt.s32.totalorder %s11, 2
    // Predicated region
    $region21: #{joint_transformer_block_with_envmap.20} parent=5 // pred_check
      %p227 = pneg %p226
    $region22: #{joint_transformer_block_with_envmap.20} parent=5 // pred_check_branch
      %229 = sbr.rel (%p227) target = $region24
    $region23: #{joint_transformer_block_with_envmap.20} parent=5 // pred_region
      // Predicated region
      $region25: #{joint_transformer_block_with_envmap.20} parent=23 // pred_check
        %p230 = pneg %p52
      $region26: #{joint_transformer_block_with_envmap.20} parent=23 // pred_check_branch
        %232 = sbr.rel (%p230) target = $region28
      $region27: #{joint_transformer_block_with_envmap.20} parent=23 // pred_region
        %p233 = scmp.lt.s32.totalorder %s18, 1
        %s234 = scalar_select %p233, %s18, 1
        %p235 = scmp.lt.s32.totalorder %s19, 0
        %s236 = scalar_select %p235, %s19, 0
        %s237 = sadd.s32 %s236, %s234
        %s238 = smul.addr %s237, 4
        %s239 = scalar_lea.vmem %s0, %s238
      $region28: #{joint_transformer_block_with_envmap.20} parent=23 // pred_fallthru
        _
      // Predicated region
      $region29: #{joint_transformer_block_with_envmap.20} parent=23 // pred_check
        %p240 = pneg %p132
      $region30: #{joint_transformer_block_with_envmap.20} parent=23 // pred_check_branch
        %242 = sbr.rel (%p240) target = $region32
      $region31: #{joint_transformer_block_with_envmap.20} parent=23 // pred_region
        %p243 = scmp.lt.s32.totalorder %s18, 1
        %s244 = scalar_select %p243, %s18, 1
        %p245 = scmp.lt.s32.totalorder %s20, 0
        %s246 = scalar_select %p245, %s20, 0
        %s247 = sadd.s32 %s246, %s244
        %s248 = scalar_lea.vmem %s3, %s247
      $region32: #{joint_transformer_block_with_envmap.20} parent=23 // pred_fallthru
        _
      // Predicated region
      $region33: #{joint_transformer_block_with_envmap.20} parent=23 // pred_check
        %p249 = pneg %p162
      $region34: #{joint_transformer_block_with_envmap.20} parent=23 // pred_check_branch
        %251 = sbr.rel (%p249) target = $region36
      $region35: #{joint_transformer_block_with_envmap.20} parent=23 // pred_region
        %p252 = scmp.lt.s32.totalorder %s18, 1
        %s253 = scalar_select %p252, %s18, 1
        %p254 = scmp.lt.s32.totalorder %s19, 0
        %s255 = scalar_select %p254, %s19, 0
        %p256 = scmp.lt.s32.totalorder %s20, 0
        %s257 = scalar_select %p256, %s20, 0
        %s258 = sadd.s32 %s257, %s255
        %s259 = sadd.s32 %s258, %s253
        %s260 = smul.addr %s259, 4
        %s261 = scalar_lea.vmem %s4, %s260
      $region36: #{joint_transformer_block_with_envmap.20} parent=23 // pred_fallthru
        _
    $region24: #{joint_transformer_block_with_envmap.20} parent=5 // pred_fallthru
      _
    %p262 = scmp.le.s32.totalorder 1, %s11
    %p263 = scmp.lt.s32.totalorder %s11, 3
    %p264 = pnand %p262, %p263
    %p265 = pneg %p264
    // Predicated region
    $region37: #{joint_transformer_block_with_envmap.20} parent=5 // pred_check
      _
    $region38: #{joint_transformer_block_with_envmap.20} parent=5 // pred_check_branch
      %267 = sbr.rel (%p264) target = $region40
    $region39: #{joint_transformer_block_with_envmap.20} parent=5 // pred_region
      %s268 = ssub.s32 %s11, 1
      %p269 = scmp.lt.s32.totalorder %s21, 1
      %s270 = scalar_select %p269, %s21, 1
      %p271 = scmp.lt.s32.totalorder %s22, 0
      %s272 = scalar_select %p271, %s22, 0
      %s273 = sadd.s32 %s272, %s270
      %s274 = smul.addr %s273, 4
      %s275 = scalar_lea.vmem %s0, %s274
      %p276 = pneg %p58
      %p277 = pneg %p55
      %p278 = scmp.lt.s32.totalorder %s23, 0
      %s279 = scalar_select %p278, %s23, 0
      %s280 = smul.addr %s279, 4
      %s281 = scalar_lea.vmem %s1, %s280
      %p282 = pneg %p84
      %p283 = pneg %p81
      %p284 = scmp.lt.s32.totalorder %s23, 0
      %s285 = scalar_select %p284, %s23, 0
      %s286 = scalar_lea.vmem %s2, %s285
      %p287 = pneg %p110
      %p288 = pneg %p107
      %p289 = scmp.lt.s32.totalorder %s21, 1
      %s290 = scalar_select %p289, %s21, 1
      %p291 = scmp.lt.s32.totalorder %s23, 0
      %s292 = scalar_select %p291, %s23, 0
      %s293 = sadd.s32 %s292, %s290
      %s294 = scalar_lea.vmem %s3, %s293
      %p295 = pneg %p138
      %p296 = pneg %p135
      %p297 = scmp.lt.s32.totalorder %s21, 1
      %s298 = scalar_select %p297, %s21, 1
      %p299 = scmp.lt.s32.totalorder %s22, 0
      %s300 = scalar_select %p299, %s22, 0
      %p301 = scmp.lt.s32.totalorder %s23, 0
      %s302 = scalar_select %p301, %s23, 0
      %s303 = sadd.s32 %s302, %s300
      %s304 = sadd.s32 %s303, %s298
      %s305 = smul.addr %s304, 4
      %s306 = scalar_lea.vmem %s4, %s305
      %p307 = pneg %p168
      %p308 = pneg %p165
      %p309 = pneg %p198
      %p310 = pneg %p195
      %p311 = scmp.lt.s32.totalorder %s21, 1
      %s312 = scalar_select %p311, %s21, 1
      %p313 = scmp.lt.s32.totalorder %s22, 0
      %s314 = scalar_select %p313, %s22, 0
      %p315 = scmp.lt.s32.totalorder %s23, 0
      %s316 = scalar_select %p315, %s23, 0
      %s317 = sadd.s32 %s316, %s314
      %s318 = sadd.s32 %s317, %s312
      %s319 = smul.addr %s318, 4
      %s320 = scalar_lea.vmem %s5, %s319
      %p321 = scmp.lt.s32.totalorder %s21, 1
      %s322 = scalar_select %p321, %s21, 1
      %p323 = scmp.lt.s32.totalorder %s22, 0
      %s324 = scalar_select %p323, %s22, 0
      %s325 = sadd.s32 %s324, %s322
      %s326 = smul.addr %s325, 4
      %s327 = scalar_lea.vmem %s0, %s326
      %p328 = scmp.lt.s32.totalorder %s23, 0
      %s329 = scalar_select %p328, %s23, 0
      %s330 = smul.addr %s329, 4
      %s331 = scalar_lea.vmem %s1, %s330
      %p332 = scmp.lt.s32.totalorder %s23, 0
      %s333 = scalar_select %p332, %s23, 0
      %s334 = scalar_lea.vmem %s2, %s333
      %p335 = scmp.lt.s32.totalorder %s21, 1
      %s336 = scalar_select %p335, %s21, 1
      %p337 = scmp.lt.s32.totalorder %s23, 0
      %s338 = scalar_select %p337, %s23, 0
      %s339 = sadd.s32 %s338, %s336
      %s340 = scalar_lea.vmem %s3, %s339
      %p341 = scmp.lt.s32.totalorder %s21, 1
      %s342 = scalar_select %p341, %s21, 1
      %p343 = scmp.lt.s32.totalorder %s22, 0
      %s344 = scalar_select %p343, %s22, 0
      %p345 = scmp.lt.s32.totalorder %s23, 0
      %s346 = scalar_select %p345, %s23, 0
      %s347 = sadd.s32 %s346, %s344
      %s348 = sadd.s32 %s347, %s342
      %s349 = smul.addr %s348, 4
      %s350 = scalar_lea.vmem %s4, %s349
      %p351 = scmp.lt.s32.totalorder %s21, 1
      %s352 = scalar_select %p351, %s21, 1
      %p353 = scmp.lt.s32.totalorder %s22, 0
      %s354 = scalar_select %p353, %s22, 0
      %p355 = scmp.lt.s32.totalorder %s23, 0
      %s356 = scalar_select %p355, %s23, 0
      %s357 = sadd.s32 %s356, %s354
      %s358 = sadd.s32 %s357, %s352
      %s359 = smul.addr %s358, 4
      %s360 = scalar_lea.vmem %s5, %s359
      %v362 = vld [vmem:[%s327] sm:$0xf]
      %v363 = vld [vmem:[%s331] sm:$0xf]
      %v364 = vld [vmem:[%s331 + $0x4] sm:$0xf]
      %v365 = vld [vmem:[%s331 + $0x8] sm:$0xf]
      %v366 = vld [vmem:[%s331 + $0xc] sm:$0xf]
      %v367 = vld [vmem:[%s331 + $0x10] sm:$0xf]
      %v368 = vld [vmem:[%s331 + $0x14] sm:$0xf]
      %v369 = vld [vmem:[%s331 + $0x18] sm:$0xf]
      %v370 = vld [vmem:[%s331 + $0x1c] sm:$0xf]
      %v371 = vld [vmem:[%s331 + $0x20] sm:$0xf]
      %v372 = vld [vmem:[%s331 + $0x24] sm:$0xf]
      %v373 = vld [vmem:[%s331 + $0x28] sm:$0xf]
      %v374 = vld [vmem:[%s331 + $0x2c] sm:$0xf]
      %v375 = vld [vmem:[%s331 + $0x30] sm:$0xf]
      %v376 = vld [vmem:[%s331 + $0x34] sm:$0xf]
      %v377 = vld [vmem:[%s331 + $0x38] sm:$0xf]
      %v378 = vld [vmem:[%s331 + $0x3c] sm:$0xf]
      %v379 = vld [vmem:[%s334] sm:$0x1]
      %v381 = vlaneseq
      %v382 = vshrl.u32 %v381, 7
      %v383 = vsub.s32 0, %v382
      %v384 = vrot.slane %v379, %v383
      %v402 = vunpack.c.l.b16 %v363
      %v403 = vunpack.c.l.b16 %v364
      %v404 = vunpack.c.l.b16 %v365
      %v405 = vunpack.c.l.b16 %v366
      %v406 = vunpack.c.l.b16 %v367
      %v407 = vunpack.c.l.b16 %v368
      %v408 = vunpack.c.l.b16 %v369
      %v409 = vunpack.c.l.b16 %v370
      %v410 = vunpack.c.l.b16 %v371
      %v411 = vunpack.c.l.b16 %v372
      %v412 = vunpack.c.l.b16 %v373
      %v413 = vunpack.c.l.b16 %v374
      %v414 = vunpack.c.l.b16 %v375
      %v415 = vunpack.c.l.b16 %v376
      %v416 = vunpack.c.l.b16 %v377
      %v417 = vunpack.c.l.b16 %v378
      %v418 = vpack.c.b16 %v403, %v402
      %v419 = vpack.c.b16 %v405, %v404
      %v420 = vpack.c.b16 %v407, %v406
      %v421 = vpack.c.b16 %v409, %v408
      %v422 = vpack.c.b16 %v411, %v410
      %v423 = vpack.c.b16 %v413, %v412
      %v424 = vpack.c.b16 %v415, %v414
      %v425 = vpack.c.b16 %v417, %v416
      %434 = vmatprep.subr.bf16.mxu0 0
      %435 = vmatpush1.bf16.msra.mxu0 %v418
      %436 = vmatprep.subr.bf16.mxu0 0
      %437 = vmatpush1.bf16.msra.mxu0 %v419
      %438 = vmatprep.subr.bf16.mxu0 0
      %439 = vmatpush1.bf16.msra.mxu0 %v420
      %440 = vmatprep.subr.bf16.mxu0 0
      %441 = vmatpush1.bf16.msra.mxu0 %v421
      %442 = vmatprep.subr.bf16.mxu0 0
      %443 = vmatpush1.bf16.msra.mxu0 %v422
      %444 = vmatprep.subr.bf16.mxu0 0
      %445 = vmatpush1.bf16.msra.mxu0 %v423
      %446 = vmatprep.subr.bf16.mxu0 0
      %447 = vmatpush1.bf16.msra.mxu0 %v424
      %448 = vmatprep.subr.bf16.mxu0 0
      %449 = vmatpush1.bf16.msra.mxu0 %v425
      %450 = vmatprep.subr.bf16.mxu0 0
      %451 = vmatpush1.bf16.msra.mxu0 0
      %452 = vmatprep.subr.bf16.mxu0 0
      %453 = vmatpush1.bf16.msra.mxu0 0
      %454 = vmatprep.subr.bf16.mxu0 0
      %455 = vmatpush1.bf16.msra.mxu0 0
      %456 = vmatprep.subr.bf16.mxu0 0
      %457 = vmatpush1.bf16.msra.mxu0 0
      %458 = vmatprep.subr.bf16.mxu0 0
      %459 = vmatpush1.bf16.msra.mxu0 0
      %460 = vmatprep.subr.bf16.mxu0 0
      %461 = vmatpush1.bf16.msra.mxu0 0
      %462 = vmatprep.subr.bf16.mxu0 0
      %463 = vmatpush1.bf16.msra.mxu0 0
      %464 = vmatprep.subr.bf16.mxu0 0
      %465 = vmatpush1.bf16.msra.mxu0 0
      %466 = vmatprep.mubr.bf16.mxu0 0
      %467 = vmatmul.mubr.bf16.gmra.mrb[0].mxu0 %v362
      %v468 = vpop.f32.mrb[0].mxu0
      %v469 = vadd.f32 %v384, %v468
      %v470 = vpop.f32.mrb[0].mxu0
      %v471 = vpop.f32.mrb[0].mxu0
      %v472 = vpop.f32.mrb[0].mxu0
      %473 = vdwg.mxu0
      %v474 = vld [vmem:[%s350] sm:$0xf]
      %v475 = vunpack.c.l.bf16 %v474
      %v476 = vld [vmem:[%s340] sm:$0x1]
      %v478 = vlaneseq
      %v479 = vshrl.u32 %v478, 7
      %v480 = vsub.s32 0, %v479
      %v481 = vrot.slane %v476, %v480
      %v483 = vmul.f32 %v481, %v469
      %v484 = vadd.f32 %v475, %v483
      %v485 = vpack.c.bf16 %v484, %v484
      %vm486 = vcmask 257024
      %487 = vst.msk [vmem:[%s360] sm:$0xf] %vm486, %v485
      %p488 = scmp.lt.s32.totalorder %s21, 1
      %s489 = scalar_select %p488, %s21, 1
      %p490 = scmp.lt.s32.totalorder %s22, 0
      %s491 = scalar_select %p490, %s22, 0
      %p492 = scmp.lt.s32.totalorder %s23, 0
      %s493 = scalar_select %p492, %s23, 0
      %s494 = sadd.s32 %s493, %s491
      %s495 = sadd.s32 %s494, %s489
      %s496 = smul.addr %s495, 4
      %s497 = scalar_lea.vmem %s5, %s496
      // Predicated region
      $region41: #{joint_transformer_block_with_envmap.20} parent=39 // pred_check
        %p498 = pneg %p195
      $region42: #{joint_transformer_block_with_envmap.20} parent=39 // pred_check_branch
        %500 = sbr.rel (%p498) target = $region44
      $region43: #{joint_transformer_block_with_envmap.20} parent=39 // pred_region
        _
      $region44: #{joint_transformer_block_with_envmap.20} parent=39 // pred_fallthru
        _
    $region40: #{joint_transformer_block_with_envmap.20} parent=5 // pred_fallthru
      _
    %p501 = scmp.le.s32.totalorder 2, %s11
    // Predicated region
    $region45: #{joint_transformer_block_with_envmap.20} parent=5 // pred_check
      %p502 = pneg %p501
    $region46: #{joint_transformer_block_with_envmap.20} parent=5 // pred_check_branch
      %504 = sbr.rel (%p502) target = $region48
    $region47: #{joint_transformer_block_with_envmap.20} parent=5 // pred_region
      %s505 = ssub.s32 %s11, 2
      // Predicated region
      $region49: #{joint_transformer_block_with_envmap.20} parent=47 // pred_check
        %p506 = pneg %p201
      $region50: #{joint_transformer_block_with_envmap.20} parent=47 // pred_check_branch
        %508 = sbr.rel (%p506) target = $region52
      $region51: #{joint_transformer_block_with_envmap.20} parent=47 // pred_region
        %p509 = scmp.lt.s32.totalorder %s24, 1
        %s510 = scalar_select %p509, %s24, 1
        %p511 = scmp.lt.s32.totalorder %s25, 0
        %s512 = scalar_select %p511, %s25, 0
        %p513 = scmp.lt.s32.totalorder %s26, 0
        %s514 = scalar_select %p513, %s26, 0
        %s515 = sadd.s32 %s514, %s512
        %s516 = sadd.s32 %s515, %s510
        %s517 = smul.addr %s516, 4
        %s518 = scalar_lea.vmem %s5, %s517
      $region52: #{joint_transformer_block_with_envmap.20} parent=47 // pred_fallthru
        _
    $region48: #{joint_transformer_block_with_envmap.20} parent=5 // pred_fallthru
      _
  $region6: #{joint_transformer_block_with_envmap.20} parent=0 // loop_footer
    %s15 = sadd.s32 1, %s11
  $region7: #{joint_transformer_block_with_envmap.20} parent=0 // loop_footer_branch
    %10 = sbr.rel target = $region3
  $region8: #{joint_transformer_block_with_envmap.20} parent=0 // loop_exit
    _

// kernel: joint_transformer_block_with_envmap.17
$region0: #{joint_transformer_block_with_envmap.17}
  #allocation0 [shape = 'u32[]', space=smem, size = 0x4, offset = 0x4, fixed_abs, tag = 'smem constant byte address 0x4 - core index']
  #allocation1 [shape = 'u32[144,128]{1,0:T(1,128)}', space=vmem, size = 0x12000, scoped, tag = 'internal scratch']
  %s0 = inlined_call_operand.vmem [shape: f32[2,8,32], index: 0, kind: input, shape index: {}]
  %s1 = inlined_call_operand.vmem [shape: bf16[32,64], index: 1, kind: input, shape index: {}]
  %s2 = inlined_call_operand.vmem [shape: f32[1,1,64], index: 2, kind: input, shape index: {}]
  %s3 = inlined_call_operand.vmem [shape: bf16[2,8,64], index: 3, kind: output, shape index: {}]
  %s4 = sld [smem:[#allocation0]]
  $region45: #{joint_transformer_block_with_envmap.17} parent=0
    _
  %s6 = ssub.s32 1, %s4
  %s7 = scalar_select 0, %s6, %s4
  loop: start=0, step=1, limit=4
  $region2: #{joint_transformer_block_with_envmap.17} parent=0 // loop_pre_header
    _
  $region3: #{joint_transformer_block_with_envmap.17} parent=0 // loop_header
    %s9 = sphi 0, %s13
    %p10 = scmp.ge.s32.totalorder %s9, 4
    %s16 = sphi 0, %s35
    %s17 = sphi 0, %s31
    %s18 = sphi 0, %s27
    %s19 = sphi 0, %s16
    %s20 = sphi 0, %s17
    %s21 = sphi 0, %s18
    %s22 = sphi 0, %s19
    %s23 = sphi 0, %s20
    %s24 = sphi 0, %s21
    %s40 = sphi 0, %s42
    %s43 = sphi 0, %s40
    %s44 = sphi 0, %s43
    %s60 = sphi 0, %s44
    %s66 = sphi 0, %s68
    %s69 = sphi 0, %s66
    %s70 = sphi 0, %s69
    %s86 = sphi 0, %s70
    %s92 = sphi 0, %s94
    %s95 = sphi 0, %s92
    %s96 = sphi 0, %s95
    %s112 = sphi 0, %s96
    %s122 = sphi 0, %s124
    %s125 = sphi 0, %s122
    %s126 = sphi 0, %s125
    %s142 = sphi 0, %s126
  $region4: #{joint_transformer_block_with_envmap.17} parent=0 // loop_header_branch
    %12 = sbr.rel (%p10) target = $region8
  $region5: #{joint_transformer_block_with_envmap.17} parent=0 // loop_body
    %s14 = ssub.s32 %s9, 1
    %s15 = ssub.s32 %s9, 2
    %s25 = sadd.s32 1, %s18
    %p26 = scmp.ge.s32.totalorder %s25, 1
    %s27 = scalar_select %p26, 0, %s25
    %s28 = sadd.s32 1, %s17
    %s29 = scalar_select %p26, %s28, %s17
    %p30 = scmp.ge.s32.totalorder %s29, 1
    %s31 = scalar_select %p30, 0, %s29
    %s32 = sadd.s32 1, %s16
    %s33 = scalar_select %p30, %s32, %s16
    %p34 = scmp.ge.s32.totalorder %s33, 2
    %s35 = scalar_select %p34, 0, %s33
    %s36 = ssub.s32 %s16, %s35
    %s37 = ssub.s32 %s17, %s31
    %s38 = sor.u32 %s36, %s37
    %p39 = scmp.eq.s32.totalorder %s38, 0
    %s41 = sadd.s32 %s40, 1
    %s42 = scalar_select %p39, %s40, %s41
    %p45 = pneg %p39
    %p46 = scmp.eq.s32.totalorder %s9, 1
    %p47 = por %p45, %p46
    %p48 = scmp.ne.s32.totalorder %s40, %s43
    %p49 = scmp.eq.s32.totalorder %s9, 0
    %p50 = por %p48, %p49
    %p51 = scmp.ne.s32.totalorder %s40, %s43
    %p52 = scmp.eq.s32.totalorder %s14, 1
    %p53 = por %p51, %p52
    %p54 = scmp.ne.s32.totalorder %s43, %s44
    %p55 = scmp.eq.s32.totalorder %s14, 0
    %p56 = por %p54, %p55
    %p57 = scmp.ne.s32.totalorder %s43, %s44
    %p58 = scmp.eq.s32.totalorder %s15, 1
    %p59 = por %p57, %p58
    %p61 = scmp.ne.s32.totalorder %s44, %s60
    %p62 = scmp.eq.s32.totalorder %s15, 0
    %p63 = por %p61, %p62
    %s64 = ssub.s32 %s18, %s27
    %p65 = scmp.eq.s32.totalorder %s64, 0
    %s67 = sadd.s32 %s66, 1
    %s68 = scalar_select %p65, %s66, %s67
    %p71 = pneg %p65
    %p72 = scmp.eq.s32.totalorder %s9, 1
    %p73 = por %p71, %p72
    %p74 = scmp.ne.s32.totalorder %s66, %s69
    %p75 = scmp.eq.s32.totalorder %s9, 0
    %p76 = por %p74, %p75
    %p77 = scmp.ne.s32.totalorder %s66, %s69
    %p78 = scmp.eq.s32.totalorder %s14, 1
    %p79 = por %p77, %p78
    %p80 = scmp.ne.s32.totalorder %s69, %s70
    %p81 = scmp.eq.s32.totalorder %s14, 0
    %p82 = por %p80, %p81
    %p83 = scmp.ne.s32.totalorder %s69, %s70
    %p84 = scmp.eq.s32.totalorder %s15, 1
    %p85 = por %p83, %p84
    %p87 = scmp.ne.s32.totalorder %s70, %s86
    %p88 = scmp.eq.s32.totalorder %s15, 0
    %p89 = por %p87, %p88
    %s90 = ssub.s32 %s18, %s27
    %p91 = scmp.eq.s32.totalorder %s90, 0
    %s93 = sadd.s32 %s92, 1
    %s94 = scalar_select %p91, %s92, %s93
    %p97 = pneg %p91
    %p98 = scmp.eq.s32.totalorder %s9, 1
    %p99 = por %p97, %p98
    %p100 = scmp.ne.s32.totalorder %s92, %s95
    %p101 = scmp.eq.s32.totalorder %s9, 0
    %p102 = por %p100, %p101
    %p103 = scmp.ne.s32.totalorder %s92, %s95
    %p104 = scmp.eq.s32.totalorder %s14, 1
    %p105 = por %p103, %p104
    %p106 = scmp.ne.s32.totalorder %s95, %s96
    %p107 = scmp.eq.s32.totalorder %s14, 0
    %p108 = por %p106, %p107
    %p109 = scmp.ne.s32.totalorder %s95, %s96
    %p110 = scmp.eq.s32.totalorder %s15, 1
    %p111 = por %p109, %p110
    %p113 = scmp.ne.s32.totalorder %s96, %s112
    %p114 = scmp.eq.s32.totalorder %s15, 0
    %p115 = por %p113, %p114
    %s116 = ssub.s32 %s16, %s35
    %s117 = ssub.s32 %s17, %s31
    %s118 = sor.u32 %s116, %s117
    %s119 = ssub.s32 %s18, %s27
    %s120 = sor.u32 %s118, %s119
    %p121 = scmp.eq.s32.totalorder %s120, 0
    %s123 = sadd.s32 %s122, 1
    %s124 = scalar_select %p121, %s122, %s123
    %p127 = pneg %p121
    %p128 = scmp.eq.s32.totalorder %s9, 1
    %p129 = por %p127, %p128
    %p130 = scmp.ne.s32.totalorder %s122, %s125
    %p131 = scmp.eq.s32.totalorder %s9, 0
    %p132 = por %p130, %p131
    %p133 = scmp.ne.s32.totalorder %s122, %s125
    %p134 = scmp.eq.s32.totalorder %s14, 1
    %p135 = por %p133, %p134
    %p136 = scmp.ne.s32.totalorder %s125, %s126
    %p137 = scmp.eq.s32.totalorder %s14, 0
    %p138 = por %p136, %p137
    %p139 = scmp.ne.s32.totalorder %s125, %s126
    %p140 = scmp.eq.s32.totalorder %s15, 1
    %p141 = por %p139, %p140
    %p143 = scmp.ne.s32.totalorder %s126, %s142
    %p144 = scmp.eq.s32.totalorder %s15, 0
    %p145 = por %p143, %p144
    %p146 = scmp.le.s32.totalorder 1, %s9
    %p147 = scmp.lt.s32.totalorder %s9, 3
    %p148 = pnand %p146, %p147
    %p149 = pneg %p148
    // Predicated region
    $region9: #{joint_transformer_block_with_envmap.17} parent=5 // pred_check
      _
    $region10: #{joint_transformer_block_with_envmap.17} parent=5 // pred_check_branch
      %151 = sbr.rel (%p148) target = $region12
    $region11: #{joint_transformer_block_with_envmap.17} parent=5 // pred_region
      %s152 = ssub.s32 %s9, 1
      // Predicated region
      $region13: #{joint_transformer_block_with_envmap.17} parent=11 // pred_check
        %p153 = pneg %p82
      $region14: #{joint_transformer_block_with_envmap.17} parent=11 // pred_check_branch
        %155 = sbr.rel (%p153) target = $region16
      $region15: #{joint_transformer_block_with_envmap.17} parent=11 // pred_region
        %p156 = scmp.lt.s32.totalorder %s21, 0
        %s157 = scalar_select %p156, %s21, 0
        %s158 = smul.addr %s157, 4
        %s159 = scalar_lea.vmem %s1, %s158
      $region16: #{joint_transformer_block_with_envmap.17} parent=11 // pred_fallthru
        _
      // Predicated region
      $region17: #{joint_transformer_block_with_envmap.17} parent=11 // pred_check
        %p160 = pneg %p108
      $region18: #{joint_transformer_block_with_envmap.17} parent=11 // pred_check_branch
        %162 = sbr.rel (%p160) target = $region20
      $region19: #{joint_transformer_block_with_envmap.17} parent=11 // pred_region
        %p163 = scmp.lt.s32.totalorder %s21, 0
        %s164 = scalar_select %p163, %s21, 0
        %s165 = scalar_lea.vmem %s2, %s164
      $region20: #{joint_transformer_block_with_envmap.17} parent=11 // pred_fallthru
        _
    $region12: #{joint_transformer_block_with_envmap.17} parent=5 // pred_fallthru
      _
    %p166 = scmp.lt.s32.totalorder %s9, 2
    // Predicated region
    $region21: #{joint_transformer_block_with_envmap.17} parent=5 // pred_check
      %p167 = pneg %p166
    $region22: #{joint_transformer_block_with_envmap.17} parent=5 // pred_check_branch
      %169 = sbr.rel (%p167) target = $region24
    $region23: #{joint_transformer_block_with_envmap.17} parent=5 // pred_region
      // Predicated region
      $region25: #{joint_transformer_block_with_envmap.17} parent=23 // pred_check
        %p170 = pneg %p50
      $region26: #{joint_transformer_block_with_envmap.17} parent=23 // pred_check_branch
        %172 = sbr.rel (%p170) target = $region28
      $region27: #{joint_transformer_block_with_envmap.17} parent=23 // pred_region
        %p173 = scmp.lt.s32.totalorder %s16, 1
        %s174 = scalar_select %p173, %s16, 1
        %p175 = scmp.lt.s32.totalorder %s17, 0
        %s176 = scalar_select %p175, %s17, 0
        %s177 = sadd.s32 %s176, %s174
        %s178 = smul.addr %s177, 8
        %s179 = scalar_lea.vmem %s0, %s178
      $region28: #{joint_transformer_block_with_envmap.17} parent=23 // pred_fallthru
        _
    $region24: #{joint_transformer_block_with_envmap.17} parent=5 // pred_fallthru
      _
    %p180 = scmp.le.s32.totalorder 1, %s9
    %p181 = scmp.lt.s32.totalorder %s9, 3
    %p182 = pnand %p180, %p181
    %p183 = pneg %p182
    // Predicated region
    $region29: #{joint_transformer_block_with_envmap.17} parent=5 // pred_check
      _
    $region30: #{joint_transformer_block_with_envmap.17} parent=5 // pred_check_branch
      %185 = sbr.rel (%p182) target = $region32
    $region31: #{joint_transformer_block_with_envmap.17} parent=5 // pred_region
      %s186 = ssub.s32 %s9, 1
      %p187 = scmp.lt.s32.totalorder %s19, 1
      %s188 = scalar_select %p187, %s19, 1
      %p189 = scmp.lt.s32.totalorder %s20, 0
      %s190 = scalar_select %p189, %s20, 0
      %s191 = sadd.s32 %s190, %s188
      %s192 = smul.addr %s191, 8
      %s193 = scalar_lea.vmem %s0, %s192
      %p194 = pneg %p56
      %p195 = pneg %p53
      %p196 = scmp.lt.s32.totalorder %s21, 0
      %s197 = scalar_select %p196, %s21, 0
      %s198 = smul.addr %s197, 4
      %s199 = scalar_lea.vmem %s1, %s198
      %p200 = pneg %p82
      %p201 = pneg %p79
      %p202 = scmp.lt.s32.totalorder %s21, 0
      %s203 = scalar_select %p202, %s21, 0
      %s204 = scalar_lea.vmem %s2, %s203
      %p205 = pneg %p108
      %p206 = pneg %p105
      %p207 = pneg %p138
      %p208 = pneg %p135
      %p209 = scmp.lt.s32.totalorder %s19, 1
      %s210 = scalar_select %p209, %s19, 1
      %p211 = scmp.lt.s32.totalorder %s20, 0
      %s212 = scalar_select %p211, %s20, 0
      %p213 = scmp.lt.s32.totalorder %s21, 0
      %s214 = scalar_select %p213, %s21, 0
      %s215 = sadd.s32 %s214, %s212
      %s216 = sadd.s32 %s215, %s210
      %s217 = smul.addr %s216, 4
      %s218 = scalar_lea.vmem %s3, %s217
      %p219 = scmp.lt.s32.totalorder %s19, 1
      %s220 = scalar_select %p219, %s19, 1
      %p221 = scmp.lt.s32.totalorder %s20, 0
      %s222 = scalar_select %p221, %s20, 0
      %s223 = sadd.s32 %s222, %s220
      %s224 = smul.addr %s223, 8
      %s225 = scalar_lea.vmem %s0, %s224
      %p226 = scmp.lt.s32.totalorder %s21, 0
      %s227 = scalar_select %p226, %s21, 0
      %s228 = smul.addr %s227, 4
      %s229 = scalar_lea.vmem %s1, %s228
      %p230 = scmp.lt.s32.totalorder %s21, 0
      %s231 = scalar_select %p230, %s21, 0
      %s232 = scalar_lea.vmem %s2, %s231
      %p233 = scmp.lt.s32.totalorder %s19, 1
      %s234 = scalar_select %p233, %s19, 1
      %p235 = scmp.lt.s32.totalorder %s20, 0
      %s236 = scalar_select %p235, %s20, 0
      %p237 = scmp.lt.s32.totalorder %s21, 0
      %s238 = scalar_select %p237, %s21, 0
      %s239 = sadd.s32 %s238, %s236
      %s240 = sadd.s32 %s239, %s234
      %s241 = smul.addr %s240, 4
      %s242 = scalar_lea.vmem %s3, %s241
      %v244 = vld [vmem:[%s225] sm:$0xff]
      %v245 = vpack.c.bf16 %v244, %v244
      %v246 = vld [vmem:[%s229] sm:$0xf]
      %v247 = vld [vmem:[%s229 + $0x4] sm:$0xf]
      %v248 = vld [vmem:[%s229 + $0x8] sm:$0xf]
      %v249 = vld [vmem:[%s229 + $0xc] sm:$0xf]
      %v250 = vld [vmem:[%s232] sm:$0x1]
      %v252 = vlaneseq
      %v253 = vshrl.u32 %v252, 7
      %v254 = vsub.s32 0, %v253
      %v255 = vrot.slane %v250, %v254
      %v261 = vunpack.c.l.b16 %v246
      %v262 = vunpack.c.l.b16 %v247
      %v263 = vunpack.c.l.b16 %v248
      %v264 = vunpack.c.l.b16 %v249
      %v265 = vpack.c.b16 %v262, %v261
      %v266 = vpack.c.b16 %v264, %v263
      %vm269 = vcmask 261120
      %v271 = vsel %vm269, %v245, 0
      %273 = vmatprep.subr.bf16.mxu0 0
      %274 = vmatpush1.bf16.msra.mxu0 %v265
      %275 = vmatprep.subr.bf16.mxu0 0
      %276 = vmatpush1.bf16.msra.mxu0 %v266
      %277 = vmatprep.subr.bf16.mxu0 0
      %278 = vmatpush1.bf16.msra.mxu0 0
      %279 = vmatprep.subr.bf16.mxu0 0
      %280 = vmatpush1.bf16.msra.mxu0 0
      %281 = vmatprep.subr.bf16.mxu0 0
      %282 = vmatpush1.bf16.msra.mxu0 0
      %283 = vmatprep.subr.bf16.mxu0 0
      %284 = vmatpush1.bf16.msra.mxu0 0
      %285 = vmatprep.subr.bf16.mxu0 0
      %286 = vmatpush1.bf16.msra.mxu0 0
      %287 = vmatprep.subr.bf16.mxu0 0
      %288 = vmatpush1.bf16.msra.mxu0 0
      %289 = vmatprep.subr.bf16.mxu0 0
      %290 = vmatpush1.bf16.msra.mxu0 0
      %291 = vmatprep.subr.bf16.mxu0 0
      %292 = vmatpush1.bf16.msra.mxu0 0
      %293 = vmatprep.subr.bf16.mxu0 0
      %294 = vmatpush1.bf16.msra.mxu0 0
      %295 = vmatprep.subr.bf16.mxu0 0
      %296 = vmatpush1.bf16.msra.mxu0 0
      %297 = vmatprep.subr.bf16.mxu0 0
      %298 = vmatpush1.bf16.msra.mxu0 0
      %299 = vmatprep.subr.bf16.mxu0 0
      %300 = vmatpush1.bf16.msra.mxu0 0
      %301 = vmatprep.subr.bf16.mxu0 0
      %302 = vmatpush1.bf16.msra.mxu0 0
      %303 = vmatprep.subr.bf16.mxu0 0
      %304 = vmatpush1.bf16.msra.mxu0 0
      %305 = vmatprep.mubr.bf16.mxu0 0
      %306 = vmatmul.mubr.bf16.gmra.mrb[0].mxu0 %v271
      %v307 = vpop.f32.mrb[0].mxu0
      %v308 = vadd.f32 %v255, %v307
      %v309 = vpop.f32.mrb[0].mxu0
      %v310 = vpop.f32.mrb[0].mxu0
      %v311 = vpop.f32.mrb[0].mxu0
      %312 = vdwg.mxu0
      %v313 = vpack.c.bf16 %v308, %v308
      %vm314 = vcmask 519168
      %315 = vst.msk [vmem:[%s242] sm:$0xf] %vm314, %v313
      %p316 = scmp.lt.s32.totalorder %s19, 1
      %s317 = scalar_select %p316, %s19, 1
      %p318 = scmp.lt.s32.totalorder %s20, 0
      %s319 = scalar_select %p318, %s20, 0
      %p320 = scmp.lt.s32.totalorder %s21, 0
      %s321 = scalar_select %p320, %s21, 0
      %s322 = sadd.s32 %s321, %s319
      %s323 = sadd.s32 %s322, %s317
      %s324 = smul.addr %s323, 4
      %s325 = scalar_lea.vmem %s3, %s324
      // Predicated region
      $region33: #{joint_transformer_block_with_envmap.17} parent=31 // pred_check
        %p326 = pneg %p135
      $region34: #{joint_transformer_block_with_envmap.17} parent=31 // pred_check_branch
        %328 = sbr.rel (%p326) target = $region36
      $region35: #{joint_transformer_block_with_envmap.17} parent=31 // pred_region
        _
      $region36: #{joint_transformer_block_with_envmap.17} parent=31 // pred_fallthru
        _
    $region32: #{joint_transformer_block_with_envmap.17} parent=5 // pred_fallthru
      _
    %p329 = scmp.le.s32.totalorder 2, %s9
    // Predicated region
    $region37: #{joint_transformer_block_with_envmap.17} parent=5 // pred_check
      %p330 = pneg %p329
    $region38: #{joint_transformer_block_with_envmap.17} parent=5 // pred_check_branch
      %332 = sbr.rel (%p330) target = $region40
    $region39: #{joint_transformer_block_with_envmap.17} parent=5 // pred_region
      %s333 = ssub.s32 %s9, 2
      // Predicated region
      $region41: #{joint_transformer_block_with_envmap.17} parent=39 // pred_check
        %p334 = pneg %p141
      $region42: #{joint_transformer_block_with_envmap.17} parent=39 // pred_check_branch
        %336 = sbr.rel (%p334) target = $region44
      $region43: #{joint_transformer_block_with_envmap.17} parent=39 // pred_region
        %p337 = scmp.lt.s32.totalorder %s22, 1
        %s338 = scalar_select %p337, %s22, 1
        %p339 = scmp.lt.s32.totalorder %s23, 0
        %s340 = scalar_select %p339, %s23, 0
        %p341 = scmp.lt.s32.totalorder %s24, 0
        %s342 = scalar_select %p341, %s24, 0
        %s343 = sadd.s32 %s342, %s340
        %s344 = sadd.s32 %s343, %s338
        %s345 = smul.addr %s344, 4
        %s346 = scalar_lea.vmem %s3, %s345
      $region44: #{joint_transformer_block_with_envmap.17} parent=39 // pred_fallthru
        _
    $region40: #{joint_transformer_block_with_envmap.17} parent=5 // pred_fallthru
      _
  $region6: #{joint_transformer_block_with_envmap.17} parent=0 // loop_footer
    %s13 = sadd.s32 1, %s9
  $region7: #{joint_transformer_block_with_envmap.17} parent=0 // loop_footer_branch
    %8 = sbr.rel target = $region3
  $region8: #{joint_transformer_block_with_envmap.17} parent=0 // loop_exit
    _

// kernel: joint_transformer_block_with_envmap.21
$region0: #{joint_transformer_block_with_envmap.21}
  #allocation0 [shape = 'u32[]', space=smem, size = 0x4, offset = 0x4, fixed_abs, tag = 'smem constant byte address 0x4 - core index']
  #allocation1 [shape = 'u32[144,128]{1,0:T(1,128)}', space=vmem, size = 0x12000, scoped, tag = 'internal scratch']
  %s0 = inlined_call_operand.vmem [shape: bf16[2,8,32], index: 0, kind: input, shape index: {}]
  %s1 = inlined_call_operand.vmem [shape: bf16[32,32], index: 1, kind: input, shape index: {}]
  %s2 = inlined_call_operand.vmem [shape: f32[1,1,32], index: 2, kind: input, shape index: {}]
  %s3 = inlined_call_operand.vmem [shape: bf16[2,8,32], index: 3, kind: input, shape index: {}]
  %s4 = inlined_call_operand.hbm [shape: f32[2,8,32], index: 4, kind: output, shape index: {}]
  %s5 = sld [smem:[#allocation0]]
  $region49: #{joint_transformer_block_with_envmap.21} parent=0
    _
  %s7 = ssub.s32 1, %s5
  %s8 = scalar_select 0, %s7, %s5
  $region1: #{joint_transformer_block_with_envmap.21} parent=0
    #allocation2 [shape = 'u8[8192]{0}', space=vmem, size = 0x2000, scoped, tag = 'output window, operand 0']
    #allocation3 [shape = 's32[2]{0}', space=sflag, size = 0x8, scoped, tag = 'scoped memory for joint_transformer_block_with_envmap.21']
    %9 = vsyncpa [#allocation3], 0
    %s10 = scalar_lea.sflag [#allocation3], 1
    %11 = vsyncpa %s10, 0
    loop: start=0, step=1, limit=4
    $region2: #{joint_transformer_block_with_envmap.21} parent=1 // loop_pre_header
      _
    $region3: #{joint_transformer_block_with_envmap.21} parent=1 // loop_header
      %s13 = sphi 0, %s17
      %p14 = scmp.ge.s32.totalorder %s13, 4
      %s20 = sphi 0, %s39
      %s21 = sphi 0, %s35
      %s22 = sphi 0, %s31
      %s23 = sphi 0, %s20
      %s24 = sphi 0, %s21
      %s25 = sphi 0, %s22
      %s26 = sphi 0, %s23
      %s27 = sphi 0, %s24
      %s28 = sphi 0, %s25
      %s44 = sphi 0, %s46
      %s47 = sphi 0, %s44
      %s48 = sphi 0, %s47
      %s64 = sphi 0, %s48
      %s70 = sphi 0, %s72
      %s73 = sphi 0, %s70
      %s74 = sphi 0, %s73
      %s90 = sphi 0, %s74
      %s96 = sphi 0, %s98
      %s99 = sphi 0, %s96
      %s100 = sphi 0, %s99
      %s116 = sphi 0, %s100
      %s126 = sphi 0, %s128
      %s129 = sphi 0, %s126
      %s130 = sphi 0, %s129
      %s146 = sphi 0, %s130
      %s156 = sphi 0, %s158
      %s159 = sphi 0, %s156
      %s160 = sphi 0, %s159
      %s176 = sphi 0, %s160
    $region4: #{joint_transformer_block_with_envmap.21} parent=1 // loop_header_branch
      %16 = sbr.rel (%p14) target = $region8
    $region5: #{joint_transformer_block_with_envmap.21} parent=1 // loop_body
      %s18 = ssub.s32 %s13, 1
      %s19 = ssub.s32 %s13, 2
      %s29 = sadd.s32 1, %s22
      %p30 = scmp.ge.s32.totalorder %s29, 1
      %s31 = scalar_select %p30, 0, %s29
      %s32 = sadd.s32 1, %s21
      %s33 = scalar_select %p30, %s32, %s21
      %p34 = scmp.ge.s32.totalorder %s33, 1
      %s35 = scalar_select %p34, 0, %s33
      %s36 = sadd.s32 1, %s20
      %s37 = scalar_select %p34, %s36, %s20
      %p38 = scmp.ge.s32.totalorder %s37, 2
      %s39 = scalar_select %p38, 0, %s37
      %s40 = ssub.s32 %s20, %s39
      %s41 = ssub.s32 %s21, %s35
      %s42 = sor.u32 %s40, %s41
      %p43 = scmp.eq.s32.totalorder %s42, 0
      %s45 = sadd.s32 %s44, 1
      %s46 = scalar_select %p43, %s44, %s45
      %p49 = pneg %p43
      %p50 = scmp.eq.s32.totalorder %s13, 1
      %p51 = por %p49, %p50
      %p52 = scmp.ne.s32.totalorder %s44, %s47
      %p53 = scmp.eq.s32.totalorder %s13, 0
      %p54 = por %p52, %p53
      %p55 = scmp.ne.s32.totalorder %s44, %s47
      %p56 = scmp.eq.s32.totalorder %s18, 1
      %p57 = por %p55, %p56
      %p58 = scmp.ne.s32.totalorder %s47, %s48
      %p59 = scmp.eq.s32.totalorder %s18, 0
      %p60 = por %p58, %p59
      %p61 = scmp.ne.s32.totalorder %s47, %s48
      %p62 = scmp.eq.s32.totalorder %s19, 1
      %p63 = por %p61, %p62
      %p65 = scmp.ne.s32.totalorder %s48, %s64
      %p66 = scmp.eq.s32.totalorder %s19, 0
      %p67 = por %p65, %p66
      %s68 = ssub.s32 %s22, %s31
      %p69 = scmp.eq.s32.totalorder %s68, 0
      %s71 = sadd.s32 %s70, 1
      %s72 = scalar_select %p69, %s70, %s71
      %p75 = pneg %p69
      %p76 = scmp.eq.s32.totalorder %s13, 1
      %p77 = por %p75, %p76
      %p78 = scmp.ne.s32.totalorder %s70, %s73
      %p79 = scmp.eq.s32.totalorder %s13, 0
      %p80 = por %p78, %p79
      %p81 = scmp.ne.s32.totalorder %s70, %s73
      %p82 = scmp.eq.s32.totalorder %s18, 1
      %p83 = por %p81, %p82
      %p84 = scmp.ne.s32.totalorder %s73, %s74
      %p85 = scmp.eq.s32.totalorder %s18, 0
      %p86 = por %p84, %p85
      %p87 = scmp.ne.s32.totalorder %s73, %s74
      %p88 = scmp.eq.s32.totalorder %s19, 1
      %p89 = por %p87, %p88
      %p91 = scmp.ne.s32.totalorder %s74, %s90
      %p92 = scmp.eq.s32.totalorder %s19, 0
      %p93 = por %p91, %p92
      %s94 = ssub.s32 %s22, %s31
      %p95 = scmp.eq.s32.totalorder %s94, 0
      %s97 = sadd.s32 %s96, 1
      %s98 = scalar_select %p95, %s96, %s97
      %p101 = pneg %p95
      %p102 = scmp.eq.s32.totalorder %s13, 1
      %p103 = por %p101, %p102
      %p104 = scmp.ne.s32.totalorder %s96, %s99
      %p105 = scmp.eq.s32.totalorder %s13, 0
      %p106 = por %p104, %p105
      %p107 = scmp.ne.s32.totalorder %s96, %s99
      %p108 = scmp.eq.s32.totalorder %s18, 1
      %p109 = por %p107, %p108
      %p110 = scmp.ne.s32.totalorder %s99, %s100
      %p111 = scmp.eq.s32.totalorder %s18, 0
      %p112 = por %p110, %p111
      %p113 = scmp.ne.s32.totalorder %s99, %s100
      %p114 = scmp.eq.s32.totalorder %s19, 1
      %p115 = por %p113, %p114
      %p117 = scmp.ne.s32.totalorder %s100, %s116
      %p118 = scmp.eq.s32.totalorder %s19, 0
      %p119 = por %p117, %p118
      %s120 = ssub.s32 %s20, %s39
      %s121 = ssub.s32 %s21, %s35
      %s122 = sor.u32 %s120, %s121
      %s123 = ssub.s32 %s22, %s31
      %s124 = sor.u32 %s122, %s123
      %p125 = scmp.eq.s32.totalorder %s124, 0
      %s127 = sadd.s32 %s126, 1
      %s128 = scalar_select %p125, %s126, %s127
      %p131 = pneg %p125
      %p132 = scmp.eq.s32.totalorder %s13, 1
      %p133 = por %p131, %p132
      %p134 = scmp.ne.s32.totalorder %s126, %s129
      %p135 = scmp.eq.s32.totalorder %s13, 0
      %p136 = por %p134, %p135
      %p137 = scmp.ne.s32.totalorder %s126, %s129
      %p138 = scmp.eq.s32.totalorder %s18, 1
      %p139 = por %p137, %p138
      %p140 = scmp.ne.s32.totalorder %s129, %s130
      %p141 = scmp.eq.s32.totalorder %s18, 0
      %p142 = por %p140, %p141
      %p143 = scmp.ne.s32.totalorder %s129, %s130
      %p144 = scmp.eq.s32.totalorder %s19, 1
      %p145 = por %p143, %p144
      %p147 = scmp.ne.s32.totalorder %s130, %s146
      %p148 = scmp.eq.s32.totalorder %s19, 0
      %p149 = por %p147, %p148
      %s150 = ssub.s32 %s20, %s39
      %s151 = ssub.s32 %s21, %s35
      %s152 = sor.u32 %s150, %s151
      %s153 = ssub.s32 %s22, %s31
      %s154 = sor.u32 %s152, %s153
      %p155 = scmp.eq.s32.totalorder %s154, 0
      %s157 = sadd.s32 %s156, 1
      %s158 = scalar_select %p155, %s156, %s157
      %p161 = pneg %p155
      %p162 = scmp.eq.s32.totalorder %s13, 1
      %p163 = por %p161, %p162
      %p164 = scmp.ne.s32.totalorder %s156, %s159
      %p165 = scmp.eq.s32.totalorder %s13, 0
      %p166 = por %p164, %p165
      %p167 = scmp.ne.s32.totalorder %s156, %s159
      %p168 = scmp.eq.s32.totalorder %s18, 1
      %p169 = por %p167, %p168
      %p170 = scmp.ne.s32.totalorder %s159, %s160
      %p171 = scmp.eq.s32.totalorder %s18, 0
      %p172 = por %p170, %p171
      %p173 = scmp.ne.s32.totalorder %s159, %s160
      %p174 = scmp.eq.s32.totalorder %s19, 1
      %p175 = por %p173, %p174
      %p177 = scmp.ne.s32.totalorder %s160, %s176
      %p178 = scmp.eq.s32.totalorder %s19, 0
      %p179 = por %p177, %p178
      %p180 = scmp.le.s32.totalorder 1, %s13
      %p181 = scmp.lt.s32.totalorder %s13, 3
      %p182 = pnand %p180, %p181
      %p183 = pneg %p182
      // Predicated region
      $region9: #{joint_transformer_block_with_envmap.21} parent=5 // pred_check
        _
      $region10: #{joint_transformer_block_with_envmap.21} parent=5 // pred_check_branch
        %185 = sbr.rel (%p182) target = $region12
      $region11: #{joint_transformer_block_with_envmap.21} parent=5 // pred_region
        %s186 = ssub.s32 %s13, 1
        // Predicated region
        $region13: #{joint_transformer_block_with_envmap.21} parent=11 // pred_check
          %p187 = pneg %p86
        $region14: #{joint_transformer_block_with_envmap.21} parent=11 // pred_check_branch
          %189 = sbr.rel (%p187) target = $region16
        $region15: #{joint_transformer_block_with_envmap.21} parent=11 // pred_region
          %p190 = scmp.lt.s32.totalorder %s25, 0
          %s191 = scalar_select %p190, %s25, 0
          %s192 = smul.addr %s191, 4
          %s193 = scalar_lea.vmem %s1, %s192
        $region16: #{joint_transformer_block_with_envmap.21} parent=11 // pred_fallthru
          _
        // Predicated region
        $region17: #{joint_transformer_block_with_envmap.21} parent=11 // pred_check
          %p194 = pneg %p112
        $region18: #{joint_transformer_block_with_envmap.21} parent=11 // pred_check_branch
          %196 = sbr.rel (%p194) target = $region20
        $region19: #{joint_transformer_block_with_envmap.21} parent=11 // pred_region
          %p197 = scmp.lt.s32.totalorder %s25, 0
          %s198 = scalar_select %p197, %s25, 0
          %s199 = scalar_lea.vmem %s2, %s198
        $region20: #{joint_transformer_block_with_envmap.21} parent=11 // pred_fallthru
          _
      $region12: #{joint_transformer_block_with_envmap.21} parent=5 // pred_fallthru
        _
      %p200 = scmp.lt.s32.totalorder %s13, 2
      // Predicated region
      $region21: #{joint_transformer_block_with_envmap.21} parent=5 // pred_check
        %p201 = pneg %p200
      $region22: #{joint_transformer_block_with_envmap.21} parent=5 // pred_check_branch
        %203 = sbr.rel (%p201) target = $region24
      $region23: #{joint_transformer_block_with_envmap.21} parent=5 // pred_region
        // Predicated region
        $region25: #{joint_transformer_block_with_envmap.21} parent=23 // pred_check
          %p204 = pneg %p54
        $region26: #{joint_transformer_block_with_envmap.21} parent=23 // pred_check_branch
          %206 = sbr.rel (%p204) target = $region28
        $region27: #{joint_transformer_block_with_envmap.21} parent=23 // pred_region
          %p207 = scmp.lt.s32.totalorder %s20, 1
          %s208 = scalar_select %p207, %s20, 1
          %p209 = scmp.lt.s32.totalorder %s21, 0
          %s210 = scalar_select %p209, %s21, 0
          %s211 = sadd.s32 %s210, %s208
          %s212 = smul.addr %s211, 4
          %s213 = scalar_lea.vmem %s0, %s212
        $region28: #{joint_transformer_block_with_envmap.21} parent=23 // pred_fallthru
          _
        // Predicated region
        $region29: #{joint_transformer_block_with_envmap.21} parent=23 // pred_check
          %p214 = pneg %p136
        $region30: #{joint_transformer_block_with_envmap.21} parent=23 // pred_check_branch
          %216 = sbr.rel (%p214) target = $region32
        $region31: #{joint_transformer_block_with_envmap.21} parent=23 // pred_region
          %p217 = scmp.lt.s32.totalorder %s20, 1
          %s218 = scalar_select %p217, %s20, 1
          %p219 = scmp.lt.s32.totalorder %s21, 0
          %s220 = scalar_select %p219, %s21, 0
          %p221 = scmp.lt.s32.totalorder %s22, 0
          %s222 = scalar_select %p221, %s22, 0
          %s223 = sadd.s32 %s222, %s220
          %s224 = sadd.s32 %s223, %s218
          %s225 = smul.addr %s224, 4
          %s226 = scalar_lea.vmem %s3, %s225
        $region32: #{joint_transformer_block_with_envmap.21} parent=23 // pred_fallthru
          _
      $region24: #{joint_transformer_block_with_envmap.21} parent=5 // pred_fallthru
        _
      %p227 = scmp.le.s32.totalorder 1, %s13
      %p228 = scmp.lt.s32.totalorder %s13, 3
      %p229 = pnand %p227, %p228
      %p230 = pneg %p229
      // Predicated region
      $region33: #{joint_transformer_block_with_envmap.21} parent=5 // pred_check
        _
      $region34: #{joint_transformer_block_with_envmap.21} parent=5 // pred_check_branch
        %232 = sbr.rel (%p229) target = $region36
      $region35: #{joint_transformer_block_with_envmap.21} parent=5 // pred_region
        %s233 = ssub.s32 %s13, 1
        %p234 = scmp.lt.s32.totalorder %s23, 1
        %s235 = scalar_select %p234, %s23, 1
        %p236 = scmp.lt.s32.totalorder %s24, 0
        %s237 = scalar_select %p236, %s24, 0
        %s238 = sadd.s32 %s237, %s235
        %s239 = smul.addr %s238, 4
        %s240 = scalar_lea.vmem %s0, %s239
        %p241 = pneg %p60
        %p242 = pneg %p57
        %p243 = scmp.lt.s32.totalorder %s25, 0
        %s244 = scalar_select %p243, %s25, 0
        %s245 = smul.addr %s244, 4
        %s246 = scalar_lea.vmem %s1, %s245
        %p247 = pneg %p86
        %p248 = pneg %p83
        %p249 = scmp.lt.s32.totalorder %s25, 0
        %s250 = scalar_select %p249, %s25, 0
        %s251 = scalar_lea.vmem %s2, %s250
        %p252 = pneg %p112
        %p253 = pneg %p109
        %p254 = scmp.lt.s32.totalorder %s23, 1
        %s255 = scalar_select %p254, %s23, 1
        %p256 = scmp.lt.s32.totalorder %s24, 0
        %s257 = scalar_select %p256, %s24, 0
        %p258 = scmp.lt.s32.totalorder %s25, 0
        %s259 = scalar_select %p258, %s25, 0
        %s260 = sadd.s32 %s259, %s257
        %s261 = sadd.s32 %s260, %s255
        %s262 = smul.addr %s261, 4
        %s263 = scalar_lea.vmem %s3, %s262
        %p264 = pneg %p142
        %p265 = pneg %p139
        %p266 = pneg %p172
        %p267 = pneg %p169
        %s268 = sand.u32 %s159, 1
        %s269 = scalar_lea.sflag [#allocation3], %s268
        %s270 = sand.u32 %s159, 1
        %s271 = smul.addr %s270, 8
        %s272 = scalar_lea.vmem [#allocation2], %s271
        %p273 = scmp.lt.s32.totalorder %s23, 1
        %s274 = scalar_select %p273, %s23, 1
        %p275 = scmp.lt.s32.totalorder %s24, 0
        %s276 = scalar_select %p275, %s24, 0
        %s277 = sadd.s32 %s276, %s274
        %s278 = smul.addr %s277, 4
        %s279 = scalar_lea.vmem %s0, %s278
        %p280 = scmp.lt.s32.totalorder %s25, 0
        %s281 = scalar_select %p280, %s25, 0
        %s282 = smul.addr %s281, 4
        %s283 = scalar_lea.vmem %s1, %s282
        %p284 = scmp.lt.s32.totalorder %s25, 0
        %s285 = scalar_select %p284, %s25, 0
        %s286 = scalar_lea.vmem %s2, %s285
        %p287 = scmp.lt.s32.totalorder %s23, 1
        %s288 = scalar_select %p287, %s23, 1
        %p289 = scmp.lt.s32.totalorder %s24, 0
        %s290 = scalar_select %p289, %s24, 0
        %p291 = scmp.lt.s32.totalorder %s25, 0
        %s292 = scalar_select %p291, %s25, 0
        %s293 = sadd.s32 %s292, %s290
        %s294 = sadd.s32 %s293, %s288
        %s295 = smul.addr %s294, 4
        %s296 = scalar_lea.vmem %s3, %s295
        %v298 = vld [vmem:[%s279] sm:$0xf]
        %v299 = vld [vmem:[%s283] sm:$0xf]
        %v300 = vld [vmem:[%s283 + $0x4] sm:$0xf]
        %v301 = vld [vmem:[%s283 + $0x8] sm:$0xf]
        %v302 = vld [vmem:[%s283 + $0xc] sm:$0xf]
        %v303 = vld [vmem:[%s286] sm:$0x1]
        %v305 = vlaneseq
        %v306 = vshrl.u32 %v305, 7
        %v307 = vsub.s32 0, %v306
        %v308 = vrot.slane %v303, %v307
        %v314 = vunpack.c.l.b16 %v299
        %v315 = vunpack.c.l.b16 %v300
        %v316 = vunpack.c.l.b16 %v301
        %v317 = vunpack.c.l.b16 %v302
        %v318 = vpack.c.b16 %v315, %v314
        %v319 = vpack.c.b16 %v317, %v316
        %vm322 = vcmask 261120
        %v324 = vsel %vm322, %v298, 0
        %326 = vmatprep.subr.bf16.mxu0 0
        %327 = vmatpush1.bf16.msra.mxu0 %v318
        %328 = vmatprep.subr.bf16.mxu0 0
        %329 = vmatpush1.bf16.msra.mxu0 %v319
        %330 = vmatprep.subr.bf16.mxu0 0
        %331 = vmatpush1.bf16.msra.mxu0 0
        %332 = vmatprep.subr.bf16.mxu0 0
        %333 = vmatpush1.bf16.msra.mxu0 0
        %334 = vmatprep.subr.bf16.mxu0 0
        %335 = vmatpush1.bf16.msra.mxu0 0
        %336 = vmatprep.subr.bf16.mxu0 0
        %337 = vmatpush1.bf16.msra.mxu0 0
        %338 = vmatprep.subr.bf16.mxu0 0
        %339 = vmatpush1.bf16.msra.mxu0 0
        %340 = vmatprep.subr.bf16.mxu0 0
        %341 = vmatpush1.bf16.msra.mxu0 0
        %342 = vmatprep.subr.bf16.mxu0 0
        %343 = vmatpush1.bf16.msra.mxu0 0
        %344 = vmatprep.subr.bf16.mxu0 0
        %345 = vmatpush1.bf16.msra.mxu0 0
        %346 = vmatprep.subr.bf16.mxu0 0
        %347 = vmatpush1.bf16.msra.mxu0 0
        %348 = vmatprep.subr.bf16.mxu0 0
        %349 = vmatpush1.bf16.msra.mxu0 0
        %350 = vmatprep.subr.bf16.mxu0 0
        %351 = vmatpush1.bf16.msra.mxu0 0
        %352 = vmatprep.subr.bf16.mxu0 0
        %353 = vmatpush1.bf16.msra.mxu0 0
        %354 = vmatprep.subr.bf16.mxu0 0
        %355 = vmatpush1.bf16.msra.mxu0 0
        %356 = vmatprep.subr.bf16.mxu0 0
        %357 = vmatpush1.bf16.msra.mxu0 0
        %358 = vmatprep.mubr.bf16.mxu0 0
        %359 = vmatmul.mubr.bf16.gmra.mrb[0].mxu0 %v324
        %v360 = vpop.f32.mrb[0].mxu0
        %v361 = vadd.f32 %v308, %v360
        %v362 = vpop.f32.mrb[0].mxu0
        %v363 = vpop.f32.mrb[0].mxu0
        %v364 = vpop.f32.mrb[0].mxu0
        %365 = vdwg.mxu0
        %v366 = vld [vmem:[%s296] sm:$0xf]
        %v367 = vunpack.c.l.bf16 %v366
        %v368 = vadd.f32 %v367, %v361
        %369 = vst.msk [vmem:[%s272] sm:$0xff] %vm322, %v368
        %s370 = sand.u32 %s159, 1
        %s371 = scalar_lea.sflag [#allocation3], %s370
        %s372 = sand.u32 %s159, 1
        %s373 = smul.addr %s372, 8
        %s374 = scalar_lea.vmem [#allocation2], %s373
        // Predicated region
        $region37: #{joint_transformer_block_with_envmap.21} parent=35 // pred_check
          %p375 = pneg %p169
        $region38: #{joint_transformer_block_with_envmap.21} parent=35 // pred_check_branch
          %377 = sbr.rel (%p375) target = $region40
        $region39: #{joint_transformer_block_with_envmap.21} parent=35 // pred_region
          %s379 = ssub.s32 128, 128
          %380 = vsyncadd %s371, %s379
          %s381 = sadd.s32 %s25, %s24
          %s382 = sadd.s32 %s381, %s23
          %s383 = smul.addr %s382, 128
          %s384 = scalar_lea.hbm %s4, %s383
          %s386 = sshll.u32 %s374, 4
          %s387 = int_to_ptr.vmem [resolvable:$true] %s386
          %389 = dma.vmem_to_hbm [thread:$0]  %s387, 128, %s384, %s371
        $region40: #{joint_transformer_block_with_envmap.21} parent=35 // pred_fallthru
          _
      $region36: #{joint_transformer_block_with_envmap.21} parent=5 // pred_fallthru
        _
      %p390 = scmp.le.s32.totalorder 2, %s13
      // Predicated region
      $region41: #{joint_transformer_block_with_envmap.21} parent=5 // pred_check
        %p391 = pneg %p390
      $region42: #{joint_transformer_block_with_envmap.21} parent=5 // pred_check_branch
        %393 = sbr.rel (%p391) target = $region44
      $region43: #{joint_transformer_block_with_envmap.21} parent=5 // pred_region
        %s394 = ssub.s32 %s13, 2
        // Predicated region
        $region45: #{joint_transformer_block_with_envmap.21} parent=43 // pred_check
          %p395 = pneg %p175
        $region46: #{joint_transformer_block_with_envmap.21} parent=43 // pred_check_branch
          %397 = sbr.rel (%p395) target = $region48
        $region47: #{joint_transformer_block_with_envmap.21} parent=43 // pred_region
          %s398 = sand.u32 %s160, 1
          %s399 = scalar_lea.sflag [#allocation3], %s398
          %s400 = sand.u32 %s160, 1
          %s401 = smul.addr %s400, 8
          %s402 = scalar_lea.vmem [#allocation2], %s401
          %403 = dma.done %s399, 128
        $region48: #{joint_transformer_block_with_envmap.21} parent=43 // pred_fallthru
          _
      $region44: #{joint_transformer_block_with_envmap.21} parent=5 // pred_fallthru
        _
    $region6: #{joint_transformer_block_with_envmap.21} parent=1 // loop_footer
      %s17 = sadd.s32 1, %s13
    $region7: #{joint_transformer_block_with_envmap.21} parent=1 // loop_footer_branch
      %12 = sbr.rel target = $region3
    $region8: #{joint_transformer_block_with_envmap.21} parent=1 // loop_exit
      _
    %404 = vsyncpa [#allocation3], 1
    %s405 = scalar_lea.sflag [#allocation3], 1
    %406 = vsyncpa %s405, 1

// kernel: joint_transformer_block_with_envmap.18
$region0: #{joint_transformer_block_with_envmap.18}
  #allocation0 [shape = 'u32[]', space=smem, size = 0x4, offset = 0x4, fixed_abs, tag = 'smem constant byte address 0x4 - core index']
  #allocation1 [shape = 'u32[144,128]{1,0:T(1,128)}', space=vmem, size = 0x12000, scoped, tag = 'internal scratch']
  #allocation2 [shape = 'f32[2,8,1]{2,1,0:T(8,128)}', space=vmem, size = 0x2000, scoped, tag = 'scratch operand']
  #allocation3 [shape = 'f32[2,8,1]{2,1,0:T(8,128)}', space=vmem, size = 0x2000, scoped, tag = 'scratch operand']
  #allocation4 [shape = 'f32[2,8,16]{2,1,0:T(8,128)}', space=vmem, size = 0x2000, scoped, tag = 'scratch operand']
  %s0 = inlined_call_operand.vmem [shape: bf16[2,2,8,16], index: 0, kind: input, shape index: {}]
  %s1 = inlined_call_operand.vmem [shape: bf16[2,2,8,16], index: 1, kind: input, shape index: {}]
  %s2 = inlined_call_operand.vmem [shape: bf16[2,2,8,16], index: 2, kind: input, shape index: {}]
  %s3 = inlined_call_operand.vmem [shape: bf16[2,2,8,16], index: 3, kind: output, shape index: {}]
  %s4 = sld [smem:[#allocation0]]
  $region53: #{joint_transformer_block_with_envmap.18} parent=0
    _
  %s6 = ssub.s32 1, %s4
  %s7 = scalar_select 0, %s6, %s4
  loop: start=0, step=1, limit=4
  $region2: #{joint_transformer_block_with_envmap.18} parent=0 // loop_pre_header
    _
  $region3: #{joint_transformer_block_with_envmap.18} parent=0 // loop_header
    %s9 = sphi 0, %s13
    %p10 = scmp.ge.s32.totalorder %s9, 4
    %s16 = sphi 0, %s35
    %s17 = sphi 0, %s31
    %s18 = sphi 0, %s27
    %s19 = sphi 0, %s16
    %s20 = sphi 0, %s17
    %s21 = sphi 0, %s18
    %s22 = sphi 0, %s19
    %s23 = sphi 0, %s20
    %s24 = sphi 0, %s21
    %s40 = sphi 0, %s42
    %s43 = sphi 0, %s40
    %s44 = sphi 0, %s43
    %s60 = sphi 0, %s44
    %s68 = sphi 0, %s70
    %s71 = sphi 0, %s68
    %s72 = sphi 0, %s71
    %s88 = sphi 0, %s72
    %s96 = sphi 0, %s98
    %s99 = sphi 0, %s96
    %s100 = sphi 0, %s99
    %s116 = sphi 0, %s100
    %s124 = sphi 0, %s126
    %s127 = sphi 0, %s124
    %s128 = sphi 0, %s127
    %s144 = sphi 0, %s128
  $region4: #{joint_transformer_block_with_envmap.18} parent=0 // loop_header_branch
    %12 = sbr.rel (%p10) target = $region8
  $region5: #{joint_transformer_block_with_envmap.18} parent=0 // loop_body
    %s14 = ssub.s32 %s9, 1
    %s15 = ssub.s32 %s9, 2
    %s25 = sadd.s32 1, %s18
    %p26 = scmp.ge.s32.totalorder %s25, 1
    %s27 = scalar_select %p26, 0, %s25
    %s28 = sadd.s32 1, %s17
    %s29 = scalar_select %p26, %s28, %s17
    %p30 = scmp.ge.s32.totalorder %s29, 1
    %s31 = scalar_select %p30, 0, %s29
    %s32 = sadd.s32 1, %s16
    %s33 = scalar_select %p30, %s32, %s16
    %p34 = scmp.ge.s32.totalorder %s33, 2
    %s35 = scalar_select %p34, 0, %s33
    %s36 = ssub.s32 %s16, %s35
    %s37 = ssub.s32 %s17, %s31
    %s38 = sor.u32 %s36, %s37
    %p39 = scmp.eq.s32.totalorder %s38, 0
    %s41 = sadd.s32 %s40, 1
    %s42 = scalar_select %p39, %s40, %s41
    %p45 = pneg %p39
    %p46 = scmp.eq.s32.totalorder %s9, 1
    %p47 = por %p45, %p46
    %p48 = scmp.ne.s32.totalorder %s40, %s43
    %p49 = scmp.eq.s32.totalorder %s9, 0
    %p50 = por %p48, %p49
    %p51 = scmp.ne.s32.totalorder %s40, %s43
    %p52 = scmp.eq.s32.totalorder %s14, 1
    %p53 = por %p51, %p52
    %p54 = scmp.ne.s32.totalorder %s43, %s44
    %p55 = scmp.eq.s32.totalorder %s14, 0
    %p56 = por %p54, %p55
    %p57 = scmp.ne.s32.totalorder %s43, %s44
    %p58 = scmp.eq.s32.totalorder %s15, 1
    %p59 = por %p57, %p58
    %p61 = scmp.ne.s32.totalorder %s44, %s60
    %p62 = scmp.eq.s32.totalorder %s15, 0
    %p63 = por %p61, %p62
    %s64 = ssub.s32 %s16, %s35
    %s65 = ssub.s32 %s18, %s27
    %s66 = sor.u32 %s64, %s65
    %p67 = scmp.eq.s32.totalorder %s66, 0
    %s69 = sadd.s32 %s68, 1
    %s70 = scalar_select %p67, %s68, %s69
    %p73 = pneg %p67
    %p74 = scmp.eq.s32.totalorder %s9, 1
    %p75 = por %p73, %p74
    %p76 = scmp.ne.s32.totalorder %s68, %s71
    %p77 = scmp.eq.s32.totalorder %s9, 0
    %p78 = por %p76, %p77
    %p79 = scmp.ne.s32.totalorder %s68, %s71
    %p80 = scmp.eq.s32.totalorder %s14, 1
    %p81 = por %p79, %p80
    %p82 = scmp.ne.s32.totalorder %s71, %s72
    %p83 = scmp.eq.s32.totalorder %s14, 0
    %p84 = por %p82, %p83
    %p85 = scmp.ne.s32.totalorder %s71, %s72
    %p86 = scmp.eq.s32.totalorder %s15, 1
    %p87 = por %p85, %p86
    %p89 = scmp.ne.s32.totalorder %s72, %s88
    %p90 = scmp.eq.s32.totalorder %s15, 0
    %p91 = por %p89, %p90
    %s92 = ssub.s32 %s16, %s35
    %s93 = ssub.s32 %s18, %s27
    %s94 = sor.u32 %s92, %s93
    %p95 = scmp.eq.s32.totalorder %s94, 0
    %s97 = sadd.s32 %s96, 1
    %s98 = scalar_select %p95, %s96, %s97
    %p101 = pneg %p95
    %p102 = scmp.eq.s32.totalorder %s9, 1
    %p103 = por %p101, %p102
    %p104 = scmp.ne.s32.totalorder %s96, %s99
    %p105 = scmp.eq.s32.totalorder %s9, 0
    %p106 = por %p104, %p105
    %p107 = scmp.ne.s32.totalorder %s96, %s99
    %p108 = scmp.eq.s32.totalorder %s14, 1
    %p109 = por %p107, %p108
    %p110 = scmp.ne.s32.totalorder %s99, %s100
    %p111 = scmp.eq.s32.totalorder %s14, 0
    %p112 = por %p110, %p111
    %p113 = scmp.ne.s32.totalorder %s99, %s100
    %p114 = scmp.eq.s32.totalorder %s15, 1
    %p115 = por %p113, %p114
    %p117 = scmp.ne.s32.totalorder %s100, %s116
    %p118 = scmp.eq.s32.totalorder %s15, 0
    %p119 = por %p117, %p118
    %s120 = ssub.s32 %s16, %s35
    %s121 = ssub.s32 %s17, %s31
    %s122 = sor.u32 %s120, %s121
    %p123 = scmp.eq.s32.totalorder %s122, 0
    %s125 = sadd.s32 %s124, 1
    %s126 = scalar_select %p123, %s124, %s125
    %p129 = pneg %p123
    %p130 = scmp.eq.s32.totalorder %s9, 1
    %p131 = por %p129, %p130
    %p132 = scmp.ne.s32.totalorder %s124, %s127
    %p133 = scmp.eq.s32.totalorder %s9, 0
    %p134 = por %p132, %p133
    %p135 = scmp.ne.s32.totalorder %s124, %s127
    %p136 = scmp.eq.s32.totalorder %s14, 1
    %p137 = por %p135, %p136
    %p138 = scmp.ne.s32.totalorder %s127, %s128
    %p139 = scmp.eq.s32.totalorder %s14, 0
    %p140 = por %p138, %p139
    %p141 = scmp.ne.s32.totalorder %s127, %s128
    %p142 = scmp.eq.s32.totalorder %s15, 1
    %p143 = por %p141, %p142
    %p145 = scmp.ne.s32.totalorder %s128, %s144
    %p146 = scmp.eq.s32.totalorder %s15, 0
    %p147 = por %p145, %p146
    %p148 = scmp.le.s32.totalorder 1, %s9
    %p149 = scmp.lt.s32.totalorder %s9, 3
    %p150 = pnand %p148, %p149
    %p151 = pneg %p150
    // Predicated region
    $region9: #{joint_transformer_block_with_envmap.18} parent=5 // pred_check
      _
    $region10: #{joint_transformer_block_with_envmap.18} parent=5 // pred_check_branch
      %153 = sbr.rel (%p150) target = $region12
    $region11: #{joint_transformer_block_with_envmap.18} parent=5 // pred_region
      %s154 = ssub.s32 %s9, 1
    $region12: #{joint_transformer_block_with_envmap.18} parent=5 // pred_fallthru
      _
    %p155 = scmp.lt.s32.totalorder %s9, 2
    // Predicated region
    $region13: #{joint_transformer_block_with_envmap.18} parent=5 // pred_check
      %p156 = pneg %p155
    $region14: #{joint_transformer_block_with_envmap.18} parent=5 // pred_check_branch
      %158 = sbr.rel (%p156) target = $region16
    $region15: #{joint_transformer_block_with_envmap.18} parent=5 // pred_region
      // Predicated region
      $region17: #{joint_transformer_block_with_envmap.18} parent=15 // pred_check
        %p159 = pneg %p50
      $region18: #{joint_transformer_block_with_envmap.18} parent=15 // pred_check_branch
        %161 = sbr.rel (%p159) target = $region20
      $region19: #{joint_transformer_block_with_envmap.18} parent=15 // pred_region
        %p162 = scmp.lt.s32.totalorder %s16, 1
        %s163 = scalar_select %p162, %s16, 1
        %p164 = scmp.lt.s32.totalorder %s17, 0
        %s165 = scalar_select %p164, %s17, 0
        %s166 = smul.addr %s163, 2
        %s167 = sadd.s32 %s165, %s166
        %s168 = smul.addr %s167, 4
        %s169 = scalar_lea.vmem %s0, %s168
      $region20: #{joint_transformer_block_with_envmap.18} parent=15 // pred_fallthru
        _
      // Predicated region
      $region21: #{joint_transformer_block_with_envmap.18} parent=15 // pred_check
        %p170 = pneg %p78
      $region22: #{joint_transformer_block_with_envmap.18} parent=15 // pred_check_branch
        %172 = sbr.rel (%p170) target = $region24
      $region23: #{joint_transformer_block_with_envmap.18} parent=15 // pred_region
        %p173 = scmp.lt.s32.totalorder %s16, 1
        %s174 = scalar_select %p173, %s16, 1
        %p175 = scmp.lt.s32.totalorder %s18, 0
        %s176 = scalar_select %p175, %s18, 0
        %s177 = smul.addr %s174, 2
        %s178 = sadd.s32 %s176, %s177
        %s179 = smul.addr %s178, 4
        %s180 = scalar_lea.vmem %s1, %s179
      $region24: #{joint_transformer_block_with_envmap.18} parent=15 // pred_fallthru
        _
      // Predicated region
      $region25: #{joint_transformer_block_with_envmap.18} parent=15 // pred_check
        %p181 = pneg %p106
      $region26: #{joint_transformer_block_with_envmap.18} parent=15 // pred_check_branch
        %183 = sbr.rel (%p181) target = $region28
      $region27: #{joint_transformer_block_with_envmap.18} parent=15 // pred_region
        %p184 = scmp.lt.s32.totalorder %s16, 1
        %s185 = scalar_select %p184, %s16, 1
        %p186 = scmp.lt.s32.totalorder %s18, 0
        %s187 = scalar_select %p186, %s18, 0
        %s188 = smul.addr %s185, 2
        %s189 = sadd.s32 %s187, %s188
        %s190 = smul.addr %s189, 4
        %s191 = scalar_lea.vmem %s2, %s190
      $region28: #{joint_transformer_block_with_envmap.18} parent=15 // pred_fallthru
        _
    $region16: #{joint_transformer_block_with_envmap.18} parent=5 // pred_fallthru
      _
    %p192 = scmp.le.s32.totalorder 1, %s9
    %p193 = scmp.lt.s32.totalorder %s9, 3
    %p194 = pnand %p192, %p193
    %p195 = pneg %p194
    // Predicated region
    $region29: #{joint_transformer_block_with_envmap.18} parent=5 // pred_check
      _
    $region30: #{joint_transformer_block_with_envmap.18} parent=5 // pred_check_branch
      %197 = sbr.rel (%p194) target = $region32
    $region31: #{joint_transformer_block_with_envmap.18} parent=5 // pred_region
      %s198 = ssub.s32 %s9, 1
      %p199 = scmp.lt.s32.totalorder %s19, 1
      %s200 = scalar_select %p199, %s19, 1
      %p201 = scmp.lt.s32.totalorder %s20, 0
      %s202 = scalar_select %p201, %s20, 0
      %s203 = smul.addr %s200, 2
      %s204 = sadd.s32 %s202, %s203
      %s205 = smul.addr %s204, 4
      %s206 = scalar_lea.vmem %s0, %s205
      %p207 = pneg %p56
      %p208 = pneg %p53
      %p209 = scmp.lt.s32.totalorder %s19, 1
      %s210 = scalar_select %p209, %s19, 1
      %p211 = scmp.lt.s32.totalorder %s21, 0
      %s212 = scalar_select %p211, %s21, 0
      %s213 = smul.addr %s210, 2
      %s214 = sadd.s32 %s212, %s213
      %s215 = smul.addr %s214, 4
      %s216 = scalar_lea.vmem %s1, %s215
      %p217 = pneg %p84
      %p218 = pneg %p81
      %p219 = scmp.lt.s32.totalorder %s19, 1
      %s220 = scalar_select %p219, %s19, 1
      %p221 = scmp.lt.s32.totalorder %s21, 0
      %s222 = scalar_select %p221, %s21, 0
      %s223 = smul.addr %s220, 2
      %s224 = sadd.s32 %s222, %s223
      %s225 = smul.addr %s224, 4
      %s226 = scalar_lea.vmem %s2, %s225
      %p227 = pneg %p112
      %p228 = pneg %p109
      %p229 = pneg %p140
      %p230 = pneg %p137
      %p231 = scmp.lt.s32.totalorder %s19, 1
      %s232 = scalar_select %p231, %s19, 1
      %p233 = scmp.lt.s32.totalorder %s20, 0
      %s234 = scalar_select %p233, %s20, 0
      %s235 = smul.addr %s232, 2
      %s236 = sadd.s32 %s234, %s235
      %s237 = smul.addr %s236, 4
      %s238 = scalar_lea.vmem %s3, %s237
      %p239 = scmp.lt.s32.totalorder %s19, 1
      %s240 = scalar_select %p239, %s19, 1
      %p241 = scmp.lt.s32.totalorder %s20, 0
      %s242 = scalar_select %p241, %s20, 0
      %s243 = smul.addr %s240, 2
      %s244 = sadd.s32 %s242, %s243
      %s245 = smul.addr %s244, 4
      %s246 = scalar_lea.vmem %s0, %s245
      %p247 = scmp.lt.s32.totalorder %s19, 1
      %s248 = scalar_select %p247, %s19, 1
      %p249 = scmp.lt.s32.totalorder %s21, 0
      %s250 = scalar_select %p249, %s21, 0
      %s251 = smul.addr %s248, 2
      %s252 = sadd.s32 %s250, %s251
      %s253 = smul.addr %s252, 4
      %s254 = scalar_lea.vmem %s1, %s253
      %p255 = scmp.lt.s32.totalorder %s19, 1
      %s256 = scalar_select %p255, %s19, 1
      %p257 = scmp.lt.s32.totalorder %s21, 0
      %s258 = scalar_select %p257, %s21, 0
      %s259 = smul.addr %s256, 2
      %s260 = sadd.s32 %s258, %s259
      %s261 = smul.addr %s260, 4
      %s262 = scalar_lea.vmem %s2, %s261
      %p263 = scmp.lt.s32.totalorder %s19, 1
      %s264 = scalar_select %p263, %s19, 1
      %p265 = scmp.lt.s32.totalorder %s20, 0
      %s266 = scalar_select %p265, %s20, 0
      %s267 = smul.addr %s264, 2
      %s268 = sadd.s32 %s266, %s267
      %s269 = smul.addr %s268, 4
      %s270 = scalar_lea.vmem %s3, %s269
      %p272 = scmp.eq.s32.totalorder %s21, 0
      // Predicated region
      $region33: #{joint_transformer_block_with_envmap.18} parent=31 // pred_check
        %p273 = pneg %p272
      $region34: #{joint_transformer_block_with_envmap.18} parent=31 // pred_check_branch
        %275 = sbr.rel (%p273) target = $region36
      $region35: #{joint_transformer_block_with_envmap.18} parent=31 // pred_region
        %vm276 = vcmask 7168
        %277 = vst.msk [vmem:[#allocation2] sm:$0xff] %vm276, -inf
        %278 = vst.msk [vmem:[#allocation2 + $0x8] sm:$0xff] %vm276, -inf
        %279 = vst.msk [vmem:[#allocation3] sm:$0xff] %vm276, 0.0
        %280 = vst.msk [vmem:[#allocation3 + $0x8] sm:$0xff] %vm276, 0.0
        %vm281 = vcmask 130048
        %282 = vst.msk [vmem:[#allocation4] sm:$0xff] %vm281, 0.0
        %283 = vst.msk [vmem:[#allocation4 + $0x8] sm:$0xff] %vm281, 0.0
      $region36: #{joint_transformer_block_with_envmap.18} parent=31 // pred_fallthru
        _
      %v284 = vld [vmem:[%s246] sm:$0xf]
      %v285 = vld [vmem:[%s246 + $0x4] sm:$0xf]
      %v286 = vld [vmem:[%s254] sm:$0xf]
      %v287 = vld [vmem:[%s254 + $0x4] sm:$0xf]
      %v288 = vld [vmem:[%s262] sm:$0xf]
      %v289 = vld [vmem:[%s262 + $0x4] sm:$0xf]
      %vm290 = vcmask 130048
      %v292 = vsel %vm290, %v284, 0
      %v295 = vsel %vm290, %v286, 0
      %297 = vmatprep.subr.bf16.mxu0 0
      %298 = vmatpush1.bf16.xpose.msra.mxu0 %v295
      %299 = vmatprep.subr.bf16.mxu0 0
      %300 = vmatpush1.bf16.xpose.msra.mxu0 0
      %301 = vmatprep.subr.bf16.mxu0 0
      %302 = vmatpush1.bf16.xpose.msra.mxu0 0
      %303 = vmatprep.subr.bf16.mxu0 0
      %304 = vmatpush1.bf16.xpose.msra.mxu0 0
      %305 = vmatprep.subr.bf16.mxu0 0
      %306 = vmatpush1.bf16.xpose.msra.mxu0 0
      %307 = vmatprep.subr.bf16.mxu0 0
      %308 = vmatpush1.bf16.xpose.msra.mxu0 0
      %309 = vmatprep.subr.bf16.mxu0 0
      %310 = vmatpush1.bf16.xpose.msra.mxu0 0
      %311 = vmatprep.subr.bf16.mxu0 0
      %312 = vmatpush1.bf16.xpose.msra.mxu0 0
      %313 = vmatprep.subr.bf16.mxu0 0
      %314 = vmatpush1.bf16.xpose.msra.mxu0 0
      %315 = vmatprep.subr.bf16.mxu0 0
      %316 = vmatpush1.bf16.xpose.msra.mxu0 0
      %317 = vmatprep.subr.bf16.mxu0 0
      %318 = vmatpush1.bf16.xpose.msra.mxu0 0
      %319 = vmatprep.subr.bf16.mxu0 0
      %320 = vmatpush1.bf16.xpose.msra.mxu0 0
      %321 = vmatprep.subr.bf16.mxu0 0
      %322 = vmatpush1.bf16.xpose.msra.mxu0 0
      %323 = vmatprep.subr.bf16.mxu0 0
      %324 = vmatpush1.bf16.xpose.msra.mxu0 0
      %325 = vmatprep.subr.bf16.mxu0 0
      %326 = vmatpush1.bf16.xpose.msra.mxu0 0
      %327 = vmatprep.subr.bf16.mxu0 0
      %328 = vmatpush1.bf16.xpose.msra.mxu0 0
      %329 = vmatprep.mubr.bf16.mxu0 0
      %330 = vmatmul.mubr.bf16.gmra.mrb[0].mxu0 %v292
      %v331 = vpop.f32.mrb[0].mxu0
      %v332 = vadd.f32 0.0, %v331
      %v333 = vpop.f32.mrb[0].mxu0
      %v334 = vpop.f32.mrb[0].mxu0
      %v335 = vpop.f32.mrb[0].mxu0
      %336 = vdwg.mxu0
      %v338 = vsel %vm290, %v285, 0
      %v341 = vsel %vm290, %v287, 0
      %343 = vmatprep.subr.bf16.mxu0 0
      %344 = vmatpush1.bf16.xpose.msra.mxu0 %v341
      %345 = vmatprep.subr.bf16.mxu0 0
      %346 = vmatpush1.bf16.xpose.msra.mxu0 0
      %347 = vmatprep.subr.bf16.mxu0 0
      %348 = vmatpush1.bf16.xpose.msra.mxu0 0
      %349 = vmatprep.subr.bf16.mxu0 0
      %350 = vmatpush1.bf16.xpose.msra.mxu0 0
      %351 = vmatprep.subr.bf16.mxu0 0
      %352 = vmatpush1.bf16.xpose.msra.mxu0 0
      %353 = vmatprep.subr.bf16.mxu0 0
      %354 = vmatpush1.bf16.xpose.msra.mxu0 0
      %355 = vmatprep.subr.bf16.mxu0 0
      %356 = vmatpush1.bf16.xpose.msra.mxu0 0
      %357 = vmatprep.subr.bf16.mxu0 0
      %358 = vmatpush1.bf16.xpose.msra.mxu0 0
      %359 = vmatprep.subr.bf16.mxu0 0
      %360 = vmatpush1.bf16.xpose.msra.mxu0 0
      %361 = vmatprep.subr.bf16.mxu0 0
      %362 = vmatpush1.bf16.xpose.msra.mxu0 0
      %363 = vmatprep.subr.bf16.mxu0 0
      %364 = vmatpush1.bf16.xpose.msra.mxu0 0
      %365 = vmatprep.subr.bf16.mxu0 0
      %366 = vmatpush1.bf16.xpose.msra.mxu0 0
      %367 = vmatprep.subr.bf16.mxu0 0
      %368 = vmatpush1.bf16.xpose.msra.mxu0 0
      %369 = vmatprep.subr.bf16.mxu0 0
      %370 = vmatpush1.bf16.xpose.msra.mxu0 0
      %371 = vmatprep.subr.bf16.mxu0 0
      %372 = vmatpush1.bf16.xpose.msra.mxu0 0
      %373 = vmatprep.subr.bf16.mxu0 0
      %374 = vmatpush1.bf16.xpose.msra.mxu0 0
      %375 = vmatprep.mubr.bf16.mxu0 0
      %376 = vmatmul.mubr.bf16.gmra.mrb[0].mxu0 %v338
      %v377 = vpop.f32.mrb[0].mxu0
      %v378 = vadd.f32 0.0, %v377
      %v379 = vpop.f32.mrb[0].mxu0
      %v380 = vpop.f32.mrb[0].mxu0
      %v381 = vpop.f32.mrb[0].mxu0
      %382 = vdwg.mxu0
      %v383 = vld [vmem:[#allocation2] sm:$0xff]
      %v384 = vld [vmem:[#allocation2 + $0x8] sm:$0xff]
      %vm385 = vcmask 64512
      %v386 = vsel %vm385, %v332, -inf
      %387 = vmax.xlane.f32.xlu0 %v386
      %v388 = vpop.xlane.xlu0 %387
      %v389 = vsel %vm385, %v378, -inf
      %390 = vmax.xlane.f32.xlu0 %v389
      %v391 = vpop.xlane.xlu0 %390
      %v392 = vmax.f32 %v383, %v388
      %v393 = vmax.f32 %v384, %v391
      %v394 = vsub.f32 %v383, %v392
      %v395 = vsub.f32 %v384, %v393
      %v396 = vmul.f32 %v394, 1.442695
      %v397 = vpow.pop %v396
      %v398 = vmul.f32 %v395, 1.442695
      %v399 = vpow.pop %v398
      %401 = vset.pattern.permute.xlu0 0
      %402 = vperm.xlu0 %401, %v392
      %v403 = vpop.permute.xlu0 %402
      %406 = vset.pattern.permute.xlu0 0
      %407 = vperm.xlu0 %406, %v393
      %v408 = vpop.permute.xlu0 %407
      %v410 = vsub.f32 %v332, %v403
      %v411 = vsub.f32 %v378, %v408
      %v412 = vmul.f32 %v410, 1.442695
      %v413 = vpow.pop %v412
      %v414 = vmul.f32 %v411, 1.442695
      %v415 = vpow.pop %v414
      %v416 = vld [vmem:[#allocation3] sm:$0xff]
      %v417 = vld [vmem:[#allocation3 + $0x8] sm:$0xff]
      %v418 = vmul.f32 %v397, %v416
      %v419 = vmul.f32 %v399, %v417
      %v420 = vsel %vm385, %v413, 0.0
      %421 = vadd.xlane.f32.xlu0 %v420
      %v422 = vpop.xlane.xlu0 %421
      %v423 = vsel %vm385, %v415, 0.0
      %424 = vadd.xlane.f32.xlu0 %v423
      %v425 = vpop.xlane.xlu0 %424
      %v426 = vadd.f32 %v418, %v422
      %v427 = vadd.f32 %v419, %v425
      %vm428 = vcmask 7168
      %429 = vst.msk [vmem:[#allocation3] sm:$0xff] %vm428, %v426
      %430 = vst.msk [vmem:[#allocation3 + $0x8] sm:$0xff] %vm428, %v427
      %v431 = vpack.c.bf16 %v413, %v413
      %v432 = vpack.c.bf16 %v415, %v415
      %v434 = vsel %vm385, %v431, 0
      %vm436 = vcmask 1043456
      %v438 = vsel %vm436, %v288, 0
      %440 = vmatprep.subr.bf16.mxu0 0
      %441 = vmatpush1.bf16.msra.mxu0 %v438
      %442 = vmatprep.subr.bf16.mxu0 0
      %443 = vmatpush1.bf16.msra.mxu0 0
      %444 = vmatprep.subr.bf16.mxu0 0
      %445 = vmatpush1.bf16.msra.mxu0 0
      %446 = vmatprep.subr.bf16.mxu0 0
      %447 = vmatpush1.bf16.msra.mxu0 0
      %448 = vmatprep.subr.bf16.mxu0 0
      %449 = vmatpush1.bf16.msra.mxu0 0
      %450 = vmatprep.subr.bf16.mxu0 0
      %451 = vmatpush1.bf16.msra.mxu0 0
      %452 = vmatprep.subr.bf16.mxu0 0
      %453 = vmatpush1.bf16.msra.mxu0 0
      %454 = vmatprep.subr.bf16.mxu0 0
      %455 = vmatpush1.bf16.msra.mxu0 0
      %456 = vmatprep.subr.bf16.mxu0 0
      %457 = vmatpush1.bf16.msra.mxu0 0
      %458 = vmatprep.subr.bf16.mxu0 0
      %459 = vmatpush1.bf16.msra.mxu0 0
      %460 = vmatprep.subr.bf16.mxu0 0
      %461 = vmatpush1.bf16.msra.mxu0 0
      %462 = vmatprep.subr.bf16.mxu0 0
      %463 = vmatpush1.bf16.msra.mxu0 0
      %464 = vmatprep.subr.bf16.mxu0 0
      %465 = vmatpush1.bf16.msra.mxu0 0
      %466 = vmatprep.subr.bf16.mxu0 0
      %467 = vmatpush1.bf16.msra.mxu0 0
      %468 = vmatprep.subr.bf16.mxu0 0
      %469 = vmatpush1.bf16.msra.mxu0 0
      %470 = vmatprep.subr.bf16.mxu0 0
      %471 = vmatpush1.bf16.msra.mxu0 0
      %472 = vmatprep.mubr.bf16.mxu0 0
      %473 = vmatmul.mubr.bf16.gmra.mrb[0].mxu0 %v434
      %v474 = vpop.f32.mrb[0].mxu0
      %v475 = vadd.f32 0.0, %v474
      %v476 = vpop.f32.mrb[0].mxu0
      %v477 = vpop.f32.mrb[0].mxu0
      %v478 = vpop.f32.mrb[0].mxu0
      %479 = vdwg.mxu0
      %v481 = vsel %vm385, %v432, 0
      %v484 = vsel %vm436, %v289, 0
      %486 = vmatprep.subr.bf16.mxu0 0
      %487 = vmatpush1.bf16.msra.mxu0 %v484
      %488 = vmatprep.subr.bf16.mxu0 0
      %489 = vmatpush1.bf16.msra.mxu0 0
      %490 = vmatprep.subr.bf16.mxu0 0
      %491 = vmatpush1.bf16.msra.mxu0 0
      %492 = vmatprep.subr.bf16.mxu0 0
      %493 = vmatpush1.bf16.msra.mxu0 0
      %494 = vmatprep.subr.bf16.mxu0 0
      %495 = vmatpush1.bf16.msra.mxu0 0
      %496 = vmatprep.subr.bf16.mxu0 0
      %497 = vmatpush1.bf16.msra.mxu0 0
      %498 = vmatprep.subr.bf16.mxu0 0
      %499 = vmatpush1.bf16.msra.mxu0 0
      %500 = vmatprep.subr.bf16.mxu0 0
      %501 = vmatpush1.bf16.msra.mxu0 0
      %502 = vmatprep.subr.bf16.mxu0 0
      %503 = vmatpush1.bf16.msra.mxu0 0
      %504 = vmatprep.subr.bf16.mxu0 0
      %505 = vmatpush1.bf16.msra.mxu0 0
      %506 = vmatprep.subr.bf16.mxu0 0
      %507 = vmatpush1.bf16.msra.mxu0 0
      %508 = vmatprep.subr.bf16.mxu0 0
      %509 = vmatpush1.bf16.msra.mxu0 0
      %510 = vmatprep.subr.bf16.mxu0 0
      %511 = vmatpush1.bf16.msra.mxu0 0
      %512 = vmatprep.subr.bf16.mxu0 0
      %513 = vmatpush1.bf16.msra.mxu0 0
      %514 = vmatprep.subr.bf16.mxu0 0
      %515 = vmatpush1.bf16.msra.mxu0 0
      %516 = vmatprep.subr.bf16.mxu0 0
      %517 = vmatpush1.bf16.msra.mxu0 0
      %518 = vmatprep.mubr.bf16.mxu0 0
      %519 = vmatmul.mubr.bf16.gmra.mrb[0].mxu0 %v481
      %v520 = vpop.f32.mrb[0].mxu0
      %v521 = vadd.f32 0.0, %v520
      %v522 = vpop.f32.mrb[0].mxu0
      %v523 = vpop.f32.mrb[0].mxu0
      %v524 = vpop.f32.mrb[0].mxu0
      %525 = vdwg.mxu0
      %v526 = vld [vmem:[#allocation4] sm:$0xff]
      %v527 = vld [vmem:[#allocation4 + $0x8] sm:$0xff]
      %529 = vset.pattern.permute.xlu0 0
      %530 = vperm.xlu0 %529, %v397
      %v531 = vpop.permute.xlu0 %530
      %534 = vset.pattern.permute.xlu0 0
      %535 = vperm.xlu0 %534, %v399
      %v536 = vpop.permute.xlu0 %535
      %v538 = vmul.f32 %v531, %v526
      %v539 = vmul.f32 %v536, %v527
      %v540 = vadd.f32 %v538, %v475
      %v541 = vadd.f32 %v539, %v521
      %542 = vst.msk [vmem:[#allocation4] sm:$0xff] %vm290, %v540
      %543 = vst.msk [vmem:[#allocation4 + $0x8] sm:$0xff] %vm290, %v541
      %544 = vst.msk [vmem:[#allocation2] sm:$0xff] %vm428, %v392
      %545 = vst.msk [vmem:[#allocation2 + $0x8] sm:$0xff] %vm428, %v393
      // Predicated region
      $region37: #{joint_transformer_block_with_envmap.18} parent=31 // pred_check
        %p546 = pneg %p272
      $region38: #{joint_transformer_block_with_envmap.18} parent=31 // pred_check_branch
        %548 = sbr.rel (%p546) target = $region40
      $region39: #{joint_transformer_block_with_envmap.18} parent=31 // pred_region
        %v549 = vld [vmem:[#allocation3] sm:$0xff]
        %v550 = vld [vmem:[#allocation3 + $0x8] sm:$0xff]
        %v551 = vrcp.pop %v549
        %v552 = vrcp.pop %v550
        %v553 = vld [vmem:[#allocation4] sm:$0xff]
        %v554 = vld [vmem:[#allocation4 + $0x8] sm:$0xff]
        %556 = vset.pattern.permute.xlu0 0
        %557 = vperm.xlu0 %556, %v551
        %v558 = vpop.permute.xlu0 %557
        %561 = vset.pattern.permute.xlu0 0
        %562 = vperm.xlu0 %561, %v552
        %v563 = vpop.permute.xlu0 %562
        %v565 = vmul.f32 %v553, %v558
        %v566 = vmul.f32 %v554, %v563
        %v567 = vpack.c.bf16 %v565, %v565
        %v568 = vpack.c.bf16 %v566, %v566
        %vm569 = vcmask 125952
        %570 = vst.msk [vmem:[%s270] sm:$0xf] %vm569, %v567
        %571 = vst.msk [vmem:[%s270 + $0x4] sm:$0xf] %vm569, %v568
      $region40: #{joint_transformer_block_with_envmap.18} parent=31 // pred_fallthru
        _
      %p572 = scmp.lt.s32.totalorder %s19, 1
      %s573 = scalar_select %p572, %s19, 1
      %p574 = scmp.lt.s32.totalorder %s20, 0
      %s575 = scalar_select %p574, %s20, 0
      %s576 = smul.addr %s573, 2
      %s577 = sadd.s32 %s575, %s576
      %s578 = smul.addr %s577, 4
      %s579 = scalar_lea.vmem %s3, %s578
      // Predicated region
      $region41: #{joint_transformer_block_with_envmap.18} parent=31 // pred_check
        %p580 = pneg %p137
      $region42: #{joint_transformer_block_with_envmap.18} parent=31 // pred_check_branch
        %582 = sbr.rel (%p580) target = $region44
      $region43: #{joint_transformer_block_with_envmap.18} parent=31 // pred_region
        _
      $region44: #{joint_transformer_block_with_envmap.18} parent=31 // pred_fallthru
        _
    $region32: #{joint_transformer_block_with_envmap.18} parent=5 // pred_fallthru
      _
    %p583 = scmp.le.s32.totalorder 2, %s9
    // Predicated region
    $region45: #{joint_transformer_block_with_envmap.18} parent=5 // pred_check
      %p584 = pneg %p583
    $region46: #{joint_transformer_block_with_envmap.18} parent=5 // pred_check_branch
      %586 = sbr.rel (%p584) target = $region48
    $region47: #{joint_transformer_block_with_envmap.18} parent=5 // pred_region
      %s587 = ssub.s32 %s9, 2
      // Predicated region
      $region49: #{joint_transformer_block_with_envmap.18} parent=47 // pred_check
        %p588 = pneg %p143
      $region50: #{joint_transformer_block_with_envmap.18} parent=47 // pred_check_branch
        %590 = sbr.rel (%p588) target = $region52
      $region51: #{joint_transformer_block_with_envmap.18} parent=47 // pred_region
        %p591 = scmp.lt.s32.totalorder %s22, 1
        %s592 = scalar_select %p591, %s22, 1
        %p593 = scmp.lt.s32.totalorder %s23, 0
        %s594 = scalar_select %p593, %s23, 0
        %s595 = smul.addr %s592, 2
        %s596 = sadd.s32 %s594, %s595
        %s597 = smul.addr %s596, 4
        %s598 = scalar_lea.vmem %s3, %s597
      $region52: #{joint_transformer_block_with_envmap.18} parent=47 // pred_fallthru
        _
    $region48: #{joint_transformer_block_with_envmap.18} parent=5 // pred_fallthru
      _
  $region6: #{joint_transformer_block_with_envmap.18} parent=0 // loop_footer
    %s13 = sadd.s32 1, %s9
  $region7: #{joint_transformer_block_with_envmap.18} parent=0 // loop_footer_branch
    %8 = sbr.rel target = $region3
  $region8: #{joint_transformer_block_with_envmap.18} parent=0 // loop_exit
    _

</llo_original>
